<compile_context>
chip_gen: v6e
topology: v6e:2x2x1
jax: 0.10.0
libtpu: 0.0.40
codegen_flags: <defaults>
</compile_context>

<pallas_src>
import numpy as np
import jax
import jax.numpy as jnp
from jax.experimental import pallas as pl
from jax.experimental.pallas import tpu as pltpu


def _repeat_rows(x, k):
    """(R, N) -> (R*k, N): each row repeated k times consecutively (sublane repeat)."""
    r, n = x.shape
    return jnp.broadcast_to(x[:, None, :], (r, k, n)).reshape(r * k, n)


def _tile_rows(x, k):
    """(R, N) -> (k*R, N): whole block tiled k times along sublanes."""
    r, n = x.shape
    return jnp.broadcast_to(x[None, :, :], (k, r, n)).reshape(k * r, n)


def _make_kernel(scalings, num_levels, features_per_level, pvr, smoothstep):
    """Builds the Pallas kernel body with all hyper-parameters baked in as constants."""
    mask = pvr - 1                      # power-of-two periodic wrap (== floor-mod)
    assert (pvr & (pvr - 1)) == 0, "periodic_volume_resolution must be a power of two"

    def kernel(pos_ref, table_ref, out_ref):
        # pos_ref:   (3, TN)      f32 lane-major point tile
        # table_ref: (L*F, T)     bf16, rows = (level, feature), lanes = table entry
        # out_ref:   (L*F, TN)    f32 lane-dense output tile
        tn = pos_ref.shape[1]
        F = features_per_level

        px = pos_ref[0:1, :]            # (1, TN)
        py = pos_ref[1:2, :]
        pz = pos_ref[2:3, :]

        # small per-axis lattice iota; pvr = 8 -> exactly one f32 sublane tile
        iota_p = jax.lax.broadcasted_iota(jnp.int32, (pvr, tn), 0)   # (pvr, TN)

        for l in range(num_levels):     # static unroll (L is small)
            s = float(scalings[l])
            sx = px * s
            sy = py * s
            sz = pz * s
            fxf = jnp.floor(sx)
            fyf = jnp.floor(sy)
            fzf = jnp.floor(sz)
            ox = sx - fxf
            oy = sy - fyf
            oz = sz - fzf
            if smoothstep:
                ox = ox * ox * (3.0 - 2.0 * ox)
                oy = oy * oy * (3.0 - 2.0 * oy)
                oz = oz * oz * (3.0 - 2.0 * oz)

            # periodic wrap of integer lattice coords (power-of-two -> bitwise AND)
            fxm = fxf.astype(jnp.int32) & mask
            fym = fyf.astype(jnp.int32) & mask
            fzm = fzf.astype(jnp.int32) & mask
            cxm = jnp.ceil(sx).astype(jnp.int32) & mask
            cym = jnp.ceil(sy).astype(jnp.int32) & mask
            czm = jnp.ceil(sz).astype(jnp.int32) & mask

            # Separable trilinear weights built at (pvr, TN).  Floor/ceil contributions
            # ADD, so the exact-integer (ceil == floor) case collapses to weight 1 on
            # the single shared entry, matching the reference interpolation.
            wx = (jnp.where(iota_p == fxm, 1.0 - ox, 0.0)
                  + jnp.where(iota_p == cxm, ox, 0.0))               # (pvr, TN)
            wy = (jnp.where(iota_p == fym, 1.0 - oy, 0.0)
                  + jnp.where(iota_p == cym, oy, 0.0))
            wz = (jnp.where(iota_p == fzm, 1.0 - oz, 0.0)
                  + jnp.where(iota_p == czm, oz, 0.0))

            # Expand to the flat table index t = ix*pvr^2 + iy*pvr + iz.
            # Only the last multiply runs at full (T, TN) size.
            wxy = _repeat_rows(wx, pvr) * _tile_rows(wy, pvr)            # (pvr^2, TN)
            w_full = _repeat_rows(wxy, pvr) * _tile_rows(wz, pvr * pvr)  # (T, TN) f32
            w_bf = w_full.astype(jnp.bfloat16)

            # One MXU matmul per level gathers + interpolates: (F, T) @ (T, TN) -> (F, TN)
            res = jnp.dot(table_ref[l * F:(l + 1) * F, :], w_bf,
                          preferred_element_type=jnp.float32)
            out_ref[l * F:(l + 1) * F, :] = res

    return kernel


class PeriodicVolumeEncodingPallas:
    """JAX/Pallas port of PeriodicVolumeEncoding.pytorch_fwd (forward only)."""

    def __init__(self, num_levels=4, min_res=4, max_res=16, log2_hashmap_size=9,
                 features_per_level=2, hash_init_scale=0.001, smoothstep=False,
                 key=None, block_n=512):
        assert log2_hashmap_size % 3 == 0
        self.num_levels = num_levels
        self.features_per_level = features_per_level
        self.hash_table_size = 2 ** log2_hashmap_size
        self.periodic_volume_resolution = 2 ** (log2_hashmap_size // 3)
        self.smoothstep = smoothstep
        assert block_n % 128 == 0, "block_n must be a multiple of 128 (lane-major layout)"
        self.block_n = block_n

        levels = np.arange(num_levels)
        if num_levels > 1:
            growth = np.exp((np.log(max_res) - np.log(min_res)) / (num_levels - 1))
        else:
            growth = 1.0
        self.scalings = np.floor(min_res * growth ** levels)

        if key is None:
            key = jax.random.PRNGKey(0)
        # deterministic synthetic init:  U[0,1) * 2 - 1, scaled by hash_init_scale
        tbl = jax.random.uniform(
            key, (self.hash_table_size * num_levels, features_per_level),
            dtype=jnp.float32) * 2.0 - 1.0
        self.hash_table = tbl * hash_init_scale          # (L*T, F) f32, torch-param layout

        # Lane-major per-level table for the kernel: rows = (level, feature), lanes = entry.
        L, T, F = num_levels, self.hash_table_size, features_per_level
        tbl_lft = jnp.transpose(self.hash_table.reshape(L, T, F), (0, 2, 1))   # (L, F, T)
        self.table_kernel = tbl_lft.reshape(L * F, T).astype(jnp.bfloat16)     # (L*F, T)

    def __call__(self, x):
        assert x.shape[-1] == 3
        batch_shape = x.shape[:-1]
        pts = x.reshape(-1, 3).astype(jnp.float32)
        n = pts.shape[0]
        tn = self.block_n
        n_pad = -(-n // tn) * tn

        pts_t = pts.T                                            # (3, n) lane-major
        if n_pad != n:
            pts_t = jnp.concatenate(
                [pts_t, jnp.zeros((3, n_pad - n), jnp.float32)], axis=1)

        L, F, T = self.num_levels, self.features_per_level, self.hash_table_size
        kernel = _make_kernel(self.scalings, L, F,
                              self.periodic_volume_resolution, self.smoothstep)

        out = pl.pallas_call(
            kernel,
            out_shape=jax.ShapeDtypeStruct((L * F, n_pad), jnp.float32),
            grid_spec=pltpu.PrefetchScalarGridSpec(
                num_scalar_prefetch=0,
                grid=(n_pad // tn,),
                in_specs=[
                    pl.BlockSpec((3, tn), lambda i: (0, i)),        # point tile (lane-major)
                    pl.BlockSpec((L * F, T), lambda i: (0, 0)),     # full table, VMEM-resident
                ],
                out_specs=pl.BlockSpec((L * F, tn), lambda i: (0, i)),
            ),
            compiler_params=pltpu.CompilerParams(
                dimension_semantics=("parallel",),
                vmem_limit_bytes=32 * 1024 * 1024),
        )(pts_t, self.table_kernel)

        # (L*F, n) -> (n, L*F): level-major / feature-minor, == torch.flatten(enc, -2, -1)
        return out[:, :n].T.reshape(*batch_shape, L * F)


def reference_forward(enc, x):
    """Pure-JAX reimplementation of PeriodicVolumeEncoding.pytorch_fwd (for checking)."""
    scalings = jnp.asarray(enc.scalings, dtype=jnp.float32)
    pvr = enc.periodic_volume_resolution
    T = enc.hash_table_size
    L = enc.num_levels
    table = enc.hash_table
    hash_offset = jnp.arange(L, dtype=jnp.int32) * T

    xin = x[..., None, :]                                  # (..., 1, 3)
    scaled = xin * scalings[:, None]                       # (..., L, 3)
    c = jnp.ceil(scaled).astype(jnp.int32)
    f = jnp.floor(scaled).astype(jnp.int32)
    offset = scaled - f
    if enc.smoothstep:
        offset = offset * offset * (3.0 - 2.0 * offset)

    def hash_fn(t):
        t = t % pvr
        h = t[..., 0] * pvr * pvr + t[..., 1] * pvr + t[..., 2]
        return h + hash_offset

    def corner(a, b, cc):
        return jnp.concatenate([a[..., 0:1], b[..., 1:2], cc[..., 2:3]], axis=-1)

    hs = [hash_fn(c),
          hash_fn(corner(c, f, c)),
          hash_fn(corner(f, f, c)),
          hash_fn(corner(f, c, c)),
          hash_fn(corner(c, c, f)),
          hash_fn(corner(c, f, f)),
          hash_fn(f),
          hash_fn(corner(f, c, f))]
    fv = [table[h] for h in hs]                            # each (..., L, F)
    ox = offset[..., 0:1]; oy = offset[..., 1:2]; oz = offset[..., 2:3]
    f03 = fv[0] * ox + fv[3] * (1 - ox)
    f12 = fv[1] * ox + fv[2] * (1 - ox)
    f56 = fv[5] * ox + fv[6] * (1 - ox)
    f47 = fv[4] * ox + fv[7] * (1 - ox)
    f0312 = f03 * oy + f12 * (1 - oy)
    f4756 = f47 * oy + f56 * (1 - oy)
    enc_v = f0312 * oz + f4756 * (1 - oz)                  # (..., L, F)
    return enc_v.reshape(*enc_v.shape[:-2], -1)


if __name__ == "__main__":
    key = jax.random.PRNGKey(0)
    k_pts, k_tbl = jax.random.split(key)

    # points (..., 3), 4 levels, 2 feats/level; 1024 points -> 2 grid steps of 512
    x = jax.random.uniform(k_pts, (2, 512, 3), dtype=jnp.float32)

    enc = PeriodicVolumeEncodingPallas(
        num_levels=4, min_res=4, max_res=16, log2_hashmap_size=9,
        features_per_level=2, hash_init_scale=0.001, smoothstep=False,
        key=k_tbl, block_n=512)

    out = enc(x)
    out = jax.block_until_ready(out)
    assert out.shape == (2, 512, 8), out.shape

    ref = jax.block_until_ready(reference_forward(enc, x))
    # bf16 table + bf16 weight matmul (DEFAULT precision): quantization error is
    # ~few e-6 on values of scale ~1e-3, so rtol=1e-2 / atol=5e-5 is comfortable
    # while still catching any real gather/interpolation bug (~1e-3 scale).
    np.testing.assert_allclose(np.asarray(out), np.asarray(ref),
                               rtol=1e-2, atol=5e-5)

    print("KERNEL_OK")
</pallas_src>

<mosaic_0001>
module attributes {stable_mosaic.version = 11 : i64} {
  func.func @kernel(%arg0: i32, %arg1: memref<3x512xf32, #tpu.memory_space<vmem>>, %arg2: memref<8x512xbf16, #tpu.memory_space<vmem>>, %arg3: memref<8x512xf32, #tpu.memory_space<vmem>>) attributes {dimension_semantics = [#tpu.dimension_semantics<parallel>], iteration_bounds = array<i64: 2>, scalar_prefetch = 0 : i64, scratch_operands = 0 : i64, tpu.core_type = #tpu.core_type<tc>, window_params = [{transform_indices = @transform_0, window_bounds = array<i64: 3, 512>}, {pipeline_mode = #tpu.pipeline_mode<synchronous>, transform_indices = @transform_1, window_bounds = array<i64: 8, 512>}, {transform_indices = @transform_2, window_bounds = array<i64: 8, 512>}]} {
    %c0 = arith.constant 0 : index
    %c0_0 = arith.constant 0 : index
    %0 = vector.load %arg1[%c0, %c0_0] : memref<3x512xf32, #tpu.memory_space<vmem>>, vector<1x512xf32>
    %c1 = arith.constant 1 : index
    %c0_1 = arith.constant 0 : index
    %1 = vector.load %arg1[%c1, %c0_1] : memref<3x512xf32, #tpu.memory_space<vmem>>, vector<1x512xf32>
    %c2 = arith.constant 2 : index
    %c0_2 = arith.constant 0 : index
    %2 = vector.load %arg1[%c2, %c0_2] : memref<3x512xf32, #tpu.memory_space<vmem>>, vector<1x512xf32>
    %3 = tpu.iota {dimensions = array<i32: 0>} : vector<8x512xi32>
    %cst = arith.constant 4.000000e+00 : f32
    %4 = vector.broadcast %cst : f32 to vector<1x512xf32>
    %5 = arith.mulf %0, %4 : vector<1x512xf32>
    %cst_3 = arith.constant 4.000000e+00 : f32
    %6 = vector.broadcast %cst_3 : f32 to vector<1x512xf32>
    %7 = arith.mulf %1, %6 : vector<1x512xf32>
    %cst_4 = arith.constant 4.000000e+00 : f32
    %8 = vector.broadcast %cst_4 : f32 to vector<1x512xf32>
    %9 = arith.mulf %2, %8 : vector<1x512xf32>
    %10 = math.floor %5 : vector<1x512xf32>
    %11 = math.floor %7 : vector<1x512xf32>
    %12 = math.floor %9 : vector<1x512xf32>
    %13 = arith.subf %5, %10 : vector<1x512xf32>
    %14 = arith.subf %7, %11 : vector<1x512xf32>
    %15 = arith.subf %9, %12 : vector<1x512xf32>
    %16 = arith.fptosi %10 : vector<1x512xf32> to vector<1x512xi32>
    %c7_i32 = arith.constant 7 : i32
    %17 = vector.broadcast %c7_i32 : i32 to vector<1x512xi32>
    %18 = arith.andi %16, %17 : vector<1x512xi32>
    %19 = arith.fptosi %11 : vector<1x512xf32> to vector<1x512xi32>
    %c7_i32_5 = arith.constant 7 : i32
    %20 = vector.broadcast %c7_i32_5 : i32 to vector<1x512xi32>
    %21 = arith.andi %19, %20 : vector<1x512xi32>
    %22 = arith.fptosi %12 : vector<1x512xf32> to vector<1x512xi32>
    %c7_i32_6 = arith.constant 7 : i32
    %23 = vector.broadcast %c7_i32_6 : i32 to vector<1x512xi32>
    %24 = arith.andi %22, %23 : vector<1x512xi32>
    %25 = math.ceil %5 : vector<1x512xf32>
    %26 = arith.fptosi %25 : vector<1x512xf32> to vector<1x512xi32>
    %c7_i32_7 = arith.constant 7 : i32
    %27 = vector.broadcast %c7_i32_7 : i32 to vector<1x512xi32>
    %28 = arith.andi %26, %27 : vector<1x512xi32>
    %29 = math.ceil %7 : vector<1x512xf32>
    %30 = arith.fptosi %29 : vector<1x512xf32> to vector<1x512xi32>
    %c7_i32_8 = arith.constant 7 : i32
    %31 = vector.broadcast %c7_i32_8 : i32 to vector<1x512xi32>
    %32 = arith.andi %30, %31 : vector<1x512xi32>
    %33 = math.ceil %9 : vector<1x512xf32>
    %34 = arith.fptosi %33 : vector<1x512xf32> to vector<1x512xi32>
    %c7_i32_9 = arith.constant 7 : i32
    %35 = vector.broadcast %c7_i32_9 : i32 to vector<1x512xi32>
    %36 = arith.andi %34, %35 : vector<1x512xi32>
    %37 = vector.broadcast %18 : vector<1x512xi32> to vector<8x512xi32>
    %38 = arith.cmpi eq, %3, %37 : vector<8x512xi32>
    %cst_10 = arith.constant 1.000000e+00 : f32
    %39 = vector.broadcast %cst_10 : f32 to vector<1x512xf32>
    %40 = arith.subf %39, %13 : vector<1x512xf32>
    %cst_11 = arith.constant 0.000000e+00 : f32
    %41 = vector.shape_cast %40 : vector<1x512xf32> to vector<1x512xf32>
    %42 = vector.broadcast %41 : vector<1x512xf32> to vector<8x512xf32>
    %43 = vector.broadcast %cst_11 : f32 to vector<8x512xf32>
    %44 = arith.select %38, %42, %43 : vector<8x512xi1>, vector<8x512xf32>
    %45 = vector.broadcast %28 : vector<1x512xi32> to vector<8x512xi32>
    %46 = arith.cmpi eq, %3, %45 : vector<8x512xi32>
    %cst_12 = arith.constant 0.000000e+00 : f32
    %47 = vector.shape_cast %13 : vector<1x512xf32> to vector<1x512xf32>
    %48 = vector.broadcast %47 : vector<1x512xf32> to vector<8x512xf32>
    %49 = vector.broadcast %cst_12 : f32 to vector<8x512xf32>
    %50 = arith.select %46, %48, %49 : vector<8x512xi1>, vector<8x512xf32>
    %51 = arith.addf %44, %50 : vector<8x512xf32>
    %52 = vector.broadcast %21 : vector<1x512xi32> to vector<8x512xi32>
    %53 = arith.cmpi eq, %3, %52 : vector<8x512xi32>
    %cst_13 = arith.constant 1.000000e+00 : f32
    %54 = vector.broadcast %cst_13 : f32 to vector<1x512xf32>
    %55 = arith.subf %54, %14 : vector<1x512xf32>
    %cst_14 = arith.constant 0.000000e+00 : f32
    %56 = vector.shape_cast %55 : vector<1x512xf32> to vector<1x512xf32>
    %57 = vector.broadcast %56 : vector<1x512xf32> to vector<8x512xf32>
    %58 = vector.broadcast %cst_14 : f32 to vector<8x512xf32>
    %59 = arith.select %53, %57, %58 : vector<8x512xi1>, vector<8x512xf32>
    %60 = vector.broadcast %32 : vector<1x512xi32> to vector<8x512xi32>
    %61 = arith.cmpi eq, %3, %60 : vector<8x512xi32>
    %cst_15 = arith.constant 0.000000e+00 : f32
    %62 = vector.shape_cast %14 : vector<1x512xf32> to vector<1x512xf32>
    %63 = vector.broadcast %62 : vector<1x512xf32> to vector<8x512xf32>
    %64 = vector.broadcast %cst_15 : f32 to vector<8x512xf32>
    %65 = arith.select %61, %63, %64 : vector<8x512xi1>, vector<8x512xf32>
    %66 = arith.addf %59, %65 : vector<8x512xf32>
    %67 = vector.broadcast %24 : vector<1x512xi32> to vector<8x512xi32>
    %68 = arith.cmpi eq, %3, %67 : vector<8x512xi32>
    %cst_16 = arith.constant 1.000000e+00 : f32
    %69 = vector.broadcast %cst_16 : f32 to vector<1x512xf32>
    %70 = arith.subf %69, %15 : vector<1x512xf32>
    %cst_17 = arith.constant 0.000000e+00 : f32
    %71 = vector.shape_cast %70 : vector<1x512xf32> to vector<1x512xf32>
    %72 = vector.broadcast %71 : vector<1x512xf32> to vector<8x512xf32>
    %73 = vector.broadcast %cst_17 : f32 to vector<8x512xf32>
    %74 = arith.select %68, %72, %73 : vector<8x512xi1>, vector<8x512xf32>
    %75 = vector.broadcast %36 : vector<1x512xi32> to vector<8x512xi32>
    %76 = arith.cmpi eq, %3, %75 : vector<8x512xi32>
    %cst_18 = arith.constant 0.000000e+00 : f32
    %77 = vector.shape_cast %15 : vector<1x512xf32> to vector<1x512xf32>
    %78 = vector.broadcast %77 : vector<1x512xf32> to vector<8x512xf32>
    %79 = vector.broadcast %cst_18 : f32 to vector<8x512xf32>
    %80 = arith.select %76, %78, %79 : vector<8x512xi1>, vector<8x512xf32>
    %81 = arith.addf %74, %80 : vector<8x512xf32>
    %82 = vector.shape_cast %51 : vector<8x512xf32> to vector<8x1x512xf32>
    %83 = vector.shape_cast %82 : vector<8x1x512xf32> to vector<8x1x512xf32>
    %84 = vector.broadcast %83 : vector<8x1x512xf32> to vector<8x8x512xf32>
    %85 = vector.shape_cast %84 : vector<8x8x512xf32> to vector<64x512xf32>
    %86 = vector.shape_cast %66 : vector<8x512xf32> to vector<1x8x512xf32>
    %87 = vector.shape_cast %86 : vector<1x8x512xf32> to vector<1x8x512xf32>
    %88 = vector.broadcast %87 : vector<1x8x512xf32> to vector<8x8x512xf32>
    %89 = vector.shape_cast %88 : vector<8x8x512xf32> to vector<64x512xf32>
    %90 = arith.mulf %85, %89 : vector<64x512xf32>
    %91 = vector.shape_cast %90 : vector<64x512xf32> to vector<64x1x512xf32>
    %92 = vector.shape_cast %91 : vector<64x1x512xf32> to vector<64x1x512xf32>
    %93 = vector.broadcast %92 : vector<64x1x512xf32> to vector<64x8x512xf32>
    %94 = vector.shape_cast %93 : vector<64x8x512xf32> to vector<512x512xf32>
    %95 = vector.shape_cast %81 : vector<8x512xf32> to vector<1x8x512xf32>
    %96 = vector.shape_cast %95 : vector<1x8x512xf32> to vector<1x8x512xf32>
    %97 = vector.broadcast %96 : vector<1x8x512xf32> to vector<64x8x512xf32>
    %98 = vector.shape_cast %97 : vector<64x8x512xf32> to vector<512x512xf32>
    %99 = arith.mulf %94, %98 : vector<512x512xf32>
    %100 = arith.truncf %99 : vector<512x512xf32> to vector<512x512xbf16>
    %c0_19 = arith.constant 0 : index
    %c0_20 = arith.constant 0 : index
    %101 = vector.load %arg2[%c0_19, %c0_20] : memref<8x512xbf16, #tpu.memory_space<vmem>>, vector<2x512xbf16>
    %cst_21 = arith.constant dense<0.000000e+00> : vector<2x512xf32>
    %102 = tpu.matmul %101, %100, %cst_21 {dimension_numbers = #tpu.dot_dimension_numbers<[1], [0], [0], [1], [0, 0, 1, 1], [], []>} : vector<2x512xbf16>, vector<512x512xbf16>, vector<2x512xf32> -> vector<2x512xf32>
    %c0_22 = arith.constant 0 : index
    %c0_23 = arith.constant 0 : index
    %103 = vector.load %arg3[%c0_22, %c0_23] : memref<8x512xf32, #tpu.memory_space<vmem>>, vector<2x512xf32>
    tpu.vector_store %arg3[%c0_22, %c0_23], %102 {strides = array<i32>} : memref<8x512xf32, #tpu.memory_space<vmem>>, vector<2x512xf32>,
    %cst_24 = arith.constant 6.000000e+00 : f32
    %104 = vector.broadcast %cst_24 : f32 to vector<1x512xf32>
    %105 = arith.mulf %0, %104 : vector<1x512xf32>
    %cst_25 = arith.constant 6.000000e+00 : f32
    %106 = vector.broadcast %cst_25 : f32 to vector<1x512xf32>
    %107 = arith.mulf %1, %106 : vector<1x512xf32>
    %cst_26 = arith.constant 6.000000e+00 : f32
    %108 = vector.broadcast %cst_26 : f32 to vector<1x512xf32>
    %109 = arith.mulf %2, %108 : vector<1x512xf32>
    %110 = math.floor %105 : vector<1x512xf32>
    %111 = math.floor %107 : vector<1x512xf32>
    %112 = math.floor %109 : vector<1x512xf32>
    %113 = arith.subf %105, %110 : vector<1x512xf32>
    %114 = arith.subf %107, %111 : vector<1x512xf32>
    %115 = arith.subf %109, %112 : vector<1x512xf32>
    %116 = arith.fptosi %110 : vector<1x512xf32> to vector<1x512xi32>
    %c7_i32_27 = arith.constant 7 : i32
    %117 = vector.broadcast %c7_i32_27 : i32 to vector<1x512xi32>
    %118 = arith.andi %116, %117 : vector<1x512xi32>
    %119 = arith.fptosi %111 : vector<1x512xf32> to vector<1x512xi32>
    %c7_i32_28 = arith.constant 7 : i32
    %120 = vector.broadcast %c7_i32_28 : i32 to vector<1x512xi32>
    %121 = arith.andi %119, %120 : vector<1x512xi32>
    %122 = arith.fptosi %112 : vector<1x512xf32> to vector<1x512xi32>
    %c7_i32_29 = arith.constant 7 : i32
    %123 = vector.broadcast %c7_i32_29 : i32 to vector<1x512xi32>
    %124 = arith.andi %122, %123 : vector<1x512xi32>
    %125 = math.ceil %105 : vector<1x512xf32>
    %126 = arith.fptosi %125 : vector<1x512xf32> to vector<1x512xi32>
    %c7_i32_30 = arith.constant 7 : i32
    %127 = vector.broadcast %c7_i32_30 : i32 to vector<1x512xi32>
    %128 = arith.andi %126, %127 : vector<1x512xi32>
    %129 = math.ceil %107 : vector<1x512xf32>
    %130 = arith.fptosi %129 : vector<1x512xf32> to vector<1x512xi32>
    %c7_i32_31 = arith.constant 7 : i32
    %131 = vector.broadcast %c7_i32_31 : i32 to vector<1x512xi32>
    %132 = arith.andi %130, %131 : vector<1x512xi32>
    %133 = math.ceil %109 : vector<1x512xf32>
    %134 = arith.fptosi %133 : vector<1x512xf32> to vector<1x512xi32>
    %c7_i32_32 = arith.constant 7 : i32
    %135 = vector.broadcast %c7_i32_32 : i32 to vector<1x512xi32>
    %136 = arith.andi %134, %135 : vector<1x512xi32>
    %137 = vector.broadcast %118 : vector<1x512xi32> to vector<8x512xi32>
    %138 = arith.cmpi eq, %3, %137 : vector<8x512xi32>
    %cst_33 = arith.constant 1.000000e+00 : f32
    %139 = vector.broadcast %cst_33 : f32 to vector<1x512xf32>
    %140 = arith.subf %139, %113 : vector<1x512xf32>
    %cst_34 = arith.constant 0.000000e+00 : f32
    %141 = vector.shape_cast %140 : vector<1x512xf32> to vector<1x512xf32>
    %142 = vector.broadcast %141 : vector<1x512xf32> to vector<8x512xf32>
    %143 = vector.broadcast %cst_34 : f32 to vector<8x512xf32>
    %144 = arith.select %138, %142, %143 : vector<8x512xi1>, vector<8x512xf32>
    %145 = vector.broadcast %128 : vector<1x512xi32> to vector<8x512xi32>
    %146 = arith.cmpi eq, %3, %145 : vector<8x512xi32>
    %cst_35 = arith.constant 0.000000e+00 : f32
    %147 = vector.shape_cast %113 : vector<1x512xf32> to vector<1x512xf32>
    %148 = vector.broadcast %147 : vector<1x512xf32> to vector<8x512xf32>
    %149 = vector.broadcast %cst_35 : f32 to vector<8x512xf32>
    %150 = arith.select %146, %148, %149 : vector<8x512xi1>, vector<8x512xf32>
    %151 = arith.addf %144, %150 : vector<8x512xf32>
    %152 = vector.broadcast %121 : vector<1x512xi32> to vector<8x512xi32>
    %153 = arith.cmpi eq, %3, %152 : vector<8x512xi32>
    %cst_36 = arith.constant 1.000000e+00 : f32
    %154 = vector.broadcast %cst_36 : f32 to vector<1x512xf32>
    %155 = arith.subf %154, %114 : vector<1x512xf32>
    %cst_37 = arith.constant 0.000000e+00 : f32
    %156 = vector.shape_cast %155 : vector<1x512xf32> to vector<1x512xf32>
    %157 = vector.broadcast %156 : vector<1x512xf32> to vector<8x512xf32>
    %158 = vector.broadcast %cst_37 : f32 to vector<8x512xf32>
    %159 = arith.select %153, %157, %158 : vector<8x512xi1>, vector<8x512xf32>
    %160 = vector.broadcast %132 : vector<1x512xi32> to vector<8x512xi32>
    %161 = arith.cmpi eq, %3, %160 : vector<8x512xi32>
    %cst_38 = arith.constant 0.000000e+00 : f32
    %162 = vector.shape_cast %114 : vector<1x512xf32> to vector<1x512xf32>
    %163 = vector.broadcast %162 : vector<1x512xf32> to vector<8x512xf32>
    %164 = vector.broadcast %cst_38 : f32 to vector<8x512xf32>
    %165 = arith.select %161, %163, %164 : vector<8x512xi1>, vector<8x512xf32>
    %166 = arith.addf %159, %165 : vector<8x512xf32>
    %167 = vector.broadcast %124 : vector<1x512xi32> to vector<8x512xi32>
    %168 = arith.cmpi eq, %3, %167 : vector<8x512xi32>
    %cst_39 = arith.constant 1.000000e+00 : f32
    %169 = vector.broadcast %cst_39 : f32 to vector<1x512xf32>
    %170 = arith.subf %169, %115 : vector<1x512xf32>
    %cst_40 = arith.constant 0.000000e+00 : f32
    %171 = vector.shape_cast %170 : vector<1x512xf32> to vector<1x512xf32>
    %172 = vector.broadcast %171 : vector<1x512xf32> to vector<8x512xf32>
    %173 = vector.broadcast %cst_40 : f32 to vector<8x512xf32>
    %174 = arith.select %168, %172, %173 : vector<8x512xi1>, vector<8x512xf32>
    %175 = vector.broadcast %136 : vector<1x512xi32> to vector<8x512xi32>
    %176 = arith.cmpi eq, %3, %175 : vector<8x512xi32>
    %cst_41 = arith.constant 0.000000e+00 : f32
    %177 = vector.shape_cast %115 : vector<1x512xf32> to vector<1x512xf32>
    %178 = vector.broadcast %177 : vector<1x512xf32> to vector<8x512xf32>
    %179 = vector.broadcast %cst_41 : f32 to vector<8x512xf32>
    %180 = arith.select %176, %178, %179 : vector<8x512xi1>, vector<8x512xf32>
    %181 = arith.addf %174, %180 : vector<8x512xf32>
    %182 = vector.shape_cast %151 : vector<8x512xf32> to vector<8x1x512xf32>
    %183 = vector.shape_cast %182 : vector<8x1x512xf32> to vector<8x1x512xf32>
    %184 = vector.broadcast %183 : vector<8x1x512xf32> to vector<8x8x512xf32>
    %185 = vector.shape_cast %184 : vector<8x8x512xf32> to vector<64x512xf32>
    %186 = vector.shape_cast %166 : vector<8x512xf32> to vector<1x8x512xf32>
    %187 = vector.shape_cast %186 : vector<1x8x512xf32> to vector<1x8x512xf32>
    %188 = vector.broadcast %187 : vector<1x8x512xf32> to vector<8x8x512xf32>
    %189 = vector.shape_cast %188 : vector<8x8x512xf32> to vector<64x512xf32>
    %190 = arith.mulf %185, %189 : vector<64x512xf32>
    %191 = vector.shape_cast %190 : vector<64x512xf32> to vector<64x1x512xf32>
    %192 = vector.shape_cast %191 : vector<64x1x512xf32> to vector<64x1x512xf32>
    %193 = vector.broadcast %192 : vector<64x1x512xf32> to vector<64x8x512xf32>
    %194 = vector.shape_cast %193 : vector<64x8x512xf32> to vector<512x512xf32>
    %195 = vector.shape_cast %181 : vector<8x512xf32> to vector<1x8x512xf32>
    %196 = vector.shape_cast %195 : vector<1x8x512xf32> to vector<1x8x512xf32>
    %197 = vector.broadcast %196 : vector<1x8x512xf32> to vector<64x8x512xf32>
    %198 = vector.shape_cast %197 : vector<64x8x512xf32> to vector<512x512xf32>
    %199 = arith.mulf %194, %198 : vector<512x512xf32>
    %200 = arith.truncf %199 : vector<512x512xf32> to vector<512x512xbf16>
    %c2_42 = arith.constant 2 : index
    %c0_43 = arith.constant 0 : index
    %201 = vector.load %arg2[%c2_42, %c0_43] : memref<8x512xbf16, #tpu.memory_space<vmem>>, vector<2x512xbf16>
    %cst_44 = arith.constant dense<0.000000e+00> : vector<2x512xf32>
    %202 = tpu.matmul %201, %200, %cst_44 {dimension_numbers = #tpu.dot_dimension_numbers<[1], [0], [0], [1], [0, 0, 1, 1], [], []>} : vector<2x512xbf16>, vector<512x512xbf16>, vector<2x512xf32> -> vector<2x512xf32>
    %c2_45 = arith.constant 2 : index
    %c0_46 = arith.constant 0 : index
    %203 = vector.load %arg3[%c2_45, %c0_46] : memref<8x512xf32, #tpu.memory_space<vmem>>, vector<2x512xf32>
    tpu.vector_store %arg3[%c2_45, %c0_46], %202 {strides = array<i32>} : memref<8x512xf32, #tpu.memory_space<vmem>>, vector<2x512xf32>,
    %cst_47 = arith.constant 1.000000e+01 : f32
    %204 = vector.broadcast %cst_47 : f32 to vector<1x512xf32>
    %205 = arith.mulf %0, %204 : vector<1x512xf32>
    %cst_48 = arith.constant 1.000000e+01 : f32
    %206 = vector.broadcast %cst_48 : f32 to vector<1x512xf32>
    %207 = arith.mulf %1, %206 : vector<1x512xf32>
    %cst_49 = arith.constant 1.000000e+01 : f32
    %208 = vector.broadcast %cst_49 : f32 to vector<1x512xf32>
    %209 = arith.mulf %2, %208 : vector<1x512xf32>
    %210 = math.floor %205 : vector<1x512xf32>
    %211 = math.floor %207 : vector<1x512xf32>
    %212 = math.floor %209 : vector<1x512xf32>
    %213 = arith.subf %205, %210 : vector<1x512xf32>
    %214 = arith.subf %207, %211 : vector<1x512xf32>
    %215 = arith.subf %209, %212 : vector<1x512xf32>
    %216 = arith.fptosi %210 : vector<1x512xf32> to vector<1x512xi32>
    %c7_i32_50 = arith.constant 7 : i32
    %217 = vector.broadcast %c7_i32_50 : i32 to vector<1x512xi32>
    %218 = arith.andi %216, %217 : vector<1x512xi32>
    %219 = arith.fptosi %211 : vector<1x512xf32> to vector<1x512xi32>
    %c7_i32_51 = arith.constant 7 : i32
    %220 = vector.broadcast %c7_i32_51 : i32 to vector<1x512xi32>
    %221 = arith.andi %219, %220 : vector<1x512xi32>
    %222 = arith.fptosi %212 : vector<1x512xf32> to vector<1x512xi32>
    %c7_i32_52 = arith.constant 7 : i32
    %223 = vector.broadcast %c7_i32_52 : i32 to vector<1x512xi32>
    %224 = arith.andi %222, %223 : vector<1x512xi32>
    %225 = math.ceil %205 : vector<1x512xf32>
    %226 = arith.fptosi %225 : vector<1x512xf32> to vector<1x512xi32>
    %c7_i32_53 = arith.constant 7 : i32
    %227 = vector.broadcast %c7_i32_53 : i32 to vector<1x512xi32>
    %228 = arith.andi %226, %227 : vector<1x512xi32>
    %229 = math.ceil %207 : vector<1x512xf32>
    %230 = arith.fptosi %229 : vector<1x512xf32> to vector<1x512xi32>
    %c7_i32_54 = arith.constant 7 : i32
    %231 = vector.broadcast %c7_i32_54 : i32 to vector<1x512xi32>
    %232 = arith.andi %230, %231 : vector<1x512xi32>
    %233 = math.ceil %209 : vector<1x512xf32>
    %234 = arith.fptosi %233 : vector<1x512xf32> to vector<1x512xi32>
    %c7_i32_55 = arith.constant 7 : i32
    %235 = vector.broadcast %c7_i32_55 : i32 to vector<1x512xi32>
    %236 = arith.andi %234, %235 : vector<1x512xi32>
    %237 = vector.broadcast %218 : vector<1x512xi32> to vector<8x512xi32>
    %238 = arith.cmpi eq, %3, %237 : vector<8x512xi32>
    %cst_56 = arith.constant 1.000000e+00 : f32
    %239 = vector.broadcast %cst_56 : f32 to vector<1x512xf32>
    %240 = arith.subf %239, %213 : vector<1x512xf32>
    %cst_57 = arith.constant 0.000000e+00 : f32
    %241 = vector.shape_cast %240 : vector<1x512xf32> to vector<1x512xf32>
    %242 = vector.broadcast %241 : vector<1x512xf32> to vector<8x512xf32>
    %243 = vector.broadcast %cst_57 : f32 to vector<8x512xf32>
    %244 = arith.select %238, %242, %243 : vector<8x512xi1>, vector<8x512xf32>
    %245 = vector.broadcast %228 : vector<1x512xi32> to vector<8x512xi32>
    %246 = arith.cmpi eq, %3, %245 : vector<8x512xi32>
    %cst_58 = arith.constant 0.000000e+00 : f32
    %247 = vector.shape_cast %213 : vector<1x512xf32> to vector<1x512xf32>
    %248 = vector.broadcast %247 : vector<1x512xf32> to vector<8x512xf32>
    %249 = vector.broadcast %cst_58 : f32 to vector<8x512xf32>
    %250 = arith.select %246, %248, %249 : vector<8x512xi1>, vector<8x512xf32>
    %251 = arith.addf %244, %250 : vector<8x512xf32>
    %252 = vector.broadcast %221 : vector<1x512xi32> to vector<8x512xi32>
    %253 = arith.cmpi eq, %3, %252 : vector<8x512xi32>
    %cst_59 = arith.constant 1.000000e+00 : f32
    %254 = vector.broadcast %cst_59 : f32 to vector<1x512xf32>
    %255 = arith.subf %254, %214 : vector<1x512xf32>
    %cst_60 = arith.constant 0.000000e+00 : f32
    %256 = vector.shape_cast %255 : vector<1x512xf32> to vector<1x512xf32>
    %257 = vector.broadcast %256 : vector<1x512xf32> to vector<8x512xf32>
    %258 = vector.broadcast %cst_60 : f32 to vector<8x512xf32>
    %259 = arith.select %253, %257, %258 : vector<8x512xi1>, vector<8x512xf32>
    %260 = vector.broadcast %232 : vector<1x512xi32> to vector<8x512xi32>
    %261 = arith.cmpi eq, %3, %260 : vector<8x512xi32>
    %cst_61 = arith.constant 0.000000e+00 : f32
    %262 = vector.shape_cast %214 : vector<1x512xf32> to vector<1x512xf32>
    %263 = vector.broadcast %262 : vector<1x512xf32> to vector<8x512xf32>
    %264 = vector.broadcast %cst_61 : f32 to vector<8x512xf32>
    %265 = arith.select %261, %263, %264 : vector<8x512xi1>, vector<8x512xf32>
    %266 = arith.addf %259, %265 : vector<8x512xf32>
    %267 = vector.broadcast %224 : vector<1x512xi32> to vector<8x512xi32>
    %268 = arith.cmpi eq, %3, %267 : vector<8x512xi32>
    %cst_62 = arith.constant 1.000000e+00 : f32
    %269 = vector.broadcast %cst_62 : f32 to vector<1x512xf32>
    %270 = arith.subf %269, %215 : vector<1x512xf32>
    %cst_63 = arith.constant 0.000000e+00 : f32
    %271 = vector.shape_cast %270 : vector<1x512xf32> to vector<1x512xf32>
    %272 = vector.broadcast %271 : vector<1x512xf32> to vector<8x512xf32>
    %273 = vector.broadcast %cst_63 : f32 to vector<8x512xf32>
    %274 = arith.select %268, %272, %273 : vector<8x512xi1>, vector<8x512xf32>
    %275 = vector.broadcast %236 : vector<1x512xi32> to vector<8x512xi32>
    %276 = arith.cmpi eq, %3, %275 : vector<8x512xi32>
    %cst_64 = arith.constant 0.000000e+00 : f32
    %277 = vector.shape_cast %215 : vector<1x512xf32> to vector<1x512xf32>
    %278 = vector.broadcast %277 : vector<1x512xf32> to vector<8x512xf32>
    %279 = vector.broadcast %cst_64 : f32 to vector<8x512xf32>
    %280 = arith.select %276, %278, %279 : vector<8x512xi1>, vector<8x512xf32>
    %281 = arith.addf %274, %280 : vector<8x512xf32>
    %282 = vector.shape_cast %251 : vector<8x512xf32> to vector<8x1x512xf32>
    %283 = vector.shape_cast %282 : vector<8x1x512xf32> to vector<8x1x512xf32>
    %284 = vector.broadcast %283 : vector<8x1x512xf32> to vector<8x8x512xf32>
    %285 = vector.shape_cast %284 : vector<8x8x512xf32> to vector<64x512xf32>
    %286 = vector.shape_cast %266 : vector<8x512xf32> to vector<1x8x512xf32>
    %287 = vector.shape_cast %286 : vector<1x8x512xf32> to vector<1x8x512xf32>
    %288 = vector.broadcast %287 : vector<1x8x512xf32> to vector<8x8x512xf32>
    %289 = vector.shape_cast %288 : vector<8x8x512xf32> to vector<64x512xf32>
    %290 = arith.mulf %285, %289 : vector<64x512xf32>
    %291 = vector.shape_cast %290 : vector<64x512xf32> to vector<64x1x512xf32>
    %292 = vector.shape_cast %291 : vector<64x1x512xf32> to vector<64x1x512xf32>
    %293 = vector.broadcast %292 : vector<64x1x512xf32> to vector<64x8x512xf32>
    %294 = vector.shape_cast %293 : vector<64x8x512xf32> to vector<512x512xf32>
    %295 = vector.shape_cast %281 : vector<8x512xf32> to vector<1x8x512xf32>
    %296 = vector.shape_cast %295 : vector<1x8x512xf32> to vector<1x8x512xf32>
    %297 = vector.broadcast %296 : vector<1x8x512xf32> to vector<64x8x512xf32>
    %298 = vector.shape_cast %297 : vector<64x8x512xf32> to vector<512x512xf32>
    %299 = arith.mulf %294, %298 : vector<512x512xf32>
    %300 = arith.truncf %299 : vector<512x512xf32> to vector<512x512xbf16>
    %c4 = arith.constant 4 : index
    %c0_65 = arith.constant 0 : index
    %301 = vector.load %arg2[%c4, %c0_65] : memref<8x512xbf16, #tpu.memory_space<vmem>>, vector<2x512xbf16>
    %cst_66 = arith.constant dense<0.000000e+00> : vector<2x512xf32>
    %302 = tpu.matmul %301, %300, %cst_66 {dimension_numbers = #tpu.dot_dimension_numbers<[1], [0], [0], [1], [0, 0, 1, 1], [], []>} : vector<2x512xbf16>, vector<512x512xbf16>, vector<2x512xf32> -> vector<2x512xf32>
    %c4_67 = arith.constant 4 : index
    %c0_68 = arith.constant 0 : index
    %303 = vector.load %arg3[%c4_67, %c0_68] : memref<8x512xf32, #tpu.memory_space<vmem>>, vector<2x512xf32>
    tpu.vector_store %arg3[%c4_67, %c0_68], %302 {strides = array<i32>} : memref<8x512xf32, #tpu.memory_space<vmem>>, vector<2x512xf32>,
    %cst_69 = arith.constant 1.500000e+01 : f32
    %304 = vector.broadcast %cst_69 : f32 to vector<1x512xf32>
    %305 = arith.mulf %0, %304 : vector<1x512xf32>
    %cst_70 = arith.constant 1.500000e+01 : f32
    %306 = vector.broadcast %cst_70 : f32 to vector<1x512xf32>
    %307 = arith.mulf %1, %306 : vector<1x512xf32>
    %cst_71 = arith.constant 1.500000e+01 : f32
    %308 = vector.broadcast %cst_71 : f32 to vector<1x512xf32>
    %309 = arith.mulf %2, %308 : vector<1x512xf32>
    %310 = math.floor %305 : vector<1x512xf32>
    %311 = math.floor %307 : vector<1x512xf32>
    %312 = math.floor %309 : vector<1x512xf32>
    %313 = arith.subf %305, %310 : vector<1x512xf32>
    %314 = arith.subf %307, %311 : vector<1x512xf32>
    %315 = arith.subf %309, %312 : vector<1x512xf32>
    %316 = arith.fptosi %310 : vector<1x512xf32> to vector<1x512xi32>
    %c7_i32_72 = arith.constant 7 : i32
    %317 = vector.broadcast %c7_i32_72 : i32 to vector<1x512xi32>
    %318 = arith.andi %316, %317 : vector<1x512xi32>
    %319 = arith.fptosi %311 : vector<1x512xf32> to vector<1x512xi32>
    %c7_i32_73 = arith.constant 7 : i32
    %320 = vector.broadcast %c7_i32_73 : i32 to vector<1x512xi32>
    %321 = arith.andi %319, %320 : vector<1x512xi32>
    %322 = arith.fptosi %312 : vector<1x512xf32> to vector<1x512xi32>
    %c7_i32_74 = arith.constant 7 : i32
    %323 = vector.broadcast %c7_i32_74 : i32 to vector<1x512xi32>
    %324 = arith.andi %322, %323 : vector<1x512xi32>
    %325 = math.ceil %305 : vector<1x512xf32>
    %326 = arith.fptosi %325 : vector<1x512xf32> to vector<1x512xi32>
    %c7_i32_75 = arith.constant 7 : i32
    %327 = vector.broadcast %c7_i32_75 : i32 to vector<1x512xi32>
    %328 = arith.andi %326, %327 : vector<1x512xi32>
    %329 = math.ceil %307 : vector<1x512xf32>
    %330 = arith.fptosi %329 : vector<1x512xf32> to vector<1x512xi32>
    %c7_i32_76 = arith.constant 7 : i32
    %331 = vector.broadcast %c7_i32_76 : i32 to vector<1x512xi32>
    %332 = arith.andi %330, %331 : vector<1x512xi32>
    %333 = math.ceil %309 : vector<1x512xf32>
    %334 = arith.fptosi %333 : vector<1x512xf32> to vector<1x512xi32>
    %c7_i32_77 = arith.constant 7 : i32
    %335 = vector.broadcast %c7_i32_77 : i32 to vector<1x512xi32>
    %336 = arith.andi %334, %335 : vector<1x512xi32>
    %337 = vector.broadcast %318 : vector<1x512xi32> to vector<8x512xi32>
    %338 = arith.cmpi eq, %3, %337 : vector<8x512xi32>
    %cst_78 = arith.constant 1.000000e+00 : f32
    %339 = vector.broadcast %cst_78 : f32 to vector<1x512xf32>
    %340 = arith.subf %339, %313 : vector<1x512xf32>
    %cst_79 = arith.constant 0.000000e+00 : f32
    %341 = vector.shape_cast %340 : vector<1x512xf32> to vector<1x512xf32>
    %342 = vector.broadcast %341 : vector<1x512xf32> to vector<8x512xf32>
    %343 = vector.broadcast %cst_79 : f32 to vector<8x512xf32>
    %344 = arith.select %338, %342, %343 : vector<8x512xi1>, vector<8x512xf32>
    %345 = vector.broadcast %328 : vector<1x512xi32> to vector<8x512xi32>
    %346 = arith.cmpi eq, %3, %345 : vector<8x512xi32>
    %cst_80 = arith.constant 0.000000e+00 : f32
    %347 = vector.shape_cast %313 : vector<1x512xf32> to vector<1x512xf32>
    %348 = vector.broadcast %347 : vector<1x512xf32> to vector<8x512xf32>
    %349 = vector.broadcast %cst_80 : f32 to vector<8x512xf32>
    %350 = arith.select %346, %348, %349 : vector<8x512xi1>, vector<8x512xf32>
    %351 = arith.addf %344, %350 : vector<8x512xf32>
    %352 = vector.broadcast %321 : vector<1x512xi32> to vector<8x512xi32>
    %353 = arith.cmpi eq, %3, %352 : vector<8x512xi32>
    %cst_81 = arith.constant 1.000000e+00 : f32
    %354 = vector.broadcast %cst_81 : f32 to vector<1x512xf32>
    %355 = arith.subf %354, %314 : vector<1x512xf32>
    %cst_82 = arith.constant 0.000000e+00 : f32
    %356 = vector.shape_cast %355 : vector<1x512xf32> to vector<1x512xf32>
    %357 = vector.broadcast %356 : vector<1x512xf32> to vector<8x512xf32>
    %358 = vector.broadcast %cst_82 : f32 to vector<8x512xf32>
    %359 = arith.select %353, %357, %358 : vector<8x512xi1>, vector<8x512xf32>
    %360 = vector.broadcast %332 : vector<1x512xi32> to vector<8x512xi32>
    %361 = arith.cmpi eq, %3, %360 : vector<8x512xi32>
    %cst_83 = arith.constant 0.000000e+00 : f32
    %362 = vector.shape_cast %314 : vector<1x512xf32> to vector<1x512xf32>
    %363 = vector.broadcast %362 : vector<1x512xf32> to vector<8x512xf32>
    %364 = vector.broadcast %cst_83 : f32 to vector<8x512xf32>
    %365 = arith.select %361, %363, %364 : vector<8x512xi1>, vector<8x512xf32>
    %366 = arith.addf %359, %365 : vector<8x512xf32>
    %367 = vector.broadcast %324 : vector<1x512xi32> to vector<8x512xi32>
    %368 = arith.cmpi eq, %3, %367 : vector<8x512xi32>
    %cst_84 = arith.constant 1.000000e+00 : f32
    %369 = vector.broadcast %cst_84 : f32 to vector<1x512xf32>
    %370 = arith.subf %369, %315 : vector<1x512xf32>
    %cst_85 = arith.constant 0.000000e+00 : f32
    %371 = vector.shape_cast %370 : vector<1x512xf32> to vector<1x512xf32>
    %372 = vector.broadcast %371 : vector<1x512xf32> to vector<8x512xf32>
    %373 = vector.broadcast %cst_85 : f32 to vector<8x512xf32>
    %374 = arith.select %368, %372, %373 : vector<8x512xi1>, vector<8x512xf32>
    %375 = vector.broadcast %336 : vector<1x512xi32> to vector<8x512xi32>
    %376 = arith.cmpi eq, %3, %375 : vector<8x512xi32>
    %cst_86 = arith.constant 0.000000e+00 : f32
    %377 = vector.shape_cast %315 : vector<1x512xf32> to vector<1x512xf32>
    %378 = vector.broadcast %377 : vector<1x512xf32> to vector<8x512xf32>
    %379 = vector.broadcast %cst_86 : f32 to vector<8x512xf32>
    %380 = arith.select %376, %378, %379 : vector<8x512xi1>, vector<8x512xf32>
    %381 = arith.addf %374, %380 : vector<8x512xf32>
    %382 = vector.shape_cast %351 : vector<8x512xf32> to vector<8x1x512xf32>
    %383 = vector.shape_cast %382 : vector<8x1x512xf32> to vector<8x1x512xf32>
    %384 = vector.broadcast %383 : vector<8x1x512xf32> to vector<8x8x512xf32>
    %385 = vector.shape_cast %384 : vector<8x8x512xf32> to vector<64x512xf32>
    %386 = vector.shape_cast %366 : vector<8x512xf32> to vector<1x8x512xf32>
    %387 = vector.shape_cast %386 : vector<1x8x512xf32> to vector<1x8x512xf32>
    %388 = vector.broadcast %387 : vector<1x8x512xf32> to vector<8x8x512xf32>
    %389 = vector.shape_cast %388 : vector<8x8x512xf32> to vector<64x512xf32>
    %390 = arith.mulf %385, %389 : vector<64x512xf32>
    %391 = vector.shape_cast %390 : vector<64x512xf32> to vector<64x1x512xf32>
    %392 = vector.shape_cast %391 : vector<64x1x512xf32> to vector<64x1x512xf32>
    %393 = vector.broadcast %392 : vector<64x1x512xf32> to vector<64x8x512xf32>
    %394 = vector.shape_cast %393 : vector<64x8x512xf32> to vector<512x512xf32>
    %395 = vector.shape_cast %381 : vector<8x512xf32> to vector<1x8x512xf32>
    %396 = vector.shape_cast %395 : vector<1x8x512xf32> to vector<1x8x512xf32>
    %397 = vector.broadcast %396 : vector<1x8x512xf32> to vector<64x8x512xf32>
    %398 = vector.shape_cast %397 : vector<64x8x512xf32> to vector<512x512xf32>
    %399 = arith.mulf %394, %398 : vector<512x512xf32>
    %400 = arith.truncf %399 : vector<512x512xf32> to vector<512x512xbf16>
    %c6 = arith.constant 6 : index
    %c0_87 = arith.constant 0 : index
    %401 = vector.load %arg2[%c6, %c0_87] : memref<8x512xbf16, #tpu.memory_space<vmem>>, vector<2x512xbf16>
    %cst_88 = arith.constant dense<0.000000e+00> : vector<2x512xf32>
    %402 = tpu.matmul %401, %400, %cst_88 {dimension_numbers = #tpu.dot_dimension_numbers<[1], [0], [0], [1], [0, 0, 1, 1], [], []>} : vector<2x512xbf16>, vector<512x512xbf16>, vector<2x512xf32> -> vector<2x512xf32>
    %c6_89 = arith.constant 6 : index
    %c0_90 = arith.constant 0 : index
    %403 = vector.load %arg3[%c6_89, %c0_90] : memref<8x512xf32, #tpu.memory_space<vmem>>, vector<2x512xf32>
    tpu.vector_store %arg3[%c6_89, %c0_90], %402 {strides = array<i32>} : memref<8x512xf32, #tpu.memory_space<vmem>>, vector<2x512xf32>,
    return
  }
  func.func @transform_0(%arg0: i32) -> (i32, i32) {
    %c0_i32 = arith.constant 0 : i32
    %c0_i32_0 = arith.constant 0 : i32
    return %c0_i32, %arg0 : i32, i32
  }
  func.func @transform_1(%arg0: i32) -> (i32, i32) {
    %c0_i32 = arith.constant 0 : i32
    %c0_i32_0 = arith.constant 0 : i32
    %c0_i32_1 = arith.constant 0 : i32
    return %c0_i32, %c0_i32_0 : i32, i32
  }
  func.func @transform_2(%arg0: i32) -> (i32, i32) {
    %c0_i32 = arith.constant 0 : i32
    %c0_i32_0 = arith.constant 0 : i32
    return %c0_i32, %arg0 : i32, i32
  }
}

</mosaic_0001>

<llo_original>
// kernel: tpu_custom_call.1
$region0: #{tpu_custom_call.1}
  #allocation0 [shape = 'u32[]', space=smem, size = 0x4, offset = 0x4, fixed_abs, tag = 'smem constant byte address 0x4 - core index']
  #allocation1 [shape = 'u32[144,128]{1,0:T(1,128)}', space=vmem, size = 0x12000, scoped, tag = 'internal scratch']
  %s0 = inlined_call_operand.hbm [shape: f32[3,1024], index: 0, kind: input, shape index: {}]
  %s1 = inlined_call_operand.hbm [shape: bf16[8,512], index: 1, kind: input, shape index: {}]
  %s2 = inlined_call_operand.hbm [shape: f32[8,1024], index: 2, kind: output, shape index: {}]
  %s3 = sld [smem:[#allocation0]]
  $region49: #{tpu_custom_call.1} parent=0
    _
  %s5 = ssub.s32 1, %s3
  %s6 = scalar_select 0, %s5, %s3
  $region1: #{tpu_custom_call.1} parent=0
    #allocation2 [shape = 'u8[16384]{0}', space=vmem, size = 0x4000, scoped, tag = 'input window, operand 0']
    #allocation3 [shape = 's32[2]{0}', space=sflag, size = 0x8, scoped, tag = 'scoped memory for tpu_custom_call.1']
    #allocation4 [shape = 's32[2]{0}', space=sflag, size = 0x8, scoped, tag = 'scoped memory for tpu_custom_call.1']
    #allocation5 [shape = 'u8[8192]{0}', space=vmem, size = 0x2000, scoped, tag = 'input window, operand 1, single buffered']
    #allocation6 [shape = 's32[1]{0}', space=sflag, size = 0x4, scoped, tag = 'scoped memory for tpu_custom_call.1']
    #allocation7 [shape = 'u8[32768]{0}', space=vmem, size = 0x8000, scoped, tag = 'output window, operand 0']
    %7 = vsyncpa [#allocation3], 0
    %s8 = scalar_lea.sflag [#allocation3], 1
    %9 = vsyncpa %s8, 0
    %10 = vsyncpa [#allocation6], 0
    %11 = vsyncpa [#allocation4], 0
    %s12 = scalar_lea.sflag [#allocation4], 1
    %13 = vsyncpa %s12, 0
    loop: start=0, step=1, limit=4
    $region2: #{tpu_custom_call.1} parent=1 // loop_pre_header
      _
    $region3: #{tpu_custom_call.1} parent=1 // loop_header
      %s15 = sphi 0, %s19
      %p16 = scmp.ge.s32.totalorder %s15, 4
      %s25 = sphi 0, %s27
      %s28 = sphi 0, %s25
      %s29 = sphi 0, %s28
      %s45 = sphi 0, %s29
      %s49 = sphi 0, %s49
      %s51 = sphi 0, %s49
      %s52 = sphi 0, %s51
      %s66 = sphi 0, %s52
      %s72 = sphi 0, %s74
      %s75 = sphi 0, %s72
      %s76 = sphi 0, %s75
      %s92 = sphi 0, %s76
    $region4: #{tpu_custom_call.1} parent=1 // loop_header_branch
      %18 = sbr.rel (%p16) target = $region8
    $region5: #{tpu_custom_call.1} parent=1 // loop_body
      %s20 = ssub.s32 %s15, 1
      %s21 = ssub.s32 %s15, 2
      %s22 = sadd.s32 %s15, 1
      %s23 = ssub.s32 %s15, %s22
      %p24 = scmp.eq.s32.totalorder %s23, 0
      %s26 = sadd.s32 %s25, 1
      %s27 = scalar_select %p24, %s25, %s26
      %p30 = pneg %p24
      %p31 = scmp.eq.s32.totalorder %s15, 1
      %p32 = por %p30, %p31
      %p33 = scmp.ne.s32.totalorder %s25, %s28
      %p34 = scmp.eq.s32.totalorder %s15, 0
      %p35 = por %p33, %p34
      %p36 = scmp.ne.s32.totalorder %s25, %s28
      %p37 = scmp.eq.s32.totalorder %s20, 1
      %p38 = por %p36, %p37
      %p39 = scmp.ne.s32.totalorder %s28, %s29
      %p40 = scmp.eq.s32.totalorder %s20, 0
      %p41 = por %p39, %p40
      %p42 = scmp.ne.s32.totalorder %s28, %s29
      %p43 = scmp.eq.s32.totalorder %s21, 1
      %p44 = por %p42, %p43
      %p46 = scmp.ne.s32.totalorder %s29, %s45
      %p47 = scmp.eq.s32.totalorder %s21, 0
      %p48 = por %p46, %p47
      %s50 = sadd.s32 %s49, 1
      %p53 = scmp.eq.s32.totalorder %s15, 1
      %p54 = scmp.ne.s32.totalorder %s49, %s51
      %p55 = scmp.eq.s32.totalorder %s15, 0
      %p56 = por %p54, %p55
      %p57 = scmp.ne.s32.totalorder %s49, %s51
      %p58 = scmp.eq.s32.totalorder %s20, 1
      %p59 = por %p57, %p58
      %p60 = scmp.ne.s32.totalorder %s51, %s52
      %p61 = scmp.eq.s32.totalorder %s20, 0
      %p62 = por %p60, %p61
      %p63 = scmp.ne.s32.totalorder %s51, %s52
      %p64 = scmp.eq.s32.totalorder %s21, 1
      %p65 = por %p63, %p64
      %p67 = scmp.ne.s32.totalorder %s52, %s66
      %p68 = scmp.eq.s32.totalorder %s21, 0
      %p69 = por %p67, %p68
      %s70 = ssub.s32 %s15, %s22
      %p71 = scmp.eq.s32.totalorder %s70, 0
      %s73 = sadd.s32 %s72, 1
      %s74 = scalar_select %p71, %s72, %s73
      %p77 = pneg %p71
      %p78 = scmp.eq.s32.totalorder %s15, 1
      %p79 = por %p77, %p78
      %p80 = scmp.ne.s32.totalorder %s72, %s75
      %p81 = scmp.eq.s32.totalorder %s15, 0
      %p82 = por %p80, %p81
      %p83 = scmp.ne.s32.totalorder %s72, %s75
      %p84 = scmp.eq.s32.totalorder %s20, 1
      %p85 = por %p83, %p84
      %p86 = scmp.ne.s32.totalorder %s75, %s76
      %p87 = scmp.eq.s32.totalorder %s20, 0
      %p88 = por %p86, %p87
      %p89 = scmp.ne.s32.totalorder %s75, %s76
      %p90 = scmp.eq.s32.totalorder %s21, 1
      %p91 = por %p89, %p90
      %p93 = scmp.ne.s32.totalorder %s76, %s92
      %p94 = scmp.eq.s32.totalorder %s21, 0
      %p95 = por %p93, %p94
      %p96 = scmp.le.s32.totalorder 1, %s15
      %p97 = scmp.lt.s32.totalorder %s15, 3
      %p98 = pnand %p96, %p97
      %p99 = pneg %p98
      // Predicated region
      $region9: #{tpu_custom_call.1} parent=5 // pred_check
        _
      $region10: #{tpu_custom_call.1} parent=5 // pred_check_branch
        %101 = sbr.rel (%p98) target = $region12
      $region11: #{tpu_custom_call.1} parent=5 // pred_region
        %s102 = ssub.s32 %s15, 1
        // Predicated region
        $region13: #{tpu_custom_call.1} parent=11 // pred_check
          %p103 = pneg %p62
        $region14: #{tpu_custom_call.1} parent=11 // pred_check_branch
          %105 = sbr.rel (%p103) target = $region16
        $region15: #{tpu_custom_call.1} parent=11 // pred_region
          %s107 = ssub.s32 256, 256
          %108 = vsyncadd [#allocation6], %s107
          %s110 = sshll.u32 [#allocation5], 4
          %s111 = int_to_ptr.vmem [resolvable:$true] %s110
          %113 = dma.hbm_to_vmem [thread:$0]  %s1, 256, %s111, [#allocation6]
        $region16: #{tpu_custom_call.1} parent=11 // pred_fallthru
          _
      $region12: #{tpu_custom_call.1} parent=5 // pred_fallthru
        _
      %p114 = scmp.lt.s32.totalorder %s15, 2
      // Predicated region
      $region17: #{tpu_custom_call.1} parent=5 // pred_check
        %p115 = pneg %p114
      $region18: #{tpu_custom_call.1} parent=5 // pred_check_branch
        %117 = sbr.rel (%p115) target = $region20
      $region19: #{tpu_custom_call.1} parent=5 // pred_region
        // Predicated region
        $region21: #{tpu_custom_call.1} parent=19 // pred_check
          %p118 = pneg %p35
        $region22: #{tpu_custom_call.1} parent=19 // pred_check_branch
          %120 = sbr.rel (%p118) target = $region24
        $region23: #{tpu_custom_call.1} parent=19 // pred_region
          %s121 = sand.u32 %s25, 1
          %s122 = scalar_lea.sflag [#allocation3], %s121
          %s123 = sand.u32 %s25, 1
          %s124 = smul.addr %s123, 16
          %s125 = scalar_lea.vmem [#allocation2], %s124
          %s126 = smul.u32 4, %s15
          %s128 = ssub.s32 256, 256
          %129 = vsyncadd %s122, %s128
          %s130 = smul.addr %s126, 64
          %s131 = scalar_lea.hbm %s0, %s130
          %s133 = sshll.u32 %s125, 4
          %s134 = int_to_ptr.vmem [resolvable:$true] %s133
          %136 = dma.hbm_to_vmem [thread:$0]  %s131, 256, %s134, %s122
        $region24: #{tpu_custom_call.1} parent=19 // pred_fallthru
          _
      $region20: #{tpu_custom_call.1} parent=5 // pred_fallthru
        _
      %p137 = scmp.le.s32.totalorder 1, %s15
      %p138 = scmp.lt.s32.totalorder %s15, 3
      %p139 = pnand %p137, %p138
      %p140 = pneg %p139
      // Predicated region
      $region25: #{tpu_custom_call.1} parent=5 // pred_check
        _
      $region26: #{tpu_custom_call.1} parent=5 // pred_check_branch
        %142 = sbr.rel (%p139) target = $region28
      $region27: #{tpu_custom_call.1} parent=5 // pred_region
        %s143 = ssub.s32 %s15, 1
        %s144 = sand.u32 %s28, 1
        %s145 = scalar_lea.sflag [#allocation3], %s144
        %s146 = sand.u32 %s28, 1
        %s147 = smul.addr %s146, 16
        %s148 = scalar_lea.vmem [#allocation2], %s147
        // Predicated region
        $region29: #{tpu_custom_call.1} parent=27 // pred_check
          %p149 = pneg %p41
        $region30: #{tpu_custom_call.1} parent=27 // pred_check_branch
          %151 = sbr.rel (%p149) target = $region32
        $region31: #{tpu_custom_call.1} parent=27 // pred_region
          %152 = dma.done %s145, 256
        $region32: #{tpu_custom_call.1} parent=27 // pred_fallthru
          _
        // Predicated region
        $region33: #{tpu_custom_call.1} parent=27 // pred_check
          %p153 = pneg %p62
        $region34: #{tpu_custom_call.1} parent=27 // pred_check_branch
          %155 = sbr.rel (%p153) target = $region36
        $region35: #{tpu_custom_call.1} parent=27 // pred_region
          %156 = dma.done [#allocation6], 256
        $region36: #{tpu_custom_call.1} parent=27 // pred_fallthru
          _
        %s157 = sand.u32 %s28, 1
        %s158 = scalar_lea.sflag [#allocation3], %s157
        %s159 = sand.u32 %s28, 1
        %s160 = smul.addr %s159, 16
        %s161 = scalar_lea.vmem [#allocation2], %s160
        %p162 = pneg %p41
        %p163 = pneg %p38
        %p164 = pneg %p62
        %p165 = pneg %p59
        %p166 = pneg %p88
        %p167 = pneg %p85
        %s168 = sand.u32 %s75, 1
        %s169 = scalar_lea.sflag [#allocation4], %s168
        %s170 = sand.u32 %s75, 1
        %s171 = smul.addr %s170, 32
        %s172 = scalar_lea.vmem [#allocation7], %s171
        %s173 = smul.u32 4, %s20
        %s174 = smul.u32 4, %s20
        %v175 = vld [vmem:[%s148] ss:$4 sm:$0xf]
        %s176 = scalar_lea.vmem %s148, 1 [#allocation2]
        %v177 = vld [vmem:[%s176] ss:$4 sm:$0xf]
        %s178 = scalar_lea.vmem %s148, 2 [#allocation2]
        %v179 = vld [vmem:[%s178] ss:$4 sm:$0xf]
        %v180 = vlaneseq
        %v181 = vshrl.u32 %v180, 7
        %v182 = vmul.f32 %v175, 4.0
        %v183 = vmul.f32 %v177, 4.0
        %v184 = vmul.f32 %v179, 4.0
        %v185 = vfloor.f32 %v182
        %v186 = vfloor.f32 %v183
        %v187 = vfloor.f32 %v184
        %v188 = vsub.f32 %v182, %v185
        %v189 = vsub.f32 %v183, %v186
        %v190 = vsub.f32 %v184, %v187
        %v191 = vcvt.f32.s32.to.zero.pseudo %v185
        %v192 = vand.u32 %v191, 7
        %v193 = vcvt.f32.s32.to.zero.pseudo %v186
        %v194 = vand.u32 %v193, 7
        %v195 = vcvt.f32.s32.to.zero.pseudo %v187
        %v196 = vand.u32 %v195, 7
        %v197 = vceil.f32 %v182
        %v198 = vcvt.f32.s32.to.zero.pseudo %v197
        %v199 = vand.u32 %v198, 7
        %v200 = vceil.f32 %v183
        %v201 = vcvt.f32.s32.to.zero.pseudo %v200
        %v202 = vand.u32 %v201, 7
        %v203 = vceil.f32 %v184
        %v204 = vcvt.f32.s32.to.zero.pseudo %v203
        %v205 = vand.u32 %v204, 7
        %v206 = vlaneseq
        %v207 = vshrl.u32 %v206, 7
        %v208 = vsub.s32 0, %v207
        %v209 = vrot.slane %v192, %v208
        %v210 = vlaneseq
        %v211 = vshrl.u32 %v210, 7
        %v212 = vsub.s32 1, %v211
        %v213 = vrot.slane %v192, %v212
        %v214 = vlaneseq
        %v215 = vshrl.u32 %v214, 7
        %v216 = vsub.s32 2, %v215
        %v217 = vrot.slane %v192, %v216
        %v218 = vlaneseq
        %v219 = vshrl.u32 %v218, 7
        %v220 = vsub.s32 3, %v219
        %v221 = vrot.slane %v192, %v220
        %vm222 = vcmp.eq.s32.totalorder %v181, %v209
        %vm223 = vcmp.eq.s32.totalorder %v181, %v213
        %vm224 = vcmp.eq.s32.totalorder %v181, %v217
        %vm225 = vcmp.eq.s32.totalorder %v181, %v221
        %v226 = vsub.f32 1.0, %v188
        %v228 = vlaneseq
        %v229 = vshrl.u32 %v228, 7
        %v230 = vsub.s32 0, %v229
        %v231 = vrot.slane %v226, %v230
        %v232 = vlaneseq
        %v233 = vshrl.u32 %v232, 7
        %v234 = vsub.s32 1, %v233
        %v235 = vrot.slane %v226, %v234
        %v236 = vlaneseq
        %v237 = vshrl.u32 %v236, 7
        %v238 = vsub.s32 2, %v237
        %v239 = vrot.slane %v226, %v238
        %v240 = vlaneseq
        %v241 = vshrl.u32 %v240, 7
        %v242 = vsub.s32 3, %v241
        %v243 = vrot.slane %v226, %v242
        %v248 = vsel %vm222, %v231, 0.0
        %v249 = vsel %vm223, %v235, 0.0
        %v250 = vsel %vm224, %v239, 0.0
        %v251 = vsel %vm225, %v243, 0.0
        %v252 = vlaneseq
        %v253 = vshrl.u32 %v252, 7
        %v254 = vsub.s32 0, %v253
        %v255 = vrot.slane %v199, %v254
        %v256 = vlaneseq
        %v257 = vshrl.u32 %v256, 7
        %v258 = vsub.s32 1, %v257
        %v259 = vrot.slane %v199, %v258
        %v260 = vlaneseq
        %v261 = vshrl.u32 %v260, 7
        %v262 = vsub.s32 2, %v261
        %v263 = vrot.slane %v199, %v262
        %v264 = vlaneseq
        %v265 = vshrl.u32 %v264, 7
        %v266 = vsub.s32 3, %v265
        %v267 = vrot.slane %v199, %v266
        %vm268 = vcmp.eq.s32.totalorder %v181, %v255
        %vm269 = vcmp.eq.s32.totalorder %v181, %v259
        %vm270 = vcmp.eq.s32.totalorder %v181, %v263
        %vm271 = vcmp.eq.s32.totalorder %v181, %v267
        %v273 = vlaneseq
        %v274 = vshrl.u32 %v273, 7
        %v275 = vsub.s32 0, %v274
        %v276 = vrot.slane %v188, %v275
        %v277 = vlaneseq
        %v278 = vshrl.u32 %v277, 7
        %v279 = vsub.s32 1, %v278
        %v280 = vrot.slane %v188, %v279
        %v281 = vlaneseq
        %v282 = vshrl.u32 %v281, 7
        %v283 = vsub.s32 2, %v282
        %v284 = vrot.slane %v188, %v283
        %v285 = vlaneseq
        %v286 = vshrl.u32 %v285, 7
        %v287 = vsub.s32 3, %v286
        %v288 = vrot.slane %v188, %v287
        %v293 = vsel %vm268, %v276, 0.0
        %v294 = vsel %vm269, %v280, 0.0
        %v295 = vsel %vm270, %v284, 0.0
        %v296 = vsel %vm271, %v288, 0.0
        %v297 = vadd.f32 %v248, %v293
        %v298 = vadd.f32 %v249, %v294
        %v299 = vadd.f32 %v250, %v295
        %v300 = vadd.f32 %v251, %v296
        %v301 = vlaneseq
        %v302 = vshrl.u32 %v301, 7
        %v303 = vsub.s32 0, %v302
        %v304 = vrot.slane %v194, %v303
        %v305 = vlaneseq
        %v306 = vshrl.u32 %v305, 7
        %v307 = vsub.s32 1, %v306
        %v308 = vrot.slane %v194, %v307
        %v309 = vlaneseq
        %v310 = vshrl.u32 %v309, 7
        %v311 = vsub.s32 2, %v310
        %v312 = vrot.slane %v194, %v311
        %v313 = vlaneseq
        %v314 = vshrl.u32 %v313, 7
        %v315 = vsub.s32 3, %v314
        %v316 = vrot.slane %v194, %v315
        %vm317 = vcmp.eq.s32.totalorder %v181, %v304
        %vm318 = vcmp.eq.s32.totalorder %v181, %v308
        %vm319 = vcmp.eq.s32.totalorder %v181, %v312
        %vm320 = vcmp.eq.s32.totalorder %v181, %v316
        %v321 = vsub.f32 1.0, %v189
        %v323 = vlaneseq
        %v324 = vshrl.u32 %v323, 7
        %v325 = vsub.s32 0, %v324
        %v326 = vrot.slane %v321, %v325
        %v327 = vlaneseq
        %v328 = vshrl.u32 %v327, 7
        %v329 = vsub.s32 1, %v328
        %v330 = vrot.slane %v321, %v329
        %v331 = vlaneseq
        %v332 = vshrl.u32 %v331, 7
        %v333 = vsub.s32 2, %v332
        %v334 = vrot.slane %v321, %v333
        %v335 = vlaneseq
        %v336 = vshrl.u32 %v335, 7
        %v337 = vsub.s32 3, %v336
        %v338 = vrot.slane %v321, %v337
        %v343 = vsel %vm317, %v326, 0.0
        %v344 = vsel %vm318, %v330, 0.0
        %v345 = vsel %vm319, %v334, 0.0
        %v346 = vsel %vm320, %v338, 0.0
        %v347 = vlaneseq
        %v348 = vshrl.u32 %v347, 7
        %v349 = vsub.s32 0, %v348
        %v350 = vrot.slane %v202, %v349
        %v351 = vlaneseq
        %v352 = vshrl.u32 %v351, 7
        %v353 = vsub.s32 1, %v352
        %v354 = vrot.slane %v202, %v353
        %v355 = vlaneseq
        %v356 = vshrl.u32 %v355, 7
        %v357 = vsub.s32 2, %v356
        %v358 = vrot.slane %v202, %v357
        %v359 = vlaneseq
        %v360 = vshrl.u32 %v359, 7
        %v361 = vsub.s32 3, %v360
        %v362 = vrot.slane %v202, %v361
        %vm363 = vcmp.eq.s32.totalorder %v181, %v350
        %vm364 = vcmp.eq.s32.totalorder %v181, %v354
        %vm365 = vcmp.eq.s32.totalorder %v181, %v358
        %vm366 = vcmp.eq.s32.totalorder %v181, %v362
        %v368 = vlaneseq
        %v369 = vshrl.u32 %v368, 7
        %v370 = vsub.s32 0, %v369
        %v371 = vrot.slane %v189, %v370
        %v372 = vlaneseq
        %v373 = vshrl.u32 %v372, 7
        %v374 = vsub.s32 1, %v373
        %v375 = vrot.slane %v189, %v374
        %v376 = vlaneseq
        %v377 = vshrl.u32 %v376, 7
        %v378 = vsub.s32 2, %v377
        %v379 = vrot.slane %v189, %v378
        %v380 = vlaneseq
        %v381 = vshrl.u32 %v380, 7
        %v382 = vsub.s32 3, %v381
        %v383 = vrot.slane %v189, %v382
        %v388 = vsel %vm363, %v371, 0.0
        %v389 = vsel %vm364, %v375, 0.0
        %v390 = vsel %vm365, %v379, 0.0
        %v391 = vsel %vm366, %v383, 0.0
        %v392 = vadd.f32 %v343, %v388
        %v393 = vadd.f32 %v344, %v389
        %v394 = vadd.f32 %v345, %v390
        %v395 = vadd.f32 %v346, %v391
        %v396 = vlaneseq
        %v397 = vshrl.u32 %v396, 7
        %v398 = vsub.s32 0, %v397
        %v399 = vrot.slane %v196, %v398
        %v400 = vlaneseq
        %v401 = vshrl.u32 %v400, 7
        %v402 = vsub.s32 1, %v401
        %v403 = vrot.slane %v196, %v402
        %v404 = vlaneseq
        %v405 = vshrl.u32 %v404, 7
        %v406 = vsub.s32 2, %v405
        %v407 = vrot.slane %v196, %v406
        %v408 = vlaneseq
        %v409 = vshrl.u32 %v408, 7
        %v410 = vsub.s32 3, %v409
        %v411 = vrot.slane %v196, %v410
        %vm412 = vcmp.eq.s32.totalorder %v181, %v399
        %vm413 = vcmp.eq.s32.totalorder %v181, %v403
        %vm414 = vcmp.eq.s32.totalorder %v181, %v407
        %vm415 = vcmp.eq.s32.totalorder %v181, %v411
        %v416 = vsub.f32 1.0, %v190
        %v418 = vlaneseq
        %v419 = vshrl.u32 %v418, 7
        %v420 = vsub.s32 0, %v419
        %v421 = vrot.slane %v416, %v420
        %v422 = vlaneseq
        %v423 = vshrl.u32 %v422, 7
        %v424 = vsub.s32 1, %v423
        %v425 = vrot.slane %v416, %v424
        %v426 = vlaneseq
        %v427 = vshrl.u32 %v426, 7
        %v428 = vsub.s32 2, %v427
        %v429 = vrot.slane %v416, %v428
        %v430 = vlaneseq
        %v431 = vshrl.u32 %v430, 7
        %v432 = vsub.s32 3, %v431
        %v433 = vrot.slane %v416, %v432
        %v438 = vsel %vm412, %v421, 0.0
        %v439 = vsel %vm413, %v425, 0.0
        %v440 = vsel %vm414, %v429, 0.0
        %v441 = vsel %vm415, %v433, 0.0
        %v442 = vlaneseq
        %v443 = vshrl.u32 %v442, 7
        %v444 = vsub.s32 0, %v443
        %v445 = vrot.slane %v205, %v444
        %v446 = vlaneseq
        %v447 = vshrl.u32 %v446, 7
        %v448 = vsub.s32 1, %v447
        %v449 = vrot.slane %v205, %v448
        %v450 = vlaneseq
        %v451 = vshrl.u32 %v450, 7
        %v452 = vsub.s32 2, %v451
        %v453 = vrot.slane %v205, %v452
        %v454 = vlaneseq
        %v455 = vshrl.u32 %v454, 7
        %v456 = vsub.s32 3, %v455
        %v457 = vrot.slane %v205, %v456
        %vm458 = vcmp.eq.s32.totalorder %v181, %v445
        %vm459 = vcmp.eq.s32.totalorder %v181, %v449
        %vm460 = vcmp.eq.s32.totalorder %v181, %v453
        %vm461 = vcmp.eq.s32.totalorder %v181, %v457
        %v463 = vlaneseq
        %v464 = vshrl.u32 %v463, 7
        %v465 = vsub.s32 0, %v464
        %v466 = vrot.slane %v190, %v465
        %v467 = vlaneseq
        %v468 = vshrl.u32 %v467, 7
        %v469 = vsub.s32 1, %v468
        %v470 = vrot.slane %v190, %v469
        %v471 = vlaneseq
        %v472 = vshrl.u32 %v471, 7
        %v473 = vsub.s32 2, %v472
        %v474 = vrot.slane %v190, %v473
        %v475 = vlaneseq
        %v476 = vshrl.u32 %v475, 7
        %v477 = vsub.s32 3, %v476
        %v478 = vrot.slane %v190, %v477
        %v483 = vsel %vm458, %v466, 0.0
        %v484 = vsel %vm459, %v470, 0.0
        %v485 = vsel %vm460, %v474, 0.0
        %v486 = vsel %vm461, %v478, 0.0
        %v487 = vadd.f32 %v438, %v483
        %v488 = vadd.f32 %v439, %v484
        %v489 = vadd.f32 %v440, %v485
        %v490 = vadd.f32 %v441, %v486
        %v495 = vcombine.low %v297, %v298
        %v496 = vcombine.high %v297, %v298
        %v497 = vcombine.low %v299, %v300
        %v498 = vcombine.high %v299, %v300
        %v500 = vunpack.c.l.s4 1966171168
        %v501 = vunpack.c.0.s8 %v500
        %v502 = vlaneseq
        %v503 = vshrl.u32 %v502, 7
        %v504 = vsub.s32 %v501, %v503
        %v505 = vrot.slane %v495, %v504
        %v507 = vunpack.c.l.s4 1966171168
        %v508 = vunpack.c.0.s8 %v507
        %v509 = vlaneseq
        %v510 = vshrl.u32 %v509, 7
        %v511 = vsub.s32 %v508, %v510
        %v512 = vrot.slane %v496, %v511
        %v514 = vunpack.c.l.s4 1966171168
        %v515 = vunpack.c.0.s8 %v514
        %v516 = vlaneseq
        %v517 = vshrl.u32 %v516, 7
        %v518 = vsub.s32 %v515, %v517
        %v519 = vrot.slane %v497, %v518
        %v521 = vunpack.c.l.s4 1966171168
        %v522 = vunpack.c.0.s8 %v521
        %v523 = vlaneseq
        %v524 = vshrl.u32 %v523, 7
        %v525 = vsub.s32 %v522, %v524
        %v526 = vrot.slane %v498, %v525
        %v527 = vcombine.low %v505, %v519
        %v528 = vcombine.high %v505, %v519
        %v529 = vcombine.low %v512, %v526
        %v530 = vcombine.high %v512, %v526
        %v532 = vunpack.c.l.s4 1966171168
        %v533 = vunpack.c.0.s8 %v532
        %v534 = vlaneseq
        %v535 = vshrl.u32 %v534, 7
        %v536 = vsub.s32 %v533, %v535
        %v537 = vrot.slane %v527, %v536
        %v539 = vunpack.c.l.s4 1966171168
        %v540 = vunpack.c.0.s8 %v539
        %v541 = vlaneseq
        %v542 = vshrl.u32 %v541, 7
        %v543 = vsub.s32 %v540, %v542
        %v544 = vrot.slane %v529, %v543
        %v546 = vunpack.c.l.s4 1966171168
        %v547 = vunpack.c.0.s8 %v546
        %v548 = vlaneseq
        %v549 = vshrl.u32 %v548, 7
        %v550 = vsub.s32 %v547, %v549
        %v551 = vrot.slane %v528, %v550
        %v553 = vunpack.c.l.s4 1966171168
        %v554 = vunpack.c.0.s8 %v553
        %v555 = vlaneseq
        %v556 = vshrl.u32 %v555, 7
        %v557 = vsub.s32 %v554, %v556
        %v558 = vrot.slane %v530, %v557
        %v559 = vcombine.high %v537, %v537
        %v560 = vcombine.high %v544, %v544
        %v561 = vcombine.high %v551, %v551
        %v562 = vcombine.high %v558, %v558
        %v563 = vlaneseq
        %v564 = vshrl.u32 %v563, 7
        %v565 = vsub.s32 0, %v564
        %v566 = vrot.slane %v537, %v565
        %v567 = vlaneseq
        %v568 = vshrl.u32 %v567, 7
        %v569 = vsub.s32 1, %v568
        %v570 = vrot.slane %v537, %v569
        %v571 = vlaneseq
        %v572 = vshrl.u32 %v571, 7
        %v573 = vsub.s32 2, %v572
        %v574 = vrot.slane %v537, %v573
        %v575 = vlaneseq
        %v576 = vshrl.u32 %v575, 7
        %v577 = vsub.s32 3, %v576
        %v578 = vrot.slane %v537, %v577
        %v579 = vlaneseq
        %v580 = vshrl.u32 %v579, 7
        %v581 = vsub.s32 0, %v580
        %v582 = vrot.slane %v551, %v581
        %v583 = vlaneseq
        %v584 = vshrl.u32 %v583, 7
        %v585 = vsub.s32 1, %v584
        %v586 = vrot.slane %v551, %v585
        %v587 = vlaneseq
        %v588 = vshrl.u32 %v587, 7
        %v589 = vsub.s32 2, %v588
        %v590 = vrot.slane %v551, %v589
        %v591 = vlaneseq
        %v592 = vshrl.u32 %v591, 7
        %v593 = vsub.s32 3, %v592
        %v594 = vrot.slane %v551, %v593
        %v595 = vlaneseq
        %v596 = vshrl.u32 %v595, 7
        %v597 = vsub.s32 0, %v596
        %v598 = vrot.slane %v559, %v597
        %v599 = vlaneseq
        %v600 = vshrl.u32 %v599, 7
        %v601 = vsub.s32 1, %v600
        %v602 = vrot.slane %v559, %v601
        %v603 = vlaneseq
        %v604 = vshrl.u32 %v603, 7
        %v605 = vsub.s32 2, %v604
        %v606 = vrot.slane %v559, %v605
        %v607 = vlaneseq
        %v608 = vshrl.u32 %v607, 7
        %v609 = vsub.s32 3, %v608
        %v610 = vrot.slane %v559, %v609
        %v611 = vlaneseq
        %v612 = vshrl.u32 %v611, 7
        %v613 = vsub.s32 0, %v612
        %v614 = vrot.slane %v561, %v613
        %v615 = vlaneseq
        %v616 = vshrl.u32 %v615, 7
        %v617 = vsub.s32 1, %v616
        %v618 = vrot.slane %v561, %v617
        %v619 = vlaneseq
        %v620 = vshrl.u32 %v619, 7
        %v621 = vsub.s32 2, %v620
        %v622 = vrot.slane %v561, %v621
        %v623 = vlaneseq
        %v624 = vshrl.u32 %v623, 7
        %v625 = vsub.s32 3, %v624
        %v626 = vrot.slane %v561, %v625
        %v627 = vlaneseq
        %v628 = vshrl.u32 %v627, 7
        %v629 = vsub.s32 0, %v628
        %v630 = vrot.slane %v544, %v629
        %v631 = vlaneseq
        %v632 = vshrl.u32 %v631, 7
        %v633 = vsub.s32 1, %v632
        %v634 = vrot.slane %v544, %v633
        %v635 = vlaneseq
        %v636 = vshrl.u32 %v635, 7
        %v637 = vsub.s32 2, %v636
        %v638 = vrot.slane %v544, %v637
        %v639 = vlaneseq
        %v640 = vshrl.u32 %v639, 7
        %v641 = vsub.s32 3, %v640
        %v642 = vrot.slane %v544, %v641
        %v643 = vlaneseq
        %v644 = vshrl.u32 %v643, 7
        %v645 = vsub.s32 0, %v644
        %v646 = vrot.slane %v558, %v645
        %v647 = vlaneseq
        %v648 = vshrl.u32 %v647, 7
        %v649 = vsub.s32 1, %v648
        %v650 = vrot.slane %v558, %v649
        %v651 = vlaneseq
        %v652 = vshrl.u32 %v651, 7
        %v653 = vsub.s32 2, %v652
        %v654 = vrot.slane %v558, %v653
        %v655 = vlaneseq
        %v656 = vshrl.u32 %v655, 7
        %v657 = vsub.s32 3, %v656
        %v658 = vrot.slane %v558, %v657
        %v659 = vlaneseq
        %v660 = vshrl.u32 %v659, 7
        %v661 = vsub.s32 0, %v660
        %v662 = vrot.slane %v560, %v661
        %v663 = vlaneseq
        %v664 = vshrl.u32 %v663, 7
        %v665 = vsub.s32 1, %v664
        %v666 = vrot.slane %v560, %v665
        %v667 = vlaneseq
        %v668 = vshrl.u32 %v667, 7
        %v669 = vsub.s32 2, %v668
        %v670 = vrot.slane %v560, %v669
        %v671 = vlaneseq
        %v672 = vshrl.u32 %v671, 7
        %v673 = vsub.s32 3, %v672
        %v674 = vrot.slane %v560, %v673
        %v675 = vlaneseq
        %v676 = vshrl.u32 %v675, 7
        %v677 = vsub.s32 0, %v676
        %v678 = vrot.slane %v562, %v677
        %v679 = vlaneseq
        %v680 = vshrl.u32 %v679, 7
        %v681 = vsub.s32 1, %v680
        %v682 = vrot.slane %v562, %v681
        %v683 = vlaneseq
        %v684 = vshrl.u32 %v683, 7
        %v685 = vsub.s32 2, %v684
        %v686 = vrot.slane %v562, %v685
        %v687 = vlaneseq
        %v688 = vshrl.u32 %v687, 7
        %v689 = vsub.s32 3, %v688
        %v690 = vrot.slane %v562, %v689
        %v723 = vmul.f32 %v566, %v392
        %v724 = vmul.f32 %v570, %v393
        %v725 = vmul.f32 %v574, %v394
        %v726 = vmul.f32 %v578, %v395
        %v727 = vmul.f32 %v582, %v392
        %v728 = vmul.f32 %v586, %v393
        %v729 = vmul.f32 %v590, %v394
        %v730 = vmul.f32 %v594, %v395
        %v731 = vmul.f32 %v598, %v392
        %v732 = vmul.f32 %v602, %v393
        %v733 = vmul.f32 %v606, %v394
        %v734 = vmul.f32 %v610, %v395
        %v735 = vmul.f32 %v614, %v392
        %v736 = vmul.f32 %v618, %v393
        %v737 = vmul.f32 %v622, %v394
        %v738 = vmul.f32 %v626, %v395
        %v739 = vmul.f32 %v630, %v392
        %v740 = vmul.f32 %v634, %v393
        %v741 = vmul.f32 %v638, %v394
        %v742 = vmul.f32 %v642, %v395
        %v743 = vmul.f32 %v646, %v392
        %v744 = vmul.f32 %v650, %v393
        %v745 = vmul.f32 %v654, %v394
        %v746 = vmul.f32 %v658, %v395
        %v747 = vmul.f32 %v662, %v392
        %v748 = vmul.f32 %v666, %v393
        %v749 = vmul.f32 %v670, %v394
        %v750 = vmul.f32 %v674, %v395
        %v751 = vmul.f32 %v678, %v392
        %v752 = vmul.f32 %v682, %v393
        %v753 = vmul.f32 %v686, %v394
        %v754 = vmul.f32 %v690, %v395
        %v787 = vcombine.low %v723, %v724
        %v788 = vcombine.high %v723, %v724
        %v789 = vcombine.low %v725, %v726
        %v790 = vcombine.high %v725, %v726
        %v792 = vunpack.c.l.s4 1966171168
        %v793 = vunpack.c.0.s8 %v792
        %v794 = vlaneseq
        %v795 = vshrl.u32 %v794, 7
        %v796 = vsub.s32 %v793, %v795
        %v797 = vrot.slane %v787, %v796
        %v799 = vunpack.c.l.s4 1966171168
        %v800 = vunpack.c.0.s8 %v799
        %v801 = vlaneseq
        %v802 = vshrl.u32 %v801, 7
        %v803 = vsub.s32 %v800, %v802
        %v804 = vrot.slane %v788, %v803
        %v806 = vunpack.c.l.s4 1966171168
        %v807 = vunpack.c.0.s8 %v806
        %v808 = vlaneseq
        %v809 = vshrl.u32 %v808, 7
        %v810 = vsub.s32 %v807, %v809
        %v811 = vrot.slane %v789, %v810
        %v813 = vunpack.c.l.s4 1966171168
        %v814 = vunpack.c.0.s8 %v813
        %v815 = vlaneseq
        %v816 = vshrl.u32 %v815, 7
        %v817 = vsub.s32 %v814, %v816
        %v818 = vrot.slane %v790, %v817
        %v819 = vcombine.low %v797, %v811
        %v820 = vcombine.high %v797, %v811
        %v821 = vcombine.low %v804, %v818
        %v822 = vcombine.high %v804, %v818
        %v824 = vunpack.c.l.s4 1966171168
        %v825 = vunpack.c.0.s8 %v824
        %v826 = vlaneseq
        %v827 = vshrl.u32 %v826, 7
        %v828 = vsub.s32 %v825, %v827
        %v829 = vrot.slane %v819, %v828
        %v831 = vunpack.c.l.s4 1966171168
        %v832 = vunpack.c.0.s8 %v831
        %v833 = vlaneseq
        %v834 = vshrl.u32 %v833, 7
        %v835 = vsub.s32 %v832, %v834
        %v836 = vrot.slane %v821, %v835
        %v838 = vunpack.c.l.s4 1966171168
        %v839 = vunpack.c.0.s8 %v838
        %v840 = vlaneseq
        %v841 = vshrl.u32 %v840, 7
        %v842 = vsub.s32 %v839, %v841
        %v843 = vrot.slane %v820, %v842
        %v845 = vunpack.c.l.s4 1966171168
        %v846 = vunpack.c.0.s8 %v845
        %v847 = vlaneseq
        %v848 = vshrl.u32 %v847, 7
        %v849 = vsub.s32 %v846, %v848
        %v850 = vrot.slane %v822, %v849
        %v851 = vcombine.high %v829, %v829
        %v852 = vcombine.high %v836, %v836
        %v853 = vcombine.high %v843, %v843
        %v854 = vcombine.high %v850, %v850
        %v855 = vcombine.low %v727, %v728
        %v856 = vcombine.high %v727, %v728
        %v857 = vcombine.low %v729, %v730
        %v858 = vcombine.high %v729, %v730
        %v860 = vunpack.c.l.s4 1966171168
        %v861 = vunpack.c.0.s8 %v860
        %v862 = vlaneseq
        %v863 = vshrl.u32 %v862, 7
        %v864 = vsub.s32 %v861, %v863
        %v865 = vrot.slane %v855, %v864
        %v867 = vunpack.c.l.s4 1966171168
        %v868 = vunpack.c.0.s8 %v867
        %v869 = vlaneseq
        %v870 = vshrl.u32 %v869, 7
        %v871 = vsub.s32 %v868, %v870
        %v872 = vrot.slane %v856, %v871
        %v874 = vunpack.c.l.s4 1966171168
        %v875 = vunpack.c.0.s8 %v874
        %v876 = vlaneseq
        %v877 = vshrl.u32 %v876, 7
        %v878 = vsub.s32 %v875, %v877
        %v879 = vrot.slane %v857, %v878
        %v881 = vunpack.c.l.s4 1966171168
        %v882 = vunpack.c.0.s8 %v881
        %v883 = vlaneseq
        %v884 = vshrl.u32 %v883, 7
        %v885 = vsub.s32 %v882, %v884
        %v886 = vrot.slane %v858, %v885
        %v887 = vcombine.low %v865, %v879
        %v888 = vcombine.high %v865, %v879
        %v889 = vcombine.low %v872, %v886
        %v890 = vcombine.high %v872, %v886
        %v892 = vunpack.c.l.s4 1966171168
        %v893 = vunpack.c.0.s8 %v892
        %v894 = vlaneseq
        %v895 = vshrl.u32 %v894, 7
        %v896 = vsub.s32 %v893, %v895
        %v897 = vrot.slane %v887, %v896
        %v899 = vunpack.c.l.s4 1966171168
        %v900 = vunpack.c.0.s8 %v899
        %v901 = vlaneseq
        %v902 = vshrl.u32 %v901, 7
        %v903 = vsub.s32 %v900, %v902
        %v904 = vrot.slane %v889, %v903
        %v906 = vunpack.c.l.s4 1966171168
        %v907 = vunpack.c.0.s8 %v906
        %v908 = vlaneseq
        %v909 = vshrl.u32 %v908, 7
        %v910 = vsub.s32 %v907, %v909
        %v911 = vrot.slane %v888, %v910
        %v913 = vunpack.c.l.s4 1966171168
        %v914 = vunpack.c.0.s8 %v913
        %v915 = vlaneseq
        %v916 = vshrl.u32 %v915, 7
        %v917 = vsub.s32 %v914, %v916
        %v918 = vrot.slane %v890, %v917
        %v919 = vcombine.high %v897, %v897
        %v920 = vcombine.high %v904, %v904
        %v921 = vcombine.high %v911, %v911
        %v922 = vcombine.high %v918, %v918
        %v923 = vcombine.low %v731, %v732
        %v924 = vcombine.high %v731, %v732
        %v925 = vcombine.low %v733, %v734
        %v926 = vcombine.high %v733, %v734
        %v928 = vunpack.c.l.s4 1966171168
        %v929 = vunpack.c.0.s8 %v928
        %v930 = vlaneseq
        %v931 = vshrl.u32 %v930, 7
        %v932 = vsub.s32 %v929, %v931
        %v933 = vrot.slane %v923, %v932
        %v935 = vunpack.c.l.s4 1966171168
        %v936 = vunpack.c.0.s8 %v935
        %v937 = vlaneseq
        %v938 = vshrl.u32 %v937, 7
        %v939 = vsub.s32 %v936, %v938
        %v940 = vrot.slane %v924, %v939
        %v942 = vunpack.c.l.s4 1966171168
        %v943 = vunpack.c.0.s8 %v942
        %v944 = vlaneseq
        %v945 = vshrl.u32 %v944, 7
        %v946 = vsub.s32 %v943, %v945
        %v947 = vrot.slane %v925, %v946
        %v949 = vunpack.c.l.s4 1966171168
        %v950 = vunpack.c.0.s8 %v949
        %v951 = vlaneseq
        %v952 = vshrl.u32 %v951, 7
        %v953 = vsub.s32 %v950, %v952
        %v954 = vrot.slane %v926, %v953
        %v955 = vcombine.low %v933, %v947
        %v956 = vcombine.high %v933, %v947
        %v957 = vcombine.low %v940, %v954
        %v958 = vcombine.high %v940, %v954
        %v960 = vunpack.c.l.s4 1966171168
        %v961 = vunpack.c.0.s8 %v960
        %v962 = vlaneseq
        %v963 = vshrl.u32 %v962, 7
        %v964 = vsub.s32 %v961, %v963
        %v965 = vrot.slane %v955, %v964
        %v967 = vunpack.c.l.s4 1966171168
        %v968 = vunpack.c.0.s8 %v967
        %v969 = vlaneseq
        %v970 = vshrl.u32 %v969, 7
        %v971 = vsub.s32 %v968, %v970
        %v972 = vrot.slane %v957, %v971
        %v974 = vunpack.c.l.s4 1966171168
        %v975 = vunpack.c.0.s8 %v974
        %v976 = vlaneseq
        %v977 = vshrl.u32 %v976, 7
        %v978 = vsub.s32 %v975, %v977
        %v979 = vrot.slane %v956, %v978
        %v981 = vunpack.c.l.s4 1966171168
        %v982 = vunpack.c.0.s8 %v981
        %v983 = vlaneseq
        %v984 = vshrl.u32 %v983, 7
        %v985 = vsub.s32 %v982, %v984
        %v986 = vrot.slane %v958, %v985
        %v987 = vcombine.high %v965, %v965
        %v988 = vcombine.high %v972, %v972
        %v989 = vcombine.high %v979, %v979
        %v990 = vcombine.high %v986, %v986
        %v991 = vcombine.low %v735, %v736
        %v992 = vcombine.high %v735, %v736
        %v993 = vcombine.low %v737, %v738
        %v994 = vcombine.high %v737, %v738
        %v996 = vunpack.c.l.s4 1966171168
        %v997 = vunpack.c.0.s8 %v996
        %v998 = vlaneseq
        %v999 = vshrl.u32 %v998, 7
        %v1000 = vsub.s32 %v997, %v999
        %v1001 = vrot.slane %v991, %v1000
        %v1003 = vunpack.c.l.s4 1966171168
        %v1004 = vunpack.c.0.s8 %v1003
        %v1005 = vlaneseq
        %v1006 = vshrl.u32 %v1005, 7
        %v1007 = vsub.s32 %v1004, %v1006
        %v1008 = vrot.slane %v992, %v1007
        %v1010 = vunpack.c.l.s4 1966171168
        %v1011 = vunpack.c.0.s8 %v1010
        %v1012 = vlaneseq
        %v1013 = vshrl.u32 %v1012, 7
        %v1014 = vsub.s32 %v1011, %v1013
        %v1015 = vrot.slane %v993, %v1014
        %v1017 = vunpack.c.l.s4 1966171168
        %v1018 = vunpack.c.0.s8 %v1017
        %v1019 = vlaneseq
        %v1020 = vshrl.u32 %v1019, 7
        %v1021 = vsub.s32 %v1018, %v1020
        %v1022 = vrot.slane %v994, %v1021
        %v1023 = vcombine.low %v1001, %v1015
        %v1024 = vcombine.high %v1001, %v1015
        %v1025 = vcombine.low %v1008, %v1022
        %v1026 = vcombine.high %v1008, %v1022
        %v1028 = vunpack.c.l.s4 1966171168
        %v1029 = vunpack.c.0.s8 %v1028
        %v1030 = vlaneseq
        %v1031 = vshrl.u32 %v1030, 7
        %v1032 = vsub.s32 %v1029, %v1031
        %v1033 = vrot.slane %v1023, %v1032
        %v1035 = vunpack.c.l.s4 1966171168
        %v1036 = vunpack.c.0.s8 %v1035
        %v1037 = vlaneseq
        %v1038 = vshrl.u32 %v1037, 7
        %v1039 = vsub.s32 %v1036, %v1038
        %v1040 = vrot.slane %v1025, %v1039
        %v1042 = vunpack.c.l.s4 1966171168
        %v1043 = vunpack.c.0.s8 %v1042
        %v1044 = vlaneseq
        %v1045 = vshrl.u32 %v1044, 7
        %v1046 = vsub.s32 %v1043, %v1045
        %v1047 = vrot.slane %v1024, %v1046
        %v1049 = vunpack.c.l.s4 1966171168
        %v1050 = vunpack.c.0.s8 %v1049
        %v1051 = vlaneseq
        %v1052 = vshrl.u32 %v1051, 7
        %v1053 = vsub.s32 %v1050, %v1052
        %v1054 = vrot.slane %v1026, %v1053
        %v1055 = vcombine.high %v1033, %v1033
        %v1056 = vcombine.high %v1040, %v1040
        %v1057 = vcombine.high %v1047, %v1047
        %v1058 = vcombine.high %v1054, %v1054
        %v1059 = vcombine.low %v739, %v740
        %v1060 = vcombine.high %v739, %v740
        %v1061 = vcombine.low %v741, %v742
        %v1062 = vcombine.high %v741, %v742
        %v1064 = vunpack.c.l.s4 1966171168
        %v1065 = vunpack.c.0.s8 %v1064
        %v1066 = vlaneseq
        %v1067 = vshrl.u32 %v1066, 7
        %v1068 = vsub.s32 %v1065, %v1067
        %v1069 = vrot.slane %v1059, %v1068
        %v1071 = vunpack.c.l.s4 1966171168
        %v1072 = vunpack.c.0.s8 %v1071
        %v1073 = vlaneseq
        %v1074 = vshrl.u32 %v1073, 7
        %v1075 = vsub.s32 %v1072, %v1074
        %v1076 = vrot.slane %v1060, %v1075
        %v1078 = vunpack.c.l.s4 1966171168
        %v1079 = vunpack.c.0.s8 %v1078
        %v1080 = vlaneseq
        %v1081 = vshrl.u32 %v1080, 7
        %v1082 = vsub.s32 %v1079, %v1081
        %v1083 = vrot.slane %v1061, %v1082
        %v1085 = vunpack.c.l.s4 1966171168
        %v1086 = vunpack.c.0.s8 %v1085
        %v1087 = vlaneseq
        %v1088 = vshrl.u32 %v1087, 7
        %v1089 = vsub.s32 %v1086, %v1088
        %v1090 = vrot.slane %v1062, %v1089
        %v1091 = vcombine.low %v1069, %v1083
        %v1092 = vcombine.high %v1069, %v1083
        %v1093 = vcombine.low %v1076, %v1090
        %v1094 = vcombine.high %v1076, %v1090
        %v1096 = vunpack.c.l.s4 1966171168
        %v1097 = vunpack.c.0.s8 %v1096
        %v1098 = vlaneseq
        %v1099 = vshrl.u32 %v1098, 7
        %v1100 = vsub.s32 %v1097, %v1099
        %v1101 = vrot.slane %v1091, %v1100
        %v1103 = vunpack.c.l.s4 1966171168
        %v1104 = vunpack.c.0.s8 %v1103
        %v1105 = vlaneseq
        %v1106 = vshrl.u32 %v1105, 7
        %v1107 = vsub.s32 %v1104, %v1106
        %v1108 = vrot.slane %v1093, %v1107
        %v1110 = vunpack.c.l.s4 1966171168
        %v1111 = vunpack.c.0.s8 %v1110
        %v1112 = vlaneseq
        %v1113 = vshrl.u32 %v1112, 7
        %v1114 = vsub.s32 %v1111, %v1113
        %v1115 = vrot.slane %v1092, %v1114
        %v1117 = vunpack.c.l.s4 1966171168
        %v1118 = vunpack.c.0.s8 %v1117
        %v1119 = vlaneseq
        %v1120 = vshrl.u32 %v1119, 7
        %v1121 = vsub.s32 %v1118, %v1120
        %v1122 = vrot.slane %v1094, %v1121
        %v1123 = vcombine.high %v1101, %v1101
        %v1124 = vcombine.high %v1108, %v1108
        %v1125 = vcombine.high %v1115, %v1115
        %v1126 = vcombine.high %v1122, %v1122
        %v1127 = vcombine.low %v743, %v744
        %v1128 = vcombine.high %v743, %v744
        %v1129 = vcombine.low %v745, %v746
        %v1130 = vcombine.high %v745, %v746
        %v1132 = vunpack.c.l.s4 1966171168
        %v1133 = vunpack.c.0.s8 %v1132
        %v1134 = vlaneseq
        %v1135 = vshrl.u32 %v1134, 7
        %v1136 = vsub.s32 %v1133, %v1135
        %v1137 = vrot.slane %v1127, %v1136
        %v1139 = vunpack.c.l.s4 1966171168
        %v1140 = vunpack.c.0.s8 %v1139
        %v1141 = vlaneseq
        %v1142 = vshrl.u32 %v1141, 7
        %v1143 = vsub.s32 %v1140, %v1142
        %v1144 = vrot.slane %v1128, %v1143
        %v1146 = vunpack.c.l.s4 1966171168
        %v1147 = vunpack.c.0.s8 %v1146
        %v1148 = vlaneseq
        %v1149 = vshrl.u32 %v1148, 7
        %v1150 = vsub.s32 %v1147, %v1149
        %v1151 = vrot.slane %v1129, %v1150
        %v1153 = vunpack.c.l.s4 1966171168
        %v1154 = vunpack.c.0.s8 %v1153
        %v1155 = vlaneseq
        %v1156 = vshrl.u32 %v1155, 7
        %v1157 = vsub.s32 %v1154, %v1156
        %v1158 = vrot.slane %v1130, %v1157
        %v1159 = vcombine.low %v1137, %v1151
        %v1160 = vcombine.high %v1137, %v1151
        %v1161 = vcombine.low %v1144, %v1158
        %v1162 = vcombine.high %v1144, %v1158
        %v1164 = vunpack.c.l.s4 1966171168
        %v1165 = vunpack.c.0.s8 %v1164
        %v1166 = vlaneseq
        %v1167 = vshrl.u32 %v1166, 7
        %v1168 = vsub.s32 %v1165, %v1167
        %v1169 = vrot.slane %v1159, %v1168
        %v1171 = vunpack.c.l.s4 1966171168
        %v1172 = vunpack.c.0.s8 %v1171
        %v1173 = vlaneseq
        %v1174 = vshrl.u32 %v1173, 7
        %v1175 = vsub.s32 %v1172, %v1174
        %v1176 = vrot.slane %v1161, %v1175
        %v1178 = vunpack.c.l.s4 1966171168
        %v1179 = vunpack.c.0.s8 %v1178
        %v1180 = vlaneseq
        %v1181 = vshrl.u32 %v1180, 7
        %v1182 = vsub.s32 %v1179, %v1181
        %v1183 = vrot.slane %v1160, %v1182
        %v1185 = vunpack.c.l.s4 1966171168
        %v1186 = vunpack.c.0.s8 %v1185
        %v1187 = vlaneseq
        %v1188 = vshrl.u32 %v1187, 7
        %v1189 = vsub.s32 %v1186, %v1188
        %v1190 = vrot.slane %v1162, %v1189
        %v1191 = vcombine.high %v1169, %v1169
        %v1192 = vcombine.high %v1176, %v1176
        %v1193 = vcombine.high %v1183, %v1183
        %v1194 = vcombine.high %v1190, %v1190
        %v1195 = vcombine.low %v747, %v748
        %v1196 = vcombine.high %v747, %v748
        %v1197 = vcombine.low %v749, %v750
        %v1198 = vcombine.high %v749, %v750
        %v1200 = vunpack.c.l.s4 1966171168
        %v1201 = vunpack.c.0.s8 %v1200
        %v1202 = vlaneseq
        %v1203 = vshrl.u32 %v1202, 7
        %v1204 = vsub.s32 %v1201, %v1203
        %v1205 = vrot.slane %v1195, %v1204
        %v1207 = vunpack.c.l.s4 1966171168
        %v1208 = vunpack.c.0.s8 %v1207
        %v1209 = vlaneseq
        %v1210 = vshrl.u32 %v1209, 7
        %v1211 = vsub.s32 %v1208, %v1210
        %v1212 = vrot.slane %v1196, %v1211
        %v1214 = vunpack.c.l.s4 1966171168
        %v1215 = vunpack.c.0.s8 %v1214
        %v1216 = vlaneseq
        %v1217 = vshrl.u32 %v1216, 7
        %v1218 = vsub.s32 %v1215, %v1217
        %v1219 = vrot.slane %v1197, %v1218
        %v1221 = vunpack.c.l.s4 1966171168
        %v1222 = vunpack.c.0.s8 %v1221
        %v1223 = vlaneseq
        %v1224 = vshrl.u32 %v1223, 7
        %v1225 = vsub.s32 %v1222, %v1224
        %v1226 = vrot.slane %v1198, %v1225
        %v1227 = vcombine.low %v1205, %v1219
        %v1228 = vcombine.high %v1205, %v1219
        %v1229 = vcombine.low %v1212, %v1226
        %v1230 = vcombine.high %v1212, %v1226
        %v1232 = vunpack.c.l.s4 1966171168
        %v1233 = vunpack.c.0.s8 %v1232
        %v1234 = vlaneseq
        %v1235 = vshrl.u32 %v1234, 7
        %v1236 = vsub.s32 %v1233, %v1235
        %v1237 = vrot.slane %v1227, %v1236
        %v1239 = vunpack.c.l.s4 1966171168
        %v1240 = vunpack.c.0.s8 %v1239
        %v1241 = vlaneseq
        %v1242 = vshrl.u32 %v1241, 7
        %v1243 = vsub.s32 %v1240, %v1242
        %v1244 = vrot.slane %v1229, %v1243
        %v1246 = vunpack.c.l.s4 1966171168
        %v1247 = vunpack.c.0.s8 %v1246
        %v1248 = vlaneseq
        %v1249 = vshrl.u32 %v1248, 7
        %v1250 = vsub.s32 %v1247, %v1249
        %v1251 = vrot.slane %v1228, %v1250
        %v1253 = vunpack.c.l.s4 1966171168
        %v1254 = vunpack.c.0.s8 %v1253
        %v1255 = vlaneseq
        %v1256 = vshrl.u32 %v1255, 7
        %v1257 = vsub.s32 %v1254, %v1256
        %v1258 = vrot.slane %v1230, %v1257
        %v1259 = vcombine.high %v1237, %v1237
        %v1260 = vcombine.high %v1244, %v1244
        %v1261 = vcombine.high %v1251, %v1251
        %v1262 = vcombine.high %v1258, %v1258
        %v1263 = vcombine.low %v751, %v752
        %v1264 = vcombine.high %v751, %v752
        %v1265 = vcombine.low %v753, %v754
        %v1266 = vcombine.high %v753, %v754
        %v1268 = vunpack.c.l.s4 1966171168
        %v1269 = vunpack.c.0.s8 %v1268
        %v1270 = vlaneseq
        %v1271 = vshrl.u32 %v1270, 7
        %v1272 = vsub.s32 %v1269, %v1271
        %v1273 = vrot.slane %v1263, %v1272
        %v1275 = vunpack.c.l.s4 1966171168
        %v1276 = vunpack.c.0.s8 %v1275
        %v1277 = vlaneseq
        %v1278 = vshrl.u32 %v1277, 7
        %v1279 = vsub.s32 %v1276, %v1278
        %v1280 = vrot.slane %v1264, %v1279
        %v1282 = vunpack.c.l.s4 1966171168
        %v1283 = vunpack.c.0.s8 %v1282
        %v1284 = vlaneseq
        %v1285 = vshrl.u32 %v1284, 7
        %v1286 = vsub.s32 %v1283, %v1285
        %v1287 = vrot.slane %v1265, %v1286
        %v1289 = vunpack.c.l.s4 1966171168
        %v1290 = vunpack.c.0.s8 %v1289
        %v1291 = vlaneseq
        %v1292 = vshrl.u32 %v1291, 7
        %v1293 = vsub.s32 %v1290, %v1292
        %v1294 = vrot.slane %v1266, %v1293
        %v1295 = vcombine.low %v1273, %v1287
        %v1296 = vcombine.high %v1273, %v1287
        %v1297 = vcombine.low %v1280, %v1294
        %v1298 = vcombine.high %v1280, %v1294
        %v1300 = vunpack.c.l.s4 1966171168
        %v1301 = vunpack.c.0.s8 %v1300
        %v1302 = vlaneseq
        %v1303 = vshrl.u32 %v1302, 7
        %v1304 = vsub.s32 %v1301, %v1303
        %v1305 = vrot.slane %v1295, %v1304
        %v1307 = vunpack.c.l.s4 1966171168
        %v1308 = vunpack.c.0.s8 %v1307
        %v1309 = vlaneseq
        %v1310 = vshrl.u32 %v1309, 7
        %v1311 = vsub.s32 %v1308, %v1310
        %v1312 = vrot.slane %v1297, %v1311
        %v1314 = vunpack.c.l.s4 1966171168
        %v1315 = vunpack.c.0.s8 %v1314
        %v1316 = vlaneseq
        %v1317 = vshrl.u32 %v1316, 7
        %v1318 = vsub.s32 %v1315, %v1317
        %v1319 = vrot.slane %v1296, %v1318
        %v1321 = vunpack.c.l.s4 1966171168
        %v1322 = vunpack.c.0.s8 %v1321
        %v1323 = vlaneseq
        %v1324 = vshrl.u32 %v1323, 7
        %v1325 = vsub.s32 %v1322, %v1324
        %v1326 = vrot.slane %v1298, %v1325
        %v1327 = vcombine.high %v1305, %v1305
        %v1328 = vcombine.high %v1312, %v1312
        %v1329 = vcombine.high %v1319, %v1319
        %v1330 = vcombine.high %v1326, %v1326
        %v1331 = vlaneseq
        %v1332 = vshrl.u32 %v1331, 7
        %v1333 = vsub.s32 0, %v1332
        %v1334 = vrot.slane %v829, %v1333
        %v1335 = vlaneseq
        %v1336 = vshrl.u32 %v1335, 7
        %v1337 = vsub.s32 1, %v1336
        %v1338 = vrot.slane %v829, %v1337
        %v1339 = vlaneseq
        %v1340 = vshrl.u32 %v1339, 7
        %v1341 = vsub.s32 2, %v1340
        %v1342 = vrot.slane %v829, %v1341
        %v1343 = vlaneseq
        %v1344 = vshrl.u32 %v1343, 7
        %v1345 = vsub.s32 3, %v1344
        %v1346 = vrot.slane %v829, %v1345
        %v1347 = vlaneseq
        %v1348 = vshrl.u32 %v1347, 7
        %v1349 = vsub.s32 0, %v1348
        %v1350 = vrot.slane %v843, %v1349
        %v1351 = vlaneseq
        %v1352 = vshrl.u32 %v1351, 7
        %v1353 = vsub.s32 1, %v1352
        %v1354 = vrot.slane %v843, %v1353
        %v1355 = vlaneseq
        %v1356 = vshrl.u32 %v1355, 7
        %v1357 = vsub.s32 2, %v1356
        %v1358 = vrot.slane %v843, %v1357
        %v1359 = vlaneseq
        %v1360 = vshrl.u32 %v1359, 7
        %v1361 = vsub.s32 3, %v1360
        %v1362 = vrot.slane %v843, %v1361
        %v1363 = vlaneseq
        %v1364 = vshrl.u32 %v1363, 7
        %v1365 = vsub.s32 0, %v1364
        %v1366 = vrot.slane %v851, %v1365
        %v1367 = vlaneseq
        %v1368 = vshrl.u32 %v1367, 7
        %v1369 = vsub.s32 1, %v1368
        %v1370 = vrot.slane %v851, %v1369
        %v1371 = vlaneseq
        %v1372 = vshrl.u32 %v1371, 7
        %v1373 = vsub.s32 2, %v1372
        %v1374 = vrot.slane %v851, %v1373
        %v1375 = vlaneseq
        %v1376 = vshrl.u32 %v1375, 7
        %v1377 = vsub.s32 3, %v1376
        %v1378 = vrot.slane %v851, %v1377
        %v1379 = vlaneseq
        %v1380 = vshrl.u32 %v1379, 7
        %v1381 = vsub.s32 0, %v1380
        %v1382 = vrot.slane %v853, %v1381
        %v1383 = vlaneseq
        %v1384 = vshrl.u32 %v1383, 7
        %v1385 = vsub.s32 1, %v1384
        %v1386 = vrot.slane %v853, %v1385
        %v1387 = vlaneseq
        %v1388 = vshrl.u32 %v1387, 7
        %v1389 = vsub.s32 2, %v1388
        %v1390 = vrot.slane %v853, %v1389
        %v1391 = vlaneseq
        %v1392 = vshrl.u32 %v1391, 7
        %v1393 = vsub.s32 3, %v1392
        %v1394 = vrot.slane %v853, %v1393
        %v1395 = vlaneseq
        %v1396 = vshrl.u32 %v1395, 7
        %v1397 = vsub.s32 0, %v1396
        %v1398 = vrot.slane %v836, %v1397
        %v1399 = vlaneseq
        %v1400 = vshrl.u32 %v1399, 7
        %v1401 = vsub.s32 1, %v1400
        %v1402 = vrot.slane %v836, %v1401
        %v1403 = vlaneseq
        %v1404 = vshrl.u32 %v1403, 7
        %v1405 = vsub.s32 2, %v1404
        %v1406 = vrot.slane %v836, %v1405
        %v1407 = vlaneseq
        %v1408 = vshrl.u32 %v1407, 7
        %v1409 = vsub.s32 3, %v1408
        %v1410 = vrot.slane %v836, %v1409
        %v1411 = vlaneseq
        %v1412 = vshrl.u32 %v1411, 7
        %v1413 = vsub.s32 0, %v1412
        %v1414 = vrot.slane %v850, %v1413
        %v1415 = vlaneseq
        %v1416 = vshrl.u32 %v1415, 7
        %v1417 = vsub.s32 1, %v1416
        %v1418 = vrot.slane %v850, %v1417
        %v1419 = vlaneseq
        %v1420 = vshrl.u32 %v1419, 7
        %v1421 = vsub.s32 2, %v1420
        %v1422 = vrot.slane %v850, %v1421
        %v1423 = vlaneseq
        %v1424 = vshrl.u32 %v1423, 7
        %v1425 = vsub.s32 3, %v1424
        %v1426 = vrot.slane %v850, %v1425
        %v1427 = vlaneseq
        %v1428 = vshrl.u32 %v1427, 7
        %v1429 = vsub.s32 0, %v1428
        %v1430 = vrot.slane %v852, %v1429
        %v1431 = vlaneseq
        %v1432 = vshrl.u32 %v1431, 7
        %v1433 = vsub.s32 1, %v1432
        %v1434 = vrot.slane %v852, %v1433
        %v1435 = vlaneseq
        %v1436 = vshrl.u32 %v1435, 7
        %v1437 = vsub.s32 2, %v1436
        %v1438 = vrot.slane %v852, %v1437
        %v1439 = vlaneseq
        %v1440 = vshrl.u32 %v1439, 7
        %v1441 = vsub.s32 3, %v1440
        %v1442 = vrot.slane %v852, %v1441
        %v1443 = vlaneseq
        %v1444 = vshrl.u32 %v1443, 7
        %v1445 = vsub.s32 0, %v1444
        %v1446 = vrot.slane %v854, %v1445
        %v1447 = vlaneseq
        %v1448 = vshrl.u32 %v1447, 7
        %v1449 = vsub.s32 1, %v1448
        %v1450 = vrot.slane %v854, %v1449
        %v1451 = vlaneseq
        %v1452 = vshrl.u32 %v1451, 7
        %v1453 = vsub.s32 2, %v1452
        %v1454 = vrot.slane %v854, %v1453
        %v1455 = vlaneseq
        %v1456 = vshrl.u32 %v1455, 7
        %v1457 = vsub.s32 3, %v1456
        %v1458 = vrot.slane %v854, %v1457
        %v1459 = vlaneseq
        %v1460 = vshrl.u32 %v1459, 7
        %v1461 = vsub.s32 0, %v1460
        %v1462 = vrot.slane %v897, %v1461
        %v1463 = vlaneseq
        %v1464 = vshrl.u32 %v1463, 7
        %v1465 = vsub.s32 1, %v1464
        %v1466 = vrot.slane %v897, %v1465
        %v1467 = vlaneseq
        %v1468 = vshrl.u32 %v1467, 7
        %v1469 = vsub.s32 2, %v1468
        %v1470 = vrot.slane %v897, %v1469
        %v1471 = vlaneseq
        %v1472 = vshrl.u32 %v1471, 7
        %v1473 = vsub.s32 3, %v1472
        %v1474 = vrot.slane %v897, %v1473
        %v1475 = vlaneseq
        %v1476 = vshrl.u32 %v1475, 7
        %v1477 = vsub.s32 0, %v1476
        %v1478 = vrot.slane %v911, %v1477
        %v1479 = vlaneseq
        %v1480 = vshrl.u32 %v1479, 7
        %v1481 = vsub.s32 1, %v1480
        %v1482 = vrot.slane %v911, %v1481
        %v1483 = vlaneseq
        %v1484 = vshrl.u32 %v1483, 7
        %v1485 = vsub.s32 2, %v1484
        %v1486 = vrot.slane %v911, %v1485
        %v1487 = vlaneseq
        %v1488 = vshrl.u32 %v1487, 7
        %v1489 = vsub.s32 3, %v1488
        %v1490 = vrot.slane %v911, %v1489
        %v1491 = vlaneseq
        %v1492 = vshrl.u32 %v1491, 7
        %v1493 = vsub.s32 0, %v1492
        %v1494 = vrot.slane %v919, %v1493
        %v1495 = vlaneseq
        %v1496 = vshrl.u32 %v1495, 7
        %v1497 = vsub.s32 1, %v1496
        %v1498 = vrot.slane %v919, %v1497
        %v1499 = vlaneseq
        %v1500 = vshrl.u32 %v1499, 7
        %v1501 = vsub.s32 2, %v1500
        %v1502 = vrot.slane %v919, %v1501
        %v1503 = vlaneseq
        %v1504 = vshrl.u32 %v1503, 7
        %v1505 = vsub.s32 3, %v1504
        %v1506 = vrot.slane %v919, %v1505
        %v1507 = vlaneseq
        %v1508 = vshrl.u32 %v1507, 7
        %v1509 = vsub.s32 0, %v1508
        %v1510 = vrot.slane %v921, %v1509
        %v1511 = vlaneseq
        %v1512 = vshrl.u32 %v1511, 7
        %v1513 = vsub.s32 1, %v1512
        %v1514 = vrot.slane %v921, %v1513
        %v1515 = vlaneseq
        %v1516 = vshrl.u32 %v1515, 7
        %v1517 = vsub.s32 2, %v1516
        %v1518 = vrot.slane %v921, %v1517
        %v1519 = vlaneseq
        %v1520 = vshrl.u32 %v1519, 7
        %v1521 = vsub.s32 3, %v1520
        %v1522 = vrot.slane %v921, %v1521
        %v1523 = vlaneseq
        %v1524 = vshrl.u32 %v1523, 7
        %v1525 = vsub.s32 0, %v1524
        %v1526 = vrot.slane %v904, %v1525
        %v1527 = vlaneseq
        %v1528 = vshrl.u32 %v1527, 7
        %v1529 = vsub.s32 1, %v1528
        %v1530 = vrot.slane %v904, %v1529
        %v1531 = vlaneseq
        %v1532 = vshrl.u32 %v1531, 7
        %v1533 = vsub.s32 2, %v1532
        %v1534 = vrot.slane %v904, %v1533
        %v1535 = vlaneseq
        %v1536 = vshrl.u32 %v1535, 7
        %v1537 = vsub.s32 3, %v1536
        %v1538 = vrot.slane %v904, %v1537
        %v1539 = vlaneseq
        %v1540 = vshrl.u32 %v1539, 7
        %v1541 = vsub.s32 0, %v1540
        %v1542 = vrot.slane %v918, %v1541
        %v1543 = vlaneseq
        %v1544 = vshrl.u32 %v1543, 7
        %v1545 = vsub.s32 1, %v1544
        %v1546 = vrot.slane %v918, %v1545
        %v1547 = vlaneseq
        %v1548 = vshrl.u32 %v1547, 7
        %v1549 = vsub.s32 2, %v1548
        %v1550 = vrot.slane %v918, %v1549
        %v1551 = vlaneseq
        %v1552 = vshrl.u32 %v1551, 7
        %v1553 = vsub.s32 3, %v1552
        %v1554 = vrot.slane %v918, %v1553
        %v1555 = vlaneseq
        %v1556 = vshrl.u32 %v1555, 7
        %v1557 = vsub.s32 0, %v1556
        %v1558 = vrot.slane %v920, %v1557
        %v1559 = vlaneseq
        %v1560 = vshrl.u32 %v1559, 7
        %v1561 = vsub.s32 1, %v1560
        %v1562 = vrot.slane %v920, %v1561
        %v1563 = vlaneseq
        %v1564 = vshrl.u32 %v1563, 7
        %v1565 = vsub.s32 2, %v1564
        %v1566 = vrot.slane %v920, %v1565
        %v1567 = vlaneseq
        %v1568 = vshrl.u32 %v1567, 7
        %v1569 = vsub.s32 3, %v1568
        %v1570 = vrot.slane %v920, %v1569
        %v1571 = vlaneseq
        %v1572 = vshrl.u32 %v1571, 7
        %v1573 = vsub.s32 0, %v1572
        %v1574 = vrot.slane %v922, %v1573
        %v1575 = vlaneseq
        %v1576 = vshrl.u32 %v1575, 7
        %v1577 = vsub.s32 1, %v1576
        %v1578 = vrot.slane %v922, %v1577
        %v1579 = vlaneseq
        %v1580 = vshrl.u32 %v1579, 7
        %v1581 = vsub.s32 2, %v1580
        %v1582 = vrot.slane %v922, %v1581
        %v1583 = vlaneseq
        %v1584 = vshrl.u32 %v1583, 7
        %v1585 = vsub.s32 3, %v1584
        %v1586 = vrot.slane %v922, %v1585
        %v1587 = vlaneseq
        %v1588 = vshrl.u32 %v1587, 7
        %v1589 = vsub.s32 0, %v1588
        %v1590 = vrot.slane %v965, %v1589
        %v1591 = vlaneseq
        %v1592 = vshrl.u32 %v1591, 7
        %v1593 = vsub.s32 1, %v1592
        %v1594 = vrot.slane %v965, %v1593
        %v1595 = vlaneseq
        %v1596 = vshrl.u32 %v1595, 7
        %v1597 = vsub.s32 2, %v1596
        %v1598 = vrot.slane %v965, %v1597
        %v1599 = vlaneseq
        %v1600 = vshrl.u32 %v1599, 7
        %v1601 = vsub.s32 3, %v1600
        %v1602 = vrot.slane %v965, %v1601
        %v1603 = vlaneseq
        %v1604 = vshrl.u32 %v1603, 7
        %v1605 = vsub.s32 0, %v1604
        %v1606 = vrot.slane %v979, %v1605
        %v1607 = vlaneseq
        %v1608 = vshrl.u32 %v1607, 7
        %v1609 = vsub.s32 1, %v1608
        %v1610 = vrot.slane %v979, %v1609
        %v1611 = vlaneseq
        %v1612 = vshrl.u32 %v1611, 7
        %v1613 = vsub.s32 2, %v1612
        %v1614 = vrot.slane %v979, %v1613
        %v1615 = vlaneseq
        %v1616 = vshrl.u32 %v1615, 7
        %v1617 = vsub.s32 3, %v1616
        %v1618 = vrot.slane %v979, %v1617
        %v1619 = vlaneseq
        %v1620 = vshrl.u32 %v1619, 7
        %v1621 = vsub.s32 0, %v1620
        %v1622 = vrot.slane %v987, %v1621
        %v1623 = vlaneseq
        %v1624 = vshrl.u32 %v1623, 7
        %v1625 = vsub.s32 1, %v1624
        %v1626 = vrot.slane %v987, %v1625
        %v1627 = vlaneseq
        %v1628 = vshrl.u32 %v1627, 7
        %v1629 = vsub.s32 2, %v1628
        %v1630 = vrot.slane %v987, %v1629
        %v1631 = vlaneseq
        %v1632 = vshrl.u32 %v1631, 7
        %v1633 = vsub.s32 3, %v1632
        %v1634 = vrot.slane %v987, %v1633
        %v1635 = vlaneseq
        %v1636 = vshrl.u32 %v1635, 7
        %v1637 = vsub.s32 0, %v1636
        %v1638 = vrot.slane %v989, %v1637
        %v1639 = vlaneseq
        %v1640 = vshrl.u32 %v1639, 7
        %v1641 = vsub.s32 1, %v1640
        %v1642 = vrot.slane %v989, %v1641
        %v1643 = vlaneseq
        %v1644 = vshrl.u32 %v1643, 7
        %v1645 = vsub.s32 2, %v1644
        %v1646 = vrot.slane %v989, %v1645
        %v1647 = vlaneseq
        %v1648 = vshrl.u32 %v1647, 7
        %v1649 = vsub.s32 3, %v1648
        %v1650 = vrot.slane %v989, %v1649
        %v1651 = vlaneseq
        %v1652 = vshrl.u32 %v1651, 7
        %v1653 = vsub.s32 0, %v1652
        %v1654 = vrot.slane %v972, %v1653
        %v1655 = vlaneseq
        %v1656 = vshrl.u32 %v1655, 7
        %v1657 = vsub.s32 1, %v1656
        %v1658 = vrot.slane %v972, %v1657
        %v1659 = vlaneseq
        %v1660 = vshrl.u32 %v1659, 7
        %v1661 = vsub.s32 2, %v1660
        %v1662 = vrot.slane %v972, %v1661
        %v1663 = vlaneseq
        %v1664 = vshrl.u32 %v1663, 7
        %v1665 = vsub.s32 3, %v1664
        %v1666 = vrot.slane %v972, %v1665
        %v1667 = vlaneseq
        %v1668 = vshrl.u32 %v1667, 7
        %v1669 = vsub.s32 0, %v1668
        %v1670 = vrot.slane %v986, %v1669
        %v1671 = vlaneseq
        %v1672 = vshrl.u32 %v1671, 7
        %v1673 = vsub.s32 1, %v1672
        %v1674 = vrot.slane %v986, %v1673
        %v1675 = vlaneseq
        %v1676 = vshrl.u32 %v1675, 7
        %v1677 = vsub.s32 2, %v1676
        %v1678 = vrot.slane %v986, %v1677
        %v1679 = vlaneseq
        %v1680 = vshrl.u32 %v1679, 7
        %v1681 = vsub.s32 3, %v1680
        %v1682 = vrot.slane %v986, %v1681
        %v1683 = vlaneseq
        %v1684 = vshrl.u32 %v1683, 7
        %v1685 = vsub.s32 0, %v1684
        %v1686 = vrot.slane %v988, %v1685
        %v1687 = vlaneseq
        %v1688 = vshrl.u32 %v1687, 7
        %v1689 = vsub.s32 1, %v1688
        %v1690 = vrot.slane %v988, %v1689
        %v1691 = vlaneseq
        %v1692 = vshrl.u32 %v1691, 7
        %v1693 = vsub.s32 2, %v1692
        %v1694 = vrot.slane %v988, %v1693
        %v1695 = vlaneseq
        %v1696 = vshrl.u32 %v1695, 7
        %v1697 = vsub.s32 3, %v1696
        %v1698 = vrot.slane %v988, %v1697
        %v1699 = vlaneseq
        %v1700 = vshrl.u32 %v1699, 7
        %v1701 = vsub.s32 0, %v1700
        %v1702 = vrot.slane %v990, %v1701
        %v1703 = vlaneseq
        %v1704 = vshrl.u32 %v1703, 7
        %v1705 = vsub.s32 1, %v1704
        %v1706 = vrot.slane %v990, %v1705
        %v1707 = vlaneseq
        %v1708 = vshrl.u32 %v1707, 7
        %v1709 = vsub.s32 2, %v1708
        %v1710 = vrot.slane %v990, %v1709
        %v1711 = vlaneseq
        %v1712 = vshrl.u32 %v1711, 7
        %v1713 = vsub.s32 3, %v1712
        %v1714 = vrot.slane %v990, %v1713
        %v1715 = vlaneseq
        %v1716 = vshrl.u32 %v1715, 7
        %v1717 = vsub.s32 0, %v1716
        %v1718 = vrot.slane %v1033, %v1717
        %v1719 = vlaneseq
        %v1720 = vshrl.u32 %v1719, 7
        %v1721 = vsub.s32 1, %v1720
        %v1722 = vrot.slane %v1033, %v1721
        %v1723 = vlaneseq
        %v1724 = vshrl.u32 %v1723, 7
        %v1725 = vsub.s32 2, %v1724
        %v1726 = vrot.slane %v1033, %v1725
        %v1727 = vlaneseq
        %v1728 = vshrl.u32 %v1727, 7
        %v1729 = vsub.s32 3, %v1728
        %v1730 = vrot.slane %v1033, %v1729
        %v1731 = vlaneseq
        %v1732 = vshrl.u32 %v1731, 7
        %v1733 = vsub.s32 0, %v1732
        %v1734 = vrot.slane %v1047, %v1733
        %v1735 = vlaneseq
        %v1736 = vshrl.u32 %v1735, 7
        %v1737 = vsub.s32 1, %v1736
        %v1738 = vrot.slane %v1047, %v1737
        %v1739 = vlaneseq
        %v1740 = vshrl.u32 %v1739, 7
        %v1741 = vsub.s32 2, %v1740
        %v1742 = vrot.slane %v1047, %v1741
        %v1743 = vlaneseq
        %v1744 = vshrl.u32 %v1743, 7
        %v1745 = vsub.s32 3, %v1744
        %v1746 = vrot.slane %v1047, %v1745
        %v1747 = vlaneseq
        %v1748 = vshrl.u32 %v1747, 7
        %v1749 = vsub.s32 0, %v1748
        %v1750 = vrot.slane %v1055, %v1749
        %v1751 = vlaneseq
        %v1752 = vshrl.u32 %v1751, 7
        %v1753 = vsub.s32 1, %v1752
        %v1754 = vrot.slane %v1055, %v1753
        %v1755 = vlaneseq
        %v1756 = vshrl.u32 %v1755, 7
        %v1757 = vsub.s32 2, %v1756
        %v1758 = vrot.slane %v1055, %v1757
        %v1759 = vlaneseq
        %v1760 = vshrl.u32 %v1759, 7
        %v1761 = vsub.s32 3, %v1760
        %v1762 = vrot.slane %v1055, %v1761
        %v1763 = vlaneseq
        %v1764 = vshrl.u32 %v1763, 7
        %v1765 = vsub.s32 0, %v1764
        %v1766 = vrot.slane %v1057, %v1765
        %v1767 = vlaneseq
        %v1768 = vshrl.u32 %v1767, 7
        %v1769 = vsub.s32 1, %v1768
        %v1770 = vrot.slane %v1057, %v1769
        %v1771 = vlaneseq
        %v1772 = vshrl.u32 %v1771, 7
        %v1773 = vsub.s32 2, %v1772
        %v1774 = vrot.slane %v1057, %v1773
        %v1775 = vlaneseq
        %v1776 = vshrl.u32 %v1775, 7
        %v1777 = vsub.s32 3, %v1776
        %v1778 = vrot.slane %v1057, %v1777
        %v1779 = vlaneseq
        %v1780 = vshrl.u32 %v1779, 7
        %v1781 = vsub.s32 0, %v1780
        %v1782 = vrot.slane %v1040, %v1781
        %v1783 = vlaneseq
        %v1784 = vshrl.u32 %v1783, 7
        %v1785 = vsub.s32 1, %v1784
        %v1786 = vrot.slane %v1040, %v1785
        %v1787 = vlaneseq
        %v1788 = vshrl.u32 %v1787, 7
        %v1789 = vsub.s32 2, %v1788
        %v1790 = vrot.slane %v1040, %v1789
        %v1791 = vlaneseq
        %v1792 = vshrl.u32 %v1791, 7
        %v1793 = vsub.s32 3, %v1792
        %v1794 = vrot.slane %v1040, %v1793
        %v1795 = vlaneseq
        %v1796 = vshrl.u32 %v1795, 7
        %v1797 = vsub.s32 0, %v1796
        %v1798 = vrot.slane %v1054, %v1797
        %v1799 = vlaneseq
        %v1800 = vshrl.u32 %v1799, 7
        %v1801 = vsub.s32 1, %v1800
        %v1802 = vrot.slane %v1054, %v1801
        %v1803 = vlaneseq
        %v1804 = vshrl.u32 %v1803, 7
        %v1805 = vsub.s32 2, %v1804
        %v1806 = vrot.slane %v1054, %v1805
        %v1807 = vlaneseq
        %v1808 = vshrl.u32 %v1807, 7
        %v1809 = vsub.s32 3, %v1808
        %v1810 = vrot.slane %v1054, %v1809
        %v1811 = vlaneseq
        %v1812 = vshrl.u32 %v1811, 7
        %v1813 = vsub.s32 0, %v1812
        %v1814 = vrot.slane %v1056, %v1813
        %v1815 = vlaneseq
        %v1816 = vshrl.u32 %v1815, 7
        %v1817 = vsub.s32 1, %v1816
        %v1818 = vrot.slane %v1056, %v1817
        %v1819 = vlaneseq
        %v1820 = vshrl.u32 %v1819, 7
        %v1821 = vsub.s32 2, %v1820
        %v1822 = vrot.slane %v1056, %v1821
        %v1823 = vlaneseq
        %v1824 = vshrl.u32 %v1823, 7
        %v1825 = vsub.s32 3, %v1824
        %v1826 = vrot.slane %v1056, %v1825
        %v1827 = vlaneseq
        %v1828 = vshrl.u32 %v1827, 7
        %v1829 = vsub.s32 0, %v1828
        %v1830 = vrot.slane %v1058, %v1829
        %v1831 = vlaneseq
        %v1832 = vshrl.u32 %v1831, 7
        %v1833 = vsub.s32 1, %v1832
        %v1834 = vrot.slane %v1058, %v1833
        %v1835 = vlaneseq
        %v1836 = vshrl.u32 %v1835, 7
        %v1837 = vsub.s32 2, %v1836
        %v1838 = vrot.slane %v1058, %v1837
        %v1839 = vlaneseq
        %v1840 = vshrl.u32 %v1839, 7
        %v1841 = vsub.s32 3, %v1840
        %v1842 = vrot.slane %v1058, %v1841
        %v1843 = vlaneseq
        %v1844 = vshrl.u32 %v1843, 7
        %v1845 = vsub.s32 0, %v1844
        %v1846 = vrot.slane %v1101, %v1845
        %v1847 = vlaneseq
        %v1848 = vshrl.u32 %v1847, 7
        %v1849 = vsub.s32 1, %v1848
        %v1850 = vrot.slane %v1101, %v1849
        %v1851 = vlaneseq
        %v1852 = vshrl.u32 %v1851, 7
        %v1853 = vsub.s32 2, %v1852
        %v1854 = vrot.slane %v1101, %v1853
        %v1855 = vlaneseq
        %v1856 = vshrl.u32 %v1855, 7
        %v1857 = vsub.s32 3, %v1856
        %v1858 = vrot.slane %v1101, %v1857
        %v1859 = vlaneseq
        %v1860 = vshrl.u32 %v1859, 7
        %v1861 = vsub.s32 0, %v1860
        %v1862 = vrot.slane %v1115, %v1861
        %v1863 = vlaneseq
        %v1864 = vshrl.u32 %v1863, 7
        %v1865 = vsub.s32 1, %v1864
        %v1866 = vrot.slane %v1115, %v1865
        %v1867 = vlaneseq
        %v1868 = vshrl.u32 %v1867, 7
        %v1869 = vsub.s32 2, %v1868
        %v1870 = vrot.slane %v1115, %v1869
        %v1871 = vlaneseq
        %v1872 = vshrl.u32 %v1871, 7
        %v1873 = vsub.s32 3, %v1872
        %v1874 = vrot.slane %v1115, %v1873
        %v1875 = vlaneseq
        %v1876 = vshrl.u32 %v1875, 7
        %v1877 = vsub.s32 0, %v1876
        %v1878 = vrot.slane %v1123, %v1877
        %v1879 = vlaneseq
        %v1880 = vshrl.u32 %v1879, 7
        %v1881 = vsub.s32 1, %v1880
        %v1882 = vrot.slane %v1123, %v1881
        %v1883 = vlaneseq
        %v1884 = vshrl.u32 %v1883, 7
        %v1885 = vsub.s32 2, %v1884
        %v1886 = vrot.slane %v1123, %v1885
        %v1887 = vlaneseq
        %v1888 = vshrl.u32 %v1887, 7
        %v1889 = vsub.s32 3, %v1888
        %v1890 = vrot.slane %v1123, %v1889
        %v1891 = vlaneseq
        %v1892 = vshrl.u32 %v1891, 7
        %v1893 = vsub.s32 0, %v1892
        %v1894 = vrot.slane %v1125, %v1893
        %v1895 = vlaneseq
        %v1896 = vshrl.u32 %v1895, 7
        %v1897 = vsub.s32 1, %v1896
        %v1898 = vrot.slane %v1125, %v1897
        %v1899 = vlaneseq
        %v1900 = vshrl.u32 %v1899, 7
        %v1901 = vsub.s32 2, %v1900
        %v1902 = vrot.slane %v1125, %v1901
        %v1903 = vlaneseq
        %v1904 = vshrl.u32 %v1903, 7
        %v1905 = vsub.s32 3, %v1904
        %v1906 = vrot.slane %v1125, %v1905
        %v1907 = vlaneseq
        %v1908 = vshrl.u32 %v1907, 7
        %v1909 = vsub.s32 0, %v1908
        %v1910 = vrot.slane %v1108, %v1909
        %v1911 = vlaneseq
        %v1912 = vshrl.u32 %v1911, 7
        %v1913 = vsub.s32 1, %v1912
        %v1914 = vrot.slane %v1108, %v1913
        %v1915 = vlaneseq
        %v1916 = vshrl.u32 %v1915, 7
        %v1917 = vsub.s32 2, %v1916
        %v1918 = vrot.slane %v1108, %v1917
        %v1919 = vlaneseq
        %v1920 = vshrl.u32 %v1919, 7
        %v1921 = vsub.s32 3, %v1920
        %v1922 = vrot.slane %v1108, %v1921
        %v1923 = vlaneseq
        %v1924 = vshrl.u32 %v1923, 7
        %v1925 = vsub.s32 0, %v1924
        %v1926 = vrot.slane %v1122, %v1925
        %v1927 = vlaneseq
        %v1928 = vshrl.u32 %v1927, 7
        %v1929 = vsub.s32 1, %v1928
        %v1930 = vrot.slane %v1122, %v1929
        %v1931 = vlaneseq
        %v1932 = vshrl.u32 %v1931, 7
        %v1933 = vsub.s32 2, %v1932
        %v1934 = vrot.slane %v1122, %v1933
        %v1935 = vlaneseq
        %v1936 = vshrl.u32 %v1935, 7
        %v1937 = vsub.s32 3, %v1936
        %v1938 = vrot.slane %v1122, %v1937
        %v1939 = vlaneseq
        %v1940 = vshrl.u32 %v1939, 7
        %v1941 = vsub.s32 0, %v1940
        %v1942 = vrot.slane %v1124, %v1941
        %v1943 = vlaneseq
        %v1944 = vshrl.u32 %v1943, 7
        %v1945 = vsub.s32 1, %v1944
        %v1946 = vrot.slane %v1124, %v1945
        %v1947 = vlaneseq
        %v1948 = vshrl.u32 %v1947, 7
        %v1949 = vsub.s32 2, %v1948
        %v1950 = vrot.slane %v1124, %v1949
        %v1951 = vlaneseq
        %v1952 = vshrl.u32 %v1951, 7
        %v1953 = vsub.s32 3, %v1952
        %v1954 = vrot.slane %v1124, %v1953
        %v1955 = vlaneseq
        %v1956 = vshrl.u32 %v1955, 7
        %v1957 = vsub.s32 0, %v1956
        %v1958 = vrot.slane %v1126, %v1957
        %v1959 = vlaneseq
        %v1960 = vshrl.u32 %v1959, 7
        %v1961 = vsub.s32 1, %v1960
        %v1962 = vrot.slane %v1126, %v1961
        %v1963 = vlaneseq
        %v1964 = vshrl.u32 %v1963, 7
        %v1965 = vsub.s32 2, %v1964
        %v1966 = vrot.slane %v1126, %v1965
        %v1967 = vlaneseq
        %v1968 = vshrl.u32 %v1967, 7
        %v1969 = vsub.s32 3, %v1968
        %v1970 = vrot.slane %v1126, %v1969
        %v1971 = vlaneseq
        %v1972 = vshrl.u32 %v1971, 7
        %v1973 = vsub.s32 0, %v1972
        %v1974 = vrot.slane %v1169, %v1973
        %v1975 = vlaneseq
        %v1976 = vshrl.u32 %v1975, 7
        %v1977 = vsub.s32 1, %v1976
        %v1978 = vrot.slane %v1169, %v1977
        %v1979 = vlaneseq
        %v1980 = vshrl.u32 %v1979, 7
        %v1981 = vsub.s32 2, %v1980
        %v1982 = vrot.slane %v1169, %v1981
        %v1983 = vlaneseq
        %v1984 = vshrl.u32 %v1983, 7
        %v1985 = vsub.s32 3, %v1984
        %v1986 = vrot.slane %v1169, %v1985
        %v1987 = vlaneseq
        %v1988 = vshrl.u32 %v1987, 7
        %v1989 = vsub.s32 0, %v1988
        %v1990 = vrot.slane %v1183, %v1989
        %v1991 = vlaneseq
        %v1992 = vshrl.u32 %v1991, 7
        %v1993 = vsub.s32 1, %v1992
        %v1994 = vrot.slane %v1183, %v1993
        %v1995 = vlaneseq
        %v1996 = vshrl.u32 %v1995, 7
        %v1997 = vsub.s32 2, %v1996
        %v1998 = vrot.slane %v1183, %v1997
        %v1999 = vlaneseq
        %v2000 = vshrl.u32 %v1999, 7
        %v2001 = vsub.s32 3, %v2000
        %v2002 = vrot.slane %v1183, %v2001
        %v2003 = vlaneseq
        %v2004 = vshrl.u32 %v2003, 7
        %v2005 = vsub.s32 0, %v2004
        %v2006 = vrot.slane %v1191, %v2005
        %v2007 = vlaneseq
        %v2008 = vshrl.u32 %v2007, 7
        %v2009 = vsub.s32 1, %v2008
        %v2010 = vrot.slane %v1191, %v2009
        %v2011 = vlaneseq
        %v2012 = vshrl.u32 %v2011, 7
        %v2013 = vsub.s32 2, %v2012
        %v2014 = vrot.slane %v1191, %v2013
        %v2015 = vlaneseq
        %v2016 = vshrl.u32 %v2015, 7
        %v2017 = vsub.s32 3, %v2016
        %v2018 = vrot.slane %v1191, %v2017
        %v2019 = vlaneseq
        %v2020 = vshrl.u32 %v2019, 7
        %v2021 = vsub.s32 0, %v2020
        %v2022 = vrot.slane %v1193, %v2021
        %v2023 = vlaneseq
        %v2024 = vshrl.u32 %v2023, 7
        %v2025 = vsub.s32 1, %v2024
        %v2026 = vrot.slane %v1193, %v2025
        %v2027 = vlaneseq
        %v2028 = vshrl.u32 %v2027, 7
        %v2029 = vsub.s32 2, %v2028
        %v2030 = vrot.slane %v1193, %v2029
        %v2031 = vlaneseq
        %v2032 = vshrl.u32 %v2031, 7
        %v2033 = vsub.s32 3, %v2032
        %v2034 = vrot.slane %v1193, %v2033
        %v2035 = vlaneseq
        %v2036 = vshrl.u32 %v2035, 7
        %v2037 = vsub.s32 0, %v2036
        %v2038 = vrot.slane %v1176, %v2037
        %v2039 = vlaneseq
        %v2040 = vshrl.u32 %v2039, 7
        %v2041 = vsub.s32 1, %v2040
        %v2042 = vrot.slane %v1176, %v2041
        %v2043 = vlaneseq
        %v2044 = vshrl.u32 %v2043, 7
        %v2045 = vsub.s32 2, %v2044
        %v2046 = vrot.slane %v1176, %v2045
        %v2047 = vlaneseq
        %v2048 = vshrl.u32 %v2047, 7
        %v2049 = vsub.s32 3, %v2048
        %v2050 = vrot.slane %v1176, %v2049
        %v2051 = vlaneseq
        %v2052 = vshrl.u32 %v2051, 7
        %v2053 = vsub.s32 0, %v2052
        %v2054 = vrot.slane %v1190, %v2053
        %v2055 = vlaneseq
        %v2056 = vshrl.u32 %v2055, 7
        %v2057 = vsub.s32 1, %v2056
        %v2058 = vrot.slane %v1190, %v2057
        %v2059 = vlaneseq
        %v2060 = vshrl.u32 %v2059, 7
        %v2061 = vsub.s32 2, %v2060
        %v2062 = vrot.slane %v1190, %v2061
        %v2063 = vlaneseq
        %v2064 = vshrl.u32 %v2063, 7
        %v2065 = vsub.s32 3, %v2064
        %v2066 = vrot.slane %v1190, %v2065
        %v2067 = vlaneseq
        %v2068 = vshrl.u32 %v2067, 7
        %v2069 = vsub.s32 0, %v2068
        %v2070 = vrot.slane %v1192, %v2069
        %v2071 = vlaneseq
        %v2072 = vshrl.u32 %v2071, 7
        %v2073 = vsub.s32 1, %v2072
        %v2074 = vrot.slane %v1192, %v2073
        %v2075 = vlaneseq
        %v2076 = vshrl.u32 %v2075, 7
        %v2077 = vsub.s32 2, %v2076
        %v2078 = vrot.slane %v1192, %v2077
        %v2079 = vlaneseq
        %v2080 = vshrl.u32 %v2079, 7
        %v2081 = vsub.s32 3, %v2080
        %v2082 = vrot.slane %v1192, %v2081
        %v2083 = vlaneseq
        %v2084 = vshrl.u32 %v2083, 7
        %v2085 = vsub.s32 0, %v2084
        %v2086 = vrot.slane %v1194, %v2085
        %v2087 = vlaneseq
        %v2088 = vshrl.u32 %v2087, 7
        %v2089 = vsub.s32 1, %v2088
        %v2090 = vrot.slane %v1194, %v2089
        %v2091 = vlaneseq
        %v2092 = vshrl.u32 %v2091, 7
        %v2093 = vsub.s32 2, %v2092
        %v2094 = vrot.slane %v1194, %v2093
        %v2095 = vlaneseq
        %v2096 = vshrl.u32 %v2095, 7
        %v2097 = vsub.s32 3, %v2096
        %v2098 = vrot.slane %v1194, %v2097
        %v2099 = vlaneseq
        %v2100 = vshrl.u32 %v2099, 7
        %v2101 = vsub.s32 0, %v2100
        %v2102 = vrot.slane %v1237, %v2101
        %v2103 = vlaneseq
        %v2104 = vshrl.u32 %v2103, 7
        %v2105 = vsub.s32 1, %v2104
        %v2106 = vrot.slane %v1237, %v2105
        %v2107 = vlaneseq
        %v2108 = vshrl.u32 %v2107, 7
        %v2109 = vsub.s32 2, %v2108
        %v2110 = vrot.slane %v1237, %v2109
        %v2111 = vlaneseq
        %v2112 = vshrl.u32 %v2111, 7
        %v2113 = vsub.s32 3, %v2112
        %v2114 = vrot.slane %v1237, %v2113
        %v2115 = vlaneseq
        %v2116 = vshrl.u32 %v2115, 7
        %v2117 = vsub.s32 0, %v2116
        %v2118 = vrot.slane %v1251, %v2117
        %v2119 = vlaneseq
        %v2120 = vshrl.u32 %v2119, 7
        %v2121 = vsub.s32 1, %v2120
        %v2122 = vrot.slane %v1251, %v2121
        %v2123 = vlaneseq
        %v2124 = vshrl.u32 %v2123, 7
        %v2125 = vsub.s32 2, %v2124
        %v2126 = vrot.slane %v1251, %v2125
        %v2127 = vlaneseq
        %v2128 = vshrl.u32 %v2127, 7
        %v2129 = vsub.s32 3, %v2128
        %v2130 = vrot.slane %v1251, %v2129
        %v2131 = vlaneseq
        %v2132 = vshrl.u32 %v2131, 7
        %v2133 = vsub.s32 0, %v2132
        %v2134 = vrot.slane %v1259, %v2133
        %v2135 = vlaneseq
        %v2136 = vshrl.u32 %v2135, 7
        %v2137 = vsub.s32 1, %v2136
        %v2138 = vrot.slane %v1259, %v2137
        %v2139 = vlaneseq
        %v2140 = vshrl.u32 %v2139, 7
        %v2141 = vsub.s32 2, %v2140
        %v2142 = vrot.slane %v1259, %v2141
        %v2143 = vlaneseq
        %v2144 = vshrl.u32 %v2143, 7
        %v2145 = vsub.s32 3, %v2144
        %v2146 = vrot.slane %v1259, %v2145
        %v2147 = vlaneseq
        %v2148 = vshrl.u32 %v2147, 7
        %v2149 = vsub.s32 0, %v2148
        %v2150 = vrot.slane %v1261, %v2149
        %v2151 = vlaneseq
        %v2152 = vshrl.u32 %v2151, 7
        %v2153 = vsub.s32 1, %v2152
        %v2154 = vrot.slane %v1261, %v2153
        %v2155 = vlaneseq
        %v2156 = vshrl.u32 %v2155, 7
        %v2157 = vsub.s32 2, %v2156
        %v2158 = vrot.slane %v1261, %v2157
        %v2159 = vlaneseq
        %v2160 = vshrl.u32 %v2159, 7
        %v2161 = vsub.s32 3, %v2160
        %v2162 = vrot.slane %v1261, %v2161
        %v2163 = vlaneseq
        %v2164 = vshrl.u32 %v2163, 7
        %v2165 = vsub.s32 0, %v2164
        %v2166 = vrot.slane %v1244, %v2165
        %v2167 = vlaneseq
        %v2168 = vshrl.u32 %v2167, 7
        %v2169 = vsub.s32 1, %v2168
        %v2170 = vrot.slane %v1244, %v2169
        %v2171 = vlaneseq
        %v2172 = vshrl.u32 %v2171, 7
        %v2173 = vsub.s32 2, %v2172
        %v2174 = vrot.slane %v1244, %v2173
        %v2175 = vlaneseq
        %v2176 = vshrl.u32 %v2175, 7
        %v2177 = vsub.s32 3, %v2176
        %v2178 = vrot.slane %v1244, %v2177
        %v2179 = vlaneseq
        %v2180 = vshrl.u32 %v2179, 7
        %v2181 = vsub.s32 0, %v2180
        %v2182 = vrot.slane %v1258, %v2181
        %v2183 = vlaneseq
        %v2184 = vshrl.u32 %v2183, 7
        %v2185 = vsub.s32 1, %v2184
        %v2186 = vrot.slane %v1258, %v2185
        %v2187 = vlaneseq
        %v2188 = vshrl.u32 %v2187, 7
        %v2189 = vsub.s32 2, %v2188
        %v2190 = vrot.slane %v1258, %v2189
        %v2191 = vlaneseq
        %v2192 = vshrl.u32 %v2191, 7
        %v2193 = vsub.s32 3, %v2192
        %v2194 = vrot.slane %v1258, %v2193
        %v2195 = vlaneseq
        %v2196 = vshrl.u32 %v2195, 7
        %v2197 = vsub.s32 0, %v2196
        %v2198 = vrot.slane %v1260, %v2197
        %v2199 = vlaneseq
        %v2200 = vshrl.u32 %v2199, 7
        %v2201 = vsub.s32 1, %v2200
        %v2202 = vrot.slane %v1260, %v2201
        %v2203 = vlaneseq
        %v2204 = vshrl.u32 %v2203, 7
        %v2205 = vsub.s32 2, %v2204
        %v2206 = vrot.slane %v1260, %v2205
        %v2207 = vlaneseq
        %v2208 = vshrl.u32 %v2207, 7
        %v2209 = vsub.s32 3, %v2208
        %v2210 = vrot.slane %v1260, %v2209
        %v2211 = vlaneseq
        %v2212 = vshrl.u32 %v2211, 7
        %v2213 = vsub.s32 0, %v2212
        %v2214 = vrot.slane %v1262, %v2213
        %v2215 = vlaneseq
        %v2216 = vshrl.u32 %v2215, 7
        %v2217 = vsub.s32 1, %v2216
        %v2218 = vrot.slane %v1262, %v2217
        %v2219 = vlaneseq
        %v2220 = vshrl.u32 %v2219, 7
        %v2221 = vsub.s32 2, %v2220
        %v2222 = vrot.slane %v1262, %v2221
        %v2223 = vlaneseq
        %v2224 = vshrl.u32 %v2223, 7
        %v2225 = vsub.s32 3, %v2224
        %v2226 = vrot.slane %v1262, %v2225
        %v2227 = vlaneseq
        %v2228 = vshrl.u32 %v2227, 7
        %v2229 = vsub.s32 0, %v2228
        %v2230 = vrot.slane %v1305, %v2229
        %v2231 = vlaneseq
        %v2232 = vshrl.u32 %v2231, 7
        %v2233 = vsub.s32 1, %v2232
        %v2234 = vrot.slane %v1305, %v2233
        %v2235 = vlaneseq
        %v2236 = vshrl.u32 %v2235, 7
        %v2237 = vsub.s32 2, %v2236
        %v2238 = vrot.slane %v1305, %v2237
        %v2239 = vlaneseq
        %v2240 = vshrl.u32 %v2239, 7
        %v2241 = vsub.s32 3, %v2240
        %v2242 = vrot.slane %v1305, %v2241
        %v2243 = vlaneseq
        %v2244 = vshrl.u32 %v2243, 7
        %v2245 = vsub.s32 0, %v2244
        %v2246 = vrot.slane %v1319, %v2245
        %v2247 = vlaneseq
        %v2248 = vshrl.u32 %v2247, 7
        %v2249 = vsub.s32 1, %v2248
        %v2250 = vrot.slane %v1319, %v2249
        %v2251 = vlaneseq
        %v2252 = vshrl.u32 %v2251, 7
        %v2253 = vsub.s32 2, %v2252
        %v2254 = vrot.slane %v1319, %v2253
        %v2255 = vlaneseq
        %v2256 = vshrl.u32 %v2255, 7
        %v2257 = vsub.s32 3, %v2256
        %v2258 = vrot.slane %v1319, %v2257
        %v2259 = vlaneseq
        %v2260 = vshrl.u32 %v2259, 7
        %v2261 = vsub.s32 0, %v2260
        %v2262 = vrot.slane %v1327, %v2261
        %v2263 = vlaneseq
        %v2264 = vshrl.u32 %v2263, 7
        %v2265 = vsub.s32 1, %v2264
        %v2266 = vrot.slane %v1327, %v2265
        %v2267 = vlaneseq
        %v2268 = vshrl.u32 %v2267, 7
        %v2269 = vsub.s32 2, %v2268
        %v2270 = vrot.slane %v1327, %v2269
        %v2271 = vlaneseq
        %v2272 = vshrl.u32 %v2271, 7
        %v2273 = vsub.s32 3, %v2272
        %v2274 = vrot.slane %v1327, %v2273
        %v2275 = vlaneseq
        %v2276 = vshrl.u32 %v2275, 7
        %v2277 = vsub.s32 0, %v2276
        %v2278 = vrot.slane %v1329, %v2277
        %v2279 = vlaneseq
        %v2280 = vshrl.u32 %v2279, 7
        %v2281 = vsub.s32 1, %v2280
        %v2282 = vrot.slane %v1329, %v2281
        %v2283 = vlaneseq
        %v2284 = vshrl.u32 %v2283, 7
        %v2285 = vsub.s32 2, %v2284
        %v2286 = vrot.slane %v1329, %v2285
        %v2287 = vlaneseq
        %v2288 = vshrl.u32 %v2287, 7
        %v2289 = vsub.s32 3, %v2288
        %v2290 = vrot.slane %v1329, %v2289
        %v2291 = vlaneseq
        %v2292 = vshrl.u32 %v2291, 7
        %v2293 = vsub.s32 0, %v2292
        %v2294 = vrot.slane %v1312, %v2293
        %v2295 = vlaneseq
        %v2296 = vshrl.u32 %v2295, 7
        %v2297 = vsub.s32 1, %v2296
        %v2298 = vrot.slane %v1312, %v2297
        %v2299 = vlaneseq
        %v2300 = vshrl.u32 %v2299, 7
        %v2301 = vsub.s32 2, %v2300
        %v2302 = vrot.slane %v1312, %v2301
        %v2303 = vlaneseq
        %v2304 = vshrl.u32 %v2303, 7
        %v2305 = vsub.s32 3, %v2304
        %v2306 = vrot.slane %v1312, %v2305
        %v2307 = vlaneseq
        %v2308 = vshrl.u32 %v2307, 7
        %v2309 = vsub.s32 0, %v2308
        %v2310 = vrot.slane %v1326, %v2309
        %v2311 = vlaneseq
        %v2312 = vshrl.u32 %v2311, 7
        %v2313 = vsub.s32 1, %v2312
        %v2314 = vrot.slane %v1326, %v2313
        %v2315 = vlaneseq
        %v2316 = vshrl.u32 %v2315, 7
        %v2317 = vsub.s32 2, %v2316
        %v2318 = vrot.slane %v1326, %v2317
        %v2319 = vlaneseq
        %v2320 = vshrl.u32 %v2319, 7
        %v2321 = vsub.s32 3, %v2320
        %v2322 = vrot.slane %v1326, %v2321
        %v2323 = vlaneseq
        %v2324 = vshrl.u32 %v2323, 7
        %v2325 = vsub.s32 0, %v2324
        %v2326 = vrot.slane %v1328, %v2325
        %v2327 = vlaneseq
        %v2328 = vshrl.u32 %v2327, 7
        %v2329 = vsub.s32 1, %v2328
        %v2330 = vrot.slane %v1328, %v2329
        %v2331 = vlaneseq
        %v2332 = vshrl.u32 %v2331, 7
        %v2333 = vsub.s32 2, %v2332
        %v2334 = vrot.slane %v1328, %v2333
        %v2335 = vlaneseq
        %v2336 = vshrl.u32 %v2335, 7
        %v2337 = vsub.s32 3, %v2336
        %v2338 = vrot.slane %v1328, %v2337
        %v2339 = vlaneseq
        %v2340 = vshrl.u32 %v2339, 7
        %v2341 = vsub.s32 0, %v2340
        %v2342 = vrot.slane %v1330, %v2341
        %v2343 = vlaneseq
        %v2344 = vshrl.u32 %v2343, 7
        %v2345 = vsub.s32 1, %v2344
        %v2346 = vrot.slane %v1330, %v2345
        %v2347 = vlaneseq
        %v2348 = vshrl.u32 %v2347, 7
        %v2349 = vsub.s32 2, %v2348
        %v2350 = vrot.slane %v1330, %v2349
        %v2351 = vlaneseq
        %v2352 = vshrl.u32 %v2351, 7
        %v2353 = vsub.s32 3, %v2352
        %v2354 = vrot.slane %v1330, %v2353
        %v2611 = vmul.f32 %v1334, %v487
        %v2612 = vmul.f32 %v1338, %v488
        %v2613 = vmul.f32 %v1342, %v489
        %v2614 = vmul.f32 %v1346, %v490
        %v2615 = vmul.f32 %v1350, %v487
        %v2616 = vmul.f32 %v1354, %v488
        %v2617 = vmul.f32 %v1358, %v489
        %v2618 = vmul.f32 %v1362, %v490
        %v2619 = vmul.f32 %v1366, %v487
        %v2620 = vmul.f32 %v1370, %v488
        %v2621 = vmul.f32 %v1374, %v489
        %v2622 = vmul.f32 %v1378, %v490
        %v2623 = vmul.f32 %v1382, %v487
        %v2624 = vmul.f32 %v1386, %v488
        %v2625 = vmul.f32 %v1390, %v489
        %v2626 = vmul.f32 %v1394, %v490
        %v2627 = vmul.f32 %v1398, %v487
        %v2628 = vmul.f32 %v1402, %v488
        %v2629 = vmul.f32 %v1406, %v489
        %v2630 = vmul.f32 %v1410, %v490
        %v2631 = vmul.f32 %v1414, %v487
        %v2632 = vmul.f32 %v1418, %v488
        %v2633 = vmul.f32 %v1422, %v489
        %v2634 = vmul.f32 %v1426, %v490
        %v2635 = vmul.f32 %v1430, %v487
        %v2636 = vmul.f32 %v1434, %v488
        %v2637 = vmul.f32 %v1438, %v489
        %v2638 = vmul.f32 %v1442, %v490
        %v2639 = vmul.f32 %v1446, %v487
        %v2640 = vmul.f32 %v1450, %v488
        %v2641 = vmul.f32 %v1454, %v489
        %v2642 = vmul.f32 %v1458, %v490
        %v2643 = vmul.f32 %v1462, %v487
        %v2644 = vmul.f32 %v1466, %v488
        %v2645 = vmul.f32 %v1470, %v489
        %v2646 = vmul.f32 %v1474, %v490
        %v2647 = vmul.f32 %v1478, %v487
        %v2648 = vmul.f32 %v1482, %v488
        %v2649 = vmul.f32 %v1486, %v489
        %v2650 = vmul.f32 %v1490, %v490
        %v2651 = vmul.f32 %v1494, %v487
        %v2652 = vmul.f32 %v1498, %v488
        %v2653 = vmul.f32 %v1502, %v489
        %v2654 = vmul.f32 %v1506, %v490
        %v2655 = vmul.f32 %v1510, %v487
        %v2656 = vmul.f32 %v1514, %v488
        %v2657 = vmul.f32 %v1518, %v489
        %v2658 = vmul.f32 %v1522, %v490
        %v2659 = vmul.f32 %v1526, %v487
        %v2660 = vmul.f32 %v1530, %v488
        %v2661 = vmul.f32 %v1534, %v489
        %v2662 = vmul.f32 %v1538, %v490
        %v2663 = vmul.f32 %v1542, %v487
        %v2664 = vmul.f32 %v1546, %v488
        %v2665 = vmul.f32 %v1550, %v489
        %v2666 = vmul.f32 %v1554, %v490
        %v2667 = vmul.f32 %v1558, %v487
        %v2668 = vmul.f32 %v1562, %v488
        %v2669 = vmul.f32 %v1566, %v489
        %v2670 = vmul.f32 %v1570, %v490
        %v2671 = vmul.f32 %v1574, %v487
        %v2672 = vmul.f32 %v1578, %v488
        %v2673 = vmul.f32 %v1582, %v489
        %v2674 = vmul.f32 %v1586, %v490
        %v2675 = vmul.f32 %v1590, %v487
        %v2676 = vmul.f32 %v1594, %v488
        %v2677 = vmul.f32 %v1598, %v489
        %v2678 = vmul.f32 %v1602, %v490
        %v2679 = vmul.f32 %v1606, %v487
        %v2680 = vmul.f32 %v1610, %v488
        %v2681 = vmul.f32 %v1614, %v489
        %v2682 = vmul.f32 %v1618, %v490
        %v2683 = vmul.f32 %v1622, %v487
        %v2684 = vmul.f32 %v1626, %v488
        %v2685 = vmul.f32 %v1630, %v489
        %v2686 = vmul.f32 %v1634, %v490
        %v2687 = vmul.f32 %v1638, %v487
        %v2688 = vmul.f32 %v1642, %v488
        %v2689 = vmul.f32 %v1646, %v489
        %v2690 = vmul.f32 %v1650, %v490
        %v2691 = vmul.f32 %v1654, %v487
        %v2692 = vmul.f32 %v1658, %v488
        %v2693 = vmul.f32 %v1662, %v489
        %v2694 = vmul.f32 %v1666, %v490
        %v2695 = vmul.f32 %v1670, %v487
        %v2696 = vmul.f32 %v1674, %v488
        %v2697 = vmul.f32 %v1678, %v489
        %v2698 = vmul.f32 %v1682, %v490
        %v2699 = vmul.f32 %v1686, %v487
        %v2700 = vmul.f32 %v1690, %v488
        %v2701 = vmul.f32 %v1694, %v489
        %v2702 = vmul.f32 %v1698, %v490
        %v2703 = vmul.f32 %v1702, %v487
        %v2704 = vmul.f32 %v1706, %v488
        %v2705 = vmul.f32 %v1710, %v489
        %v2706 = vmul.f32 %v1714, %v490
        %v2707 = vmul.f32 %v1718, %v487
        %v2708 = vmul.f32 %v1722, %v488
        %v2709 = vmul.f32 %v1726, %v489
        %v2710 = vmul.f32 %v1730, %v490
        %v2711 = vmul.f32 %v1734, %v487
        %v2712 = vmul.f32 %v1738, %v488
        %v2713 = vmul.f32 %v1742, %v489
        %v2714 = vmul.f32 %v1746, %v490
        %v2715 = vmul.f32 %v1750, %v487
        %v2716 = vmul.f32 %v1754, %v488
        %v2717 = vmul.f32 %v1758, %v489
        %v2718 = vmul.f32 %v1762, %v490
        %v2719 = vmul.f32 %v1766, %v487
        %v2720 = vmul.f32 %v1770, %v488
        %v2721 = vmul.f32 %v1774, %v489
        %v2722 = vmul.f32 %v1778, %v490
        %v2723 = vmul.f32 %v1782, %v487
        %v2724 = vmul.f32 %v1786, %v488
        %v2725 = vmul.f32 %v1790, %v489
        %v2726 = vmul.f32 %v1794, %v490
        %v2727 = vmul.f32 %v1798, %v487
        %v2728 = vmul.f32 %v1802, %v488
        %v2729 = vmul.f32 %v1806, %v489
        %v2730 = vmul.f32 %v1810, %v490
        %v2731 = vmul.f32 %v1814, %v487
        %v2732 = vmul.f32 %v1818, %v488
        %v2733 = vmul.f32 %v1822, %v489
        %v2734 = vmul.f32 %v1826, %v490
        %v2735 = vmul.f32 %v1830, %v487
        %v2736 = vmul.f32 %v1834, %v488
        %v2737 = vmul.f32 %v1838, %v489
        %v2738 = vmul.f32 %v1842, %v490
        %v2739 = vmul.f32 %v1846, %v487
        %v2740 = vmul.f32 %v1850, %v488
        %v2741 = vmul.f32 %v1854, %v489
        %v2742 = vmul.f32 %v1858, %v490
        %v2743 = vmul.f32 %v1862, %v487
        %v2744 = vmul.f32 %v1866, %v488
        %v2745 = vmul.f32 %v1870, %v489
        %v2746 = vmul.f32 %v1874, %v490
        %v2747 = vmul.f32 %v1878, %v487
        %v2748 = vmul.f32 %v1882, %v488
        %v2749 = vmul.f32 %v1886, %v489
        %v2750 = vmul.f32 %v1890, %v490
        %v2751 = vmul.f32 %v1894, %v487
        %v2752 = vmul.f32 %v1898, %v488
        %v2753 = vmul.f32 %v1902, %v489
        %v2754 = vmul.f32 %v1906, %v490
        %v2755 = vmul.f32 %v1910, %v487
        %v2756 = vmul.f32 %v1914, %v488
        %v2757 = vmul.f32 %v1918, %v489
        %v2758 = vmul.f32 %v1922, %v490
        %v2759 = vmul.f32 %v1926, %v487
        %v2760 = vmul.f32 %v1930, %v488
        %v2761 = vmul.f32 %v1934, %v489
        %v2762 = vmul.f32 %v1938, %v490
        %v2763 = vmul.f32 %v1942, %v487
        %v2764 = vmul.f32 %v1946, %v488
        %v2765 = vmul.f32 %v1950, %v489
        %v2766 = vmul.f32 %v1954, %v490
        %v2767 = vmul.f32 %v1958, %v487
        %v2768 = vmul.f32 %v1962, %v488
        %v2769 = vmul.f32 %v1966, %v489
        %v2770 = vmul.f32 %v1970, %v490
        %v2771 = vmul.f32 %v1974, %v487
        %v2772 = vmul.f32 %v1978, %v488
        %v2773 = vmul.f32 %v1982, %v489
        %v2774 = vmul.f32 %v1986, %v490
        %v2775 = vmul.f32 %v1990, %v487
        %v2776 = vmul.f32 %v1994, %v488
        %v2777 = vmul.f32 %v1998, %v489
        %v2778 = vmul.f32 %v2002, %v490
        %v2779 = vmul.f32 %v2006, %v487
        %v2780 = vmul.f32 %v2010, %v488
        %v2781 = vmul.f32 %v2014, %v489
        %v2782 = vmul.f32 %v2018, %v490
        %v2783 = vmul.f32 %v2022, %v487
        %v2784 = vmul.f32 %v2026, %v488
        %v2785 = vmul.f32 %v2030, %v489
        %v2786 = vmul.f32 %v2034, %v490
        %v2787 = vmul.f32 %v2038, %v487
        %v2788 = vmul.f32 %v2042, %v488
        %v2789 = vmul.f32 %v2046, %v489
        %v2790 = vmul.f32 %v2050, %v490
        %v2791 = vmul.f32 %v2054, %v487
        %v2792 = vmul.f32 %v2058, %v488
        %v2793 = vmul.f32 %v2062, %v489
        %v2794 = vmul.f32 %v2066, %v490
        %v2795 = vmul.f32 %v2070, %v487
        %v2796 = vmul.f32 %v2074, %v488
        %v2797 = vmul.f32 %v2078, %v489
        %v2798 = vmul.f32 %v2082, %v490
        %v2799 = vmul.f32 %v2086, %v487
        %v2800 = vmul.f32 %v2090, %v488
        %v2801 = vmul.f32 %v2094, %v489
        %v2802 = vmul.f32 %v2098, %v490
        %v2803 = vmul.f32 %v2102, %v487
        %v2804 = vmul.f32 %v2106, %v488
        %v2805 = vmul.f32 %v2110, %v489
        %v2806 = vmul.f32 %v2114, %v490
        %v2807 = vmul.f32 %v2118, %v487
        %v2808 = vmul.f32 %v2122, %v488
        %v2809 = vmul.f32 %v2126, %v489
        %v2810 = vmul.f32 %v2130, %v490
        %v2811 = vmul.f32 %v2134, %v487
        %v2812 = vmul.f32 %v2138, %v488
        %v2813 = vmul.f32 %v2142, %v489
        %v2814 = vmul.f32 %v2146, %v490
        %v2815 = vmul.f32 %v2150, %v487
        %v2816 = vmul.f32 %v2154, %v488
        %v2817 = vmul.f32 %v2158, %v489
        %v2818 = vmul.f32 %v2162, %v490
        %v2819 = vmul.f32 %v2166, %v487
        %v2820 = vmul.f32 %v2170, %v488
        %v2821 = vmul.f32 %v2174, %v489
        %v2822 = vmul.f32 %v2178, %v490
        %v2823 = vmul.f32 %v2182, %v487
        %v2824 = vmul.f32 %v2186, %v488
        %v2825 = vmul.f32 %v2190, %v489
        %v2826 = vmul.f32 %v2194, %v490
        %v2827 = vmul.f32 %v2198, %v487
        %v2828 = vmul.f32 %v2202, %v488
        %v2829 = vmul.f32 %v2206, %v489
        %v2830 = vmul.f32 %v2210, %v490
        %v2831 = vmul.f32 %v2214, %v487
        %v2832 = vmul.f32 %v2218, %v488
        %v2833 = vmul.f32 %v2222, %v489
        %v2834 = vmul.f32 %v2226, %v490
        %v2835 = vmul.f32 %v2230, %v487
        %v2836 = vmul.f32 %v2234, %v488
        %v2837 = vmul.f32 %v2238, %v489
        %v2838 = vmul.f32 %v2242, %v490
        %v2839 = vmul.f32 %v2246, %v487
        %v2840 = vmul.f32 %v2250, %v488
        %v2841 = vmul.f32 %v2254, %v489
        %v2842 = vmul.f32 %v2258, %v490
        %v2843 = vmul.f32 %v2262, %v487
        %v2844 = vmul.f32 %v2266, %v488
        %v2845 = vmul.f32 %v2270, %v489
        %v2846 = vmul.f32 %v2274, %v490
        %v2847 = vmul.f32 %v2278, %v487
        %v2848 = vmul.f32 %v2282, %v488
        %v2849 = vmul.f32 %v2286, %v489
        %v2850 = vmul.f32 %v2290, %v490
        %v2851 = vmul.f32 %v2294, %v487
        %v2852 = vmul.f32 %v2298, %v488
        %v2853 = vmul.f32 %v2302, %v489
        %v2854 = vmul.f32 %v2306, %v490
        %v2855 = vmul.f32 %v2310, %v487
        %v2856 = vmul.f32 %v2314, %v488
        %v2857 = vmul.f32 %v2318, %v489
        %v2858 = vmul.f32 %v2322, %v490
        %v2859 = vmul.f32 %v2326, %v487
        %v2860 = vmul.f32 %v2330, %v488
        %v2861 = vmul.f32 %v2334, %v489
        %v2862 = vmul.f32 %v2338, %v490
        %v2863 = vmul.f32 %v2342, %v487
        %v2864 = vmul.f32 %v2346, %v488
        %v2865 = vmul.f32 %v2350, %v489
        %v2866 = vmul.f32 %v2354, %v490
        %v2867 = vpack.c.bf16 %v2615, %v2611
        %v2868 = vpack.c.bf16 %v2616, %v2612
        %v2869 = vpack.c.bf16 %v2617, %v2613
        %v2870 = vpack.c.bf16 %v2618, %v2614
        %v2871 = vpack.c.bf16 %v2623, %v2619
        %v2872 = vpack.c.bf16 %v2624, %v2620
        %v2873 = vpack.c.bf16 %v2625, %v2621
        %v2874 = vpack.c.bf16 %v2626, %v2622
        %v2875 = vpack.c.bf16 %v2631, %v2627
        %v2876 = vpack.c.bf16 %v2632, %v2628
        %v2877 = vpack.c.bf16 %v2633, %v2629
        %v2878 = vpack.c.bf16 %v2634, %v2630
        %v2879 = vpack.c.bf16 %v2639, %v2635
        %v2880 = vpack.c.bf16 %v2640, %v2636
        %v2881 = vpack.c.bf16 %v2641, %v2637
        %v2882 = vpack.c.bf16 %v2642, %v2638
        %v2883 = vpack.c.bf16 %v2647, %v2643
        %v2884 = vpack.c.bf16 %v2648, %v2644
        %v2885 = vpack.c.bf16 %v2649, %v2645
        %v2886 = vpack.c.bf16 %v2650, %v2646
        %v2887 = vpack.c.bf16 %v2655, %v2651
        %v2888 = vpack.c.bf16 %v2656, %v2652
        %v2889 = vpack.c.bf16 %v2657, %v2653
        %v2890 = vpack.c.bf16 %v2658, %v2654
        %v2891 = vpack.c.bf16 %v2663, %v2659
        %v2892 = vpack.c.bf16 %v2664, %v2660
        %v2893 = vpack.c.bf16 %v2665, %v2661
        %v2894 = vpack.c.bf16 %v2666, %v2662
        %v2895 = vpack.c.bf16 %v2671, %v2667
        %v2896 = vpack.c.bf16 %v2672, %v2668
        %v2897 = vpack.c.bf16 %v2673, %v2669
        %v2898 = vpack.c.bf16 %v2674, %v2670
        %v2899 = vpack.c.bf16 %v2679, %v2675
        %v2900 = vpack.c.bf16 %v2680, %v2676
        %v2901 = vpack.c.bf16 %v2681, %v2677
        %v2902 = vpack.c.bf16 %v2682, %v2678
        %v2903 = vpack.c.bf16 %v2687, %v2683
        %v2904 = vpack.c.bf16 %v2688, %v2684
        %v2905 = vpack.c.bf16 %v2689, %v2685
        %v2906 = vpack.c.bf16 %v2690, %v2686
        %v2907 = vpack.c.bf16 %v2695, %v2691
        %v2908 = vpack.c.bf16 %v2696, %v2692
        %v2909 = vpack.c.bf16 %v2697, %v2693
        %v2910 = vpack.c.bf16 %v2698, %v2694
        %v2911 = vpack.c.bf16 %v2703, %v2699
        %v2912 = vpack.c.bf16 %v2704, %v2700
        %v2913 = vpack.c.bf16 %v2705, %v2701
        %v2914 = vpack.c.bf16 %v2706, %v2702
        %v2915 = vpack.c.bf16 %v2711, %v2707
        %v2916 = vpack.c.bf16 %v2712, %v2708
        %v2917 = vpack.c.bf16 %v2713, %v2709
        %v2918 = vpack.c.bf16 %v2714, %v2710
        %v2919 = vpack.c.bf16 %v2719, %v2715
        %v2920 = vpack.c.bf16 %v2720, %v2716
        %v2921 = vpack.c.bf16 %v2721, %v2717
        %v2922 = vpack.c.bf16 %v2722, %v2718
        %v2923 = vpack.c.bf16 %v2727, %v2723
        %v2924 = vpack.c.bf16 %v2728, %v2724
        %v2925 = vpack.c.bf16 %v2729, %v2725
        %v2926 = vpack.c.bf16 %v2730, %v2726
        %v2927 = vpack.c.bf16 %v2735, %v2731
        %v2928 = vpack.c.bf16 %v2736, %v2732
        %v2929 = vpack.c.bf16 %v2737, %v2733
        %v2930 = vpack.c.bf16 %v2738, %v2734
        %v2931 = vpack.c.bf16 %v2743, %v2739
        %v2932 = vpack.c.bf16 %v2744, %v2740
        %v2933 = vpack.c.bf16 %v2745, %v2741
        %v2934 = vpack.c.bf16 %v2746, %v2742
        %v2935 = vpack.c.bf16 %v2751, %v2747
        %v2936 = vpack.c.bf16 %v2752, %v2748
        %v2937 = vpack.c.bf16 %v2753, %v2749
        %v2938 = vpack.c.bf16 %v2754, %v2750
        %v2939 = vpack.c.bf16 %v2759, %v2755
        %v2940 = vpack.c.bf16 %v2760, %v2756
        %v2941 = vpack.c.bf16 %v2761, %v2757
        %v2942 = vpack.c.bf16 %v2762, %v2758
        %v2943 = vpack.c.bf16 %v2767, %v2763
        %v2944 = vpack.c.bf16 %v2768, %v2764
        %v2945 = vpack.c.bf16 %v2769, %v2765
        %v2946 = vpack.c.bf16 %v2770, %v2766
        %v2947 = vpack.c.bf16 %v2775, %v2771
        %v2948 = vpack.c.bf16 %v2776, %v2772
        %v2949 = vpack.c.bf16 %v2777, %v2773
        %v2950 = vpack.c.bf16 %v2778, %v2774
        %v2951 = vpack.c.bf16 %v2783, %v2779
        %v2952 = vpack.c.bf16 %v2784, %v2780
        %v2953 = vpack.c.bf16 %v2785, %v2781
        %v2954 = vpack.c.bf16 %v2786, %v2782
        %v2955 = vpack.c.bf16 %v2791, %v2787
        %v2956 = vpack.c.bf16 %v2792, %v2788
        %v2957 = vpack.c.bf16 %v2793, %v2789
        %v2958 = vpack.c.bf16 %v2794, %v2790
        %v2959 = vpack.c.bf16 %v2799, %v2795
        %v2960 = vpack.c.bf16 %v2800, %v2796
        %v2961 = vpack.c.bf16 %v2801, %v2797
        %v2962 = vpack.c.bf16 %v2802, %v2798
        %v2963 = vpack.c.bf16 %v2807, %v2803
        %v2964 = vpack.c.bf16 %v2808, %v2804
        %v2965 = vpack.c.bf16 %v2809, %v2805
        %v2966 = vpack.c.bf16 %v2810, %v2806
        %v2967 = vpack.c.bf16 %v2815, %v2811
        %v2968 = vpack.c.bf16 %v2816, %v2812
        %v2969 = vpack.c.bf16 %v2817, %v2813
        %v2970 = vpack.c.bf16 %v2818, %v2814
        %v2971 = vpack.c.bf16 %v2823, %v2819
        %v2972 = vpack.c.bf16 %v2824, %v2820
        %v2973 = vpack.c.bf16 %v2825, %v2821
        %v2974 = vpack.c.bf16 %v2826, %v2822
        %v2975 = vpack.c.bf16 %v2831, %v2827
        %v2976 = vpack.c.bf16 %v2832, %v2828
        %v2977 = vpack.c.bf16 %v2833, %v2829
        %v2978 = vpack.c.bf16 %v2834, %v2830
        %v2979 = vpack.c.bf16 %v2839, %v2835
        %v2980 = vpack.c.bf16 %v2840, %v2836
        %v2981 = vpack.c.bf16 %v2841, %v2837
        %v2982 = vpack.c.bf16 %v2842, %v2838
        %v2983 = vpack.c.bf16 %v2847, %v2843
        %v2984 = vpack.c.bf16 %v2848, %v2844
        %v2985 = vpack.c.bf16 %v2849, %v2845
        %v2986 = vpack.c.bf16 %v2850, %v2846
        %v2987 = vpack.c.bf16 %v2855, %v2851
        %v2988 = vpack.c.bf16 %v2856, %v2852
        %v2989 = vpack.c.bf16 %v2857, %v2853
        %v2990 = vpack.c.bf16 %v2858, %v2854
        %v2991 = vpack.c.bf16 %v2863, %v2859
        %v2992 = vpack.c.bf16 %v2864, %v2860
        %v2993 = vpack.c.bf16 %v2865, %v2861
        %v2994 = vpack.c.bf16 %v2866, %v2862
        %v2995 = vld [vmem:[#allocation5] sm:$0x11]
        %v2996 = vld [vmem:[#allocation5 + $0x8] sm:$0x11]
        %v2999 = vunpack.c.l.b16 %v2995
        %v3000 = vunpack.c.h.b16 %v2995
        %v3001 = vunpack.c.l.b16 %v2996
        %v3002 = vunpack.c.h.b16 %v2996
        %v3003 = vpack.c.b16 %v2999, %v2999
        %v3004 = vpack.c.b16 %v3000, %v3000
        %v3005 = vpack.c.b16 %v3001, %v3001
        %v3006 = vpack.c.b16 %v3002, %v3002
        %3011 = vmatprep.subr.bf16.mxu0 %v2896
        %3012 = vmatpush1.bf16.msra.mxu0 %v2895
        %3013 = vmatprep.subr.bf16.mxu0 %v2892
        %3014 = vmatpush1.bf16.msra.mxu0 %v2891
        %3015 = vmatprep.subr.bf16.mxu0 %v2888
        %3016 = vmatpush1.bf16.msra.mxu0 %v2887
        %3017 = vmatprep.subr.bf16.mxu0 %v2884
        %3018 = vmatpush1.bf16.msra.mxu0 %v2883
        %3019 = vmatprep.subr.bf16.mxu0 %v2880
        %3020 = vmatpush1.bf16.msra.mxu0 %v2879
        %3021 = vmatprep.subr.bf16.mxu0 %v2876
        %3022 = vmatpush1.bf16.msra.mxu0 %v2875
        %3023 = vmatprep.subr.bf16.mxu0 %v2872
        %3024 = vmatpush1.bf16.msra.mxu0 %v2871
        %3025 = vmatprep.subr.bf16.mxu0 %v2868
        %3026 = vmatpush1.bf16.msra.mxu0 %v2867
        %3027 = vmatprep.subr.bf16.mxu0 %v2928
        %3028 = vmatpush2.bf16.msra.mxu0 %v2927
        %3029 = vmatprep.subr.bf16.mxu0 %v2924
        %3030 = vmatpush2.bf16.msra.mxu0 %v2923
        %3031 = vmatprep.subr.bf16.mxu0 %v2920
        %3032 = vmatpush2.bf16.msra.mxu0 %v2919
        %3033 = vmatprep.subr.bf16.mxu0 %v2916
        %3034 = vmatpush2.bf16.msra.mxu0 %v2915
        %3035 = vmatprep.subr.bf16.mxu0 %v2912
        %3036 = vmatpush2.bf16.msra.mxu0 %v2911
        %3037 = vmatprep.subr.bf16.mxu0 %v2908
        %3038 = vmatpush2.bf16.msra.mxu0 %v2907
        %3039 = vmatprep.subr.bf16.mxu0 %v2904
        %3040 = vmatpush2.bf16.msra.mxu0 %v2903
        %3041 = vmatprep.subr.bf16.mxu0 %v2900
        %3042 = vmatpush2.bf16.msra.mxu0 %v2899
        %3043 = vmatprep.mubr.bf16.mxu0 %v3004
        %3044 = vmatmul.mubr.bf16.gmra.mxu0 %v3003
        %v3045 = vpop.f32.mrf.mxu0
        %v3046 = vadd.f32 0.0, %v3045
        %v3047 = vpop.f32.mrf.mxu0
        %v3048 = vadd.f32 0.0, %v3047
        %v3049 = vpop.f32.mrf.mxu0
        %v3050 = vpop.f32.mrf.mxu0
        %3051 = vdwg.mxu0
        %3052 = vmatprep.subr.bf16.mxu0 %v2960
        %3053 = vmatpush1.bf16.msra.mxu0 %v2959
        %3054 = vmatprep.subr.bf16.mxu0 %v2956
        %3055 = vmatpush1.bf16.msra.mxu0 %v2955
        %3056 = vmatprep.subr.bf16.mxu0 %v2952
        %3057 = vmatpush1.bf16.msra.mxu0 %v2951
        %3058 = vmatprep.subr.bf16.mxu0 %v2948
        %3059 = vmatpush1.bf16.msra.mxu0 %v2947
        %3060 = vmatprep.subr.bf16.mxu0 %v2944
        %3061 = vmatpush1.bf16.msra.mxu0 %v2943
        %3062 = vmatprep.subr.bf16.mxu0 %v2940
        %3063 = vmatpush1.bf16.msra.mxu0 %v2939
        %3064 = vmatprep.subr.bf16.mxu0 %v2936
        %3065 = vmatpush1.bf16.msra.mxu0 %v2935
        %3066 = vmatprep.subr.bf16.mxu0 %v2932
        %3067 = vmatpush1.bf16.msra.mxu0 %v2931
        %3068 = vmatprep.subr.bf16.mxu0 %v2992
        %3069 = vmatpush2.bf16.msra.mxu0 %v2991
        %3070 = vmatprep.subr.bf16.mxu0 %v2988
        %3071 = vmatpush2.bf16.msra.mxu0 %v2987
        %3072 = vmatprep.subr.bf16.mxu0 %v2984
        %3073 = vmatpush2.bf16.msra.mxu0 %v2983
        %3074 = vmatprep.subr.bf16.mxu0 %v2980
        %3075 = vmatpush2.bf16.msra.mxu0 %v2979
        %3076 = vmatprep.subr.bf16.mxu0 %v2976
        %3077 = vmatpush2.bf16.msra.mxu0 %v2975
        %3078 = vmatprep.subr.bf16.mxu0 %v2972
        %3079 = vmatpush2.bf16.msra.mxu0 %v2971
        %3080 = vmatprep.subr.bf16.mxu0 %v2968
        %3081 = vmatpush2.bf16.msra.mxu0 %v2967
        %3082 = vmatprep.subr.bf16.mxu0 %v2964
        %3083 = vmatpush2.bf16.msra.mxu0 %v2963
        %3084 = vmatprep.mubr.bf16.mxu0 %v3006
        %3085 = vmatmul.mubr.bf16.gmra.mxu0 %v3005
        %v3086 = vpop.f32.mrf.mxu0
        %v3087 = vadd.f32 %v3046, %v3086
        %v3088 = vpop.f32.mrf.mxu0
        %v3089 = vadd.f32 %v3048, %v3088
        %v3090 = vpop.f32.mrf.mxu0
        %v3091 = vpop.f32.mrf.mxu0
        %3092 = vdwg.mxu0
        %3093 = vmatprep.subr.bf16.mxu0 %v2898
        %3094 = vmatpush1.bf16.msra.mxu0 %v2897
        %3095 = vmatprep.subr.bf16.mxu0 %v2894
        %3096 = vmatpush1.bf16.msra.mxu0 %v2893
        %3097 = vmatprep.subr.bf16.mxu0 %v2890
        %3098 = vmatpush1.bf16.msra.mxu0 %v2889
        %3099 = vmatprep.subr.bf16.mxu0 %v2886
        %3100 = vmatpush1.bf16.msra.mxu0 %v2885
        %3101 = vmatprep.subr.bf16.mxu0 %v2882
        %3102 = vmatpush1.bf16.msra.mxu0 %v2881
        %3103 = vmatprep.subr.bf16.mxu0 %v2878
        %3104 = vmatpush1.bf16.msra.mxu0 %v2877
        %3105 = vmatprep.subr.bf16.mxu0 %v2874
        %3106 = vmatpush1.bf16.msra.mxu0 %v2873
        %3107 = vmatprep.subr.bf16.mxu0 %v2870
        %3108 = vmatpush1.bf16.msra.mxu0 %v2869
        %3109 = vmatprep.subr.bf16.mxu0 %v2930
        %3110 = vmatpush2.bf16.msra.mxu0 %v2929
        %3111 = vmatprep.subr.bf16.mxu0 %v2926
        %3112 = vmatpush2.bf16.msra.mxu0 %v2925
        %3113 = vmatprep.subr.bf16.mxu0 %v2922
        %3114 = vmatpush2.bf16.msra.mxu0 %v2921
        %3115 = vmatprep.subr.bf16.mxu0 %v2918
        %3116 = vmatpush2.bf16.msra.mxu0 %v2917
        %3117 = vmatprep.subr.bf16.mxu0 %v2914
        %3118 = vmatpush2.bf16.msra.mxu0 %v2913
        %3119 = vmatprep.subr.bf16.mxu0 %v2910
        %3120 = vmatpush2.bf16.msra.mxu0 %v2909
        %3121 = vmatprep.subr.bf16.mxu0 %v2906
        %3122 = vmatpush2.bf16.msra.mxu0 %v2905
        %3123 = vmatprep.subr.bf16.mxu0 %v2902
        %3124 = vmatpush2.bf16.msra.mxu0 %v2901
        %3125 = vmatprep.mubr.bf16.mxu0 %v3004
        %3126 = vmatmul.mubr.bf16.gmra.mxu0 %v3003
        %v3127 = vpop.f32.mrf.mxu0
        %v3128 = vadd.f32 0.0, %v3127
        %v3129 = vpop.f32.mrf.mxu0
        %v3130 = vadd.f32 0.0, %v3129
        %v3131 = vpop.f32.mrf.mxu0
        %v3132 = vpop.f32.mrf.mxu0
        %3133 = vdwg.mxu0
        %3134 = vmatprep.subr.bf16.mxu0 %v2962
        %3135 = vmatpush1.bf16.msra.mxu0 %v2961
        %3136 = vmatprep.subr.bf16.mxu0 %v2958
        %3137 = vmatpush1.bf16.msra.mxu0 %v2957
        %3138 = vmatprep.subr.bf16.mxu0 %v2954
        %3139 = vmatpush1.bf16.msra.mxu0 %v2953
        %3140 = vmatprep.subr.bf16.mxu0 %v2950
        %3141 = vmatpush1.bf16.msra.mxu0 %v2949
        %3142 = vmatprep.subr.bf16.mxu0 %v2946
        %3143 = vmatpush1.bf16.msra.mxu0 %v2945
        %3144 = vmatprep.subr.bf16.mxu0 %v2942
        %3145 = vmatpush1.bf16.msra.mxu0 %v2941
        %3146 = vmatprep.subr.bf16.mxu0 %v2938
        %3147 = vmatpush1.bf16.msra.mxu0 %v2937
        %3148 = vmatprep.subr.bf16.mxu0 %v2934
        %3149 = vmatpush1.bf16.msra.mxu0 %v2933
        %3150 = vmatprep.subr.bf16.mxu0 %v2994
        %3151 = vmatpush2.bf16.msra.mxu0 %v2993
        %3152 = vmatprep.subr.bf16.mxu0 %v2990
        %3153 = vmatpush2.bf16.msra.mxu0 %v2989
        %3154 = vmatprep.subr.bf16.mxu0 %v2986
        %3155 = vmatpush2.bf16.msra.mxu0 %v2985
        %3156 = vmatprep.subr.bf16.mxu0 %v2982
        %3157 = vmatpush2.bf16.msra.mxu0 %v2981
        %3158 = vmatprep.subr.bf16.mxu0 %v2978
        %3159 = vmatpush2.bf16.msra.mxu0 %v2977
        %3160 = vmatprep.subr.bf16.mxu0 %v2974
        %3161 = vmatpush2.bf16.msra.mxu0 %v2973
        %3162 = vmatprep.subr.bf16.mxu0 %v2970
        %3163 = vmatpush2.bf16.msra.mxu0 %v2969
        %3164 = vmatprep.subr.bf16.mxu0 %v2966
        %3165 = vmatpush2.bf16.msra.mxu0 %v2965
        %3166 = vmatprep.mubr.bf16.mxu0 %v3006
        %3167 = vmatmul.mubr.bf16.gmra.mxu0 %v3005
        %v3168 = vpop.f32.mrf.mxu0
        %v3169 = vadd.f32 %v3128, %v3168
        %v3170 = vpop.f32.mrf.mxu0
        %v3171 = vadd.f32 %v3130, %v3170
        %v3172 = vpop.f32.mrf.mxu0
        %v3173 = vpop.f32.mrf.mxu0
        %3174 = vdwg.mxu0
        %3175 = vst [vmem:[%s172] sm:$0x3] %v3087
        %3176 = vst [vmem:[%s172 + $0x8] sm:$0x3] %v3089
        %3177 = vst [vmem:[%s172 + $0x10] sm:$0x3] %v3169
        %3178 = vst [vmem:[%s172 + $0x18] sm:$0x3] %v3171
        %v3179 = vmul.f32 %v175, 6.0
        %v3180 = vmul.f32 %v177, 6.0
        %v3181 = vmul.f32 %v179, 6.0
        %v3182 = vfloor.f32 %v3179
        %v3183 = vfloor.f32 %v3180
        %v3184 = vfloor.f32 %v3181
        %v3185 = vsub.f32 %v3179, %v3182
        %v3186 = vsub.f32 %v3180, %v3183
        %v3187 = vsub.f32 %v3181, %v3184
        %v3188 = vcvt.f32.s32.to.zero.pseudo %v3182
        %v3189 = vand.u32 %v3188, 7
        %v3190 = vcvt.f32.s32.to.zero.pseudo %v3183
        %v3191 = vand.u32 %v3190, 7
        %v3192 = vcvt.f32.s32.to.zero.pseudo %v3184
        %v3193 = vand.u32 %v3192, 7
        %v3194 = vceil.f32 %v3179
        %v3195 = vcvt.f32.s32.to.zero.pseudo %v3194
        %v3196 = vand.u32 %v3195, 7
        %v3197 = vceil.f32 %v3180
        %v3198 = vcvt.f32.s32.to.zero.pseudo %v3197
        %v3199 = vand.u32 %v3198, 7
        %v3200 = vceil.f32 %v3181
        %v3201 = vcvt.f32.s32.to.zero.pseudo %v3200
        %v3202 = vand.u32 %v3201, 7
        %v3203 = vlaneseq
        %v3204 = vshrl.u32 %v3203, 7
        %v3205 = vsub.s32 0, %v3204
        %v3206 = vrot.slane %v3189, %v3205
        %v3207 = vlaneseq
        %v3208 = vshrl.u32 %v3207, 7
        %v3209 = vsub.s32 1, %v3208
        %v3210 = vrot.slane %v3189, %v3209
        %v3211 = vlaneseq
        %v3212 = vshrl.u32 %v3211, 7
        %v3213 = vsub.s32 2, %v3212
        %v3214 = vrot.slane %v3189, %v3213
        %v3215 = vlaneseq
        %v3216 = vshrl.u32 %v3215, 7
        %v3217 = vsub.s32 3, %v3216
        %v3218 = vrot.slane %v3189, %v3217
        %vm3219 = vcmp.eq.s32.totalorder %v181, %v3206
        %vm3220 = vcmp.eq.s32.totalorder %v181, %v3210
        %vm3221 = vcmp.eq.s32.totalorder %v181, %v3214
        %vm3222 = vcmp.eq.s32.totalorder %v181, %v3218
        %v3223 = vsub.f32 1.0, %v3185
        %v3225 = vlaneseq
        %v3226 = vshrl.u32 %v3225, 7
        %v3227 = vsub.s32 0, %v3226
        %v3228 = vrot.slane %v3223, %v3227
        %v3229 = vlaneseq
        %v3230 = vshrl.u32 %v3229, 7
        %v3231 = vsub.s32 1, %v3230
        %v3232 = vrot.slane %v3223, %v3231
        %v3233 = vlaneseq
        %v3234 = vshrl.u32 %v3233, 7
        %v3235 = vsub.s32 2, %v3234
        %v3236 = vrot.slane %v3223, %v3235
        %v3237 = vlaneseq
        %v3238 = vshrl.u32 %v3237, 7
        %v3239 = vsub.s32 3, %v3238
        %v3240 = vrot.slane %v3223, %v3239
        %v3245 = vsel %vm3219, %v3228, 0.0
        %v3246 = vsel %vm3220, %v3232, 0.0
        %v3247 = vsel %vm3221, %v3236, 0.0
        %v3248 = vsel %vm3222, %v3240, 0.0
        %v3249 = vlaneseq
        %v3250 = vshrl.u32 %v3249, 7
        %v3251 = vsub.s32 0, %v3250
        %v3252 = vrot.slane %v3196, %v3251
        %v3253 = vlaneseq
        %v3254 = vshrl.u32 %v3253, 7
        %v3255 = vsub.s32 1, %v3254
        %v3256 = vrot.slane %v3196, %v3255
        %v3257 = vlaneseq
        %v3258 = vshrl.u32 %v3257, 7
        %v3259 = vsub.s32 2, %v3258
        %v3260 = vrot.slane %v3196, %v3259
        %v3261 = vlaneseq
        %v3262 = vshrl.u32 %v3261, 7
        %v3263 = vsub.s32 3, %v3262
        %v3264 = vrot.slane %v3196, %v3263
        %vm3265 = vcmp.eq.s32.totalorder %v181, %v3252
        %vm3266 = vcmp.eq.s32.totalorder %v181, %v3256
        %vm3267 = vcmp.eq.s32.totalorder %v181, %v3260
        %vm3268 = vcmp.eq.s32.totalorder %v181, %v3264
        %v3270 = vlaneseq
        %v3271 = vshrl.u32 %v3270, 7
        %v3272 = vsub.s32 0, %v3271
        %v3273 = vrot.slane %v3185, %v3272
        %v3274 = vlaneseq
        %v3275 = vshrl.u32 %v3274, 7
        %v3276 = vsub.s32 1, %v3275
        %v3277 = vrot.slane %v3185, %v3276
        %v3278 = vlaneseq
        %v3279 = vshrl.u32 %v3278, 7
        %v3280 = vsub.s32 2, %v3279
        %v3281 = vrot.slane %v3185, %v3280
        %v3282 = vlaneseq
        %v3283 = vshrl.u32 %v3282, 7
        %v3284 = vsub.s32 3, %v3283
        %v3285 = vrot.slane %v3185, %v3284
        %v3290 = vsel %vm3265, %v3273, 0.0
        %v3291 = vsel %vm3266, %v3277, 0.0
        %v3292 = vsel %vm3267, %v3281, 0.0
        %v3293 = vsel %vm3268, %v3285, 0.0
        %v3294 = vadd.f32 %v3245, %v3290
        %v3295 = vadd.f32 %v3246, %v3291
        %v3296 = vadd.f32 %v3247, %v3292
        %v3297 = vadd.f32 %v3248, %v3293
        %v3298 = vlaneseq
        %v3299 = vshrl.u32 %v3298, 7
        %v3300 = vsub.s32 0, %v3299
        %v3301 = vrot.slane %v3191, %v3300
        %v3302 = vlaneseq
        %v3303 = vshrl.u32 %v3302, 7
        %v3304 = vsub.s32 1, %v3303
        %v3305 = vrot.slane %v3191, %v3304
        %v3306 = vlaneseq
        %v3307 = vshrl.u32 %v3306, 7
        %v3308 = vsub.s32 2, %v3307
        %v3309 = vrot.slane %v3191, %v3308
        %v3310 = vlaneseq
        %v3311 = vshrl.u32 %v3310, 7
        %v3312 = vsub.s32 3, %v3311
        %v3313 = vrot.slane %v3191, %v3312
        %vm3314 = vcmp.eq.s32.totalorder %v181, %v3301
        %vm3315 = vcmp.eq.s32.totalorder %v181, %v3305
        %vm3316 = vcmp.eq.s32.totalorder %v181, %v3309
        %vm3317 = vcmp.eq.s32.totalorder %v181, %v3313
        %v3318 = vsub.f32 1.0, %v3186
        %v3320 = vlaneseq
        %v3321 = vshrl.u32 %v3320, 7
        %v3322 = vsub.s32 0, %v3321
        %v3323 = vrot.slane %v3318, %v3322
        %v3324 = vlaneseq
        %v3325 = vshrl.u32 %v3324, 7
        %v3326 = vsub.s32 1, %v3325
        %v3327 = vrot.slane %v3318, %v3326
        %v3328 = vlaneseq
        %v3329 = vshrl.u32 %v3328, 7
        %v3330 = vsub.s32 2, %v3329
        %v3331 = vrot.slane %v3318, %v3330
        %v3332 = vlaneseq
        %v3333 = vshrl.u32 %v3332, 7
        %v3334 = vsub.s32 3, %v3333
        %v3335 = vrot.slane %v3318, %v3334
        %v3340 = vsel %vm3314, %v3323, 0.0
        %v3341 = vsel %vm3315, %v3327, 0.0
        %v3342 = vsel %vm3316, %v3331, 0.0
        %v3343 = vsel %vm3317, %v3335, 0.0
        %v3344 = vlaneseq
        %v3345 = vshrl.u32 %v3344, 7
        %v3346 = vsub.s32 0, %v3345
        %v3347 = vrot.slane %v3199, %v3346
        %v3348 = vlaneseq
        %v3349 = vshrl.u32 %v3348, 7
        %v3350 = vsub.s32 1, %v3349
        %v3351 = vrot.slane %v3199, %v3350
        %v3352 = vlaneseq
        %v3353 = vshrl.u32 %v3352, 7
        %v3354 = vsub.s32 2, %v3353
        %v3355 = vrot.slane %v3199, %v3354
        %v3356 = vlaneseq
        %v3357 = vshrl.u32 %v3356, 7
        %v3358 = vsub.s32 3, %v3357
        %v3359 = vrot.slane %v3199, %v3358
        %vm3360 = vcmp.eq.s32.totalorder %v181, %v3347
        %vm3361 = vcmp.eq.s32.totalorder %v181, %v3351
        %vm3362 = vcmp.eq.s32.totalorder %v181, %v3355
        %vm3363 = vcmp.eq.s32.totalorder %v181, %v3359
        %v3365 = vlaneseq
        %v3366 = vshrl.u32 %v3365, 7
        %v3367 = vsub.s32 0, %v3366
        %v3368 = vrot.slane %v3186, %v3367
        %v3369 = vlaneseq
        %v3370 = vshrl.u32 %v3369, 7
        %v3371 = vsub.s32 1, %v3370
        %v3372 = vrot.slane %v3186, %v3371
        %v3373 = vlaneseq
        %v3374 = vshrl.u32 %v3373, 7
        %v3375 = vsub.s32 2, %v3374
        %v3376 = vrot.slane %v3186, %v3375
        %v3377 = vlaneseq
        %v3378 = vshrl.u32 %v3377, 7
        %v3379 = vsub.s32 3, %v3378
        %v3380 = vrot.slane %v3186, %v3379
        %v3385 = vsel %vm3360, %v3368, 0.0
        %v3386 = vsel %vm3361, %v3372, 0.0
        %v3387 = vsel %vm3362, %v3376, 0.0
        %v3388 = vsel %vm3363, %v3380, 0.0
        %v3389 = vadd.f32 %v3340, %v3385
        %v3390 = vadd.f32 %v3341, %v3386
        %v3391 = vadd.f32 %v3342, %v3387
        %v3392 = vadd.f32 %v3343, %v3388
        %v3393 = vlaneseq
        %v3394 = vshrl.u32 %v3393, 7
        %v3395 = vsub.s32 0, %v3394
        %v3396 = vrot.slane %v3193, %v3395
        %v3397 = vlaneseq
        %v3398 = vshrl.u32 %v3397, 7
        %v3399 = vsub.s32 1, %v3398
        %v3400 = vrot.slane %v3193, %v3399
        %v3401 = vlaneseq
        %v3402 = vshrl.u32 %v3401, 7
        %v3403 = vsub.s32 2, %v3402
        %v3404 = vrot.slane %v3193, %v3403
        %v3405 = vlaneseq
        %v3406 = vshrl.u32 %v3405, 7
        %v3407 = vsub.s32 3, %v3406
        %v3408 = vrot.slane %v3193, %v3407
        %vm3409 = vcmp.eq.s32.totalorder %v181, %v3396
        %vm3410 = vcmp.eq.s32.totalorder %v181, %v3400
        %vm3411 = vcmp.eq.s32.totalorder %v181, %v3404
        %vm3412 = vcmp.eq.s32.totalorder %v181, %v3408
        %v3413 = vsub.f32 1.0, %v3187
        %v3415 = vlaneseq
        %v3416 = vshrl.u32 %v3415, 7
        %v3417 = vsub.s32 0, %v3416
        %v3418 = vrot.slane %v3413, %v3417
        %v3419 = vlaneseq
        %v3420 = vshrl.u32 %v3419, 7
        %v3421 = vsub.s32 1, %v3420
        %v3422 = vrot.slane %v3413, %v3421
        %v3423 = vlaneseq
        %v3424 = vshrl.u32 %v3423, 7
        %v3425 = vsub.s32 2, %v3424
        %v3426 = vrot.slane %v3413, %v3425
        %v3427 = vlaneseq
        %v3428 = vshrl.u32 %v3427, 7
        %v3429 = vsub.s32 3, %v3428
        %v3430 = vrot.slane %v3413, %v3429
        %v3435 = vsel %vm3409, %v3418, 0.0
        %v3436 = vsel %vm3410, %v3422, 0.0
        %v3437 = vsel %vm3411, %v3426, 0.0
        %v3438 = vsel %vm3412, %v3430, 0.0
        %v3439 = vlaneseq
        %v3440 = vshrl.u32 %v3439, 7
        %v3441 = vsub.s32 0, %v3440
        %v3442 = vrot.slane %v3202, %v3441
        %v3443 = vlaneseq
        %v3444 = vshrl.u32 %v3443, 7
        %v3445 = vsub.s32 1, %v3444
        %v3446 = vrot.slane %v3202, %v3445
        %v3447 = vlaneseq
        %v3448 = vshrl.u32 %v3447, 7
        %v3449 = vsub.s32 2, %v3448
        %v3450 = vrot.slane %v3202, %v3449
        %v3451 = vlaneseq
        %v3452 = vshrl.u32 %v3451, 7
        %v3453 = vsub.s32 3, %v3452
        %v3454 = vrot.slane %v3202, %v3453
        %vm3455 = vcmp.eq.s32.totalorder %v181, %v3442
        %vm3456 = vcmp.eq.s32.totalorder %v181, %v3446
        %vm3457 = vcmp.eq.s32.totalorder %v181, %v3450
        %vm3458 = vcmp.eq.s32.totalorder %v181, %v3454
        %v3460 = vlaneseq
        %v3461 = vshrl.u32 %v3460, 7
        %v3462 = vsub.s32 0, %v3461
        %v3463 = vrot.slane %v3187, %v3462
        %v3464 = vlaneseq
        %v3465 = vshrl.u32 %v3464, 7
        %v3466 = vsub.s32 1, %v3465
        %v3467 = vrot.slane %v3187, %v3466
        %v3468 = vlaneseq
        %v3469 = vshrl.u32 %v3468, 7
        %v3470 = vsub.s32 2, %v3469
        %v3471 = vrot.slane %v3187, %v3470
        %v3472 = vlaneseq
        %v3473 = vshrl.u32 %v3472, 7
        %v3474 = vsub.s32 3, %v3473
        %v3475 = vrot.slane %v3187, %v3474
        %v3480 = vsel %vm3455, %v3463, 0.0
        %v3481 = vsel %vm3456, %v3467, 0.0
        %v3482 = vsel %vm3457, %v3471, 0.0
        %v3483 = vsel %vm3458, %v3475, 0.0
        %v3484 = vadd.f32 %v3435, %v3480
        %v3485 = vadd.f32 %v3436, %v3481
        %v3486 = vadd.f32 %v3437, %v3482
        %v3487 = vadd.f32 %v3438, %v3483
        %v3492 = vcombine.low %v3294, %v3295
        %v3493 = vcombine.high %v3294, %v3295
        %v3494 = vcombine.low %v3296, %v3297
        %v3495 = vcombine.high %v3296, %v3297
        %v3497 = vunpack.c.l.s4 1966171168
        %v3498 = vunpack.c.0.s8 %v3497
        %v3499 = vlaneseq
        %v3500 = vshrl.u32 %v3499, 7
        %v3501 = vsub.s32 %v3498, %v3500
        %v3502 = vrot.slane %v3492, %v3501
        %v3504 = vunpack.c.l.s4 1966171168
        %v3505 = vunpack.c.0.s8 %v3504
        %v3506 = vlaneseq
        %v3507 = vshrl.u32 %v3506, 7
        %v3508 = vsub.s32 %v3505, %v3507
        %v3509 = vrot.slane %v3493, %v3508
        %v3511 = vunpack.c.l.s4 1966171168
        %v3512 = vunpack.c.0.s8 %v3511
        %v3513 = vlaneseq
        %v3514 = vshrl.u32 %v3513, 7
        %v3515 = vsub.s32 %v3512, %v3514
        %v3516 = vrot.slane %v3494, %v3515
        %v3518 = vunpack.c.l.s4 1966171168
        %v3519 = vunpack.c.0.s8 %v3518
        %v3520 = vlaneseq
        %v3521 = vshrl.u32 %v3520, 7
        %v3522 = vsub.s32 %v3519, %v3521
        %v3523 = vrot.slane %v3495, %v3522
        %v3524 = vcombine.low %v3502, %v3516
        %v3525 = vcombine.high %v3502, %v3516
        %v3526 = vcombine.low %v3509, %v3523
        %v3527 = vcombine.high %v3509, %v3523
        %v3529 = vunpack.c.l.s4 1966171168
        %v3530 = vunpack.c.0.s8 %v3529
        %v3531 = vlaneseq
        %v3532 = vshrl.u32 %v3531, 7
        %v3533 = vsub.s32 %v3530, %v3532
        %v3534 = vrot.slane %v3524, %v3533
        %v3536 = vunpack.c.l.s4 1966171168
        %v3537 = vunpack.c.0.s8 %v3536
        %v3538 = vlaneseq
        %v3539 = vshrl.u32 %v3538, 7
        %v3540 = vsub.s32 %v3537, %v3539
        %v3541 = vrot.slane %v3526, %v3540
        %v3543 = vunpack.c.l.s4 1966171168
        %v3544 = vunpack.c.0.s8 %v3543
        %v3545 = vlaneseq
        %v3546 = vshrl.u32 %v3545, 7
        %v3547 = vsub.s32 %v3544, %v3546
        %v3548 = vrot.slane %v3525, %v3547
        %v3550 = vunpack.c.l.s4 1966171168
        %v3551 = vunpack.c.0.s8 %v3550
        %v3552 = vlaneseq
        %v3553 = vshrl.u32 %v3552, 7
        %v3554 = vsub.s32 %v3551, %v3553
        %v3555 = vrot.slane %v3527, %v3554
        %v3556 = vcombine.high %v3534, %v3534
        %v3557 = vcombine.high %v3541, %v3541
        %v3558 = vcombine.high %v3548, %v3548
        %v3559 = vcombine.high %v3555, %v3555
        %v3560 = vlaneseq
        %v3561 = vshrl.u32 %v3560, 7
        %v3562 = vsub.s32 0, %v3561
        %v3563 = vrot.slane %v3534, %v3562
        %v3564 = vlaneseq
        %v3565 = vshrl.u32 %v3564, 7
        %v3566 = vsub.s32 1, %v3565
        %v3567 = vrot.slane %v3534, %v3566
        %v3568 = vlaneseq
        %v3569 = vshrl.u32 %v3568, 7
        %v3570 = vsub.s32 2, %v3569
        %v3571 = vrot.slane %v3534, %v3570
        %v3572 = vlaneseq
        %v3573 = vshrl.u32 %v3572, 7
        %v3574 = vsub.s32 3, %v3573
        %v3575 = vrot.slane %v3534, %v3574
        %v3576 = vlaneseq
        %v3577 = vshrl.u32 %v3576, 7
        %v3578 = vsub.s32 0, %v3577
        %v3579 = vrot.slane %v3548, %v3578
        %v3580 = vlaneseq
        %v3581 = vshrl.u32 %v3580, 7
        %v3582 = vsub.s32 1, %v3581
        %v3583 = vrot.slane %v3548, %v3582
        %v3584 = vlaneseq
        %v3585 = vshrl.u32 %v3584, 7
        %v3586 = vsub.s32 2, %v3585
        %v3587 = vrot.slane %v3548, %v3586
        %v3588 = vlaneseq
        %v3589 = vshrl.u32 %v3588, 7
        %v3590 = vsub.s32 3, %v3589
        %v3591 = vrot.slane %v3548, %v3590
        %v3592 = vlaneseq
        %v3593 = vshrl.u32 %v3592, 7
        %v3594 = vsub.s32 0, %v3593
        %v3595 = vrot.slane %v3556, %v3594
        %v3596 = vlaneseq
        %v3597 = vshrl.u32 %v3596, 7
        %v3598 = vsub.s32 1, %v3597
        %v3599 = vrot.slane %v3556, %v3598
        %v3600 = vlaneseq
        %v3601 = vshrl.u32 %v3600, 7
        %v3602 = vsub.s32 2, %v3601
        %v3603 = vrot.slane %v3556, %v3602
        %v3604 = vlaneseq
        %v3605 = vshrl.u32 %v3604, 7
        %v3606 = vsub.s32 3, %v3605
        %v3607 = vrot.slane %v3556, %v3606
        %v3608 = vlaneseq
        %v3609 = vshrl.u32 %v3608, 7
        %v3610 = vsub.s32 0, %v3609
        %v3611 = vrot.slane %v3558, %v3610
        %v3612 = vlaneseq
        %v3613 = vshrl.u32 %v3612, 7
        %v3614 = vsub.s32 1, %v3613
        %v3615 = vrot.slane %v3558, %v3614
        %v3616 = vlaneseq
        %v3617 = vshrl.u32 %v3616, 7
        %v3618 = vsub.s32 2, %v3617
        %v3619 = vrot.slane %v3558, %v3618
        %v3620 = vlaneseq
        %v3621 = vshrl.u32 %v3620, 7
        %v3622 = vsub.s32 3, %v3621
        %v3623 = vrot.slane %v3558, %v3622
        %v3624 = vlaneseq
        %v3625 = vshrl.u32 %v3624, 7
        %v3626 = vsub.s32 0, %v3625
        %v3627 = vrot.slane %v3541, %v3626
        %v3628 = vlaneseq
        %v3629 = vshrl.u32 %v3628, 7
        %v3630 = vsub.s32 1, %v3629
        %v3631 = vrot.slane %v3541, %v3630
        %v3632 = vlaneseq
        %v3633 = vshrl.u32 %v3632, 7
        %v3634 = vsub.s32 2, %v3633
        %v3635 = vrot.slane %v3541, %v3634
        %v3636 = vlaneseq
        %v3637 = vshrl.u32 %v3636, 7
        %v3638 = vsub.s32 3, %v3637
        %v3639 = vrot.slane %v3541, %v3638
        %v3640 = vlaneseq
        %v3641 = vshrl.u32 %v3640, 7
        %v3642 = vsub.s32 0, %v3641
        %v3643 = vrot.slane %v3555, %v3642
        %v3644 = vlaneseq
        %v3645 = vshrl.u32 %v3644, 7
        %v3646 = vsub.s32 1, %v3645
        %v3647 = vrot.slane %v3555, %v3646
        %v3648 = vlaneseq
        %v3649 = vshrl.u32 %v3648, 7
        %v3650 = vsub.s32 2, %v3649
        %v3651 = vrot.slane %v3555, %v3650
        %v3652 = vlaneseq
        %v3653 = vshrl.u32 %v3652, 7
        %v3654 = vsub.s32 3, %v3653
        %v3655 = vrot.slane %v3555, %v3654
        %v3656 = vlaneseq
        %v3657 = vshrl.u32 %v3656, 7
        %v3658 = vsub.s32 0, %v3657
        %v3659 = vrot.slane %v3557, %v3658
        %v3660 = vlaneseq
        %v3661 = vshrl.u32 %v3660, 7
        %v3662 = vsub.s32 1, %v3661
        %v3663 = vrot.slane %v3557, %v3662
        %v3664 = vlaneseq
        %v3665 = vshrl.u32 %v3664, 7
        %v3666 = vsub.s32 2, %v3665
        %v3667 = vrot.slane %v3557, %v3666
        %v3668 = vlaneseq
        %v3669 = vshrl.u32 %v3668, 7
        %v3670 = vsub.s32 3, %v3669
        %v3671 = vrot.slane %v3557, %v3670
        %v3672 = vlaneseq
        %v3673 = vshrl.u32 %v3672, 7
        %v3674 = vsub.s32 0, %v3673
        %v3675 = vrot.slane %v3559, %v3674
        %v3676 = vlaneseq
        %v3677 = vshrl.u32 %v3676, 7
        %v3678 = vsub.s32 1, %v3677
        %v3679 = vrot.slane %v3559, %v3678
        %v3680 = vlaneseq
        %v3681 = vshrl.u32 %v3680, 7
        %v3682 = vsub.s32 2, %v3681
        %v3683 = vrot.slane %v3559, %v3682
        %v3684 = vlaneseq
        %v3685 = vshrl.u32 %v3684, 7
        %v3686 = vsub.s32 3, %v3685
        %v3687 = vrot.slane %v3559, %v3686
        %v3720 = vmul.f32 %v3563, %v3389
        %v3721 = vmul.f32 %v3567, %v3390
        %v3722 = vmul.f32 %v3571, %v3391
        %v3723 = vmul.f32 %v3575, %v3392
        %v3724 = vmul.f32 %v3579, %v3389
        %v3725 = vmul.f32 %v3583, %v3390
        %v3726 = vmul.f32 %v3587, %v3391
        %v3727 = vmul.f32 %v3591, %v3392
        %v3728 = vmul.f32 %v3595, %v3389
        %v3729 = vmul.f32 %v3599, %v3390
        %v3730 = vmul.f32 %v3603, %v3391
        %v3731 = vmul.f32 %v3607, %v3392
        %v3732 = vmul.f32 %v3611, %v3389
        %v3733 = vmul.f32 %v3615, %v3390
        %v3734 = vmul.f32 %v3619, %v3391
        %v3735 = vmul.f32 %v3623, %v3392
        %v3736 = vmul.f32 %v3627, %v3389
        %v3737 = vmul.f32 %v3631, %v3390
        %v3738 = vmul.f32 %v3635, %v3391
        %v3739 = vmul.f32 %v3639, %v3392
        %v3740 = vmul.f32 %v3643, %v3389
        %v3741 = vmul.f32 %v3647, %v3390
        %v3742 = vmul.f32 %v3651, %v3391
        %v3743 = vmul.f32 %v3655, %v3392
        %v3744 = vmul.f32 %v3659, %v3389
        %v3745 = vmul.f32 %v3663, %v3390
        %v3746 = vmul.f32 %v3667, %v3391
        %v3747 = vmul.f32 %v3671, %v3392
        %v3748 = vmul.f32 %v3675, %v3389
        %v3749 = vmul.f32 %v3679, %v3390
        %v3750 = vmul.f32 %v3683, %v3391
        %v3751 = vmul.f32 %v3687, %v3392
        %v3784 = vcombine.low %v3720, %v3721
        %v3785 = vcombine.high %v3720, %v3721
        %v3786 = vcombine.low %v3722, %v3723
        %v3787 = vcombine.high %v3722, %v3723
        %v3789 = vunpack.c.l.s4 1966171168
        %v3790 = vunpack.c.0.s8 %v3789
        %v3791 = vlaneseq
        %v3792 = vshrl.u32 %v3791, 7
        %v3793 = vsub.s32 %v3790, %v3792
        %v3794 = vrot.slane %v3784, %v3793
        %v3796 = vunpack.c.l.s4 1966171168
        %v3797 = vunpack.c.0.s8 %v3796
        %v3798 = vlaneseq
        %v3799 = vshrl.u32 %v3798, 7
        %v3800 = vsub.s32 %v3797, %v3799
        %v3801 = vrot.slane %v3785, %v3800
        %v3803 = vunpack.c.l.s4 1966171168
        %v3804 = vunpack.c.0.s8 %v3803
        %v3805 = vlaneseq
        %v3806 = vshrl.u32 %v3805, 7
        %v3807 = vsub.s32 %v3804, %v3806
        %v3808 = vrot.slane %v3786, %v3807
        %v3810 = vunpack.c.l.s4 1966171168
        %v3811 = vunpack.c.0.s8 %v3810
        %v3812 = vlaneseq
        %v3813 = vshrl.u32 %v3812, 7
        %v3814 = vsub.s32 %v3811, %v3813
        %v3815 = vrot.slane %v3787, %v3814
        %v3816 = vcombine.low %v3794, %v3808
        %v3817 = vcombine.high %v3794, %v3808
        %v3818 = vcombine.low %v3801, %v3815
        %v3819 = vcombine.high %v3801, %v3815
        %v3821 = vunpack.c.l.s4 1966171168
        %v3822 = vunpack.c.0.s8 %v3821
        %v3823 = vlaneseq
        %v3824 = vshrl.u32 %v3823, 7
        %v3825 = vsub.s32 %v3822, %v3824
        %v3826 = vrot.slane %v3816, %v3825
        %v3828 = vunpack.c.l.s4 1966171168
        %v3829 = vunpack.c.0.s8 %v3828
        %v3830 = vlaneseq
        %v3831 = vshrl.u32 %v3830, 7
        %v3832 = vsub.s32 %v3829, %v3831
        %v3833 = vrot.slane %v3818, %v3832
        %v3835 = vunpack.c.l.s4 1966171168
        %v3836 = vunpack.c.0.s8 %v3835
        %v3837 = vlaneseq
        %v3838 = vshrl.u32 %v3837, 7
        %v3839 = vsub.s32 %v3836, %v3838
        %v3840 = vrot.slane %v3817, %v3839
        %v3842 = vunpack.c.l.s4 1966171168
        %v3843 = vunpack.c.0.s8 %v3842
        %v3844 = vlaneseq
        %v3845 = vshrl.u32 %v3844, 7
        %v3846 = vsub.s32 %v3843, %v3845
        %v3847 = vrot.slane %v3819, %v3846
        %v3848 = vcombine.high %v3826, %v3826
        %v3849 = vcombine.high %v3833, %v3833
        %v3850 = vcombine.high %v3840, %v3840
        %v3851 = vcombine.high %v3847, %v3847
        %v3852 = vcombine.low %v3724, %v3725
        %v3853 = vcombine.high %v3724, %v3725
        %v3854 = vcombine.low %v3726, %v3727
        %v3855 = vcombine.high %v3726, %v3727
        %v3857 = vunpack.c.l.s4 1966171168
        %v3858 = vunpack.c.0.s8 %v3857
        %v3859 = vlaneseq
        %v3860 = vshrl.u32 %v3859, 7
        %v3861 = vsub.s32 %v3858, %v3860
        %v3862 = vrot.slane %v3852, %v3861
        %v3864 = vunpack.c.l.s4 1966171168
        %v3865 = vunpack.c.0.s8 %v3864
        %v3866 = vlaneseq
        %v3867 = vshrl.u32 %v3866, 7
        %v3868 = vsub.s32 %v3865, %v3867
        %v3869 = vrot.slane %v3853, %v3868
        %v3871 = vunpack.c.l.s4 1966171168
        %v3872 = vunpack.c.0.s8 %v3871
        %v3873 = vlaneseq
        %v3874 = vshrl.u32 %v3873, 7
        %v3875 = vsub.s32 %v3872, %v3874
        %v3876 = vrot.slane %v3854, %v3875
        %v3878 = vunpack.c.l.s4 1966171168
        %v3879 = vunpack.c.0.s8 %v3878
        %v3880 = vlaneseq
        %v3881 = vshrl.u32 %v3880, 7
        %v3882 = vsub.s32 %v3879, %v3881
        %v3883 = vrot.slane %v3855, %v3882
        %v3884 = vcombine.low %v3862, %v3876
        %v3885 = vcombine.high %v3862, %v3876
        %v3886 = vcombine.low %v3869, %v3883
        %v3887 = vcombine.high %v3869, %v3883
        %v3889 = vunpack.c.l.s4 1966171168
        %v3890 = vunpack.c.0.s8 %v3889
        %v3891 = vlaneseq
        %v3892 = vshrl.u32 %v3891, 7
        %v3893 = vsub.s32 %v3890, %v3892
        %v3894 = vrot.slane %v3884, %v3893
        %v3896 = vunpack.c.l.s4 1966171168
        %v3897 = vunpack.c.0.s8 %v3896
        %v3898 = vlaneseq
        %v3899 = vshrl.u32 %v3898, 7
        %v3900 = vsub.s32 %v3897, %v3899
        %v3901 = vrot.slane %v3886, %v3900
        %v3903 = vunpack.c.l.s4 1966171168
        %v3904 = vunpack.c.0.s8 %v3903
        %v3905 = vlaneseq
        %v3906 = vshrl.u32 %v3905, 7
        %v3907 = vsub.s32 %v3904, %v3906
        %v3908 = vrot.slane %v3885, %v3907
        %v3910 = vunpack.c.l.s4 1966171168
        %v3911 = vunpack.c.0.s8 %v3910
        %v3912 = vlaneseq
        %v3913 = vshrl.u32 %v3912, 7
        %v3914 = vsub.s32 %v3911, %v3913
        %v3915 = vrot.slane %v3887, %v3914
        %v3916 = vcombine.high %v3894, %v3894
        %v3917 = vcombine.high %v3901, %v3901
        %v3918 = vcombine.high %v3908, %v3908
        %v3919 = vcombine.high %v3915, %v3915
        %v3920 = vcombine.low %v3728, %v3729
        %v3921 = vcombine.high %v3728, %v3729
        %v3922 = vcombine.low %v3730, %v3731
        %v3923 = vcombine.high %v3730, %v3731
        %v3925 = vunpack.c.l.s4 1966171168
        %v3926 = vunpack.c.0.s8 %v3925
        %v3927 = vlaneseq
        %v3928 = vshrl.u32 %v3927, 7
        %v3929 = vsub.s32 %v3926, %v3928
        %v3930 = vrot.slane %v3920, %v3929
        %v3932 = vunpack.c.l.s4 1966171168
        %v3933 = vunpack.c.0.s8 %v3932
        %v3934 = vlaneseq
        %v3935 = vshrl.u32 %v3934, 7
        %v3936 = vsub.s32 %v3933, %v3935
        %v3937 = vrot.slane %v3921, %v3936
        %v3939 = vunpack.c.l.s4 1966171168
        %v3940 = vunpack.c.0.s8 %v3939
        %v3941 = vlaneseq
        %v3942 = vshrl.u32 %v3941, 7
        %v3943 = vsub.s32 %v3940, %v3942
        %v3944 = vrot.slane %v3922, %v3943
        %v3946 = vunpack.c.l.s4 1966171168
        %v3947 = vunpack.c.0.s8 %v3946
        %v3948 = vlaneseq
        %v3949 = vshrl.u32 %v3948, 7
        %v3950 = vsub.s32 %v3947, %v3949
        %v3951 = vrot.slane %v3923, %v3950
        %v3952 = vcombine.low %v3930, %v3944
        %v3953 = vcombine.high %v3930, %v3944
        %v3954 = vcombine.low %v3937, %v3951
        %v3955 = vcombine.high %v3937, %v3951
        %v3957 = vunpack.c.l.s4 1966171168
        %v3958 = vunpack.c.0.s8 %v3957
        %v3959 = vlaneseq
        %v3960 = vshrl.u32 %v3959, 7
        %v3961 = vsub.s32 %v3958, %v3960
        %v3962 = vrot.slane %v3952, %v3961
        %v3964 = vunpack.c.l.s4 1966171168
        %v3965 = vunpack.c.0.s8 %v3964
        %v3966 = vlaneseq
        %v3967 = vshrl.u32 %v3966, 7
        %v3968 = vsub.s32 %v3965, %v3967
        %v3969 = vrot.slane %v3954, %v3968
        %v3971 = vunpack.c.l.s4 1966171168
        %v3972 = vunpack.c.0.s8 %v3971
        %v3973 = vlaneseq
        %v3974 = vshrl.u32 %v3973, 7
        %v3975 = vsub.s32 %v3972, %v3974
        %v3976 = vrot.slane %v3953, %v3975
        %v3978 = vunpack.c.l.s4 1966171168
        %v3979 = vunpack.c.0.s8 %v3978
        %v3980 = vlaneseq
        %v3981 = vshrl.u32 %v3980, 7
        %v3982 = vsub.s32 %v3979, %v3981
        %v3983 = vrot.slane %v3955, %v3982
        %v3984 = vcombine.high %v3962, %v3962
        %v3985 = vcombine.high %v3969, %v3969
        %v3986 = vcombine.high %v3976, %v3976
        %v3987 = vcombine.high %v3983, %v3983
        %v3988 = vcombine.low %v3732, %v3733
        %v3989 = vcombine.high %v3732, %v3733
        %v3990 = vcombine.low %v3734, %v3735
        %v3991 = vcombine.high %v3734, %v3735
        %v3993 = vunpack.c.l.s4 1966171168
        %v3994 = vunpack.c.0.s8 %v3993
        %v3995 = vlaneseq
        %v3996 = vshrl.u32 %v3995, 7
        %v3997 = vsub.s32 %v3994, %v3996
        %v3998 = vrot.slane %v3988, %v3997
        %v4000 = vunpack.c.l.s4 1966171168
        %v4001 = vunpack.c.0.s8 %v4000
        %v4002 = vlaneseq
        %v4003 = vshrl.u32 %v4002, 7
        %v4004 = vsub.s32 %v4001, %v4003
        %v4005 = vrot.slane %v3989, %v4004
        %v4007 = vunpack.c.l.s4 1966171168
        %v4008 = vunpack.c.0.s8 %v4007
        %v4009 = vlaneseq
        %v4010 = vshrl.u32 %v4009, 7
        %v4011 = vsub.s32 %v4008, %v4010
        %v4012 = vrot.slane %v3990, %v4011
        %v4014 = vunpack.c.l.s4 1966171168
        %v4015 = vunpack.c.0.s8 %v4014
        %v4016 = vlaneseq
        %v4017 = vshrl.u32 %v4016, 7
        %v4018 = vsub.s32 %v4015, %v4017
        %v4019 = vrot.slane %v3991, %v4018
        %v4020 = vcombine.low %v3998, %v4012
        %v4021 = vcombine.high %v3998, %v4012
        %v4022 = vcombine.low %v4005, %v4019
        %v4023 = vcombine.high %v4005, %v4019
        %v4025 = vunpack.c.l.s4 1966171168
        %v4026 = vunpack.c.0.s8 %v4025
        %v4027 = vlaneseq
        %v4028 = vshrl.u32 %v4027, 7
        %v4029 = vsub.s32 %v4026, %v4028
        %v4030 = vrot.slane %v4020, %v4029
        %v4032 = vunpack.c.l.s4 1966171168
        %v4033 = vunpack.c.0.s8 %v4032
        %v4034 = vlaneseq
        %v4035 = vshrl.u32 %v4034, 7
        %v4036 = vsub.s32 %v4033, %v4035
        %v4037 = vrot.slane %v4022, %v4036
        %v4039 = vunpack.c.l.s4 1966171168
        %v4040 = vunpack.c.0.s8 %v4039
        %v4041 = vlaneseq
        %v4042 = vshrl.u32 %v4041, 7
        %v4043 = vsub.s32 %v4040, %v4042
        %v4044 = vrot.slane %v4021, %v4043
        %v4046 = vunpack.c.l.s4 1966171168
        %v4047 = vunpack.c.0.s8 %v4046
        %v4048 = vlaneseq
        %v4049 = vshrl.u32 %v4048, 7
        %v4050 = vsub.s32 %v4047, %v4049
        %v4051 = vrot.slane %v4023, %v4050
        %v4052 = vcombine.high %v4030, %v4030
        %v4053 = vcombine.high %v4037, %v4037
        %v4054 = vcombine.high %v4044, %v4044
        %v4055 = vcombine.high %v4051, %v4051
        %v4056 = vcombine.low %v3736, %v3737
        %v4057 = vcombine.high %v3736, %v3737
        %v4058 = vcombine.low %v3738, %v3739
        %v4059 = vcombine.high %v3738, %v3739
        %v4061 = vunpack.c.l.s4 1966171168
        %v4062 = vunpack.c.0.s8 %v4061
        %v4063 = vlaneseq
        %v4064 = vshrl.u32 %v4063, 7
        %v4065 = vsub.s32 %v4062, %v4064
        %v4066 = vrot.slane %v4056, %v4065
        %v4068 = vunpack.c.l.s4 1966171168
        %v4069 = vunpack.c.0.s8 %v4068
        %v4070 = vlaneseq
        %v4071 = vshrl.u32 %v4070, 7
        %v4072 = vsub.s32 %v4069, %v4071
        %v4073 = vrot.slane %v4057, %v4072
        %v4075 = vunpack.c.l.s4 1966171168
        %v4076 = vunpack.c.0.s8 %v4075
        %v4077 = vlaneseq
        %v4078 = vshrl.u32 %v4077, 7
        %v4079 = vsub.s32 %v4076, %v4078
        %v4080 = vrot.slane %v4058, %v4079
        %v4082 = vunpack.c.l.s4 1966171168
        %v4083 = vunpack.c.0.s8 %v4082
        %v4084 = vlaneseq
        %v4085 = vshrl.u32 %v4084, 7
        %v4086 = vsub.s32 %v4083, %v4085
        %v4087 = vrot.slane %v4059, %v4086
        %v4088 = vcombine.low %v4066, %v4080
        %v4089 = vcombine.high %v4066, %v4080
        %v4090 = vcombine.low %v4073, %v4087
        %v4091 = vcombine.high %v4073, %v4087
        %v4093 = vunpack.c.l.s4 1966171168
        %v4094 = vunpack.c.0.s8 %v4093
        %v4095 = vlaneseq
        %v4096 = vshrl.u32 %v4095, 7
        %v4097 = vsub.s32 %v4094, %v4096
        %v4098 = vrot.slane %v4088, %v4097
        %v4100 = vunpack.c.l.s4 1966171168
        %v4101 = vunpack.c.0.s8 %v4100
        %v4102 = vlaneseq
        %v4103 = vshrl.u32 %v4102, 7
        %v4104 = vsub.s32 %v4101, %v4103
        %v4105 = vrot.slane %v4090, %v4104
        %v4107 = vunpack.c.l.s4 1966171168
        %v4108 = vunpack.c.0.s8 %v4107
        %v4109 = vlaneseq
        %v4110 = vshrl.u32 %v4109, 7
        %v4111 = vsub.s32 %v4108, %v4110
        %v4112 = vrot.slane %v4089, %v4111
        %v4114 = vunpack.c.l.s4 1966171168
        %v4115 = vunpack.c.0.s8 %v4114
        %v4116 = vlaneseq
        %v4117 = vshrl.u32 %v4116, 7
        %v4118 = vsub.s32 %v4115, %v4117
        %v4119 = vrot.slane %v4091, %v4118
        %v4120 = vcombine.high %v4098, %v4098
        %v4121 = vcombine.high %v4105, %v4105
        %v4122 = vcombine.high %v4112, %v4112
        %v4123 = vcombine.high %v4119, %v4119
        %v4124 = vcombine.low %v3740, %v3741
        %v4125 = vcombine.high %v3740, %v3741
        %v4126 = vcombine.low %v3742, %v3743
        %v4127 = vcombine.high %v3742, %v3743
        %v4129 = vunpack.c.l.s4 1966171168
        %v4130 = vunpack.c.0.s8 %v4129
        %v4131 = vlaneseq
        %v4132 = vshrl.u32 %v4131, 7
        %v4133 = vsub.s32 %v4130, %v4132
        %v4134 = vrot.slane %v4124, %v4133
        %v4136 = vunpack.c.l.s4 1966171168
        %v4137 = vunpack.c.0.s8 %v4136
        %v4138 = vlaneseq
        %v4139 = vshrl.u32 %v4138, 7
        %v4140 = vsub.s32 %v4137, %v4139
        %v4141 = vrot.slane %v4125, %v4140
        %v4143 = vunpack.c.l.s4 1966171168
        %v4144 = vunpack.c.0.s8 %v4143
        %v4145 = vlaneseq
        %v4146 = vshrl.u32 %v4145, 7
        %v4147 = vsub.s32 %v4144, %v4146
        %v4148 = vrot.slane %v4126, %v4147
        %v4150 = vunpack.c.l.s4 1966171168
        %v4151 = vunpack.c.0.s8 %v4150
        %v4152 = vlaneseq
        %v4153 = vshrl.u32 %v4152, 7
        %v4154 = vsub.s32 %v4151, %v4153
        %v4155 = vrot.slane %v4127, %v4154
        %v4156 = vcombine.low %v4134, %v4148
        %v4157 = vcombine.high %v4134, %v4148
        %v4158 = vcombine.low %v4141, %v4155
        %v4159 = vcombine.high %v4141, %v4155
        %v4161 = vunpack.c.l.s4 1966171168
        %v4162 = vunpack.c.0.s8 %v4161
        %v4163 = vlaneseq
        %v4164 = vshrl.u32 %v4163, 7
        %v4165 = vsub.s32 %v4162, %v4164
        %v4166 = vrot.slane %v4156, %v4165
        %v4168 = vunpack.c.l.s4 1966171168
        %v4169 = vunpack.c.0.s8 %v4168
        %v4170 = vlaneseq
        %v4171 = vshrl.u32 %v4170, 7
        %v4172 = vsub.s32 %v4169, %v4171
        %v4173 = vrot.slane %v4158, %v4172
        %v4175 = vunpack.c.l.s4 1966171168
        %v4176 = vunpack.c.0.s8 %v4175
        %v4177 = vlaneseq
        %v4178 = vshrl.u32 %v4177, 7
        %v4179 = vsub.s32 %v4176, %v4178
        %v4180 = vrot.slane %v4157, %v4179
        %v4182 = vunpack.c.l.s4 1966171168
        %v4183 = vunpack.c.0.s8 %v4182
        %v4184 = vlaneseq
        %v4185 = vshrl.u32 %v4184, 7
        %v4186 = vsub.s32 %v4183, %v4185
        %v4187 = vrot.slane %v4159, %v4186
        %v4188 = vcombine.high %v4166, %v4166
        %v4189 = vcombine.high %v4173, %v4173
        %v4190 = vcombine.high %v4180, %v4180
        %v4191 = vcombine.high %v4187, %v4187
        %v4192 = vcombine.low %v3744, %v3745
        %v4193 = vcombine.high %v3744, %v3745
        %v4194 = vcombine.low %v3746, %v3747
        %v4195 = vcombine.high %v3746, %v3747
        %v4197 = vunpack.c.l.s4 1966171168
        %v4198 = vunpack.c.0.s8 %v4197
        %v4199 = vlaneseq
        %v4200 = vshrl.u32 %v4199, 7
        %v4201 = vsub.s32 %v4198, %v4200
        %v4202 = vrot.slane %v4192, %v4201
        %v4204 = vunpack.c.l.s4 1966171168
        %v4205 = vunpack.c.0.s8 %v4204
        %v4206 = vlaneseq
        %v4207 = vshrl.u32 %v4206, 7
        %v4208 = vsub.s32 %v4205, %v4207
        %v4209 = vrot.slane %v4193, %v4208
        %v4211 = vunpack.c.l.s4 1966171168
        %v4212 = vunpack.c.0.s8 %v4211
        %v4213 = vlaneseq
        %v4214 = vshrl.u32 %v4213, 7
        %v4215 = vsub.s32 %v4212, %v4214
        %v4216 = vrot.slane %v4194, %v4215
        %v4218 = vunpack.c.l.s4 1966171168
        %v4219 = vunpack.c.0.s8 %v4218
        %v4220 = vlaneseq
        %v4221 = vshrl.u32 %v4220, 7
        %v4222 = vsub.s32 %v4219, %v4221
        %v4223 = vrot.slane %v4195, %v4222
        %v4224 = vcombine.low %v4202, %v4216
        %v4225 = vcombine.high %v4202, %v4216
        %v4226 = vcombine.low %v4209, %v4223
        %v4227 = vcombine.high %v4209, %v4223
        %v4229 = vunpack.c.l.s4 1966171168
        %v4230 = vunpack.c.0.s8 %v4229
        %v4231 = vlaneseq
        %v4232 = vshrl.u32 %v4231, 7
        %v4233 = vsub.s32 %v4230, %v4232
        %v4234 = vrot.slane %v4224, %v4233
        %v4236 = vunpack.c.l.s4 1966171168
        %v4237 = vunpack.c.0.s8 %v4236
        %v4238 = vlaneseq
        %v4239 = vshrl.u32 %v4238, 7
        %v4240 = vsub.s32 %v4237, %v4239
        %v4241 = vrot.slane %v4226, %v4240
        %v4243 = vunpack.c.l.s4 1966171168
        %v4244 = vunpack.c.0.s8 %v4243
        %v4245 = vlaneseq
        %v4246 = vshrl.u32 %v4245, 7
        %v4247 = vsub.s32 %v4244, %v4246
        %v4248 = vrot.slane %v4225, %v4247
        %v4250 = vunpack.c.l.s4 1966171168
        %v4251 = vunpack.c.0.s8 %v4250
        %v4252 = vlaneseq
        %v4253 = vshrl.u32 %v4252, 7
        %v4254 = vsub.s32 %v4251, %v4253
        %v4255 = vrot.slane %v4227, %v4254
        %v4256 = vcombine.high %v4234, %v4234
        %v4257 = vcombine.high %v4241, %v4241
        %v4258 = vcombine.high %v4248, %v4248
        %v4259 = vcombine.high %v4255, %v4255
        %v4260 = vcombine.low %v3748, %v3749
        %v4261 = vcombine.high %v3748, %v3749
        %v4262 = vcombine.low %v3750, %v3751
        %v4263 = vcombine.high %v3750, %v3751
        %v4265 = vunpack.c.l.s4 1966171168
        %v4266 = vunpack.c.0.s8 %v4265
        %v4267 = vlaneseq
        %v4268 = vshrl.u32 %v4267, 7
        %v4269 = vsub.s32 %v4266, %v4268
        %v4270 = vrot.slane %v4260, %v4269
        %v4272 = vunpack.c.l.s4 1966171168
        %v4273 = vunpack.c.0.s8 %v4272
        %v4274 = vlaneseq
        %v4275 = vshrl.u32 %v4274, 7
        %v4276 = vsub.s32 %v4273, %v4275
        %v4277 = vrot.slane %v4261, %v4276
        %v4279 = vunpack.c.l.s4 1966171168
        %v4280 = vunpack.c.0.s8 %v4279
        %v4281 = vlaneseq
        %v4282 = vshrl.u32 %v4281, 7
        %v4283 = vsub.s32 %v4280, %v4282
        %v4284 = vrot.slane %v4262, %v4283
        %v4286 = vunpack.c.l.s4 1966171168
        %v4287 = vunpack.c.0.s8 %v4286
        %v4288 = vlaneseq
        %v4289 = vshrl.u32 %v4288, 7
        %v4290 = vsub.s32 %v4287, %v4289
        %v4291 = vrot.slane %v4263, %v4290
        %v4292 = vcombine.low %v4270, %v4284
        %v4293 = vcombine.high %v4270, %v4284
        %v4294 = vcombine.low %v4277, %v4291
        %v4295 = vcombine.high %v4277, %v4291
        %v4297 = vunpack.c.l.s4 1966171168
        %v4298 = vunpack.c.0.s8 %v4297
        %v4299 = vlaneseq
        %v4300 = vshrl.u32 %v4299, 7
        %v4301 = vsub.s32 %v4298, %v4300
        %v4302 = vrot.slane %v4292, %v4301
        %v4304 = vunpack.c.l.s4 1966171168
        %v4305 = vunpack.c.0.s8 %v4304
        %v4306 = vlaneseq
        %v4307 = vshrl.u32 %v4306, 7
        %v4308 = vsub.s32 %v4305, %v4307
        %v4309 = vrot.slane %v4294, %v4308
        %v4311 = vunpack.c.l.s4 1966171168
        %v4312 = vunpack.c.0.s8 %v4311
        %v4313 = vlaneseq
        %v4314 = vshrl.u32 %v4313, 7
        %v4315 = vsub.s32 %v4312, %v4314
        %v4316 = vrot.slane %v4293, %v4315
        %v4318 = vunpack.c.l.s4 1966171168
        %v4319 = vunpack.c.0.s8 %v4318
        %v4320 = vlaneseq
        %v4321 = vshrl.u32 %v4320, 7
        %v4322 = vsub.s32 %v4319, %v4321
        %v4323 = vrot.slane %v4295, %v4322
        %v4324 = vcombine.high %v4302, %v4302
        %v4325 = vcombine.high %v4309, %v4309
        %v4326 = vcombine.high %v4316, %v4316
        %v4327 = vcombine.high %v4323, %v4323
        %v4328 = vlaneseq
        %v4329 = vshrl.u32 %v4328, 7
        %v4330 = vsub.s32 0, %v4329
        %v4331 = vrot.slane %v3826, %v4330
        %v4332 = vlaneseq
        %v4333 = vshrl.u32 %v4332, 7
        %v4334 = vsub.s32 1, %v4333
        %v4335 = vrot.slane %v3826, %v4334
        %v4336 = vlaneseq
        %v4337 = vshrl.u32 %v4336, 7
        %v4338 = vsub.s32 2, %v4337
        %v4339 = vrot.slane %v3826, %v4338
        %v4340 = vlaneseq
        %v4341 = vshrl.u32 %v4340, 7
        %v4342 = vsub.s32 3, %v4341
        %v4343 = vrot.slane %v3826, %v4342
        %v4344 = vlaneseq
        %v4345 = vshrl.u32 %v4344, 7
        %v4346 = vsub.s32 0, %v4345
        %v4347 = vrot.slane %v3840, %v4346
        %v4348 = vlaneseq
        %v4349 = vshrl.u32 %v4348, 7
        %v4350 = vsub.s32 1, %v4349
        %v4351 = vrot.slane %v3840, %v4350
        %v4352 = vlaneseq
        %v4353 = vshrl.u32 %v4352, 7
        %v4354 = vsub.s32 2, %v4353
        %v4355 = vrot.slane %v3840, %v4354
        %v4356 = vlaneseq
        %v4357 = vshrl.u32 %v4356, 7
        %v4358 = vsub.s32 3, %v4357
        %v4359 = vrot.slane %v3840, %v4358
        %v4360 = vlaneseq
        %v4361 = vshrl.u32 %v4360, 7
        %v4362 = vsub.s32 0, %v4361
        %v4363 = vrot.slane %v3848, %v4362
        %v4364 = vlaneseq
        %v4365 = vshrl.u32 %v4364, 7
        %v4366 = vsub.s32 1, %v4365
        %v4367 = vrot.slane %v3848, %v4366
        %v4368 = vlaneseq
        %v4369 = vshrl.u32 %v4368, 7
        %v4370 = vsub.s32 2, %v4369
        %v4371 = vrot.slane %v3848, %v4370
        %v4372 = vlaneseq
        %v4373 = vshrl.u32 %v4372, 7
        %v4374 = vsub.s32 3, %v4373
        %v4375 = vrot.slane %v3848, %v4374
        %v4376 = vlaneseq
        %v4377 = vshrl.u32 %v4376, 7
        %v4378 = vsub.s32 0, %v4377
        %v4379 = vrot.slane %v3850, %v4378
        %v4380 = vlaneseq
        %v4381 = vshrl.u32 %v4380, 7
        %v4382 = vsub.s32 1, %v4381
        %v4383 = vrot.slane %v3850, %v4382
        %v4384 = vlaneseq
        %v4385 = vshrl.u32 %v4384, 7
        %v4386 = vsub.s32 2, %v4385
        %v4387 = vrot.slane %v3850, %v4386
        %v4388 = vlaneseq
        %v4389 = vshrl.u32 %v4388, 7
        %v4390 = vsub.s32 3, %v4389
        %v4391 = vrot.slane %v3850, %v4390
        %v4392 = vlaneseq
        %v4393 = vshrl.u32 %v4392, 7
        %v4394 = vsub.s32 0, %v4393
        %v4395 = vrot.slane %v3833, %v4394
        %v4396 = vlaneseq
        %v4397 = vshrl.u32 %v4396, 7
        %v4398 = vsub.s32 1, %v4397
        %v4399 = vrot.slane %v3833, %v4398
        %v4400 = vlaneseq
        %v4401 = vshrl.u32 %v4400, 7
        %v4402 = vsub.s32 2, %v4401
        %v4403 = vrot.slane %v3833, %v4402
        %v4404 = vlaneseq
        %v4405 = vshrl.u32 %v4404, 7
        %v4406 = vsub.s32 3, %v4405
        %v4407 = vrot.slane %v3833, %v4406
        %v4408 = vlaneseq
        %v4409 = vshrl.u32 %v4408, 7
        %v4410 = vsub.s32 0, %v4409
        %v4411 = vrot.slane %v3847, %v4410
        %v4412 = vlaneseq
        %v4413 = vshrl.u32 %v4412, 7
        %v4414 = vsub.s32 1, %v4413
        %v4415 = vrot.slane %v3847, %v4414
        %v4416 = vlaneseq
        %v4417 = vshrl.u32 %v4416, 7
        %v4418 = vsub.s32 2, %v4417
        %v4419 = vrot.slane %v3847, %v4418
        %v4420 = vlaneseq
        %v4421 = vshrl.u32 %v4420, 7
        %v4422 = vsub.s32 3, %v4421
        %v4423 = vrot.slane %v3847, %v4422
        %v4424 = vlaneseq
        %v4425 = vshrl.u32 %v4424, 7
        %v4426 = vsub.s32 0, %v4425
        %v4427 = vrot.slane %v3849, %v4426
        %v4428 = vlaneseq
        %v4429 = vshrl.u32 %v4428, 7
        %v4430 = vsub.s32 1, %v4429
        %v4431 = vrot.slane %v3849, %v4430
        %v4432 = vlaneseq
        %v4433 = vshrl.u32 %v4432, 7
        %v4434 = vsub.s32 2, %v4433
        %v4435 = vrot.slane %v3849, %v4434
        %v4436 = vlaneseq
        %v4437 = vshrl.u32 %v4436, 7
        %v4438 = vsub.s32 3, %v4437
        %v4439 = vrot.slane %v3849, %v4438
        %v4440 = vlaneseq
        %v4441 = vshrl.u32 %v4440, 7
        %v4442 = vsub.s32 0, %v4441
        %v4443 = vrot.slane %v3851, %v4442
        %v4444 = vlaneseq
        %v4445 = vshrl.u32 %v4444, 7
        %v4446 = vsub.s32 1, %v4445
        %v4447 = vrot.slane %v3851, %v4446
        %v4448 = vlaneseq
        %v4449 = vshrl.u32 %v4448, 7
        %v4450 = vsub.s32 2, %v4449
        %v4451 = vrot.slane %v3851, %v4450
        %v4452 = vlaneseq
        %v4453 = vshrl.u32 %v4452, 7
        %v4454 = vsub.s32 3, %v4453
        %v4455 = vrot.slane %v3851, %v4454
        %v4456 = vlaneseq
        %v4457 = vshrl.u32 %v4456, 7
        %v4458 = vsub.s32 0, %v4457
        %v4459 = vrot.slane %v3894, %v4458
        %v4460 = vlaneseq
        %v4461 = vshrl.u32 %v4460, 7
        %v4462 = vsub.s32 1, %v4461
        %v4463 = vrot.slane %v3894, %v4462
        %v4464 = vlaneseq
        %v4465 = vshrl.u32 %v4464, 7
        %v4466 = vsub.s32 2, %v4465
        %v4467 = vrot.slane %v3894, %v4466
        %v4468 = vlaneseq
        %v4469 = vshrl.u32 %v4468, 7
        %v4470 = vsub.s32 3, %v4469
        %v4471 = vrot.slane %v3894, %v4470
        %v4472 = vlaneseq
        %v4473 = vshrl.u32 %v4472, 7
        %v4474 = vsub.s32 0, %v4473
        %v4475 = vrot.slane %v3908, %v4474
        %v4476 = vlaneseq
        %v4477 = vshrl.u32 %v4476, 7
        %v4478 = vsub.s32 1, %v4477
        %v4479 = vrot.slane %v3908, %v4478
        %v4480 = vlaneseq
        %v4481 = vshrl.u32 %v4480, 7
        %v4482 = vsub.s32 2, %v4481
        %v4483 = vrot.slane %v3908, %v4482
        %v4484 = vlaneseq
        %v4485 = vshrl.u32 %v4484, 7
        %v4486 = vsub.s32 3, %v4485
        %v4487 = vrot.slane %v3908, %v4486
        %v4488 = vlaneseq
        %v4489 = vshrl.u32 %v4488, 7
        %v4490 = vsub.s32 0, %v4489
        %v4491 = vrot.slane %v3916, %v4490
        %v4492 = vlaneseq
        %v4493 = vshrl.u32 %v4492, 7
        %v4494 = vsub.s32 1, %v4493
        %v4495 = vrot.slane %v3916, %v4494
        %v4496 = vlaneseq
        %v4497 = vshrl.u32 %v4496, 7
        %v4498 = vsub.s32 2, %v4497
        %v4499 = vrot.slane %v3916, %v4498
        %v4500 = vlaneseq
        %v4501 = vshrl.u32 %v4500, 7
        %v4502 = vsub.s32 3, %v4501
        %v4503 = vrot.slane %v3916, %v4502
        %v4504 = vlaneseq
        %v4505 = vshrl.u32 %v4504, 7
        %v4506 = vsub.s32 0, %v4505
        %v4507 = vrot.slane %v3918, %v4506
        %v4508 = vlaneseq
        %v4509 = vshrl.u32 %v4508, 7
        %v4510 = vsub.s32 1, %v4509
        %v4511 = vrot.slane %v3918, %v4510
        %v4512 = vlaneseq
        %v4513 = vshrl.u32 %v4512, 7
        %v4514 = vsub.s32 2, %v4513
        %v4515 = vrot.slane %v3918, %v4514
        %v4516 = vlaneseq
        %v4517 = vshrl.u32 %v4516, 7
        %v4518 = vsub.s32 3, %v4517
        %v4519 = vrot.slane %v3918, %v4518
        %v4520 = vlaneseq
        %v4521 = vshrl.u32 %v4520, 7
        %v4522 = vsub.s32 0, %v4521
        %v4523 = vrot.slane %v3901, %v4522
        %v4524 = vlaneseq
        %v4525 = vshrl.u32 %v4524, 7
        %v4526 = vsub.s32 1, %v4525
        %v4527 = vrot.slane %v3901, %v4526
        %v4528 = vlaneseq
        %v4529 = vshrl.u32 %v4528, 7
        %v4530 = vsub.s32 2, %v4529
        %v4531 = vrot.slane %v3901, %v4530
        %v4532 = vlaneseq
        %v4533 = vshrl.u32 %v4532, 7
        %v4534 = vsub.s32 3, %v4533
        %v4535 = vrot.slane %v3901, %v4534
        %v4536 = vlaneseq
        %v4537 = vshrl.u32 %v4536, 7
        %v4538 = vsub.s32 0, %v4537
        %v4539 = vrot.slane %v3915, %v4538
        %v4540 = vlaneseq
        %v4541 = vshrl.u32 %v4540, 7
        %v4542 = vsub.s32 1, %v4541
        %v4543 = vrot.slane %v3915, %v4542
        %v4544 = vlaneseq
        %v4545 = vshrl.u32 %v4544, 7
        %v4546 = vsub.s32 2, %v4545
        %v4547 = vrot.slane %v3915, %v4546
        %v4548 = vlaneseq
        %v4549 = vshrl.u32 %v4548, 7
        %v4550 = vsub.s32 3, %v4549
        %v4551 = vrot.slane %v3915, %v4550
        %v4552 = vlaneseq
        %v4553 = vshrl.u32 %v4552, 7
        %v4554 = vsub.s32 0, %v4553
        %v4555 = vrot.slane %v3917, %v4554
        %v4556 = vlaneseq
        %v4557 = vshrl.u32 %v4556, 7
        %v4558 = vsub.s32 1, %v4557
        %v4559 = vrot.slane %v3917, %v4558
        %v4560 = vlaneseq
        %v4561 = vshrl.u32 %v4560, 7
        %v4562 = vsub.s32 2, %v4561
        %v4563 = vrot.slane %v3917, %v4562
        %v4564 = vlaneseq
        %v4565 = vshrl.u32 %v4564, 7
        %v4566 = vsub.s32 3, %v4565
        %v4567 = vrot.slane %v3917, %v4566
        %v4568 = vlaneseq
        %v4569 = vshrl.u32 %v4568, 7
        %v4570 = vsub.s32 0, %v4569
        %v4571 = vrot.slane %v3919, %v4570
        %v4572 = vlaneseq
        %v4573 = vshrl.u32 %v4572, 7
        %v4574 = vsub.s32 1, %v4573
        %v4575 = vrot.slane %v3919, %v4574
        %v4576 = vlaneseq
        %v4577 = vshrl.u32 %v4576, 7
        %v4578 = vsub.s32 2, %v4577
        %v4579 = vrot.slane %v3919, %v4578
        %v4580 = vlaneseq
        %v4581 = vshrl.u32 %v4580, 7
        %v4582 = vsub.s32 3, %v4581
        %v4583 = vrot.slane %v3919, %v4582
        %v4584 = vlaneseq
        %v4585 = vshrl.u32 %v4584, 7
        %v4586 = vsub.s32 0, %v4585
        %v4587 = vrot.slane %v3962, %v4586
        %v4588 = vlaneseq
        %v4589 = vshrl.u32 %v4588, 7
        %v4590 = vsub.s32 1, %v4589
        %v4591 = vrot.slane %v3962, %v4590
        %v4592 = vlaneseq
        %v4593 = vshrl.u32 %v4592, 7
        %v4594 = vsub.s32 2, %v4593
        %v4595 = vrot.slane %v3962, %v4594
        %v4596 = vlaneseq
        %v4597 = vshrl.u32 %v4596, 7
        %v4598 = vsub.s32 3, %v4597
        %v4599 = vrot.slane %v3962, %v4598
        %v4600 = vlaneseq
        %v4601 = vshrl.u32 %v4600, 7
        %v4602 = vsub.s32 0, %v4601
        %v4603 = vrot.slane %v3976, %v4602
        %v4604 = vlaneseq
        %v4605 = vshrl.u32 %v4604, 7
        %v4606 = vsub.s32 1, %v4605
        %v4607 = vrot.slane %v3976, %v4606
        %v4608 = vlaneseq
        %v4609 = vshrl.u32 %v4608, 7
        %v4610 = vsub.s32 2, %v4609
        %v4611 = vrot.slane %v3976, %v4610
        %v4612 = vlaneseq
        %v4613 = vshrl.u32 %v4612, 7
        %v4614 = vsub.s32 3, %v4613
        %v4615 = vrot.slane %v3976, %v4614
        %v4616 = vlaneseq
        %v4617 = vshrl.u32 %v4616, 7
        %v4618 = vsub.s32 0, %v4617
        %v4619 = vrot.slane %v3984, %v4618
        %v4620 = vlaneseq
        %v4621 = vshrl.u32 %v4620, 7
        %v4622 = vsub.s32 1, %v4621
        %v4623 = vrot.slane %v3984, %v4622
        %v4624 = vlaneseq
        %v4625 = vshrl.u32 %v4624, 7
        %v4626 = vsub.s32 2, %v4625
        %v4627 = vrot.slane %v3984, %v4626
        %v4628 = vlaneseq
        %v4629 = vshrl.u32 %v4628, 7
        %v4630 = vsub.s32 3, %v4629
        %v4631 = vrot.slane %v3984, %v4630
        %v4632 = vlaneseq
        %v4633 = vshrl.u32 %v4632, 7
        %v4634 = vsub.s32 0, %v4633
        %v4635 = vrot.slane %v3986, %v4634
        %v4636 = vlaneseq
        %v4637 = vshrl.u32 %v4636, 7
        %v4638 = vsub.s32 1, %v4637
        %v4639 = vrot.slane %v3986, %v4638
        %v4640 = vlaneseq
        %v4641 = vshrl.u32 %v4640, 7
        %v4642 = vsub.s32 2, %v4641
        %v4643 = vrot.slane %v3986, %v4642
        %v4644 = vlaneseq
        %v4645 = vshrl.u32 %v4644, 7
        %v4646 = vsub.s32 3, %v4645
        %v4647 = vrot.slane %v3986, %v4646
        %v4648 = vlaneseq
        %v4649 = vshrl.u32 %v4648, 7
        %v4650 = vsub.s32 0, %v4649
        %v4651 = vrot.slane %v3969, %v4650
        %v4652 = vlaneseq
        %v4653 = vshrl.u32 %v4652, 7
        %v4654 = vsub.s32 1, %v4653
        %v4655 = vrot.slane %v3969, %v4654
        %v4656 = vlaneseq
        %v4657 = vshrl.u32 %v4656, 7
        %v4658 = vsub.s32 2, %v4657
        %v4659 = vrot.slane %v3969, %v4658
        %v4660 = vlaneseq
        %v4661 = vshrl.u32 %v4660, 7
        %v4662 = vsub.s32 3, %v4661
        %v4663 = vrot.slane %v3969, %v4662
        %v4664 = vlaneseq
        %v4665 = vshrl.u32 %v4664, 7
        %v4666 = vsub.s32 0, %v4665
        %v4667 = vrot.slane %v3983, %v4666
        %v4668 = vlaneseq
        %v4669 = vshrl.u32 %v4668, 7
        %v4670 = vsub.s32 1, %v4669
        %v4671 = vrot.slane %v3983, %v4670
        %v4672 = vlaneseq
        %v4673 = vshrl.u32 %v4672, 7
        %v4674 = vsub.s32 2, %v4673
        %v4675 = vrot.slane %v3983, %v4674
        %v4676 = vlaneseq
        %v4677 = vshrl.u32 %v4676, 7
        %v4678 = vsub.s32 3, %v4677
        %v4679 = vrot.slane %v3983, %v4678
        %v4680 = vlaneseq
        %v4681 = vshrl.u32 %v4680, 7
        %v4682 = vsub.s32 0, %v4681
        %v4683 = vrot.slane %v3985, %v4682
        %v4684 = vlaneseq
        %v4685 = vshrl.u32 %v4684, 7
        %v4686 = vsub.s32 1, %v4685
        %v4687 = vrot.slane %v3985, %v4686
        %v4688 = vlaneseq
        %v4689 = vshrl.u32 %v4688, 7
        %v4690 = vsub.s32 2, %v4689
        %v4691 = vrot.slane %v3985, %v4690
        %v4692 = vlaneseq
        %v4693 = vshrl.u32 %v4692, 7
        %v4694 = vsub.s32 3, %v4693
        %v4695 = vrot.slane %v3985, %v4694
        %v4696 = vlaneseq
        %v4697 = vshrl.u32 %v4696, 7
        %v4698 = vsub.s32 0, %v4697
        %v4699 = vrot.slane %v3987, %v4698
        %v4700 = vlaneseq
        %v4701 = vshrl.u32 %v4700, 7
        %v4702 = vsub.s32 1, %v4701
        %v4703 = vrot.slane %v3987, %v4702
        %v4704 = vlaneseq
        %v4705 = vshrl.u32 %v4704, 7
        %v4706 = vsub.s32 2, %v4705
        %v4707 = vrot.slane %v3987, %v4706
        %v4708 = vlaneseq
        %v4709 = vshrl.u32 %v4708, 7
        %v4710 = vsub.s32 3, %v4709
        %v4711 = vrot.slane %v3987, %v4710
        %v4712 = vlaneseq
        %v4713 = vshrl.u32 %v4712, 7
        %v4714 = vsub.s32 0, %v4713
        %v4715 = vrot.slane %v4030, %v4714
        %v4716 = vlaneseq
        %v4717 = vshrl.u32 %v4716, 7
        %v4718 = vsub.s32 1, %v4717
        %v4719 = vrot.slane %v4030, %v4718
        %v4720 = vlaneseq
        %v4721 = vshrl.u32 %v4720, 7
        %v4722 = vsub.s32 2, %v4721
        %v4723 = vrot.slane %v4030, %v4722
        %v4724 = vlaneseq
        %v4725 = vshrl.u32 %v4724, 7
        %v4726 = vsub.s32 3, %v4725
        %v4727 = vrot.slane %v4030, %v4726
        %v4728 = vlaneseq
        %v4729 = vshrl.u32 %v4728, 7
        %v4730 = vsub.s32 0, %v4729
        %v4731 = vrot.slane %v4044, %v4730
        %v4732 = vlaneseq
        %v4733 = vshrl.u32 %v4732, 7
        %v4734 = vsub.s32 1, %v4733
        %v4735 = vrot.slane %v4044, %v4734
        %v4736 = vlaneseq
        %v4737 = vshrl.u32 %v4736, 7
        %v4738 = vsub.s32 2, %v4737
        %v4739 = vrot.slane %v4044, %v4738
        %v4740 = vlaneseq
        %v4741 = vshrl.u32 %v4740, 7
        %v4742 = vsub.s32 3, %v4741
        %v4743 = vrot.slane %v4044, %v4742
        %v4744 = vlaneseq
        %v4745 = vshrl.u32 %v4744, 7
        %v4746 = vsub.s32 0, %v4745
        %v4747 = vrot.slane %v4052, %v4746
        %v4748 = vlaneseq
        %v4749 = vshrl.u32 %v4748, 7
        %v4750 = vsub.s32 1, %v4749
        %v4751 = vrot.slane %v4052, %v4750
        %v4752 = vlaneseq
        %v4753 = vshrl.u32 %v4752, 7
        %v4754 = vsub.s32 2, %v4753
        %v4755 = vrot.slane %v4052, %v4754
        %v4756 = vlaneseq
        %v4757 = vshrl.u32 %v4756, 7
        %v4758 = vsub.s32 3, %v4757
        %v4759 = vrot.slane %v4052, %v4758
        %v4760 = vlaneseq
        %v4761 = vshrl.u32 %v4760, 7
        %v4762 = vsub.s32 0, %v4761
        %v4763 = vrot.slane %v4054, %v4762
        %v4764 = vlaneseq
        %v4765 = vshrl.u32 %v4764, 7
        %v4766 = vsub.s32 1, %v4765
        %v4767 = vrot.slane %v4054, %v4766
        %v4768 = vlaneseq
        %v4769 = vshrl.u32 %v4768, 7
        %v4770 = vsub.s32 2, %v4769
        %v4771 = vrot.slane %v4054, %v4770
        %v4772 = vlaneseq
        %v4773 = vshrl.u32 %v4772, 7
        %v4774 = vsub.s32 3, %v4773
        %v4775 = vrot.slane %v4054, %v4774
        %v4776 = vlaneseq
        %v4777 = vshrl.u32 %v4776, 7
        %v4778 = vsub.s32 0, %v4777
        %v4779 = vrot.slane %v4037, %v4778
        %v4780 = vlaneseq
        %v4781 = vshrl.u32 %v4780, 7
        %v4782 = vsub.s32 1, %v4781
        %v4783 = vrot.slane %v4037, %v4782
        %v4784 = vlaneseq
        %v4785 = vshrl.u32 %v4784, 7
        %v4786 = vsub.s32 2, %v4785
        %v4787 = vrot.slane %v4037, %v4786
        %v4788 = vlaneseq
        %v4789 = vshrl.u32 %v4788, 7
        %v4790 = vsub.s32 3, %v4789
        %v4791 = vrot.slane %v4037, %v4790
        %v4792 = vlaneseq
        %v4793 = vshrl.u32 %v4792, 7
        %v4794 = vsub.s32 0, %v4793
        %v4795 = vrot.slane %v4051, %v4794
        %v4796 = vlaneseq
        %v4797 = vshrl.u32 %v4796, 7
        %v4798 = vsub.s32 1, %v4797
        %v4799 = vrot.slane %v4051, %v4798
        %v4800 = vlaneseq
        %v4801 = vshrl.u32 %v4800, 7
        %v4802 = vsub.s32 2, %v4801
        %v4803 = vrot.slane %v4051, %v4802
        %v4804 = vlaneseq
        %v4805 = vshrl.u32 %v4804, 7
        %v4806 = vsub.s32 3, %v4805
        %v4807 = vrot.slane %v4051, %v4806
        %v4808 = vlaneseq
        %v4809 = vshrl.u32 %v4808, 7
        %v4810 = vsub.s32 0, %v4809
        %v4811 = vrot.slane %v4053, %v4810
        %v4812 = vlaneseq
        %v4813 = vshrl.u32 %v4812, 7
        %v4814 = vsub.s32 1, %v4813
        %v4815 = vrot.slane %v4053, %v4814
        %v4816 = vlaneseq
        %v4817 = vshrl.u32 %v4816, 7
        %v4818 = vsub.s32 2, %v4817
        %v4819 = vrot.slane %v4053, %v4818
        %v4820 = vlaneseq
        %v4821 = vshrl.u32 %v4820, 7
        %v4822 = vsub.s32 3, %v4821
        %v4823 = vrot.slane %v4053, %v4822
        %v4824 = vlaneseq
        %v4825 = vshrl.u32 %v4824, 7
        %v4826 = vsub.s32 0, %v4825
        %v4827 = vrot.slane %v4055, %v4826
        %v4828 = vlaneseq
        %v4829 = vshrl.u32 %v4828, 7
        %v4830 = vsub.s32 1, %v4829
        %v4831 = vrot.slane %v4055, %v4830
        %v4832 = vlaneseq
        %v4833 = vshrl.u32 %v4832, 7
        %v4834 = vsub.s32 2, %v4833
        %v4835 = vrot.slane %v4055, %v4834
        %v4836 = vlaneseq
        %v4837 = vshrl.u32 %v4836, 7
        %v4838 = vsub.s32 3, %v4837
        %v4839 = vrot.slane %v4055, %v4838
        %v4840 = vlaneseq
        %v4841 = vshrl.u32 %v4840, 7
        %v4842 = vsub.s32 0, %v4841
        %v4843 = vrot.slane %v4098, %v4842
        %v4844 = vlaneseq
        %v4845 = vshrl.u32 %v4844, 7
        %v4846 = vsub.s32 1, %v4845
        %v4847 = vrot.slane %v4098, %v4846
        %v4848 = vlaneseq
        %v4849 = vshrl.u32 %v4848, 7
        %v4850 = vsub.s32 2, %v4849
        %v4851 = vrot.slane %v4098, %v4850
        %v4852 = vlaneseq
        %v4853 = vshrl.u32 %v4852, 7
        %v4854 = vsub.s32 3, %v4853
        %v4855 = vrot.slane %v4098, %v4854
        %v4856 = vlaneseq
        %v4857 = vshrl.u32 %v4856, 7
        %v4858 = vsub.s32 0, %v4857
        %v4859 = vrot.slane %v4112, %v4858
        %v4860 = vlaneseq
        %v4861 = vshrl.u32 %v4860, 7
        %v4862 = vsub.s32 1, %v4861
        %v4863 = vrot.slane %v4112, %v4862
        %v4864 = vlaneseq
        %v4865 = vshrl.u32 %v4864, 7
        %v4866 = vsub.s32 2, %v4865
        %v4867 = vrot.slane %v4112, %v4866
        %v4868 = vlaneseq
        %v4869 = vshrl.u32 %v4868, 7
        %v4870 = vsub.s32 3, %v4869
        %v4871 = vrot.slane %v4112, %v4870
        %v4872 = vlaneseq
        %v4873 = vshrl.u32 %v4872, 7
        %v4874 = vsub.s32 0, %v4873
        %v4875 = vrot.slane %v4120, %v4874
        %v4876 = vlaneseq
        %v4877 = vshrl.u32 %v4876, 7
        %v4878 = vsub.s32 1, %v4877
        %v4879 = vrot.slane %v4120, %v4878
        %v4880 = vlaneseq
        %v4881 = vshrl.u32 %v4880, 7
        %v4882 = vsub.s32 2, %v4881
        %v4883 = vrot.slane %v4120, %v4882
        %v4884 = vlaneseq
        %v4885 = vshrl.u32 %v4884, 7
        %v4886 = vsub.s32 3, %v4885
        %v4887 = vrot.slane %v4120, %v4886
        %v4888 = vlaneseq
        %v4889 = vshrl.u32 %v4888, 7
        %v4890 = vsub.s32 0, %v4889
        %v4891 = vrot.slane %v4122, %v4890
        %v4892 = vlaneseq
        %v4893 = vshrl.u32 %v4892, 7
        %v4894 = vsub.s32 1, %v4893
        %v4895 = vrot.slane %v4122, %v4894
        %v4896 = vlaneseq
        %v4897 = vshrl.u32 %v4896, 7
        %v4898 = vsub.s32 2, %v4897
        %v4899 = vrot.slane %v4122, %v4898
        %v4900 = vlaneseq
        %v4901 = vshrl.u32 %v4900, 7
        %v4902 = vsub.s32 3, %v4901
        %v4903 = vrot.slane %v4122, %v4902
        %v4904 = vlaneseq
        %v4905 = vshrl.u32 %v4904, 7
        %v4906 = vsub.s32 0, %v4905
        %v4907 = vrot.slane %v4105, %v4906
        %v4908 = vlaneseq
        %v4909 = vshrl.u32 %v4908, 7
        %v4910 = vsub.s32 1, %v4909
        %v4911 = vrot.slane %v4105, %v4910
        %v4912 = vlaneseq
        %v4913 = vshrl.u32 %v4912, 7
        %v4914 = vsub.s32 2, %v4913
        %v4915 = vrot.slane %v4105, %v4914
        %v4916 = vlaneseq
        %v4917 = vshrl.u32 %v4916, 7
        %v4918 = vsub.s32 3, %v4917
        %v4919 = vrot.slane %v4105, %v4918
        %v4920 = vlaneseq
        %v4921 = vshrl.u32 %v4920, 7
        %v4922 = vsub.s32 0, %v4921
        %v4923 = vrot.slane %v4119, %v4922
        %v4924 = vlaneseq
        %v4925 = vshrl.u32 %v4924, 7
        %v4926 = vsub.s32 1, %v4925
        %v4927 = vrot.slane %v4119, %v4926
        %v4928 = vlaneseq
        %v4929 = vshrl.u32 %v4928, 7
        %v4930 = vsub.s32 2, %v4929
        %v4931 = vrot.slane %v4119, %v4930
        %v4932 = vlaneseq
        %v4933 = vshrl.u32 %v4932, 7
        %v4934 = vsub.s32 3, %v4933
        %v4935 = vrot.slane %v4119, %v4934
        %v4936 = vlaneseq
        %v4937 = vshrl.u32 %v4936, 7
        %v4938 = vsub.s32 0, %v4937
        %v4939 = vrot.slane %v4121, %v4938
        %v4940 = vlaneseq
        %v4941 = vshrl.u32 %v4940, 7
        %v4942 = vsub.s32 1, %v4941
        %v4943 = vrot.slane %v4121, %v4942
        %v4944 = vlaneseq
        %v4945 = vshrl.u32 %v4944, 7
        %v4946 = vsub.s32 2, %v4945
        %v4947 = vrot.slane %v4121, %v4946
        %v4948 = vlaneseq
        %v4949 = vshrl.u32 %v4948, 7
        %v4950 = vsub.s32 3, %v4949
        %v4951 = vrot.slane %v4121, %v4950
        %v4952 = vlaneseq
        %v4953 = vshrl.u32 %v4952, 7
        %v4954 = vsub.s32 0, %v4953
        %v4955 = vrot.slane %v4123, %v4954
        %v4956 = vlaneseq
        %v4957 = vshrl.u32 %v4956, 7
        %v4958 = vsub.s32 1, %v4957
        %v4959 = vrot.slane %v4123, %v4958
        %v4960 = vlaneseq
        %v4961 = vshrl.u32 %v4960, 7
        %v4962 = vsub.s32 2, %v4961
        %v4963 = vrot.slane %v4123, %v4962
        %v4964 = vlaneseq
        %v4965 = vshrl.u32 %v4964, 7
        %v4966 = vsub.s32 3, %v4965
        %v4967 = vrot.slane %v4123, %v4966
        %v4968 = vlaneseq
        %v4969 = vshrl.u32 %v4968, 7
        %v4970 = vsub.s32 0, %v4969
        %v4971 = vrot.slane %v4166, %v4970
        %v4972 = vlaneseq
        %v4973 = vshrl.u32 %v4972, 7
        %v4974 = vsub.s32 1, %v4973
        %v4975 = vrot.slane %v4166, %v4974
        %v4976 = vlaneseq
        %v4977 = vshrl.u32 %v4976, 7
        %v4978 = vsub.s32 2, %v4977
        %v4979 = vrot.slane %v4166, %v4978
        %v4980 = vlaneseq
        %v4981 = vshrl.u32 %v4980, 7
        %v4982 = vsub.s32 3, %v4981
        %v4983 = vrot.slane %v4166, %v4982
        %v4984 = vlaneseq
        %v4985 = vshrl.u32 %v4984, 7
        %v4986 = vsub.s32 0, %v4985
        %v4987 = vrot.slane %v4180, %v4986
        %v4988 = vlaneseq
        %v4989 = vshrl.u32 %v4988, 7
        %v4990 = vsub.s32 1, %v4989
        %v4991 = vrot.slane %v4180, %v4990
        %v4992 = vlaneseq
        %v4993 = vshrl.u32 %v4992, 7
        %v4994 = vsub.s32 2, %v4993
        %v4995 = vrot.slane %v4180, %v4994
        %v4996 = vlaneseq
        %v4997 = vshrl.u32 %v4996, 7
        %v4998 = vsub.s32 3, %v4997
        %v4999 = vrot.slane %v4180, %v4998
        %v5000 = vlaneseq
        %v5001 = vshrl.u32 %v5000, 7
        %v5002 = vsub.s32 0, %v5001
        %v5003 = vrot.slane %v4188, %v5002
        %v5004 = vlaneseq
        %v5005 = vshrl.u32 %v5004, 7
        %v5006 = vsub.s32 1, %v5005
        %v5007 = vrot.slane %v4188, %v5006
        %v5008 = vlaneseq
        %v5009 = vshrl.u32 %v5008, 7
        %v5010 = vsub.s32 2, %v5009
        %v5011 = vrot.slane %v4188, %v5010
        %v5012 = vlaneseq
        %v5013 = vshrl.u32 %v5012, 7
        %v5014 = vsub.s32 3, %v5013
        %v5015 = vrot.slane %v4188, %v5014
        %v5016 = vlaneseq
        %v5017 = vshrl.u32 %v5016, 7
        %v5018 = vsub.s32 0, %v5017
        %v5019 = vrot.slane %v4190, %v5018
        %v5020 = vlaneseq
        %v5021 = vshrl.u32 %v5020, 7
        %v5022 = vsub.s32 1, %v5021
        %v5023 = vrot.slane %v4190, %v5022
        %v5024 = vlaneseq
        %v5025 = vshrl.u32 %v5024, 7
        %v5026 = vsub.s32 2, %v5025
        %v5027 = vrot.slane %v4190, %v5026
        %v5028 = vlaneseq
        %v5029 = vshrl.u32 %v5028, 7
        %v5030 = vsub.s32 3, %v5029
        %v5031 = vrot.slane %v4190, %v5030
        %v5032 = vlaneseq
        %v5033 = vshrl.u32 %v5032, 7
        %v5034 = vsub.s32 0, %v5033
        %v5035 = vrot.slane %v4173, %v5034
        %v5036 = vlaneseq
        %v5037 = vshrl.u32 %v5036, 7
        %v5038 = vsub.s32 1, %v5037
        %v5039 = vrot.slane %v4173, %v5038
        %v5040 = vlaneseq
        %v5041 = vshrl.u32 %v5040, 7
        %v5042 = vsub.s32 2, %v5041
        %v5043 = vrot.slane %v4173, %v5042
        %v5044 = vlaneseq
        %v5045 = vshrl.u32 %v5044, 7
        %v5046 = vsub.s32 3, %v5045
        %v5047 = vrot.slane %v4173, %v5046
        %v5048 = vlaneseq
        %v5049 = vshrl.u32 %v5048, 7
        %v5050 = vsub.s32 0, %v5049
        %v5051 = vrot.slane %v4187, %v5050
        %v5052 = vlaneseq
        %v5053 = vshrl.u32 %v5052, 7
        %v5054 = vsub.s32 1, %v5053
        %v5055 = vrot.slane %v4187, %v5054
        %v5056 = vlaneseq
        %v5057 = vshrl.u32 %v5056, 7
        %v5058 = vsub.s32 2, %v5057
        %v5059 = vrot.slane %v4187, %v5058
        %v5060 = vlaneseq
        %v5061 = vshrl.u32 %v5060, 7
        %v5062 = vsub.s32 3, %v5061
        %v5063 = vrot.slane %v4187, %v5062
        %v5064 = vlaneseq
        %v5065 = vshrl.u32 %v5064, 7
        %v5066 = vsub.s32 0, %v5065
        %v5067 = vrot.slane %v4189, %v5066
        %v5068 = vlaneseq
        %v5069 = vshrl.u32 %v5068, 7
        %v5070 = vsub.s32 1, %v5069
        %v5071 = vrot.slane %v4189, %v5070
        %v5072 = vlaneseq
        %v5073 = vshrl.u32 %v5072, 7
        %v5074 = vsub.s32 2, %v5073
        %v5075 = vrot.slane %v4189, %v5074
        %v5076 = vlaneseq
        %v5077 = vshrl.u32 %v5076, 7
        %v5078 = vsub.s32 3, %v5077
        %v5079 = vrot.slane %v4189, %v5078
        %v5080 = vlaneseq
        %v5081 = vshrl.u32 %v5080, 7
        %v5082 = vsub.s32 0, %v5081
        %v5083 = vrot.slane %v4191, %v5082
        %v5084 = vlaneseq
        %v5085 = vshrl.u32 %v5084, 7
        %v5086 = vsub.s32 1, %v5085
        %v5087 = vrot.slane %v4191, %v5086
        %v5088 = vlaneseq
        %v5089 = vshrl.u32 %v5088, 7
        %v5090 = vsub.s32 2, %v5089
        %v5091 = vrot.slane %v4191, %v5090
        %v5092 = vlaneseq
        %v5093 = vshrl.u32 %v5092, 7
        %v5094 = vsub.s32 3, %v5093
        %v5095 = vrot.slane %v4191, %v5094
        %v5096 = vlaneseq
        %v5097 = vshrl.u32 %v5096, 7
        %v5098 = vsub.s32 0, %v5097
        %v5099 = vrot.slane %v4234, %v5098
        %v5100 = vlaneseq
        %v5101 = vshrl.u32 %v5100, 7
        %v5102 = vsub.s32 1, %v5101
        %v5103 = vrot.slane %v4234, %v5102
        %v5104 = vlaneseq
        %v5105 = vshrl.u32 %v5104, 7
        %v5106 = vsub.s32 2, %v5105
        %v5107 = vrot.slane %v4234, %v5106
        %v5108 = vlaneseq
        %v5109 = vshrl.u32 %v5108, 7
        %v5110 = vsub.s32 3, %v5109
        %v5111 = vrot.slane %v4234, %v5110
        %v5112 = vlaneseq
        %v5113 = vshrl.u32 %v5112, 7
        %v5114 = vsub.s32 0, %v5113
        %v5115 = vrot.slane %v4248, %v5114
        %v5116 = vlaneseq
        %v5117 = vshrl.u32 %v5116, 7
        %v5118 = vsub.s32 1, %v5117
        %v5119 = vrot.slane %v4248, %v5118
        %v5120 = vlaneseq
        %v5121 = vshrl.u32 %v5120, 7
        %v5122 = vsub.s32 2, %v5121
        %v5123 = vrot.slane %v4248, %v5122
        %v5124 = vlaneseq
        %v5125 = vshrl.u32 %v5124, 7
        %v5126 = vsub.s32 3, %v5125
        %v5127 = vrot.slane %v4248, %v5126
        %v5128 = vlaneseq
        %v5129 = vshrl.u32 %v5128, 7
        %v5130 = vsub.s32 0, %v5129
        %v5131 = vrot.slane %v4256, %v5130
        %v5132 = vlaneseq
        %v5133 = vshrl.u32 %v5132, 7
        %v5134 = vsub.s32 1, %v5133
        %v5135 = vrot.slane %v4256, %v5134
        %v5136 = vlaneseq
        %v5137 = vshrl.u32 %v5136, 7
        %v5138 = vsub.s32 2, %v5137
        %v5139 = vrot.slane %v4256, %v5138
        %v5140 = vlaneseq
        %v5141 = vshrl.u32 %v5140, 7
        %v5142 = vsub.s32 3, %v5141
        %v5143 = vrot.slane %v4256, %v5142
        %v5144 = vlaneseq
        %v5145 = vshrl.u32 %v5144, 7
        %v5146 = vsub.s32 0, %v5145
        %v5147 = vrot.slane %v4258, %v5146
        %v5148 = vlaneseq
        %v5149 = vshrl.u32 %v5148, 7
        %v5150 = vsub.s32 1, %v5149
        %v5151 = vrot.slane %v4258, %v5150
        %v5152 = vlaneseq
        %v5153 = vshrl.u32 %v5152, 7
        %v5154 = vsub.s32 2, %v5153
        %v5155 = vrot.slane %v4258, %v5154
        %v5156 = vlaneseq
        %v5157 = vshrl.u32 %v5156, 7
        %v5158 = vsub.s32 3, %v5157
        %v5159 = vrot.slane %v4258, %v5158
        %v5160 = vlaneseq
        %v5161 = vshrl.u32 %v5160, 7
        %v5162 = vsub.s32 0, %v5161
        %v5163 = vrot.slane %v4241, %v5162
        %v5164 = vlaneseq
        %v5165 = vshrl.u32 %v5164, 7
        %v5166 = vsub.s32 1, %v5165
        %v5167 = vrot.slane %v4241, %v5166
        %v5168 = vlaneseq
        %v5169 = vshrl.u32 %v5168, 7
        %v5170 = vsub.s32 2, %v5169
        %v5171 = vrot.slane %v4241, %v5170
        %v5172 = vlaneseq
        %v5173 = vshrl.u32 %v5172, 7
        %v5174 = vsub.s32 3, %v5173
        %v5175 = vrot.slane %v4241, %v5174
        %v5176 = vlaneseq
        %v5177 = vshrl.u32 %v5176, 7
        %v5178 = vsub.s32 0, %v5177
        %v5179 = vrot.slane %v4255, %v5178
        %v5180 = vlaneseq
        %v5181 = vshrl.u32 %v5180, 7
        %v5182 = vsub.s32 1, %v5181
        %v5183 = vrot.slane %v4255, %v5182
        %v5184 = vlaneseq
        %v5185 = vshrl.u32 %v5184, 7
        %v5186 = vsub.s32 2, %v5185
        %v5187 = vrot.slane %v4255, %v5186
        %v5188 = vlaneseq
        %v5189 = vshrl.u32 %v5188, 7
        %v5190 = vsub.s32 3, %v5189
        %v5191 = vrot.slane %v4255, %v5190
        %v5192 = vlaneseq
        %v5193 = vshrl.u32 %v5192, 7
        %v5194 = vsub.s32 0, %v5193
        %v5195 = vrot.slane %v4257, %v5194
        %v5196 = vlaneseq
        %v5197 = vshrl.u32 %v5196, 7
        %v5198 = vsub.s32 1, %v5197
        %v5199 = vrot.slane %v4257, %v5198
        %v5200 = vlaneseq
        %v5201 = vshrl.u32 %v5200, 7
        %v5202 = vsub.s32 2, %v5201
        %v5203 = vrot.slane %v4257, %v5202
        %v5204 = vlaneseq
        %v5205 = vshrl.u32 %v5204, 7
        %v5206 = vsub.s32 3, %v5205
        %v5207 = vrot.slane %v4257, %v5206
        %v5208 = vlaneseq
        %v5209 = vshrl.u32 %v5208, 7
        %v5210 = vsub.s32 0, %v5209
        %v5211 = vrot.slane %v4259, %v5210
        %v5212 = vlaneseq
        %v5213 = vshrl.u32 %v5212, 7
        %v5214 = vsub.s32 1, %v5213
        %v5215 = vrot.slane %v4259, %v5214
        %v5216 = vlaneseq
        %v5217 = vshrl.u32 %v5216, 7
        %v5218 = vsub.s32 2, %v5217
        %v5219 = vrot.slane %v4259, %v5218
        %v5220 = vlaneseq
        %v5221 = vshrl.u32 %v5220, 7
        %v5222 = vsub.s32 3, %v5221
        %v5223 = vrot.slane %v4259, %v5222
        %v5224 = vlaneseq
        %v5225 = vshrl.u32 %v5224, 7
        %v5226 = vsub.s32 0, %v5225
        %v5227 = vrot.slane %v4302, %v5226
        %v5228 = vlaneseq
        %v5229 = vshrl.u32 %v5228, 7
        %v5230 = vsub.s32 1, %v5229
        %v5231 = vrot.slane %v4302, %v5230
        %v5232 = vlaneseq
        %v5233 = vshrl.u32 %v5232, 7
        %v5234 = vsub.s32 2, %v5233
        %v5235 = vrot.slane %v4302, %v5234
        %v5236 = vlaneseq
        %v5237 = vshrl.u32 %v5236, 7
        %v5238 = vsub.s32 3, %v5237
        %v5239 = vrot.slane %v4302, %v5238
        %v5240 = vlaneseq
        %v5241 = vshrl.u32 %v5240, 7
        %v5242 = vsub.s32 0, %v5241
        %v5243 = vrot.slane %v4316, %v5242
        %v5244 = vlaneseq
        %v5245 = vshrl.u32 %v5244, 7
        %v5246 = vsub.s32 1, %v5245
        %v5247 = vrot.slane %v4316, %v5246
        %v5248 = vlaneseq
        %v5249 = vshrl.u32 %v5248, 7
        %v5250 = vsub.s32 2, %v5249
        %v5251 = vrot.slane %v4316, %v5250
        %v5252 = vlaneseq
        %v5253 = vshrl.u32 %v5252, 7
        %v5254 = vsub.s32 3, %v5253
        %v5255 = vrot.slane %v4316, %v5254
        %v5256 = vlaneseq
        %v5257 = vshrl.u32 %v5256, 7
        %v5258 = vsub.s32 0, %v5257
        %v5259 = vrot.slane %v4324, %v5258
        %v5260 = vlaneseq
        %v5261 = vshrl.u32 %v5260, 7
        %v5262 = vsub.s32 1, %v5261
        %v5263 = vrot.slane %v4324, %v5262
        %v5264 = vlaneseq
        %v5265 = vshrl.u32 %v5264, 7
        %v5266 = vsub.s32 2, %v5265
        %v5267 = vrot.slane %v4324, %v5266
        %v5268 = vlaneseq
        %v5269 = vshrl.u32 %v5268, 7
        %v5270 = vsub.s32 3, %v5269
        %v5271 = vrot.slane %v4324, %v5270
        %v5272 = vlaneseq
        %v5273 = vshrl.u32 %v5272, 7
        %v5274 = vsub.s32 0, %v5273
        %v5275 = vrot.slane %v4326, %v5274
        %v5276 = vlaneseq
        %v5277 = vshrl.u32 %v5276, 7
        %v5278 = vsub.s32 1, %v5277
        %v5279 = vrot.slane %v4326, %v5278
        %v5280 = vlaneseq
        %v5281 = vshrl.u32 %v5280, 7
        %v5282 = vsub.s32 2, %v5281
        %v5283 = vrot.slane %v4326, %v5282
        %v5284 = vlaneseq
        %v5285 = vshrl.u32 %v5284, 7
        %v5286 = vsub.s32 3, %v5285
        %v5287 = vrot.slane %v4326, %v5286
        %v5288 = vlaneseq
        %v5289 = vshrl.u32 %v5288, 7
        %v5290 = vsub.s32 0, %v5289
        %v5291 = vrot.slane %v4309, %v5290
        %v5292 = vlaneseq
        %v5293 = vshrl.u32 %v5292, 7
        %v5294 = vsub.s32 1, %v5293
        %v5295 = vrot.slane %v4309, %v5294
        %v5296 = vlaneseq
        %v5297 = vshrl.u32 %v5296, 7
        %v5298 = vsub.s32 2, %v5297
        %v5299 = vrot.slane %v4309, %v5298
        %v5300 = vlaneseq
        %v5301 = vshrl.u32 %v5300, 7
        %v5302 = vsub.s32 3, %v5301
        %v5303 = vrot.slane %v4309, %v5302
        %v5304 = vlaneseq
        %v5305 = vshrl.u32 %v5304, 7
        %v5306 = vsub.s32 0, %v5305
        %v5307 = vrot.slane %v4323, %v5306
        %v5308 = vlaneseq
        %v5309 = vshrl.u32 %v5308, 7
        %v5310 = vsub.s32 1, %v5309
        %v5311 = vrot.slane %v4323, %v5310
        %v5312 = vlaneseq
        %v5313 = vshrl.u32 %v5312, 7
        %v5314 = vsub.s32 2, %v5313
        %v5315 = vrot.slane %v4323, %v5314
        %v5316 = vlaneseq
        %v5317 = vshrl.u32 %v5316, 7
        %v5318 = vsub.s32 3, %v5317
        %v5319 = vrot.slane %v4323, %v5318
        %v5320 = vlaneseq
        %v5321 = vshrl.u32 %v5320, 7
        %v5322 = vsub.s32 0, %v5321
        %v5323 = vrot.slane %v4325, %v5322
        %v5324 = vlaneseq
        %v5325 = vshrl.u32 %v5324, 7
        %v5326 = vsub.s32 1, %v5325
        %v5327 = vrot.slane %v4325, %v5326
        %v5328 = vlaneseq
        %v5329 = vshrl.u32 %v5328, 7
        %v5330 = vsub.s32 2, %v5329
        %v5331 = vrot.slane %v4325, %v5330
        %v5332 = vlaneseq
        %v5333 = vshrl.u32 %v5332, 7
        %v5334 = vsub.s32 3, %v5333
        %v5335 = vrot.slane %v4325, %v5334
        %v5336 = vlaneseq
        %v5337 = vshrl.u32 %v5336, 7
        %v5338 = vsub.s32 0, %v5337
        %v5339 = vrot.slane %v4327, %v5338
        %v5340 = vlaneseq
        %v5341 = vshrl.u32 %v5340, 7
        %v5342 = vsub.s32 1, %v5341
        %v5343 = vrot.slane %v4327, %v5342
        %v5344 = vlaneseq
        %v5345 = vshrl.u32 %v5344, 7
        %v5346 = vsub.s32 2, %v5345
        %v5347 = vrot.slane %v4327, %v5346
        %v5348 = vlaneseq
        %v5349 = vshrl.u32 %v5348, 7
        %v5350 = vsub.s32 3, %v5349
        %v5351 = vrot.slane %v4327, %v5350
        %v5608 = vmul.f32 %v4331, %v3484
        %v5609 = vmul.f32 %v4335, %v3485
        %v5610 = vmul.f32 %v4339, %v3486
        %v5611 = vmul.f32 %v4343, %v3487
        %v5612 = vmul.f32 %v4347, %v3484
        %v5613 = vmul.f32 %v4351, %v3485
        %v5614 = vmul.f32 %v4355, %v3486
        %v5615 = vmul.f32 %v4359, %v3487
        %v5616 = vmul.f32 %v4363, %v3484
        %v5617 = vmul.f32 %v4367, %v3485
        %v5618 = vmul.f32 %v4371, %v3486
        %v5619 = vmul.f32 %v4375, %v3487
        %v5620 = vmul.f32 %v4379, %v3484
        %v5621 = vmul.f32 %v4383, %v3485
        %v5622 = vmul.f32 %v4387, %v3486
        %v5623 = vmul.f32 %v4391, %v3487
        %v5624 = vmul.f32 %v4395, %v3484
        %v5625 = vmul.f32 %v4399, %v3485
        %v5626 = vmul.f32 %v4403, %v3486
        %v5627 = vmul.f32 %v4407, %v3487
        %v5628 = vmul.f32 %v4411, %v3484
        %v5629 = vmul.f32 %v4415, %v3485
        %v5630 = vmul.f32 %v4419, %v3486
        %v5631 = vmul.f32 %v4423, %v3487
        %v5632 = vmul.f32 %v4427, %v3484
        %v5633 = vmul.f32 %v4431, %v3485
        %v5634 = vmul.f32 %v4435, %v3486
        %v5635 = vmul.f32 %v4439, %v3487
        %v5636 = vmul.f32 %v4443, %v3484
        %v5637 = vmul.f32 %v4447, %v3485
        %v5638 = vmul.f32 %v4451, %v3486
        %v5639 = vmul.f32 %v4455, %v3487
        %v5640 = vmul.f32 %v4459, %v3484
        %v5641 = vmul.f32 %v4463, %v3485
        %v5642 = vmul.f32 %v4467, %v3486
        %v5643 = vmul.f32 %v4471, %v3487
        %v5644 = vmul.f32 %v4475, %v3484
        %v5645 = vmul.f32 %v4479, %v3485
        %v5646 = vmul.f32 %v4483, %v3486
        %v5647 = vmul.f32 %v4487, %v3487
        %v5648 = vmul.f32 %v4491, %v3484
        %v5649 = vmul.f32 %v4495, %v3485
        %v5650 = vmul.f32 %v4499, %v3486
        %v5651 = vmul.f32 %v4503, %v3487
        %v5652 = vmul.f32 %v4507, %v3484
        %v5653 = vmul.f32 %v4511, %v3485
        %v5654 = vmul.f32 %v4515, %v3486
        %v5655 = vmul.f32 %v4519, %v3487
        %v5656 = vmul.f32 %v4523, %v3484
        %v5657 = vmul.f32 %v4527, %v3485
        %v5658 = vmul.f32 %v4531, %v3486
        %v5659 = vmul.f32 %v4535, %v3487
        %v5660 = vmul.f32 %v4539, %v3484
        %v5661 = vmul.f32 %v4543, %v3485
        %v5662 = vmul.f32 %v4547, %v3486
        %v5663 = vmul.f32 %v4551, %v3487
        %v5664 = vmul.f32 %v4555, %v3484
        %v5665 = vmul.f32 %v4559, %v3485
        %v5666 = vmul.f32 %v4563, %v3486
        %v5667 = vmul.f32 %v4567, %v3487
        %v5668 = vmul.f32 %v4571, %v3484
        %v5669 = vmul.f32 %v4575, %v3485
        %v5670 = vmul.f32 %v4579, %v3486
        %v5671 = vmul.f32 %v4583, %v3487
        %v5672 = vmul.f32 %v4587, %v3484
        %v5673 = vmul.f32 %v4591, %v3485
        %v5674 = vmul.f32 %v4595, %v3486
        %v5675 = vmul.f32 %v4599, %v3487
        %v5676 = vmul.f32 %v4603, %v3484
        %v5677 = vmul.f32 %v4607, %v3485
        %v5678 = vmul.f32 %v4611, %v3486
        %v5679 = vmul.f32 %v4615, %v3487
        %v5680 = vmul.f32 %v4619, %v3484
        %v5681 = vmul.f32 %v4623, %v3485
        %v5682 = vmul.f32 %v4627, %v3486
        %v5683 = vmul.f32 %v4631, %v3487
        %v5684 = vmul.f32 %v4635, %v3484
        %v5685 = vmul.f32 %v4639, %v3485
        %v5686 = vmul.f32 %v4643, %v3486
        %v5687 = vmul.f32 %v4647, %v3487
        %v5688 = vmul.f32 %v4651, %v3484
        %v5689 = vmul.f32 %v4655, %v3485
        %v5690 = vmul.f32 %v4659, %v3486
        %v5691 = vmul.f32 %v4663, %v3487
        %v5692 = vmul.f32 %v4667, %v3484
        %v5693 = vmul.f32 %v4671, %v3485
        %v5694 = vmul.f32 %v4675, %v3486
        %v5695 = vmul.f32 %v4679, %v3487
        %v5696 = vmul.f32 %v4683, %v3484
        %v5697 = vmul.f32 %v4687, %v3485
        %v5698 = vmul.f32 %v4691, %v3486
        %v5699 = vmul.f32 %v4695, %v3487
        %v5700 = vmul.f32 %v4699, %v3484
        %v5701 = vmul.f32 %v4703, %v3485
        %v5702 = vmul.f32 %v4707, %v3486
        %v5703 = vmul.f32 %v4711, %v3487
        %v5704 = vmul.f32 %v4715, %v3484
        %v5705 = vmul.f32 %v4719, %v3485
        %v5706 = vmul.f32 %v4723, %v3486
        %v5707 = vmul.f32 %v4727, %v3487
        %v5708 = vmul.f32 %v4731, %v3484
        %v5709 = vmul.f32 %v4735, %v3485
        %v5710 = vmul.f32 %v4739, %v3486
        %v5711 = vmul.f32 %v4743, %v3487
        %v5712 = vmul.f32 %v4747, %v3484
        %v5713 = vmul.f32 %v4751, %v3485
        %v5714 = vmul.f32 %v4755, %v3486
        %v5715 = vmul.f32 %v4759, %v3487
        %v5716 = vmul.f32 %v4763, %v3484
        %v5717 = vmul.f32 %v4767, %v3485
        %v5718 = vmul.f32 %v4771, %v3486
        %v5719 = vmul.f32 %v4775, %v3487
        %v5720 = vmul.f32 %v4779, %v3484
        %v5721 = vmul.f32 %v4783, %v3485
        %v5722 = vmul.f32 %v4787, %v3486
        %v5723 = vmul.f32 %v4791, %v3487
        %v5724 = vmul.f32 %v4795, %v3484
        %v5725 = vmul.f32 %v4799, %v3485
        %v5726 = vmul.f32 %v4803, %v3486
        %v5727 = vmul.f32 %v4807, %v3487
        %v5728 = vmul.f32 %v4811, %v3484
        %v5729 = vmul.f32 %v4815, %v3485
        %v5730 = vmul.f32 %v4819, %v3486
        %v5731 = vmul.f32 %v4823, %v3487
        %v5732 = vmul.f32 %v4827, %v3484
        %v5733 = vmul.f32 %v4831, %v3485
        %v5734 = vmul.f32 %v4835, %v3486
        %v5735 = vmul.f32 %v4839, %v3487
        %v5736 = vmul.f32 %v4843, %v3484
        %v5737 = vmul.f32 %v4847, %v3485
        %v5738 = vmul.f32 %v4851, %v3486
        %v5739 = vmul.f32 %v4855, %v3487
        %v5740 = vmul.f32 %v4859, %v3484
        %v5741 = vmul.f32 %v4863, %v3485
        %v5742 = vmul.f32 %v4867, %v3486
        %v5743 = vmul.f32 %v4871, %v3487
        %v5744 = vmul.f32 %v4875, %v3484
        %v5745 = vmul.f32 %v4879, %v3485
        %v5746 = vmul.f32 %v4883, %v3486
        %v5747 = vmul.f32 %v4887, %v3487
        %v5748 = vmul.f32 %v4891, %v3484
        %v5749 = vmul.f32 %v4895, %v3485
        %v5750 = vmul.f32 %v4899, %v3486
        %v5751 = vmul.f32 %v4903, %v3487
        %v5752 = vmul.f32 %v4907, %v3484
        %v5753 = vmul.f32 %v4911, %v3485
        %v5754 = vmul.f32 %v4915, %v3486
        %v5755 = vmul.f32 %v4919, %v3487
        %v5756 = vmul.f32 %v4923, %v3484
        %v5757 = vmul.f32 %v4927, %v3485
        %v5758 = vmul.f32 %v4931, %v3486
        %v5759 = vmul.f32 %v4935, %v3487
        %v5760 = vmul.f32 %v4939, %v3484
        %v5761 = vmul.f32 %v4943, %v3485
        %v5762 = vmul.f32 %v4947, %v3486
        %v5763 = vmul.f32 %v4951, %v3487
        %v5764 = vmul.f32 %v4955, %v3484
        %v5765 = vmul.f32 %v4959, %v3485
        %v5766 = vmul.f32 %v4963, %v3486
        %v5767 = vmul.f32 %v4967, %v3487
        %v5768 = vmul.f32 %v4971, %v3484
        %v5769 = vmul.f32 %v4975, %v3485
        %v5770 = vmul.f32 %v4979, %v3486
        %v5771 = vmul.f32 %v4983, %v3487
        %v5772 = vmul.f32 %v4987, %v3484
        %v5773 = vmul.f32 %v4991, %v3485
        %v5774 = vmul.f32 %v4995, %v3486
        %v5775 = vmul.f32 %v4999, %v3487
        %v5776 = vmul.f32 %v5003, %v3484
        %v5777 = vmul.f32 %v5007, %v3485
        %v5778 = vmul.f32 %v5011, %v3486
        %v5779 = vmul.f32 %v5015, %v3487
        %v5780 = vmul.f32 %v5019, %v3484
        %v5781 = vmul.f32 %v5023, %v3485
        %v5782 = vmul.f32 %v5027, %v3486
        %v5783 = vmul.f32 %v5031, %v3487
        %v5784 = vmul.f32 %v5035, %v3484
        %v5785 = vmul.f32 %v5039, %v3485
        %v5786 = vmul.f32 %v5043, %v3486
        %v5787 = vmul.f32 %v5047, %v3487
        %v5788 = vmul.f32 %v5051, %v3484
        %v5789 = vmul.f32 %v5055, %v3485
        %v5790 = vmul.f32 %v5059, %v3486
        %v5791 = vmul.f32 %v5063, %v3487
        %v5792 = vmul.f32 %v5067, %v3484
        %v5793 = vmul.f32 %v5071, %v3485
        %v5794 = vmul.f32 %v5075, %v3486
        %v5795 = vmul.f32 %v5079, %v3487
        %v5796 = vmul.f32 %v5083, %v3484
        %v5797 = vmul.f32 %v5087, %v3485
        %v5798 = vmul.f32 %v5091, %v3486
        %v5799 = vmul.f32 %v5095, %v3487
        %v5800 = vmul.f32 %v5099, %v3484
        %v5801 = vmul.f32 %v5103, %v3485
        %v5802 = vmul.f32 %v5107, %v3486
        %v5803 = vmul.f32 %v5111, %v3487
        %v5804 = vmul.f32 %v5115, %v3484
        %v5805 = vmul.f32 %v5119, %v3485
        %v5806 = vmul.f32 %v5123, %v3486
        %v5807 = vmul.f32 %v5127, %v3487
        %v5808 = vmul.f32 %v5131, %v3484
        %v5809 = vmul.f32 %v5135, %v3485
        %v5810 = vmul.f32 %v5139, %v3486
        %v5811 = vmul.f32 %v5143, %v3487
        %v5812 = vmul.f32 %v5147, %v3484
        %v5813 = vmul.f32 %v5151, %v3485
        %v5814 = vmul.f32 %v5155, %v3486
        %v5815 = vmul.f32 %v5159, %v3487
        %v5816 = vmul.f32 %v5163, %v3484
        %v5817 = vmul.f32 %v5167, %v3485
        %v5818 = vmul.f32 %v5171, %v3486
        %v5819 = vmul.f32 %v5175, %v3487
        %v5820 = vmul.f32 %v5179, %v3484
        %v5821 = vmul.f32 %v5183, %v3485
        %v5822 = vmul.f32 %v5187, %v3486
        %v5823 = vmul.f32 %v5191, %v3487
        %v5824 = vmul.f32 %v5195, %v3484
        %v5825 = vmul.f32 %v5199, %v3485
        %v5826 = vmul.f32 %v5203, %v3486
        %v5827 = vmul.f32 %v5207, %v3487
        %v5828 = vmul.f32 %v5211, %v3484
        %v5829 = vmul.f32 %v5215, %v3485
        %v5830 = vmul.f32 %v5219, %v3486
        %v5831 = vmul.f32 %v5223, %v3487
        %v5832 = vmul.f32 %v5227, %v3484
        %v5833 = vmul.f32 %v5231, %v3485
        %v5834 = vmul.f32 %v5235, %v3486
        %v5835 = vmul.f32 %v5239, %v3487
        %v5836 = vmul.f32 %v5243, %v3484
        %v5837 = vmul.f32 %v5247, %v3485
        %v5838 = vmul.f32 %v5251, %v3486
        %v5839 = vmul.f32 %v5255, %v3487
        %v5840 = vmul.f32 %v5259, %v3484
        %v5841 = vmul.f32 %v5263, %v3485
        %v5842 = vmul.f32 %v5267, %v3486
        %v5843 = vmul.f32 %v5271, %v3487
        %v5844 = vmul.f32 %v5275, %v3484
        %v5845 = vmul.f32 %v5279, %v3485
        %v5846 = vmul.f32 %v5283, %v3486
        %v5847 = vmul.f32 %v5287, %v3487
        %v5848 = vmul.f32 %v5291, %v3484
        %v5849 = vmul.f32 %v5295, %v3485
        %v5850 = vmul.f32 %v5299, %v3486
        %v5851 = vmul.f32 %v5303, %v3487
        %v5852 = vmul.f32 %v5307, %v3484
        %v5853 = vmul.f32 %v5311, %v3485
        %v5854 = vmul.f32 %v5315, %v3486
        %v5855 = vmul.f32 %v5319, %v3487
        %v5856 = vmul.f32 %v5323, %v3484
        %v5857 = vmul.f32 %v5327, %v3485
        %v5858 = vmul.f32 %v5331, %v3486
        %v5859 = vmul.f32 %v5335, %v3487
        %v5860 = vmul.f32 %v5339, %v3484
        %v5861 = vmul.f32 %v5343, %v3485
        %v5862 = vmul.f32 %v5347, %v3486
        %v5863 = vmul.f32 %v5351, %v3487
        %v5864 = vpack.c.bf16 %v5612, %v5608
        %v5865 = vpack.c.bf16 %v5613, %v5609
        %v5866 = vpack.c.bf16 %v5614, %v5610
        %v5867 = vpack.c.bf16 %v5615, %v5611
        %v5868 = vpack.c.bf16 %v5620, %v5616
        %v5869 = vpack.c.bf16 %v5621, %v5617
        %v5870 = vpack.c.bf16 %v5622, %v5618
        %v5871 = vpack.c.bf16 %v5623, %v5619
        %v5872 = vpack.c.bf16 %v5628, %v5624
        %v5873 = vpack.c.bf16 %v5629, %v5625
        %v5874 = vpack.c.bf16 %v5630, %v5626
        %v5875 = vpack.c.bf16 %v5631, %v5627
        %v5876 = vpack.c.bf16 %v5636, %v5632
        %v5877 = vpack.c.bf16 %v5637, %v5633
        %v5878 = vpack.c.bf16 %v5638, %v5634
        %v5879 = vpack.c.bf16 %v5639, %v5635
        %v5880 = vpack.c.bf16 %v5644, %v5640
        %v5881 = vpack.c.bf16 %v5645, %v5641
        %v5882 = vpack.c.bf16 %v5646, %v5642
        %v5883 = vpack.c.bf16 %v5647, %v5643
        %v5884 = vpack.c.bf16 %v5652, %v5648
        %v5885 = vpack.c.bf16 %v5653, %v5649
        %v5886 = vpack.c.bf16 %v5654, %v5650
        %v5887 = vpack.c.bf16 %v5655, %v5651
        %v5888 = vpack.c.bf16 %v5660, %v5656
        %v5889 = vpack.c.bf16 %v5661, %v5657
        %v5890 = vpack.c.bf16 %v5662, %v5658
        %v5891 = vpack.c.bf16 %v5663, %v5659
        %v5892 = vpack.c.bf16 %v5668, %v5664
        %v5893 = vpack.c.bf16 %v5669, %v5665
        %v5894 = vpack.c.bf16 %v5670, %v5666
        %v5895 = vpack.c.bf16 %v5671, %v5667
        %v5896 = vpack.c.bf16 %v5676, %v5672
        %v5897 = vpack.c.bf16 %v5677, %v5673
        %v5898 = vpack.c.bf16 %v5678, %v5674
        %v5899 = vpack.c.bf16 %v5679, %v5675
        %v5900 = vpack.c.bf16 %v5684, %v5680
        %v5901 = vpack.c.bf16 %v5685, %v5681
        %v5902 = vpack.c.bf16 %v5686, %v5682
        %v5903 = vpack.c.bf16 %v5687, %v5683
        %v5904 = vpack.c.bf16 %v5692, %v5688
        %v5905 = vpack.c.bf16 %v5693, %v5689
        %v5906 = vpack.c.bf16 %v5694, %v5690
        %v5907 = vpack.c.bf16 %v5695, %v5691
        %v5908 = vpack.c.bf16 %v5700, %v5696
        %v5909 = vpack.c.bf16 %v5701, %v5697
        %v5910 = vpack.c.bf16 %v5702, %v5698
        %v5911 = vpack.c.bf16 %v5703, %v5699
        %v5912 = vpack.c.bf16 %v5708, %v5704
        %v5913 = vpack.c.bf16 %v5709, %v5705
        %v5914 = vpack.c.bf16 %v5710, %v5706
        %v5915 = vpack.c.bf16 %v5711, %v5707
        %v5916 = vpack.c.bf16 %v5716, %v5712
        %v5917 = vpack.c.bf16 %v5717, %v5713
        %v5918 = vpack.c.bf16 %v5718, %v5714
        %v5919 = vpack.c.bf16 %v5719, %v5715
        %v5920 = vpack.c.bf16 %v5724, %v5720
        %v5921 = vpack.c.bf16 %v5725, %v5721
        %v5922 = vpack.c.bf16 %v5726, %v5722
        %v5923 = vpack.c.bf16 %v5727, %v5723
        %v5924 = vpack.c.bf16 %v5732, %v5728
        %v5925 = vpack.c.bf16 %v5733, %v5729
        %v5926 = vpack.c.bf16 %v5734, %v5730
        %v5927 = vpack.c.bf16 %v5735, %v5731
        %v5928 = vpack.c.bf16 %v5740, %v5736
        %v5929 = vpack.c.bf16 %v5741, %v5737
        %v5930 = vpack.c.bf16 %v5742, %v5738
        %v5931 = vpack.c.bf16 %v5743, %v5739
        %v5932 = vpack.c.bf16 %v5748, %v5744
        %v5933 = vpack.c.bf16 %v5749, %v5745
        %v5934 = vpack.c.bf16 %v5750, %v5746
        %v5935 = vpack.c.bf16 %v5751, %v5747
        %v5936 = vpack.c.bf16 %v5756, %v5752
        %v5937 = vpack.c.bf16 %v5757, %v5753
        %v5938 = vpack.c.bf16 %v5758, %v5754
        %v5939 = vpack.c.bf16 %v5759, %v5755
        %v5940 = vpack.c.bf16 %v5764, %v5760
        %v5941 = vpack.c.bf16 %v5765, %v5761
        %v5942 = vpack.c.bf16 %v5766, %v5762
        %v5943 = vpack.c.bf16 %v5767, %v5763
        %v5944 = vpack.c.bf16 %v5772, %v5768
        %v5945 = vpack.c.bf16 %v5773, %v5769
        %v5946 = vpack.c.bf16 %v5774, %v5770
        %v5947 = vpack.c.bf16 %v5775, %v5771
        %v5948 = vpack.c.bf16 %v5780, %v5776
        %v5949 = vpack.c.bf16 %v5781, %v5777
        %v5950 = vpack.c.bf16 %v5782, %v5778
        %v5951 = vpack.c.bf16 %v5783, %v5779
        %v5952 = vpack.c.bf16 %v5788, %v5784
        %v5953 = vpack.c.bf16 %v5789, %v5785
        %v5954 = vpack.c.bf16 %v5790, %v5786
        %v5955 = vpack.c.bf16 %v5791, %v5787
        %v5956 = vpack.c.bf16 %v5796, %v5792
        %v5957 = vpack.c.bf16 %v5797, %v5793
        %v5958 = vpack.c.bf16 %v5798, %v5794
        %v5959 = vpack.c.bf16 %v5799, %v5795
        %v5960 = vpack.c.bf16 %v5804, %v5800
        %v5961 = vpack.c.bf16 %v5805, %v5801
        %v5962 = vpack.c.bf16 %v5806, %v5802
        %v5963 = vpack.c.bf16 %v5807, %v5803
        %v5964 = vpack.c.bf16 %v5812, %v5808
        %v5965 = vpack.c.bf16 %v5813, %v5809
        %v5966 = vpack.c.bf16 %v5814, %v5810
        %v5967 = vpack.c.bf16 %v5815, %v5811
        %v5968 = vpack.c.bf16 %v5820, %v5816
        %v5969 = vpack.c.bf16 %v5821, %v5817
        %v5970 = vpack.c.bf16 %v5822, %v5818
        %v5971 = vpack.c.bf16 %v5823, %v5819
        %v5972 = vpack.c.bf16 %v5828, %v5824
        %v5973 = vpack.c.bf16 %v5829, %v5825
        %v5974 = vpack.c.bf16 %v5830, %v5826
        %v5975 = vpack.c.bf16 %v5831, %v5827
        %v5976 = vpack.c.bf16 %v5836, %v5832
        %v5977 = vpack.c.bf16 %v5837, %v5833
        %v5978 = vpack.c.bf16 %v5838, %v5834
        %v5979 = vpack.c.bf16 %v5839, %v5835
        %v5980 = vpack.c.bf16 %v5844, %v5840
        %v5981 = vpack.c.bf16 %v5845, %v5841
        %v5982 = vpack.c.bf16 %v5846, %v5842
        %v5983 = vpack.c.bf16 %v5847, %v5843
        %v5984 = vpack.c.bf16 %v5852, %v5848
        %v5985 = vpack.c.bf16 %v5853, %v5849
        %v5986 = vpack.c.bf16 %v5854, %v5850
        %v5987 = vpack.c.bf16 %v5855, %v5851
        %v5988 = vpack.c.bf16 %v5860, %v5856
        %v5989 = vpack.c.bf16 %v5861, %v5857
        %v5990 = vpack.c.bf16 %v5862, %v5858
        %v5991 = vpack.c.bf16 %v5863, %v5859
        %v5992 = vld [vmem:[#allocation5] sm:$0x22]
        %v5993 = vld [vmem:[#allocation5 + $0x8] sm:$0x22]
        %v5996 = vunpack.c.l.b16 %v5992
        %v5997 = vunpack.c.h.b16 %v5992
        %v5998 = vunpack.c.l.b16 %v5993
        %v5999 = vunpack.c.h.b16 %v5993
        %v6000 = vpack.c.b16 %v5996, %v5996
        %v6001 = vpack.c.b16 %v5997, %v5997
        %v6002 = vpack.c.b16 %v5998, %v5998
        %v6003 = vpack.c.b16 %v5999, %v5999
        %v6004 = vrot.slane %v6000, 1
        %v6005 = vrot.slane %v6001, 1
        %v6006 = vrot.slane %v6002, 1
        %v6007 = vrot.slane %v6003, 1
        %6012 = vmatprep.subr.bf16.mxu0 %v5893
        %6013 = vmatpush1.bf16.msra.mxu0 %v5892
        %6014 = vmatprep.subr.bf16.mxu0 %v5889
        %6015 = vmatpush1.bf16.msra.mxu0 %v5888
        %6016 = vmatprep.subr.bf16.mxu0 %v5885
        %6017 = vmatpush1.bf16.msra.mxu0 %v5884
        %6018 = vmatprep.subr.bf16.mxu0 %v5881
        %6019 = vmatpush1.bf16.msra.mxu0 %v5880
        %6020 = vmatprep.subr.bf16.mxu0 %v5877
        %6021 = vmatpush1.bf16.msra.mxu0 %v5876
        %6022 = vmatprep.subr.bf16.mxu0 %v5873
        %6023 = vmatpush1.bf16.msra.mxu0 %v5872
        %6024 = vmatprep.subr.bf16.mxu0 %v5869
        %6025 = vmatpush1.bf16.msra.mxu0 %v5868
        %6026 = vmatprep.subr.bf16.mxu0 %v5865
        %6027 = vmatpush1.bf16.msra.mxu0 %v5864
        %6028 = vmatprep.subr.bf16.mxu0 %v5925
        %6029 = vmatpush2.bf16.msra.mxu0 %v5924
        %6030 = vmatprep.subr.bf16.mxu0 %v5921
        %6031 = vmatpush2.bf16.msra.mxu0 %v5920
        %6032 = vmatprep.subr.bf16.mxu0 %v5917
        %6033 = vmatpush2.bf16.msra.mxu0 %v5916
        %6034 = vmatprep.subr.bf16.mxu0 %v5913
        %6035 = vmatpush2.bf16.msra.mxu0 %v5912
        %6036 = vmatprep.subr.bf16.mxu0 %v5909
        %6037 = vmatpush2.bf16.msra.mxu0 %v5908
        %6038 = vmatprep.subr.bf16.mxu0 %v5905
        %6039 = vmatpush2.bf16.msra.mxu0 %v5904
        %6040 = vmatprep.subr.bf16.mxu0 %v5901
        %6041 = vmatpush2.bf16.msra.mxu0 %v5900
        %6042 = vmatprep.subr.bf16.mxu0 %v5897
        %6043 = vmatpush2.bf16.msra.mxu0 %v5896
        %6044 = vmatprep.mubr.bf16.mxu0 %v6005
        %6045 = vmatmul.mubr.bf16.gmra.mxu0 %v6004
        %v6046 = vpop.f32.mrf.mxu0
        %v6047 = vadd.f32 0.0, %v6046
        %v6048 = vpop.f32.mrf.mxu0
        %v6049 = vadd.f32 0.0, %v6048
        %v6050 = vpop.f32.mrf.mxu0
        %v6051 = vpop.f32.mrf.mxu0
        %6052 = vdwg.mxu0
        %6053 = vmatprep.subr.bf16.mxu0 %v5957
        %6054 = vmatpush1.bf16.msra.mxu0 %v5956
        %6055 = vmatprep.subr.bf16.mxu0 %v5953
        %6056 = vmatpush1.bf16.msra.mxu0 %v5952
        %6057 = vmatprep.subr.bf16.mxu0 %v5949
        %6058 = vmatpush1.bf16.msra.mxu0 %v5948
        %6059 = vmatprep.subr.bf16.mxu0 %v5945
        %6060 = vmatpush1.bf16.msra.mxu0 %v5944
        %6061 = vmatprep.subr.bf16.mxu0 %v5941
        %6062 = vmatpush1.bf16.msra.mxu0 %v5940
        %6063 = vmatprep.subr.bf16.mxu0 %v5937
        %6064 = vmatpush1.bf16.msra.mxu0 %v5936
        %6065 = vmatprep.subr.bf16.mxu0 %v5933
        %6066 = vmatpush1.bf16.msra.mxu0 %v5932
        %6067 = vmatprep.subr.bf16.mxu0 %v5929
        %6068 = vmatpush1.bf16.msra.mxu0 %v5928
        %6069 = vmatprep.subr.bf16.mxu0 %v5989
        %6070 = vmatpush2.bf16.msra.mxu0 %v5988
        %6071 = vmatprep.subr.bf16.mxu0 %v5985
        %6072 = vmatpush2.bf16.msra.mxu0 %v5984
        %6073 = vmatprep.subr.bf16.mxu0 %v5981
        %6074 = vmatpush2.bf16.msra.mxu0 %v5980
        %6075 = vmatprep.subr.bf16.mxu0 %v5977
        %6076 = vmatpush2.bf16.msra.mxu0 %v5976
        %6077 = vmatprep.subr.bf16.mxu0 %v5973
        %6078 = vmatpush2.bf16.msra.mxu0 %v5972
        %6079 = vmatprep.subr.bf16.mxu0 %v5969
        %6080 = vmatpush2.bf16.msra.mxu0 %v5968
        %6081 = vmatprep.subr.bf16.mxu0 %v5965
        %6082 = vmatpush2.bf16.msra.mxu0 %v5964
        %6083 = vmatprep.subr.bf16.mxu0 %v5961
        %6084 = vmatpush2.bf16.msra.mxu0 %v5960
        %6085 = vmatprep.mubr.bf16.mxu0 %v6007
        %6086 = vmatmul.mubr.bf16.gmra.mxu0 %v6006
        %v6087 = vpop.f32.mrf.mxu0
        %v6088 = vadd.f32 %v6047, %v6087
        %v6089 = vpop.f32.mrf.mxu0
        %v6090 = vadd.f32 %v6049, %v6089
        %v6091 = vpop.f32.mrf.mxu0
        %v6092 = vpop.f32.mrf.mxu0
        %6093 = vdwg.mxu0
        %6094 = vmatprep.subr.bf16.mxu0 %v5895
        %6095 = vmatpush1.bf16.msra.mxu0 %v5894
        %6096 = vmatprep.subr.bf16.mxu0 %v5891
        %6097 = vmatpush1.bf16.msra.mxu0 %v5890
        %6098 = vmatprep.subr.bf16.mxu0 %v5887
        %6099 = vmatpush1.bf16.msra.mxu0 %v5886
        %6100 = vmatprep.subr.bf16.mxu0 %v5883
        %6101 = vmatpush1.bf16.msra.mxu0 %v5882
        %6102 = vmatprep.subr.bf16.mxu0 %v5879
        %6103 = vmatpush1.bf16.msra.mxu0 %v5878
        %6104 = vmatprep.subr.bf16.mxu0 %v5875
        %6105 = vmatpush1.bf16.msra.mxu0 %v5874
        %6106 = vmatprep.subr.bf16.mxu0 %v5871
        %6107 = vmatpush1.bf16.msra.mxu0 %v5870
        %6108 = vmatprep.subr.bf16.mxu0 %v5867
        %6109 = vmatpush1.bf16.msra.mxu0 %v5866
        %6110 = vmatprep.subr.bf16.mxu0 %v5927
        %6111 = vmatpush2.bf16.msra.mxu0 %v5926
        %6112 = vmatprep.subr.bf16.mxu0 %v5923
        %6113 = vmatpush2.bf16.msra.mxu0 %v5922
        %6114 = vmatprep.subr.bf16.mxu0 %v5919
        %6115 = vmatpush2.bf16.msra.mxu0 %v5918
        %6116 = vmatprep.subr.bf16.mxu0 %v5915
        %6117 = vmatpush2.bf16.msra.mxu0 %v5914
        %6118 = vmatprep.subr.bf16.mxu0 %v5911
        %6119 = vmatpush2.bf16.msra.mxu0 %v5910
        %6120 = vmatprep.subr.bf16.mxu0 %v5907
        %6121 = vmatpush2.bf16.msra.mxu0 %v5906
        %6122 = vmatprep.subr.bf16.mxu0 %v5903
        %6123 = vmatpush2.bf16.msra.mxu0 %v5902
        %6124 = vmatprep.subr.bf16.mxu0 %v5899
        %6125 = vmatpush2.bf16.msra.mxu0 %v5898
        %6126 = vmatprep.mubr.bf16.mxu0 %v6005
        %6127 = vmatmul.mubr.bf16.gmra.mxu0 %v6004
        %v6128 = vpop.f32.mrf.mxu0
        %v6129 = vadd.f32 0.0, %v6128
        %v6130 = vpop.f32.mrf.mxu0
        %v6131 = vadd.f32 0.0, %v6130
        %v6132 = vpop.f32.mrf.mxu0
        %v6133 = vpop.f32.mrf.mxu0
        %6134 = vdwg.mxu0
        %6135 = vmatprep.subr.bf16.mxu0 %v5959
        %6136 = vmatpush1.bf16.msra.mxu0 %v5958
        %6137 = vmatprep.subr.bf16.mxu0 %v5955
        %6138 = vmatpush1.bf16.msra.mxu0 %v5954
        %6139 = vmatprep.subr.bf16.mxu0 %v5951
        %6140 = vmatpush1.bf16.msra.mxu0 %v5950
        %6141 = vmatprep.subr.bf16.mxu0 %v5947
        %6142 = vmatpush1.bf16.msra.mxu0 %v5946
        %6143 = vmatprep.subr.bf16.mxu0 %v5943
        %6144 = vmatpush1.bf16.msra.mxu0 %v5942
        %6145 = vmatprep.subr.bf16.mxu0 %v5939
        %6146 = vmatpush1.bf16.msra.mxu0 %v5938
        %6147 = vmatprep.subr.bf16.mxu0 %v5935
        %6148 = vmatpush1.bf16.msra.mxu0 %v5934
        %6149 = vmatprep.subr.bf16.mxu0 %v5931
        %6150 = vmatpush1.bf16.msra.mxu0 %v5930
        %6151 = vmatprep.subr.bf16.mxu0 %v5991
        %6152 = vmatpush2.bf16.msra.mxu0 %v5990
        %6153 = vmatprep.subr.bf16.mxu0 %v5987
        %6154 = vmatpush2.bf16.msra.mxu0 %v5986
        %6155 = vmatprep.subr.bf16.mxu0 %v5983
        %6156 = vmatpush2.bf16.msra.mxu0 %v5982
        %6157 = vmatprep.subr.bf16.mxu0 %v5979
        %6158 = vmatpush2.bf16.msra.mxu0 %v5978
        %6159 = vmatprep.subr.bf16.mxu0 %v5975
        %6160 = vmatpush2.bf16.msra.mxu0 %v5974
        %6161 = vmatprep.subr.bf16.mxu0 %v5971
        %6162 = vmatpush2.bf16.msra.mxu0 %v5970
        %6163 = vmatprep.subr.bf16.mxu0 %v5967
        %6164 = vmatpush2.bf16.msra.mxu0 %v5966
        %6165 = vmatprep.subr.bf16.mxu0 %v5963
        %6166 = vmatpush2.bf16.msra.mxu0 %v5962
        %6167 = vmatprep.mubr.bf16.mxu0 %v6007
        %6168 = vmatmul.mubr.bf16.gmra.mxu0 %v6006
        %v6169 = vpop.f32.mrf.mxu0
        %v6170 = vadd.f32 %v6129, %v6169
        %v6171 = vpop.f32.mrf.mxu0
        %v6172 = vadd.f32 %v6131, %v6171
        %v6173 = vpop.f32.mrf.mxu0
        %v6174 = vpop.f32.mrf.mxu0
        %6175 = vdwg.mxu0
        %v6180 = vrot.slane %v6088, 6
        %v6181 = vrot.slane %v6090, 6
        %v6182 = vrot.slane %v6170, 6
        %v6183 = vrot.slane %v6172, 6
        %6188 = vst [vmem:[%s172] sm:$0xc] %v6180
        %6189 = vst [vmem:[%s172 + $0x8] sm:$0xc] %v6181
        %6190 = vst [vmem:[%s172 + $0x10] sm:$0xc] %v6182
        %6191 = vst [vmem:[%s172 + $0x18] sm:$0xc] %v6183
        %v6192 = vmul.f32 %v175, 10.0
        %v6193 = vmul.f32 %v177, 10.0
        %v6194 = vmul.f32 %v179, 10.0
        %v6195 = vfloor.f32 %v6192
        %v6196 = vfloor.f32 %v6193
        %v6197 = vfloor.f32 %v6194
        %v6198 = vsub.f32 %v6192, %v6195
        %v6199 = vsub.f32 %v6193, %v6196
        %v6200 = vsub.f32 %v6194, %v6197
        %v6201 = vcvt.f32.s32.to.zero.pseudo %v6195
        %v6202 = vand.u32 %v6201, 7
        %v6203 = vcvt.f32.s32.to.zero.pseudo %v6196
        %v6204 = vand.u32 %v6203, 7
        %v6205 = vcvt.f32.s32.to.zero.pseudo %v6197
        %v6206 = vand.u32 %v6205, 7
        %v6207 = vceil.f32 %v6192
        %v6208 = vcvt.f32.s32.to.zero.pseudo %v6207
        %v6209 = vand.u32 %v6208, 7
        %v6210 = vceil.f32 %v6193
        %v6211 = vcvt.f32.s32.to.zero.pseudo %v6210
        %v6212 = vand.u32 %v6211, 7
        %v6213 = vceil.f32 %v6194
        %v6214 = vcvt.f32.s32.to.zero.pseudo %v6213
        %v6215 = vand.u32 %v6214, 7
        %v6216 = vlaneseq
        %v6217 = vshrl.u32 %v6216, 7
        %v6218 = vsub.s32 0, %v6217
        %v6219 = vrot.slane %v6202, %v6218
        %v6220 = vlaneseq
        %v6221 = vshrl.u32 %v6220, 7
        %v6222 = vsub.s32 1, %v6221
        %v6223 = vrot.slane %v6202, %v6222
        %v6224 = vlaneseq
        %v6225 = vshrl.u32 %v6224, 7
        %v6226 = vsub.s32 2, %v6225
        %v6227 = vrot.slane %v6202, %v6226
        %v6228 = vlaneseq
        %v6229 = vshrl.u32 %v6228, 7
        %v6230 = vsub.s32 3, %v6229
        %v6231 = vrot.slane %v6202, %v6230
        %vm6232 = vcmp.eq.s32.totalorder %v181, %v6219
        %vm6233 = vcmp.eq.s32.totalorder %v181, %v6223
        %vm6234 = vcmp.eq.s32.totalorder %v181, %v6227
        %vm6235 = vcmp.eq.s32.totalorder %v181, %v6231
        %v6236 = vsub.f32 1.0, %v6198
        %v6238 = vlaneseq
        %v6239 = vshrl.u32 %v6238, 7
        %v6240 = vsub.s32 0, %v6239
        %v6241 = vrot.slane %v6236, %v6240
        %v6242 = vlaneseq
        %v6243 = vshrl.u32 %v6242, 7
        %v6244 = vsub.s32 1, %v6243
        %v6245 = vrot.slane %v6236, %v6244
        %v6246 = vlaneseq
        %v6247 = vshrl.u32 %v6246, 7
        %v6248 = vsub.s32 2, %v6247
        %v6249 = vrot.slane %v6236, %v6248
        %v6250 = vlaneseq
        %v6251 = vshrl.u32 %v6250, 7
        %v6252 = vsub.s32 3, %v6251
        %v6253 = vrot.slane %v6236, %v6252
        %v6258 = vsel %vm6232, %v6241, 0.0
        %v6259 = vsel %vm6233, %v6245, 0.0
        %v6260 = vsel %vm6234, %v6249, 0.0
        %v6261 = vsel %vm6235, %v6253, 0.0
        %v6262 = vlaneseq
        %v6263 = vshrl.u32 %v6262, 7
        %v6264 = vsub.s32 0, %v6263
        %v6265 = vrot.slane %v6209, %v6264
        %v6266 = vlaneseq
        %v6267 = vshrl.u32 %v6266, 7
        %v6268 = vsub.s32 1, %v6267
        %v6269 = vrot.slane %v6209, %v6268
        %v6270 = vlaneseq
        %v6271 = vshrl.u32 %v6270, 7
        %v6272 = vsub.s32 2, %v6271
        %v6273 = vrot.slane %v6209, %v6272
        %v6274 = vlaneseq
        %v6275 = vshrl.u32 %v6274, 7
        %v6276 = vsub.s32 3, %v6275
        %v6277 = vrot.slane %v6209, %v6276
        %vm6278 = vcmp.eq.s32.totalorder %v181, %v6265
        %vm6279 = vcmp.eq.s32.totalorder %v181, %v6269
        %vm6280 = vcmp.eq.s32.totalorder %v181, %v6273
        %vm6281 = vcmp.eq.s32.totalorder %v181, %v6277
        %v6283 = vlaneseq
        %v6284 = vshrl.u32 %v6283, 7
        %v6285 = vsub.s32 0, %v6284
        %v6286 = vrot.slane %v6198, %v6285
        %v6287 = vlaneseq
        %v6288 = vshrl.u32 %v6287, 7
        %v6289 = vsub.s32 1, %v6288
        %v6290 = vrot.slane %v6198, %v6289
        %v6291 = vlaneseq
        %v6292 = vshrl.u32 %v6291, 7
        %v6293 = vsub.s32 2, %v6292
        %v6294 = vrot.slane %v6198, %v6293
        %v6295 = vlaneseq
        %v6296 = vshrl.u32 %v6295, 7
        %v6297 = vsub.s32 3, %v6296
        %v6298 = vrot.slane %v6198, %v6297
        %v6303 = vsel %vm6278, %v6286, 0.0
        %v6304 = vsel %vm6279, %v6290, 0.0
        %v6305 = vsel %vm6280, %v6294, 0.0
        %v6306 = vsel %vm6281, %v6298, 0.0
        %v6307 = vadd.f32 %v6258, %v6303
        %v6308 = vadd.f32 %v6259, %v6304
        %v6309 = vadd.f32 %v6260, %v6305
        %v6310 = vadd.f32 %v6261, %v6306
        %v6311 = vlaneseq
        %v6312 = vshrl.u32 %v6311, 7
        %v6313 = vsub.s32 0, %v6312
        %v6314 = vrot.slane %v6204, %v6313
        %v6315 = vlaneseq
        %v6316 = vshrl.u32 %v6315, 7
        %v6317 = vsub.s32 1, %v6316
        %v6318 = vrot.slane %v6204, %v6317
        %v6319 = vlaneseq
        %v6320 = vshrl.u32 %v6319, 7
        %v6321 = vsub.s32 2, %v6320
        %v6322 = vrot.slane %v6204, %v6321
        %v6323 = vlaneseq
        %v6324 = vshrl.u32 %v6323, 7
        %v6325 = vsub.s32 3, %v6324
        %v6326 = vrot.slane %v6204, %v6325
        %vm6327 = vcmp.eq.s32.totalorder %v181, %v6314
        %vm6328 = vcmp.eq.s32.totalorder %v181, %v6318
        %vm6329 = vcmp.eq.s32.totalorder %v181, %v6322
        %vm6330 = vcmp.eq.s32.totalorder %v181, %v6326
        %v6331 = vsub.f32 1.0, %v6199
        %v6333 = vlaneseq
        %v6334 = vshrl.u32 %v6333, 7
        %v6335 = vsub.s32 0, %v6334
        %v6336 = vrot.slane %v6331, %v6335
        %v6337 = vlaneseq
        %v6338 = vshrl.u32 %v6337, 7
        %v6339 = vsub.s32 1, %v6338
        %v6340 = vrot.slane %v6331, %v6339
        %v6341 = vlaneseq
        %v6342 = vshrl.u32 %v6341, 7
        %v6343 = vsub.s32 2, %v6342
        %v6344 = vrot.slane %v6331, %v6343
        %v6345 = vlaneseq
        %v6346 = vshrl.u32 %v6345, 7
        %v6347 = vsub.s32 3, %v6346
        %v6348 = vrot.slane %v6331, %v6347
        %v6353 = vsel %vm6327, %v6336, 0.0
        %v6354 = vsel %vm6328, %v6340, 0.0
        %v6355 = vsel %vm6329, %v6344, 0.0
        %v6356 = vsel %vm6330, %v6348, 0.0
        %v6357 = vlaneseq
        %v6358 = vshrl.u32 %v6357, 7
        %v6359 = vsub.s32 0, %v6358
        %v6360 = vrot.slane %v6212, %v6359
        %v6361 = vlaneseq
        %v6362 = vshrl.u32 %v6361, 7
        %v6363 = vsub.s32 1, %v6362
        %v6364 = vrot.slane %v6212, %v6363
        %v6365 = vlaneseq
        %v6366 = vshrl.u32 %v6365, 7
        %v6367 = vsub.s32 2, %v6366
        %v6368 = vrot.slane %v6212, %v6367
        %v6369 = vlaneseq
        %v6370 = vshrl.u32 %v6369, 7
        %v6371 = vsub.s32 3, %v6370
        %v6372 = vrot.slane %v6212, %v6371
        %vm6373 = vcmp.eq.s32.totalorder %v181, %v6360
        %vm6374 = vcmp.eq.s32.totalorder %v181, %v6364
        %vm6375 = vcmp.eq.s32.totalorder %v181, %v6368
        %vm6376 = vcmp.eq.s32.totalorder %v181, %v6372
        %v6378 = vlaneseq
        %v6379 = vshrl.u32 %v6378, 7
        %v6380 = vsub.s32 0, %v6379
        %v6381 = vrot.slane %v6199, %v6380
        %v6382 = vlaneseq
        %v6383 = vshrl.u32 %v6382, 7
        %v6384 = vsub.s32 1, %v6383
        %v6385 = vrot.slane %v6199, %v6384
        %v6386 = vlaneseq
        %v6387 = vshrl.u32 %v6386, 7
        %v6388 = vsub.s32 2, %v6387
        %v6389 = vrot.slane %v6199, %v6388
        %v6390 = vlaneseq
        %v6391 = vshrl.u32 %v6390, 7
        %v6392 = vsub.s32 3, %v6391
        %v6393 = vrot.slane %v6199, %v6392
        %v6398 = vsel %vm6373, %v6381, 0.0
        %v6399 = vsel %vm6374, %v6385, 0.0
        %v6400 = vsel %vm6375, %v6389, 0.0
        %v6401 = vsel %vm6376, %v6393, 0.0
        %v6402 = vadd.f32 %v6353, %v6398
        %v6403 = vadd.f32 %v6354, %v6399
        %v6404 = vadd.f32 %v6355, %v6400
        %v6405 = vadd.f32 %v6356, %v6401
        %v6406 = vlaneseq
        %v6407 = vshrl.u32 %v6406, 7
        %v6408 = vsub.s32 0, %v6407
        %v6409 = vrot.slane %v6206, %v6408
        %v6410 = vlaneseq
        %v6411 = vshrl.u32 %v6410, 7
        %v6412 = vsub.s32 1, %v6411
        %v6413 = vrot.slane %v6206, %v6412
        %v6414 = vlaneseq
        %v6415 = vshrl.u32 %v6414, 7
        %v6416 = vsub.s32 2, %v6415
        %v6417 = vrot.slane %v6206, %v6416
        %v6418 = vlaneseq
        %v6419 = vshrl.u32 %v6418, 7
        %v6420 = vsub.s32 3, %v6419
        %v6421 = vrot.slane %v6206, %v6420
        %vm6422 = vcmp.eq.s32.totalorder %v181, %v6409
        %vm6423 = vcmp.eq.s32.totalorder %v181, %v6413
        %vm6424 = vcmp.eq.s32.totalorder %v181, %v6417
        %vm6425 = vcmp.eq.s32.totalorder %v181, %v6421
        %v6426 = vsub.f32 1.0, %v6200
        %v6428 = vlaneseq
        %v6429 = vshrl.u32 %v6428, 7
        %v6430 = vsub.s32 0, %v6429
        %v6431 = vrot.slane %v6426, %v6430
        %v6432 = vlaneseq
        %v6433 = vshrl.u32 %v6432, 7
        %v6434 = vsub.s32 1, %v6433
        %v6435 = vrot.slane %v6426, %v6434
        %v6436 = vlaneseq
        %v6437 = vshrl.u32 %v6436, 7
        %v6438 = vsub.s32 2, %v6437
        %v6439 = vrot.slane %v6426, %v6438
        %v6440 = vlaneseq
        %v6441 = vshrl.u32 %v6440, 7
        %v6442 = vsub.s32 3, %v6441
        %v6443 = vrot.slane %v6426, %v6442
        %v6448 = vsel %vm6422, %v6431, 0.0
        %v6449 = vsel %vm6423, %v6435, 0.0
        %v6450 = vsel %vm6424, %v6439, 0.0
        %v6451 = vsel %vm6425, %v6443, 0.0
        %v6452 = vlaneseq
        %v6453 = vshrl.u32 %v6452, 7
        %v6454 = vsub.s32 0, %v6453
        %v6455 = vrot.slane %v6215, %v6454
        %v6456 = vlaneseq
        %v6457 = vshrl.u32 %v6456, 7
        %v6458 = vsub.s32 1, %v6457
        %v6459 = vrot.slane %v6215, %v6458
        %v6460 = vlaneseq
        %v6461 = vshrl.u32 %v6460, 7
        %v6462 = vsub.s32 2, %v6461
        %v6463 = vrot.slane %v6215, %v6462
        %v6464 = vlaneseq
        %v6465 = vshrl.u32 %v6464, 7
        %v6466 = vsub.s32 3, %v6465
        %v6467 = vrot.slane %v6215, %v6466
        %vm6468 = vcmp.eq.s32.totalorder %v181, %v6455
        %vm6469 = vcmp.eq.s32.totalorder %v181, %v6459
        %vm6470 = vcmp.eq.s32.totalorder %v181, %v6463
        %vm6471 = vcmp.eq.s32.totalorder %v181, %v6467
        %v6473 = vlaneseq
        %v6474 = vshrl.u32 %v6473, 7
        %v6475 = vsub.s32 0, %v6474
        %v6476 = vrot.slane %v6200, %v6475
        %v6477 = vlaneseq
        %v6478 = vshrl.u32 %v6477, 7
        %v6479 = vsub.s32 1, %v6478
        %v6480 = vrot.slane %v6200, %v6479
        %v6481 = vlaneseq
        %v6482 = vshrl.u32 %v6481, 7
        %v6483 = vsub.s32 2, %v6482
        %v6484 = vrot.slane %v6200, %v6483
        %v6485 = vlaneseq
        %v6486 = vshrl.u32 %v6485, 7
        %v6487 = vsub.s32 3, %v6486
        %v6488 = vrot.slane %v6200, %v6487
        %v6493 = vsel %vm6468, %v6476, 0.0
        %v6494 = vsel %vm6469, %v6480, 0.0
        %v6495 = vsel %vm6470, %v6484, 0.0
        %v6496 = vsel %vm6471, %v6488, 0.0
        %v6497 = vadd.f32 %v6448, %v6493
        %v6498 = vadd.f32 %v6449, %v6494
        %v6499 = vadd.f32 %v6450, %v6495
        %v6500 = vadd.f32 %v6451, %v6496
        %v6505 = vcombine.low %v6307, %v6308
        %v6506 = vcombine.high %v6307, %v6308
        %v6507 = vcombine.low %v6309, %v6310
        %v6508 = vcombine.high %v6309, %v6310
        %v6510 = vunpack.c.l.s4 1966171168
        %v6511 = vunpack.c.0.s8 %v6510
        %v6512 = vlaneseq
        %v6513 = vshrl.u32 %v6512, 7
        %v6514 = vsub.s32 %v6511, %v6513
        %v6515 = vrot.slane %v6505, %v6514
        %v6517 = vunpack.c.l.s4 1966171168
        %v6518 = vunpack.c.0.s8 %v6517
        %v6519 = vlaneseq
        %v6520 = vshrl.u32 %v6519, 7
        %v6521 = vsub.s32 %v6518, %v6520
        %v6522 = vrot.slane %v6506, %v6521
        %v6524 = vunpack.c.l.s4 1966171168
        %v6525 = vunpack.c.0.s8 %v6524
        %v6526 = vlaneseq
        %v6527 = vshrl.u32 %v6526, 7
        %v6528 = vsub.s32 %v6525, %v6527
        %v6529 = vrot.slane %v6507, %v6528
        %v6531 = vunpack.c.l.s4 1966171168
        %v6532 = vunpack.c.0.s8 %v6531
        %v6533 = vlaneseq
        %v6534 = vshrl.u32 %v6533, 7
        %v6535 = vsub.s32 %v6532, %v6534
        %v6536 = vrot.slane %v6508, %v6535
        %v6537 = vcombine.low %v6515, %v6529
        %v6538 = vcombine.high %v6515, %v6529
        %v6539 = vcombine.low %v6522, %v6536
        %v6540 = vcombine.high %v6522, %v6536
        %v6542 = vunpack.c.l.s4 1966171168
        %v6543 = vunpack.c.0.s8 %v6542
        %v6544 = vlaneseq
        %v6545 = vshrl.u32 %v6544, 7
        %v6546 = vsub.s32 %v6543, %v6545
        %v6547 = vrot.slane %v6537, %v6546
        %v6549 = vunpack.c.l.s4 1966171168
        %v6550 = vunpack.c.0.s8 %v6549
        %v6551 = vlaneseq
        %v6552 = vshrl.u32 %v6551, 7
        %v6553 = vsub.s32 %v6550, %v6552
        %v6554 = vrot.slane %v6539, %v6553
        %v6556 = vunpack.c.l.s4 1966171168
        %v6557 = vunpack.c.0.s8 %v6556
        %v6558 = vlaneseq
        %v6559 = vshrl.u32 %v6558, 7
        %v6560 = vsub.s32 %v6557, %v6559
        %v6561 = vrot.slane %v6538, %v6560
        %v6563 = vunpack.c.l.s4 1966171168
        %v6564 = vunpack.c.0.s8 %v6563
        %v6565 = vlaneseq
        %v6566 = vshrl.u32 %v6565, 7
        %v6567 = vsub.s32 %v6564, %v6566
        %v6568 = vrot.slane %v6540, %v6567
        %v6569 = vcombine.high %v6547, %v6547
        %v6570 = vcombine.high %v6554, %v6554
        %v6571 = vcombine.high %v6561, %v6561
        %v6572 = vcombine.high %v6568, %v6568
        %v6573 = vlaneseq
        %v6574 = vshrl.u32 %v6573, 7
        %v6575 = vsub.s32 0, %v6574
        %v6576 = vrot.slane %v6547, %v6575
        %v6577 = vlaneseq
        %v6578 = vshrl.u32 %v6577, 7
        %v6579 = vsub.s32 1, %v6578
        %v6580 = vrot.slane %v6547, %v6579
        %v6581 = vlaneseq
        %v6582 = vshrl.u32 %v6581, 7
        %v6583 = vsub.s32 2, %v6582
        %v6584 = vrot.slane %v6547, %v6583
        %v6585 = vlaneseq
        %v6586 = vshrl.u32 %v6585, 7
        %v6587 = vsub.s32 3, %v6586
        %v6588 = vrot.slane %v6547, %v6587
        %v6589 = vlaneseq
        %v6590 = vshrl.u32 %v6589, 7
        %v6591 = vsub.s32 0, %v6590
        %v6592 = vrot.slane %v6561, %v6591
        %v6593 = vlaneseq
        %v6594 = vshrl.u32 %v6593, 7
        %v6595 = vsub.s32 1, %v6594
        %v6596 = vrot.slane %v6561, %v6595
        %v6597 = vlaneseq
        %v6598 = vshrl.u32 %v6597, 7
        %v6599 = vsub.s32 2, %v6598
        %v6600 = vrot.slane %v6561, %v6599
        %v6601 = vlaneseq
        %v6602 = vshrl.u32 %v6601, 7
        %v6603 = vsub.s32 3, %v6602
        %v6604 = vrot.slane %v6561, %v6603
        %v6605 = vlaneseq
        %v6606 = vshrl.u32 %v6605, 7
        %v6607 = vsub.s32 0, %v6606
        %v6608 = vrot.slane %v6569, %v6607
        %v6609 = vlaneseq
        %v6610 = vshrl.u32 %v6609, 7
        %v6611 = vsub.s32 1, %v6610
        %v6612 = vrot.slane %v6569, %v6611
        %v6613 = vlaneseq
        %v6614 = vshrl.u32 %v6613, 7
        %v6615 = vsub.s32 2, %v6614
        %v6616 = vrot.slane %v6569, %v6615
        %v6617 = vlaneseq
        %v6618 = vshrl.u32 %v6617, 7
        %v6619 = vsub.s32 3, %v6618
        %v6620 = vrot.slane %v6569, %v6619
        %v6621 = vlaneseq
        %v6622 = vshrl.u32 %v6621, 7
        %v6623 = vsub.s32 0, %v6622
        %v6624 = vrot.slane %v6571, %v6623
        %v6625 = vlaneseq
        %v6626 = vshrl.u32 %v6625, 7
        %v6627 = vsub.s32 1, %v6626
        %v6628 = vrot.slane %v6571, %v6627
        %v6629 = vlaneseq
        %v6630 = vshrl.u32 %v6629, 7
        %v6631 = vsub.s32 2, %v6630
        %v6632 = vrot.slane %v6571, %v6631
        %v6633 = vlaneseq
        %v6634 = vshrl.u32 %v6633, 7
        %v6635 = vsub.s32 3, %v6634
        %v6636 = vrot.slane %v6571, %v6635
        %v6637 = vlaneseq
        %v6638 = vshrl.u32 %v6637, 7
        %v6639 = vsub.s32 0, %v6638
        %v6640 = vrot.slane %v6554, %v6639
        %v6641 = vlaneseq
        %v6642 = vshrl.u32 %v6641, 7
        %v6643 = vsub.s32 1, %v6642
        %v6644 = vrot.slane %v6554, %v6643
        %v6645 = vlaneseq
        %v6646 = vshrl.u32 %v6645, 7
        %v6647 = vsub.s32 2, %v6646
        %v6648 = vrot.slane %v6554, %v6647
        %v6649 = vlaneseq
        %v6650 = vshrl.u32 %v6649, 7
        %v6651 = vsub.s32 3, %v6650
        %v6652 = vrot.slane %v6554, %v6651
        %v6653 = vlaneseq
        %v6654 = vshrl.u32 %v6653, 7
        %v6655 = vsub.s32 0, %v6654
        %v6656 = vrot.slane %v6568, %v6655
        %v6657 = vlaneseq
        %v6658 = vshrl.u32 %v6657, 7
        %v6659 = vsub.s32 1, %v6658
        %v6660 = vrot.slane %v6568, %v6659
        %v6661 = vlaneseq
        %v6662 = vshrl.u32 %v6661, 7
        %v6663 = vsub.s32 2, %v6662
        %v6664 = vrot.slane %v6568, %v6663
        %v6665 = vlaneseq
        %v6666 = vshrl.u32 %v6665, 7
        %v6667 = vsub.s32 3, %v6666
        %v6668 = vrot.slane %v6568, %v6667
        %v6669 = vlaneseq
        %v6670 = vshrl.u32 %v6669, 7
        %v6671 = vsub.s32 0, %v6670
        %v6672 = vrot.slane %v6570, %v6671
        %v6673 = vlaneseq
        %v6674 = vshrl.u32 %v6673, 7
        %v6675 = vsub.s32 1, %v6674
        %v6676 = vrot.slane %v6570, %v6675
        %v6677 = vlaneseq
        %v6678 = vshrl.u32 %v6677, 7
        %v6679 = vsub.s32 2, %v6678
        %v6680 = vrot.slane %v6570, %v6679
        %v6681 = vlaneseq
        %v6682 = vshrl.u32 %v6681, 7
        %v6683 = vsub.s32 3, %v6682
        %v6684 = vrot.slane %v6570, %v6683
        %v6685 = vlaneseq
        %v6686 = vshrl.u32 %v6685, 7
        %v6687 = vsub.s32 0, %v6686
        %v6688 = vrot.slane %v6572, %v6687
        %v6689 = vlaneseq
        %v6690 = vshrl.u32 %v6689, 7
        %v6691 = vsub.s32 1, %v6690
        %v6692 = vrot.slane %v6572, %v6691
        %v6693 = vlaneseq
        %v6694 = vshrl.u32 %v6693, 7
        %v6695 = vsub.s32 2, %v6694
        %v6696 = vrot.slane %v6572, %v6695
        %v6697 = vlaneseq
        %v6698 = vshrl.u32 %v6697, 7
        %v6699 = vsub.s32 3, %v6698
        %v6700 = vrot.slane %v6572, %v6699
        %v6733 = vmul.f32 %v6576, %v6402
        %v6734 = vmul.f32 %v6580, %v6403
        %v6735 = vmul.f32 %v6584, %v6404
        %v6736 = vmul.f32 %v6588, %v6405
        %v6737 = vmul.f32 %v6592, %v6402
        %v6738 = vmul.f32 %v6596, %v6403
        %v6739 = vmul.f32 %v6600, %v6404
        %v6740 = vmul.f32 %v6604, %v6405
        %v6741 = vmul.f32 %v6608, %v6402
        %v6742 = vmul.f32 %v6612, %v6403
        %v6743 = vmul.f32 %v6616, %v6404
        %v6744 = vmul.f32 %v6620, %v6405
        %v6745 = vmul.f32 %v6624, %v6402
        %v6746 = vmul.f32 %v6628, %v6403
        %v6747 = vmul.f32 %v6632, %v6404
        %v6748 = vmul.f32 %v6636, %v6405
        %v6749 = vmul.f32 %v6640, %v6402
        %v6750 = vmul.f32 %v6644, %v6403
        %v6751 = vmul.f32 %v6648, %v6404
        %v6752 = vmul.f32 %v6652, %v6405
        %v6753 = vmul.f32 %v6656, %v6402
        %v6754 = vmul.f32 %v6660, %v6403
        %v6755 = vmul.f32 %v6664, %v6404
        %v6756 = vmul.f32 %v6668, %v6405
        %v6757 = vmul.f32 %v6672, %v6402
        %v6758 = vmul.f32 %v6676, %v6403
        %v6759 = vmul.f32 %v6680, %v6404
        %v6760 = vmul.f32 %v6684, %v6405
        %v6761 = vmul.f32 %v6688, %v6402
        %v6762 = vmul.f32 %v6692, %v6403
        %v6763 = vmul.f32 %v6696, %v6404
        %v6764 = vmul.f32 %v6700, %v6405
        %v6797 = vcombine.low %v6733, %v6734
        %v6798 = vcombine.high %v6733, %v6734
        %v6799 = vcombine.low %v6735, %v6736
        %v6800 = vcombine.high %v6735, %v6736
        %v6802 = vunpack.c.l.s4 1966171168
        %v6803 = vunpack.c.0.s8 %v6802
        %v6804 = vlaneseq
        %v6805 = vshrl.u32 %v6804, 7
        %v6806 = vsub.s32 %v6803, %v6805
        %v6807 = vrot.slane %v6797, %v6806
        %v6809 = vunpack.c.l.s4 1966171168
        %v6810 = vunpack.c.0.s8 %v6809
        %v6811 = vlaneseq
        %v6812 = vshrl.u32 %v6811, 7
        %v6813 = vsub.s32 %v6810, %v6812
        %v6814 = vrot.slane %v6798, %v6813
        %v6816 = vunpack.c.l.s4 1966171168
        %v6817 = vunpack.c.0.s8 %v6816
        %v6818 = vlaneseq
        %v6819 = vshrl.u32 %v6818, 7
        %v6820 = vsub.s32 %v6817, %v6819
        %v6821 = vrot.slane %v6799, %v6820
        %v6823 = vunpack.c.l.s4 1966171168
        %v6824 = vunpack.c.0.s8 %v6823
        %v6825 = vlaneseq
        %v6826 = vshrl.u32 %v6825, 7
        %v6827 = vsub.s32 %v6824, %v6826
        %v6828 = vrot.slane %v6800, %v6827
        %v6829 = vcombine.low %v6807, %v6821
        %v6830 = vcombine.high %v6807, %v6821
        %v6831 = vcombine.low %v6814, %v6828
        %v6832 = vcombine.high %v6814, %v6828
        %v6834 = vunpack.c.l.s4 1966171168
        %v6835 = vunpack.c.0.s8 %v6834
        %v6836 = vlaneseq
        %v6837 = vshrl.u32 %v6836, 7
        %v6838 = vsub.s32 %v6835, %v6837
        %v6839 = vrot.slane %v6829, %v6838
        %v6841 = vunpack.c.l.s4 1966171168
        %v6842 = vunpack.c.0.s8 %v6841
        %v6843 = vlaneseq
        %v6844 = vshrl.u32 %v6843, 7
        %v6845 = vsub.s32 %v6842, %v6844
        %v6846 = vrot.slane %v6831, %v6845
        %v6848 = vunpack.c.l.s4 1966171168
        %v6849 = vunpack.c.0.s8 %v6848
        %v6850 = vlaneseq
        %v6851 = vshrl.u32 %v6850, 7
        %v6852 = vsub.s32 %v6849, %v6851
        %v6853 = vrot.slane %v6830, %v6852
        %v6855 = vunpack.c.l.s4 1966171168
        %v6856 = vunpack.c.0.s8 %v6855
        %v6857 = vlaneseq
        %v6858 = vshrl.u32 %v6857, 7
        %v6859 = vsub.s32 %v6856, %v6858
        %v6860 = vrot.slane %v6832, %v6859
        %v6861 = vcombine.high %v6839, %v6839
        %v6862 = vcombine.high %v6846, %v6846
        %v6863 = vcombine.high %v6853, %v6853
        %v6864 = vcombine.high %v6860, %v6860
        %v6865 = vcombine.low %v6737, %v6738
        %v6866 = vcombine.high %v6737, %v6738
        %v6867 = vcombine.low %v6739, %v6740
        %v6868 = vcombine.high %v6739, %v6740
        %v6870 = vunpack.c.l.s4 1966171168
        %v6871 = vunpack.c.0.s8 %v6870
        %v6872 = vlaneseq
        %v6873 = vshrl.u32 %v6872, 7
        %v6874 = vsub.s32 %v6871, %v6873
        %v6875 = vrot.slane %v6865, %v6874
        %v6877 = vunpack.c.l.s4 1966171168
        %v6878 = vunpack.c.0.s8 %v6877
        %v6879 = vlaneseq
        %v6880 = vshrl.u32 %v6879, 7
        %v6881 = vsub.s32 %v6878, %v6880
        %v6882 = vrot.slane %v6866, %v6881
        %v6884 = vunpack.c.l.s4 1966171168
        %v6885 = vunpack.c.0.s8 %v6884
        %v6886 = vlaneseq
        %v6887 = vshrl.u32 %v6886, 7
        %v6888 = vsub.s32 %v6885, %v6887
        %v6889 = vrot.slane %v6867, %v6888
        %v6891 = vunpack.c.l.s4 1966171168
        %v6892 = vunpack.c.0.s8 %v6891
        %v6893 = vlaneseq
        %v6894 = vshrl.u32 %v6893, 7
        %v6895 = vsub.s32 %v6892, %v6894
        %v6896 = vrot.slane %v6868, %v6895
        %v6897 = vcombine.low %v6875, %v6889
        %v6898 = vcombine.high %v6875, %v6889
        %v6899 = vcombine.low %v6882, %v6896
        %v6900 = vcombine.high %v6882, %v6896
        %v6902 = vunpack.c.l.s4 1966171168
        %v6903 = vunpack.c.0.s8 %v6902
        %v6904 = vlaneseq
        %v6905 = vshrl.u32 %v6904, 7
        %v6906 = vsub.s32 %v6903, %v6905
        %v6907 = vrot.slane %v6897, %v6906
        %v6909 = vunpack.c.l.s4 1966171168
        %v6910 = vunpack.c.0.s8 %v6909
        %v6911 = vlaneseq
        %v6912 = vshrl.u32 %v6911, 7
        %v6913 = vsub.s32 %v6910, %v6912
        %v6914 = vrot.slane %v6899, %v6913
        %v6916 = vunpack.c.l.s4 1966171168
        %v6917 = vunpack.c.0.s8 %v6916
        %v6918 = vlaneseq
        %v6919 = vshrl.u32 %v6918, 7
        %v6920 = vsub.s32 %v6917, %v6919
        %v6921 = vrot.slane %v6898, %v6920
        %v6923 = vunpack.c.l.s4 1966171168
        %v6924 = vunpack.c.0.s8 %v6923
        %v6925 = vlaneseq
        %v6926 = vshrl.u32 %v6925, 7
        %v6927 = vsub.s32 %v6924, %v6926
        %v6928 = vrot.slane %v6900, %v6927
        %v6929 = vcombine.high %v6907, %v6907
        %v6930 = vcombine.high %v6914, %v6914
        %v6931 = vcombine.high %v6921, %v6921
        %v6932 = vcombine.high %v6928, %v6928
        %v6933 = vcombine.low %v6741, %v6742
        %v6934 = vcombine.high %v6741, %v6742
        %v6935 = vcombine.low %v6743, %v6744
        %v6936 = vcombine.high %v6743, %v6744
        %v6938 = vunpack.c.l.s4 1966171168
        %v6939 = vunpack.c.0.s8 %v6938
        %v6940 = vlaneseq
        %v6941 = vshrl.u32 %v6940, 7
        %v6942 = vsub.s32 %v6939, %v6941
        %v6943 = vrot.slane %v6933, %v6942
        %v6945 = vunpack.c.l.s4 1966171168
        %v6946 = vunpack.c.0.s8 %v6945
        %v6947 = vlaneseq
        %v6948 = vshrl.u32 %v6947, 7
        %v6949 = vsub.s32 %v6946, %v6948
        %v6950 = vrot.slane %v6934, %v6949
        %v6952 = vunpack.c.l.s4 1966171168
        %v6953 = vunpack.c.0.s8 %v6952
        %v6954 = vlaneseq
        %v6955 = vshrl.u32 %v6954, 7
        %v6956 = vsub.s32 %v6953, %v6955
        %v6957 = vrot.slane %v6935, %v6956
        %v6959 = vunpack.c.l.s4 1966171168
        %v6960 = vunpack.c.0.s8 %v6959
        %v6961 = vlaneseq
        %v6962 = vshrl.u32 %v6961, 7
        %v6963 = vsub.s32 %v6960, %v6962
        %v6964 = vrot.slane %v6936, %v6963
        %v6965 = vcombine.low %v6943, %v6957
        %v6966 = vcombine.high %v6943, %v6957
        %v6967 = vcombine.low %v6950, %v6964
        %v6968 = vcombine.high %v6950, %v6964
        %v6970 = vunpack.c.l.s4 1966171168
        %v6971 = vunpack.c.0.s8 %v6970
        %v6972 = vlaneseq
        %v6973 = vshrl.u32 %v6972, 7
        %v6974 = vsub.s32 %v6971, %v6973
        %v6975 = vrot.slane %v6965, %v6974
        %v6977 = vunpack.c.l.s4 1966171168
        %v6978 = vunpack.c.0.s8 %v6977
        %v6979 = vlaneseq
        %v6980 = vshrl.u32 %v6979, 7
        %v6981 = vsub.s32 %v6978, %v6980
        %v6982 = vrot.slane %v6967, %v6981
        %v6984 = vunpack.c.l.s4 1966171168
        %v6985 = vunpack.c.0.s8 %v6984
        %v6986 = vlaneseq
        %v6987 = vshrl.u32 %v6986, 7
        %v6988 = vsub.s32 %v6985, %v6987
        %v6989 = vrot.slane %v6966, %v6988
        %v6991 = vunpack.c.l.s4 1966171168
        %v6992 = vunpack.c.0.s8 %v6991
        %v6993 = vlaneseq
        %v6994 = vshrl.u32 %v6993, 7
        %v6995 = vsub.s32 %v6992, %v6994
        %v6996 = vrot.slane %v6968, %v6995
        %v6997 = vcombine.high %v6975, %v6975
        %v6998 = vcombine.high %v6982, %v6982
        %v6999 = vcombine.high %v6989, %v6989
        %v7000 = vcombine.high %v6996, %v6996
        %v7001 = vcombine.low %v6745, %v6746
        %v7002 = vcombine.high %v6745, %v6746
        %v7003 = vcombine.low %v6747, %v6748
        %v7004 = vcombine.high %v6747, %v6748
        %v7006 = vunpack.c.l.s4 1966171168
        %v7007 = vunpack.c.0.s8 %v7006
        %v7008 = vlaneseq
        %v7009 = vshrl.u32 %v7008, 7
        %v7010 = vsub.s32 %v7007, %v7009
        %v7011 = vrot.slane %v7001, %v7010
        %v7013 = vunpack.c.l.s4 1966171168
        %v7014 = vunpack.c.0.s8 %v7013
        %v7015 = vlaneseq
        %v7016 = vshrl.u32 %v7015, 7
        %v7017 = vsub.s32 %v7014, %v7016
        %v7018 = vrot.slane %v7002, %v7017
        %v7020 = vunpack.c.l.s4 1966171168
        %v7021 = vunpack.c.0.s8 %v7020
        %v7022 = vlaneseq
        %v7023 = vshrl.u32 %v7022, 7
        %v7024 = vsub.s32 %v7021, %v7023
        %v7025 = vrot.slane %v7003, %v7024
        %v7027 = vunpack.c.l.s4 1966171168
        %v7028 = vunpack.c.0.s8 %v7027
        %v7029 = vlaneseq
        %v7030 = vshrl.u32 %v7029, 7
        %v7031 = vsub.s32 %v7028, %v7030
        %v7032 = vrot.slane %v7004, %v7031
        %v7033 = vcombine.low %v7011, %v7025
        %v7034 = vcombine.high %v7011, %v7025
        %v7035 = vcombine.low %v7018, %v7032
        %v7036 = vcombine.high %v7018, %v7032
        %v7038 = vunpack.c.l.s4 1966171168
        %v7039 = vunpack.c.0.s8 %v7038
        %v7040 = vlaneseq
        %v7041 = vshrl.u32 %v7040, 7
        %v7042 = vsub.s32 %v7039, %v7041
        %v7043 = vrot.slane %v7033, %v7042
        %v7045 = vunpack.c.l.s4 1966171168
        %v7046 = vunpack.c.0.s8 %v7045
        %v7047 = vlaneseq
        %v7048 = vshrl.u32 %v7047, 7
        %v7049 = vsub.s32 %v7046, %v7048
        %v7050 = vrot.slane %v7035, %v7049
        %v7052 = vunpack.c.l.s4 1966171168
        %v7053 = vunpack.c.0.s8 %v7052
        %v7054 = vlaneseq
        %v7055 = vshrl.u32 %v7054, 7
        %v7056 = vsub.s32 %v7053, %v7055
        %v7057 = vrot.slane %v7034, %v7056
        %v7059 = vunpack.c.l.s4 1966171168
        %v7060 = vunpack.c.0.s8 %v7059
        %v7061 = vlaneseq
        %v7062 = vshrl.u32 %v7061, 7
        %v7063 = vsub.s32 %v7060, %v7062
        %v7064 = vrot.slane %v7036, %v7063
        %v7065 = vcombine.high %v7043, %v7043
        %v7066 = vcombine.high %v7050, %v7050
        %v7067 = vcombine.high %v7057, %v7057
        %v7068 = vcombine.high %v7064, %v7064
        %v7069 = vcombine.low %v6749, %v6750
        %v7070 = vcombine.high %v6749, %v6750
        %v7071 = vcombine.low %v6751, %v6752
        %v7072 = vcombine.high %v6751, %v6752
        %v7074 = vunpack.c.l.s4 1966171168
        %v7075 = vunpack.c.0.s8 %v7074
        %v7076 = vlaneseq
        %v7077 = vshrl.u32 %v7076, 7
        %v7078 = vsub.s32 %v7075, %v7077
        %v7079 = vrot.slane %v7069, %v7078
        %v7081 = vunpack.c.l.s4 1966171168
        %v7082 = vunpack.c.0.s8 %v7081
        %v7083 = vlaneseq
        %v7084 = vshrl.u32 %v7083, 7
        %v7085 = vsub.s32 %v7082, %v7084
        %v7086 = vrot.slane %v7070, %v7085
        %v7088 = vunpack.c.l.s4 1966171168
        %v7089 = vunpack.c.0.s8 %v7088
        %v7090 = vlaneseq
        %v7091 = vshrl.u32 %v7090, 7
        %v7092 = vsub.s32 %v7089, %v7091
        %v7093 = vrot.slane %v7071, %v7092
        %v7095 = vunpack.c.l.s4 1966171168
        %v7096 = vunpack.c.0.s8 %v7095
        %v7097 = vlaneseq
        %v7098 = vshrl.u32 %v7097, 7
        %v7099 = vsub.s32 %v7096, %v7098
        %v7100 = vrot.slane %v7072, %v7099
        %v7101 = vcombine.low %v7079, %v7093
        %v7102 = vcombine.high %v7079, %v7093
        %v7103 = vcombine.low %v7086, %v7100
        %v7104 = vcombine.high %v7086, %v7100
        %v7106 = vunpack.c.l.s4 1966171168
        %v7107 = vunpack.c.0.s8 %v7106
        %v7108 = vlaneseq
        %v7109 = vshrl.u32 %v7108, 7
        %v7110 = vsub.s32 %v7107, %v7109
        %v7111 = vrot.slane %v7101, %v7110
        %v7113 = vunpack.c.l.s4 1966171168
        %v7114 = vunpack.c.0.s8 %v7113
        %v7115 = vlaneseq
        %v7116 = vshrl.u32 %v7115, 7
        %v7117 = vsub.s32 %v7114, %v7116
        %v7118 = vrot.slane %v7103, %v7117
        %v7120 = vunpack.c.l.s4 1966171168
        %v7121 = vunpack.c.0.s8 %v7120
        %v7122 = vlaneseq
        %v7123 = vshrl.u32 %v7122, 7
        %v7124 = vsub.s32 %v7121, %v7123
        %v7125 = vrot.slane %v7102, %v7124
        %v7127 = vunpack.c.l.s4 1966171168
        %v7128 = vunpack.c.0.s8 %v7127
        %v7129 = vlaneseq
        %v7130 = vshrl.u32 %v7129, 7
        %v7131 = vsub.s32 %v7128, %v7130
        %v7132 = vrot.slane %v7104, %v7131
        %v7133 = vcombine.high %v7111, %v7111
        %v7134 = vcombine.high %v7118, %v7118
        %v7135 = vcombine.high %v7125, %v7125
        %v7136 = vcombine.high %v7132, %v7132
        %v7137 = vcombine.low %v6753, %v6754
        %v7138 = vcombine.high %v6753, %v6754
        %v7139 = vcombine.low %v6755, %v6756
        %v7140 = vcombine.high %v6755, %v6756
        %v7142 = vunpack.c.l.s4 1966171168
        %v7143 = vunpack.c.0.s8 %v7142
        %v7144 = vlaneseq
        %v7145 = vshrl.u32 %v7144, 7
        %v7146 = vsub.s32 %v7143, %v7145
        %v7147 = vrot.slane %v7137, %v7146
        %v7149 = vunpack.c.l.s4 1966171168
        %v7150 = vunpack.c.0.s8 %v7149
        %v7151 = vlaneseq
        %v7152 = vshrl.u32 %v7151, 7
        %v7153 = vsub.s32 %v7150, %v7152
        %v7154 = vrot.slane %v7138, %v7153
        %v7156 = vunpack.c.l.s4 1966171168
        %v7157 = vunpack.c.0.s8 %v7156
        %v7158 = vlaneseq
        %v7159 = vshrl.u32 %v7158, 7
        %v7160 = vsub.s32 %v7157, %v7159
        %v7161 = vrot.slane %v7139, %v7160
        %v7163 = vunpack.c.l.s4 1966171168
        %v7164 = vunpack.c.0.s8 %v7163
        %v7165 = vlaneseq
        %v7166 = vshrl.u32 %v7165, 7
        %v7167 = vsub.s32 %v7164, %v7166
        %v7168 = vrot.slane %v7140, %v7167
        %v7169 = vcombine.low %v7147, %v7161
        %v7170 = vcombine.high %v7147, %v7161
        %v7171 = vcombine.low %v7154, %v7168
        %v7172 = vcombine.high %v7154, %v7168
        %v7174 = vunpack.c.l.s4 1966171168
        %v7175 = vunpack.c.0.s8 %v7174
        %v7176 = vlaneseq
        %v7177 = vshrl.u32 %v7176, 7
        %v7178 = vsub.s32 %v7175, %v7177
        %v7179 = vrot.slane %v7169, %v7178
        %v7181 = vunpack.c.l.s4 1966171168
        %v7182 = vunpack.c.0.s8 %v7181
        %v7183 = vlaneseq
        %v7184 = vshrl.u32 %v7183, 7
        %v7185 = vsub.s32 %v7182, %v7184
        %v7186 = vrot.slane %v7171, %v7185
        %v7188 = vunpack.c.l.s4 1966171168
        %v7189 = vunpack.c.0.s8 %v7188
        %v7190 = vlaneseq
        %v7191 = vshrl.u32 %v7190, 7
        %v7192 = vsub.s32 %v7189, %v7191
        %v7193 = vrot.slane %v7170, %v7192
        %v7195 = vunpack.c.l.s4 1966171168
        %v7196 = vunpack.c.0.s8 %v7195
        %v7197 = vlaneseq
        %v7198 = vshrl.u32 %v7197, 7
        %v7199 = vsub.s32 %v7196, %v7198
        %v7200 = vrot.slane %v7172, %v7199
        %v7201 = vcombine.high %v7179, %v7179
        %v7202 = vcombine.high %v7186, %v7186
        %v7203 = vcombine.high %v7193, %v7193
        %v7204 = vcombine.high %v7200, %v7200
        %v7205 = vcombine.low %v6757, %v6758
        %v7206 = vcombine.high %v6757, %v6758
        %v7207 = vcombine.low %v6759, %v6760
        %v7208 = vcombine.high %v6759, %v6760
        %v7210 = vunpack.c.l.s4 1966171168
        %v7211 = vunpack.c.0.s8 %v7210
        %v7212 = vlaneseq
        %v7213 = vshrl.u32 %v7212, 7
        %v7214 = vsub.s32 %v7211, %v7213
        %v7215 = vrot.slane %v7205, %v7214
        %v7217 = vunpack.c.l.s4 1966171168
        %v7218 = vunpack.c.0.s8 %v7217
        %v7219 = vlaneseq
        %v7220 = vshrl.u32 %v7219, 7
        %v7221 = vsub.s32 %v7218, %v7220
        %v7222 = vrot.slane %v7206, %v7221
        %v7224 = vunpack.c.l.s4 1966171168
        %v7225 = vunpack.c.0.s8 %v7224
        %v7226 = vlaneseq
        %v7227 = vshrl.u32 %v7226, 7
        %v7228 = vsub.s32 %v7225, %v7227
        %v7229 = vrot.slane %v7207, %v7228
        %v7231 = vunpack.c.l.s4 1966171168
        %v7232 = vunpack.c.0.s8 %v7231
        %v7233 = vlaneseq
        %v7234 = vshrl.u32 %v7233, 7
        %v7235 = vsub.s32 %v7232, %v7234
        %v7236 = vrot.slane %v7208, %v7235
        %v7237 = vcombine.low %v7215, %v7229
        %v7238 = vcombine.high %v7215, %v7229
        %v7239 = vcombine.low %v7222, %v7236
        %v7240 = vcombine.high %v7222, %v7236
        %v7242 = vunpack.c.l.s4 1966171168
        %v7243 = vunpack.c.0.s8 %v7242
        %v7244 = vlaneseq
        %v7245 = vshrl.u32 %v7244, 7
        %v7246 = vsub.s32 %v7243, %v7245
        %v7247 = vrot.slane %v7237, %v7246
        %v7249 = vunpack.c.l.s4 1966171168
        %v7250 = vunpack.c.0.s8 %v7249
        %v7251 = vlaneseq
        %v7252 = vshrl.u32 %v7251, 7
        %v7253 = vsub.s32 %v7250, %v7252
        %v7254 = vrot.slane %v7239, %v7253
        %v7256 = vunpack.c.l.s4 1966171168
        %v7257 = vunpack.c.0.s8 %v7256
        %v7258 = vlaneseq
        %v7259 = vshrl.u32 %v7258, 7
        %v7260 = vsub.s32 %v7257, %v7259
        %v7261 = vrot.slane %v7238, %v7260
        %v7263 = vunpack.c.l.s4 1966171168
        %v7264 = vunpack.c.0.s8 %v7263
        %v7265 = vlaneseq
        %v7266 = vshrl.u32 %v7265, 7
        %v7267 = vsub.s32 %v7264, %v7266
        %v7268 = vrot.slane %v7240, %v7267
        %v7269 = vcombine.high %v7247, %v7247
        %v7270 = vcombine.high %v7254, %v7254
        %v7271 = vcombine.high %v7261, %v7261
        %v7272 = vcombine.high %v7268, %v7268
        %v7273 = vcombine.low %v6761, %v6762
        %v7274 = vcombine.high %v6761, %v6762
        %v7275 = vcombine.low %v6763, %v6764
        %v7276 = vcombine.high %v6763, %v6764
        %v7278 = vunpack.c.l.s4 1966171168
        %v7279 = vunpack.c.0.s8 %v7278
        %v7280 = vlaneseq
        %v7281 = vshrl.u32 %v7280, 7
        %v7282 = vsub.s32 %v7279, %v7281
        %v7283 = vrot.slane %v7273, %v7282
        %v7285 = vunpack.c.l.s4 1966171168
        %v7286 = vunpack.c.0.s8 %v7285
        %v7287 = vlaneseq
        %v7288 = vshrl.u32 %v7287, 7
        %v7289 = vsub.s32 %v7286, %v7288
        %v7290 = vrot.slane %v7274, %v7289
        %v7292 = vunpack.c.l.s4 1966171168
        %v7293 = vunpack.c.0.s8 %v7292
        %v7294 = vlaneseq
        %v7295 = vshrl.u32 %v7294, 7
        %v7296 = vsub.s32 %v7293, %v7295
        %v7297 = vrot.slane %v7275, %v7296
        %v7299 = vunpack.c.l.s4 1966171168
        %v7300 = vunpack.c.0.s8 %v7299
        %v7301 = vlaneseq
        %v7302 = vshrl.u32 %v7301, 7
        %v7303 = vsub.s32 %v7300, %v7302
        %v7304 = vrot.slane %v7276, %v7303
        %v7305 = vcombine.low %v7283, %v7297
        %v7306 = vcombine.high %v7283, %v7297
        %v7307 = vcombine.low %v7290, %v7304
        %v7308 = vcombine.high %v7290, %v7304
        %v7310 = vunpack.c.l.s4 1966171168
        %v7311 = vunpack.c.0.s8 %v7310
        %v7312 = vlaneseq
        %v7313 = vshrl.u32 %v7312, 7
        %v7314 = vsub.s32 %v7311, %v7313
        %v7315 = vrot.slane %v7305, %v7314
        %v7317 = vunpack.c.l.s4 1966171168
        %v7318 = vunpack.c.0.s8 %v7317
        %v7319 = vlaneseq
        %v7320 = vshrl.u32 %v7319, 7
        %v7321 = vsub.s32 %v7318, %v7320
        %v7322 = vrot.slane %v7307, %v7321
        %v7324 = vunpack.c.l.s4 1966171168
        %v7325 = vunpack.c.0.s8 %v7324
        %v7326 = vlaneseq
        %v7327 = vshrl.u32 %v7326, 7
        %v7328 = vsub.s32 %v7325, %v7327
        %v7329 = vrot.slane %v7306, %v7328
        %v7331 = vunpack.c.l.s4 1966171168
        %v7332 = vunpack.c.0.s8 %v7331
        %v7333 = vlaneseq
        %v7334 = vshrl.u32 %v7333, 7
        %v7335 = vsub.s32 %v7332, %v7334
        %v7336 = vrot.slane %v7308, %v7335
        %v7337 = vcombine.high %v7315, %v7315
        %v7338 = vcombine.high %v7322, %v7322
        %v7339 = vcombine.high %v7329, %v7329
        %v7340 = vcombine.high %v7336, %v7336
        %v7341 = vlaneseq
        %v7342 = vshrl.u32 %v7341, 7
        %v7343 = vsub.s32 0, %v7342
        %v7344 = vrot.slane %v6839, %v7343
        %v7345 = vlaneseq
        %v7346 = vshrl.u32 %v7345, 7
        %v7347 = vsub.s32 1, %v7346
        %v7348 = vrot.slane %v6839, %v7347
        %v7349 = vlaneseq
        %v7350 = vshrl.u32 %v7349, 7
        %v7351 = vsub.s32 2, %v7350
        %v7352 = vrot.slane %v6839, %v7351
        %v7353 = vlaneseq
        %v7354 = vshrl.u32 %v7353, 7
        %v7355 = vsub.s32 3, %v7354
        %v7356 = vrot.slane %v6839, %v7355
        %v7357 = vlaneseq
        %v7358 = vshrl.u32 %v7357, 7
        %v7359 = vsub.s32 0, %v7358
        %v7360 = vrot.slane %v6853, %v7359
        %v7361 = vlaneseq
        %v7362 = vshrl.u32 %v7361, 7
        %v7363 = vsub.s32 1, %v7362
        %v7364 = vrot.slane %v6853, %v7363
        %v7365 = vlaneseq
        %v7366 = vshrl.u32 %v7365, 7
        %v7367 = vsub.s32 2, %v7366
        %v7368 = vrot.slane %v6853, %v7367
        %v7369 = vlaneseq
        %v7370 = vshrl.u32 %v7369, 7
        %v7371 = vsub.s32 3, %v7370
        %v7372 = vrot.slane %v6853, %v7371
        %v7373 = vlaneseq
        %v7374 = vshrl.u32 %v7373, 7
        %v7375 = vsub.s32 0, %v7374
        %v7376 = vrot.slane %v6861, %v7375
        %v7377 = vlaneseq
        %v7378 = vshrl.u32 %v7377, 7
        %v7379 = vsub.s32 1, %v7378
        %v7380 = vrot.slane %v6861, %v7379
        %v7381 = vlaneseq
        %v7382 = vshrl.u32 %v7381, 7
        %v7383 = vsub.s32 2, %v7382
        %v7384 = vrot.slane %v6861, %v7383
        %v7385 = vlaneseq
        %v7386 = vshrl.u32 %v7385, 7
        %v7387 = vsub.s32 3, %v7386
        %v7388 = vrot.slane %v6861, %v7387
        %v7389 = vlaneseq
        %v7390 = vshrl.u32 %v7389, 7
        %v7391 = vsub.s32 0, %v7390
        %v7392 = vrot.slane %v6863, %v7391
        %v7393 = vlaneseq
        %v7394 = vshrl.u32 %v7393, 7
        %v7395 = vsub.s32 1, %v7394
        %v7396 = vrot.slane %v6863, %v7395
        %v7397 = vlaneseq
        %v7398 = vshrl.u32 %v7397, 7
        %v7399 = vsub.s32 2, %v7398
        %v7400 = vrot.slane %v6863, %v7399
        %v7401 = vlaneseq
        %v7402 = vshrl.u32 %v7401, 7
        %v7403 = vsub.s32 3, %v7402
        %v7404 = vrot.slane %v6863, %v7403
        %v7405 = vlaneseq
        %v7406 = vshrl.u32 %v7405, 7
        %v7407 = vsub.s32 0, %v7406
        %v7408 = vrot.slane %v6846, %v7407
        %v7409 = vlaneseq
        %v7410 = vshrl.u32 %v7409, 7
        %v7411 = vsub.s32 1, %v7410
        %v7412 = vrot.slane %v6846, %v7411
        %v7413 = vlaneseq
        %v7414 = vshrl.u32 %v7413, 7
        %v7415 = vsub.s32 2, %v7414
        %v7416 = vrot.slane %v6846, %v7415
        %v7417 = vlaneseq
        %v7418 = vshrl.u32 %v7417, 7
        %v7419 = vsub.s32 3, %v7418
        %v7420 = vrot.slane %v6846, %v7419
        %v7421 = vlaneseq
        %v7422 = vshrl.u32 %v7421, 7
        %v7423 = vsub.s32 0, %v7422
        %v7424 = vrot.slane %v6860, %v7423
        %v7425 = vlaneseq
        %v7426 = vshrl.u32 %v7425, 7
        %v7427 = vsub.s32 1, %v7426
        %v7428 = vrot.slane %v6860, %v7427
        %v7429 = vlaneseq
        %v7430 = vshrl.u32 %v7429, 7
        %v7431 = vsub.s32 2, %v7430
        %v7432 = vrot.slane %v6860, %v7431
        %v7433 = vlaneseq
        %v7434 = vshrl.u32 %v7433, 7
        %v7435 = vsub.s32 3, %v7434
        %v7436 = vrot.slane %v6860, %v7435
        %v7437 = vlaneseq
        %v7438 = vshrl.u32 %v7437, 7
        %v7439 = vsub.s32 0, %v7438
        %v7440 = vrot.slane %v6862, %v7439
        %v7441 = vlaneseq
        %v7442 = vshrl.u32 %v7441, 7
        %v7443 = vsub.s32 1, %v7442
        %v7444 = vrot.slane %v6862, %v7443
        %v7445 = vlaneseq
        %v7446 = vshrl.u32 %v7445, 7
        %v7447 = vsub.s32 2, %v7446
        %v7448 = vrot.slane %v6862, %v7447
        %v7449 = vlaneseq
        %v7450 = vshrl.u32 %v7449, 7
        %v7451 = vsub.s32 3, %v7450
        %v7452 = vrot.slane %v6862, %v7451
        %v7453 = vlaneseq
        %v7454 = vshrl.u32 %v7453, 7
        %v7455 = vsub.s32 0, %v7454
        %v7456 = vrot.slane %v6864, %v7455
        %v7457 = vlaneseq
        %v7458 = vshrl.u32 %v7457, 7
        %v7459 = vsub.s32 1, %v7458
        %v7460 = vrot.slane %v6864, %v7459
        %v7461 = vlaneseq
        %v7462 = vshrl.u32 %v7461, 7
        %v7463 = vsub.s32 2, %v7462
        %v7464 = vrot.slane %v6864, %v7463
        %v7465 = vlaneseq
        %v7466 = vshrl.u32 %v7465, 7
        %v7467 = vsub.s32 3, %v7466
        %v7468 = vrot.slane %v6864, %v7467
        %v7469 = vlaneseq
        %v7470 = vshrl.u32 %v7469, 7
        %v7471 = vsub.s32 0, %v7470
        %v7472 = vrot.slane %v6907, %v7471
        %v7473 = vlaneseq
        %v7474 = vshrl.u32 %v7473, 7
        %v7475 = vsub.s32 1, %v7474
        %v7476 = vrot.slane %v6907, %v7475
        %v7477 = vlaneseq
        %v7478 = vshrl.u32 %v7477, 7
        %v7479 = vsub.s32 2, %v7478
        %v7480 = vrot.slane %v6907, %v7479
        %v7481 = vlaneseq
        %v7482 = vshrl.u32 %v7481, 7
        %v7483 = vsub.s32 3, %v7482
        %v7484 = vrot.slane %v6907, %v7483
        %v7485 = vlaneseq
        %v7486 = vshrl.u32 %v7485, 7
        %v7487 = vsub.s32 0, %v7486
        %v7488 = vrot.slane %v6921, %v7487
        %v7489 = vlaneseq
        %v7490 = vshrl.u32 %v7489, 7
        %v7491 = vsub.s32 1, %v7490
        %v7492 = vrot.slane %v6921, %v7491
        %v7493 = vlaneseq
        %v7494 = vshrl.u32 %v7493, 7
        %v7495 = vsub.s32 2, %v7494
        %v7496 = vrot.slane %v6921, %v7495
        %v7497 = vlaneseq
        %v7498 = vshrl.u32 %v7497, 7
        %v7499 = vsub.s32 3, %v7498
        %v7500 = vrot.slane %v6921, %v7499
        %v7501 = vlaneseq
        %v7502 = vshrl.u32 %v7501, 7
        %v7503 = vsub.s32 0, %v7502
        %v7504 = vrot.slane %v6929, %v7503
        %v7505 = vlaneseq
        %v7506 = vshrl.u32 %v7505, 7
        %v7507 = vsub.s32 1, %v7506
        %v7508 = vrot.slane %v6929, %v7507
        %v7509 = vlaneseq
        %v7510 = vshrl.u32 %v7509, 7
        %v7511 = vsub.s32 2, %v7510
        %v7512 = vrot.slane %v6929, %v7511
        %v7513 = vlaneseq
        %v7514 = vshrl.u32 %v7513, 7
        %v7515 = vsub.s32 3, %v7514
        %v7516 = vrot.slane %v6929, %v7515
        %v7517 = vlaneseq
        %v7518 = vshrl.u32 %v7517, 7
        %v7519 = vsub.s32 0, %v7518
        %v7520 = vrot.slane %v6931, %v7519
        %v7521 = vlaneseq
        %v7522 = vshrl.u32 %v7521, 7
        %v7523 = vsub.s32 1, %v7522
        %v7524 = vrot.slane %v6931, %v7523
        %v7525 = vlaneseq
        %v7526 = vshrl.u32 %v7525, 7
        %v7527 = vsub.s32 2, %v7526
        %v7528 = vrot.slane %v6931, %v7527
        %v7529 = vlaneseq
        %v7530 = vshrl.u32 %v7529, 7
        %v7531 = vsub.s32 3, %v7530
        %v7532 = vrot.slane %v6931, %v7531
        %v7533 = vlaneseq
        %v7534 = vshrl.u32 %v7533, 7
        %v7535 = vsub.s32 0, %v7534
        %v7536 = vrot.slane %v6914, %v7535
        %v7537 = vlaneseq
        %v7538 = vshrl.u32 %v7537, 7
        %v7539 = vsub.s32 1, %v7538
        %v7540 = vrot.slane %v6914, %v7539
        %v7541 = vlaneseq
        %v7542 = vshrl.u32 %v7541, 7
        %v7543 = vsub.s32 2, %v7542
        %v7544 = vrot.slane %v6914, %v7543
        %v7545 = vlaneseq
        %v7546 = vshrl.u32 %v7545, 7
        %v7547 = vsub.s32 3, %v7546
        %v7548 = vrot.slane %v6914, %v7547
        %v7549 = vlaneseq
        %v7550 = vshrl.u32 %v7549, 7
        %v7551 = vsub.s32 0, %v7550
        %v7552 = vrot.slane %v6928, %v7551
        %v7553 = vlaneseq
        %v7554 = vshrl.u32 %v7553, 7
        %v7555 = vsub.s32 1, %v7554
        %v7556 = vrot.slane %v6928, %v7555
        %v7557 = vlaneseq
        %v7558 = vshrl.u32 %v7557, 7
        %v7559 = vsub.s32 2, %v7558
        %v7560 = vrot.slane %v6928, %v7559
        %v7561 = vlaneseq
        %v7562 = vshrl.u32 %v7561, 7
        %v7563 = vsub.s32 3, %v7562
        %v7564 = vrot.slane %v6928, %v7563
        %v7565 = vlaneseq
        %v7566 = vshrl.u32 %v7565, 7
        %v7567 = vsub.s32 0, %v7566
        %v7568 = vrot.slane %v6930, %v7567
        %v7569 = vlaneseq
        %v7570 = vshrl.u32 %v7569, 7
        %v7571 = vsub.s32 1, %v7570
        %v7572 = vrot.slane %v6930, %v7571
        %v7573 = vlaneseq
        %v7574 = vshrl.u32 %v7573, 7
        %v7575 = vsub.s32 2, %v7574
        %v7576 = vrot.slane %v6930, %v7575
        %v7577 = vlaneseq
        %v7578 = vshrl.u32 %v7577, 7
        %v7579 = vsub.s32 3, %v7578
        %v7580 = vrot.slane %v6930, %v7579
        %v7581 = vlaneseq
        %v7582 = vshrl.u32 %v7581, 7
        %v7583 = vsub.s32 0, %v7582
        %v7584 = vrot.slane %v6932, %v7583
        %v7585 = vlaneseq
        %v7586 = vshrl.u32 %v7585, 7
        %v7587 = vsub.s32 1, %v7586
        %v7588 = vrot.slane %v6932, %v7587
        %v7589 = vlaneseq
        %v7590 = vshrl.u32 %v7589, 7
        %v7591 = vsub.s32 2, %v7590
        %v7592 = vrot.slane %v6932, %v7591
        %v7593 = vlaneseq
        %v7594 = vshrl.u32 %v7593, 7
        %v7595 = vsub.s32 3, %v7594
        %v7596 = vrot.slane %v6932, %v7595
        %v7597 = vlaneseq
        %v7598 = vshrl.u32 %v7597, 7
        %v7599 = vsub.s32 0, %v7598
        %v7600 = vrot.slane %v6975, %v7599
        %v7601 = vlaneseq
        %v7602 = vshrl.u32 %v7601, 7
        %v7603 = vsub.s32 1, %v7602
        %v7604 = vrot.slane %v6975, %v7603
        %v7605 = vlaneseq
        %v7606 = vshrl.u32 %v7605, 7
        %v7607 = vsub.s32 2, %v7606
        %v7608 = vrot.slane %v6975, %v7607
        %v7609 = vlaneseq
        %v7610 = vshrl.u32 %v7609, 7
        %v7611 = vsub.s32 3, %v7610
        %v7612 = vrot.slane %v6975, %v7611
        %v7613 = vlaneseq
        %v7614 = vshrl.u32 %v7613, 7
        %v7615 = vsub.s32 0, %v7614
        %v7616 = vrot.slane %v6989, %v7615
        %v7617 = vlaneseq
        %v7618 = vshrl.u32 %v7617, 7
        %v7619 = vsub.s32 1, %v7618
        %v7620 = vrot.slane %v6989, %v7619
        %v7621 = vlaneseq
        %v7622 = vshrl.u32 %v7621, 7
        %v7623 = vsub.s32 2, %v7622
        %v7624 = vrot.slane %v6989, %v7623
        %v7625 = vlaneseq
        %v7626 = vshrl.u32 %v7625, 7
        %v7627 = vsub.s32 3, %v7626
        %v7628 = vrot.slane %v6989, %v7627
        %v7629 = vlaneseq
        %v7630 = vshrl.u32 %v7629, 7
        %v7631 = vsub.s32 0, %v7630
        %v7632 = vrot.slane %v6997, %v7631
        %v7633 = vlaneseq
        %v7634 = vshrl.u32 %v7633, 7
        %v7635 = vsub.s32 1, %v7634
        %v7636 = vrot.slane %v6997, %v7635
        %v7637 = vlaneseq
        %v7638 = vshrl.u32 %v7637, 7
        %v7639 = vsub.s32 2, %v7638
        %v7640 = vrot.slane %v6997, %v7639
        %v7641 = vlaneseq
        %v7642 = vshrl.u32 %v7641, 7
        %v7643 = vsub.s32 3, %v7642
        %v7644 = vrot.slane %v6997, %v7643
        %v7645 = vlaneseq
        %v7646 = vshrl.u32 %v7645, 7
        %v7647 = vsub.s32 0, %v7646
        %v7648 = vrot.slane %v6999, %v7647
        %v7649 = vlaneseq
        %v7650 = vshrl.u32 %v7649, 7
        %v7651 = vsub.s32 1, %v7650
        %v7652 = vrot.slane %v6999, %v7651
        %v7653 = vlaneseq
        %v7654 = vshrl.u32 %v7653, 7
        %v7655 = vsub.s32 2, %v7654
        %v7656 = vrot.slane %v6999, %v7655
        %v7657 = vlaneseq
        %v7658 = vshrl.u32 %v7657, 7
        %v7659 = vsub.s32 3, %v7658
        %v7660 = vrot.slane %v6999, %v7659
        %v7661 = vlaneseq
        %v7662 = vshrl.u32 %v7661, 7
        %v7663 = vsub.s32 0, %v7662
        %v7664 = vrot.slane %v6982, %v7663
        %v7665 = vlaneseq
        %v7666 = vshrl.u32 %v7665, 7
        %v7667 = vsub.s32 1, %v7666
        %v7668 = vrot.slane %v6982, %v7667
        %v7669 = vlaneseq
        %v7670 = vshrl.u32 %v7669, 7
        %v7671 = vsub.s32 2, %v7670
        %v7672 = vrot.slane %v6982, %v7671
        %v7673 = vlaneseq
        %v7674 = vshrl.u32 %v7673, 7
        %v7675 = vsub.s32 3, %v7674
        %v7676 = vrot.slane %v6982, %v7675
        %v7677 = vlaneseq
        %v7678 = vshrl.u32 %v7677, 7
        %v7679 = vsub.s32 0, %v7678
        %v7680 = vrot.slane %v6996, %v7679
        %v7681 = vlaneseq
        %v7682 = vshrl.u32 %v7681, 7
        %v7683 = vsub.s32 1, %v7682
        %v7684 = vrot.slane %v6996, %v7683
        %v7685 = vlaneseq
        %v7686 = vshrl.u32 %v7685, 7
        %v7687 = vsub.s32 2, %v7686
        %v7688 = vrot.slane %v6996, %v7687
        %v7689 = vlaneseq
        %v7690 = vshrl.u32 %v7689, 7
        %v7691 = vsub.s32 3, %v7690
        %v7692 = vrot.slane %v6996, %v7691
        %v7693 = vlaneseq
        %v7694 = vshrl.u32 %v7693, 7
        %v7695 = vsub.s32 0, %v7694
        %v7696 = vrot.slane %v6998, %v7695
        %v7697 = vlaneseq
        %v7698 = vshrl.u32 %v7697, 7
        %v7699 = vsub.s32 1, %v7698
        %v7700 = vrot.slane %v6998, %v7699
        %v7701 = vlaneseq
        %v7702 = vshrl.u32 %v7701, 7
        %v7703 = vsub.s32 2, %v7702
        %v7704 = vrot.slane %v6998, %v7703
        %v7705 = vlaneseq
        %v7706 = vshrl.u32 %v7705, 7
        %v7707 = vsub.s32 3, %v7706
        %v7708 = vrot.slane %v6998, %v7707
        %v7709 = vlaneseq
        %v7710 = vshrl.u32 %v7709, 7
        %v7711 = vsub.s32 0, %v7710
        %v7712 = vrot.slane %v7000, %v7711
        %v7713 = vlaneseq
        %v7714 = vshrl.u32 %v7713, 7
        %v7715 = vsub.s32 1, %v7714
        %v7716 = vrot.slane %v7000, %v7715
        %v7717 = vlaneseq
        %v7718 = vshrl.u32 %v7717, 7
        %v7719 = vsub.s32 2, %v7718
        %v7720 = vrot.slane %v7000, %v7719
        %v7721 = vlaneseq
        %v7722 = vshrl.u32 %v7721, 7
        %v7723 = vsub.s32 3, %v7722
        %v7724 = vrot.slane %v7000, %v7723
        %v7725 = vlaneseq
        %v7726 = vshrl.u32 %v7725, 7
        %v7727 = vsub.s32 0, %v7726
        %v7728 = vrot.slane %v7043, %v7727
        %v7729 = vlaneseq
        %v7730 = vshrl.u32 %v7729, 7
        %v7731 = vsub.s32 1, %v7730
        %v7732 = vrot.slane %v7043, %v7731
        %v7733 = vlaneseq
        %v7734 = vshrl.u32 %v7733, 7
        %v7735 = vsub.s32 2, %v7734
        %v7736 = vrot.slane %v7043, %v7735
        %v7737 = vlaneseq
        %v7738 = vshrl.u32 %v7737, 7
        %v7739 = vsub.s32 3, %v7738
        %v7740 = vrot.slane %v7043, %v7739
        %v7741 = vlaneseq
        %v7742 = vshrl.u32 %v7741, 7
        %v7743 = vsub.s32 0, %v7742
        %v7744 = vrot.slane %v7057, %v7743
        %v7745 = vlaneseq
        %v7746 = vshrl.u32 %v7745, 7
        %v7747 = vsub.s32 1, %v7746
        %v7748 = vrot.slane %v7057, %v7747
        %v7749 = vlaneseq
        %v7750 = vshrl.u32 %v7749, 7
        %v7751 = vsub.s32 2, %v7750
        %v7752 = vrot.slane %v7057, %v7751
        %v7753 = vlaneseq
        %v7754 = vshrl.u32 %v7753, 7
        %v7755 = vsub.s32 3, %v7754
        %v7756 = vrot.slane %v7057, %v7755
        %v7757 = vlaneseq
        %v7758 = vshrl.u32 %v7757, 7
        %v7759 = vsub.s32 0, %v7758
        %v7760 = vrot.slane %v7065, %v7759
        %v7761 = vlaneseq
        %v7762 = vshrl.u32 %v7761, 7
        %v7763 = vsub.s32 1, %v7762
        %v7764 = vrot.slane %v7065, %v7763
        %v7765 = vlaneseq
        %v7766 = vshrl.u32 %v7765, 7
        %v7767 = vsub.s32 2, %v7766
        %v7768 = vrot.slane %v7065, %v7767
        %v7769 = vlaneseq
        %v7770 = vshrl.u32 %v7769, 7
        %v7771 = vsub.s32 3, %v7770
        %v7772 = vrot.slane %v7065, %v7771
        %v7773 = vlaneseq
        %v7774 = vshrl.u32 %v7773, 7
        %v7775 = vsub.s32 0, %v7774
        %v7776 = vrot.slane %v7067, %v7775
        %v7777 = vlaneseq
        %v7778 = vshrl.u32 %v7777, 7
        %v7779 = vsub.s32 1, %v7778
        %v7780 = vrot.slane %v7067, %v7779
        %v7781 = vlaneseq
        %v7782 = vshrl.u32 %v7781, 7
        %v7783 = vsub.s32 2, %v7782
        %v7784 = vrot.slane %v7067, %v7783
        %v7785 = vlaneseq
        %v7786 = vshrl.u32 %v7785, 7
        %v7787 = vsub.s32 3, %v7786
        %v7788 = vrot.slane %v7067, %v7787
        %v7789 = vlaneseq
        %v7790 = vshrl.u32 %v7789, 7
        %v7791 = vsub.s32 0, %v7790
        %v7792 = vrot.slane %v7050, %v7791
        %v7793 = vlaneseq
        %v7794 = vshrl.u32 %v7793, 7
        %v7795 = vsub.s32 1, %v7794
        %v7796 = vrot.slane %v7050, %v7795
        %v7797 = vlaneseq
        %v7798 = vshrl.u32 %v7797, 7
        %v7799 = vsub.s32 2, %v7798
        %v7800 = vrot.slane %v7050, %v7799
        %v7801 = vlaneseq
        %v7802 = vshrl.u32 %v7801, 7
        %v7803 = vsub.s32 3, %v7802
        %v7804 = vrot.slane %v7050, %v7803
        %v7805 = vlaneseq
        %v7806 = vshrl.u32 %v7805, 7
        %v7807 = vsub.s32 0, %v7806
        %v7808 = vrot.slane %v7064, %v7807
        %v7809 = vlaneseq
        %v7810 = vshrl.u32 %v7809, 7
        %v7811 = vsub.s32 1, %v7810
        %v7812 = vrot.slane %v7064, %v7811
        %v7813 = vlaneseq
        %v7814 = vshrl.u32 %v7813, 7
        %v7815 = vsub.s32 2, %v7814
        %v7816 = vrot.slane %v7064, %v7815
        %v7817 = vlaneseq
        %v7818 = vshrl.u32 %v7817, 7
        %v7819 = vsub.s32 3, %v7818
        %v7820 = vrot.slane %v7064, %v7819
        %v7821 = vlaneseq
        %v7822 = vshrl.u32 %v7821, 7
        %v7823 = vsub.s32 0, %v7822
        %v7824 = vrot.slane %v7066, %v7823
        %v7825 = vlaneseq
        %v7826 = vshrl.u32 %v7825, 7
        %v7827 = vsub.s32 1, %v7826
        %v7828 = vrot.slane %v7066, %v7827
        %v7829 = vlaneseq
        %v7830 = vshrl.u32 %v7829, 7
        %v7831 = vsub.s32 2, %v7830
        %v7832 = vrot.slane %v7066, %v7831
        %v7833 = vlaneseq
        %v7834 = vshrl.u32 %v7833, 7
        %v7835 = vsub.s32 3, %v7834
        %v7836 = vrot.slane %v7066, %v7835
        %v7837 = vlaneseq
        %v7838 = vshrl.u32 %v7837, 7
        %v7839 = vsub.s32 0, %v7838
        %v7840 = vrot.slane %v7068, %v7839
        %v7841 = vlaneseq
        %v7842 = vshrl.u32 %v7841, 7
        %v7843 = vsub.s32 1, %v7842
        %v7844 = vrot.slane %v7068, %v7843
        %v7845 = vlaneseq
        %v7846 = vshrl.u32 %v7845, 7
        %v7847 = vsub.s32 2, %v7846
        %v7848 = vrot.slane %v7068, %v7847
        %v7849 = vlaneseq
        %v7850 = vshrl.u32 %v7849, 7
        %v7851 = vsub.s32 3, %v7850
        %v7852 = vrot.slane %v7068, %v7851
        %v7853 = vlaneseq
        %v7854 = vshrl.u32 %v7853, 7
        %v7855 = vsub.s32 0, %v7854
        %v7856 = vrot.slane %v7111, %v7855
        %v7857 = vlaneseq
        %v7858 = vshrl.u32 %v7857, 7
        %v7859 = vsub.s32 1, %v7858
        %v7860 = vrot.slane %v7111, %v7859
        %v7861 = vlaneseq
        %v7862 = vshrl.u32 %v7861, 7
        %v7863 = vsub.s32 2, %v7862
        %v7864 = vrot.slane %v7111, %v7863
        %v7865 = vlaneseq
        %v7866 = vshrl.u32 %v7865, 7
        %v7867 = vsub.s32 3, %v7866
        %v7868 = vrot.slane %v7111, %v7867
        %v7869 = vlaneseq
        %v7870 = vshrl.u32 %v7869, 7
        %v7871 = vsub.s32 0, %v7870
        %v7872 = vrot.slane %v7125, %v7871
        %v7873 = vlaneseq
        %v7874 = vshrl.u32 %v7873, 7
        %v7875 = vsub.s32 1, %v7874
        %v7876 = vrot.slane %v7125, %v7875
        %v7877 = vlaneseq
        %v7878 = vshrl.u32 %v7877, 7
        %v7879 = vsub.s32 2, %v7878
        %v7880 = vrot.slane %v7125, %v7879
        %v7881 = vlaneseq
        %v7882 = vshrl.u32 %v7881, 7
        %v7883 = vsub.s32 3, %v7882
        %v7884 = vrot.slane %v7125, %v7883
        %v7885 = vlaneseq
        %v7886 = vshrl.u32 %v7885, 7
        %v7887 = vsub.s32 0, %v7886
        %v7888 = vrot.slane %v7133, %v7887
        %v7889 = vlaneseq
        %v7890 = vshrl.u32 %v7889, 7
        %v7891 = vsub.s32 1, %v7890
        %v7892 = vrot.slane %v7133, %v7891
        %v7893 = vlaneseq
        %v7894 = vshrl.u32 %v7893, 7
        %v7895 = vsub.s32 2, %v7894
        %v7896 = vrot.slane %v7133, %v7895
        %v7897 = vlaneseq
        %v7898 = vshrl.u32 %v7897, 7
        %v7899 = vsub.s32 3, %v7898
        %v7900 = vrot.slane %v7133, %v7899
        %v7901 = vlaneseq
        %v7902 = vshrl.u32 %v7901, 7
        %v7903 = vsub.s32 0, %v7902
        %v7904 = vrot.slane %v7135, %v7903
        %v7905 = vlaneseq
        %v7906 = vshrl.u32 %v7905, 7
        %v7907 = vsub.s32 1, %v7906
        %v7908 = vrot.slane %v7135, %v7907
        %v7909 = vlaneseq
        %v7910 = vshrl.u32 %v7909, 7
        %v7911 = vsub.s32 2, %v7910
        %v7912 = vrot.slane %v7135, %v7911
        %v7913 = vlaneseq
        %v7914 = vshrl.u32 %v7913, 7
        %v7915 = vsub.s32 3, %v7914
        %v7916 = vrot.slane %v7135, %v7915
        %v7917 = vlaneseq
        %v7918 = vshrl.u32 %v7917, 7
        %v7919 = vsub.s32 0, %v7918
        %v7920 = vrot.slane %v7118, %v7919
        %v7921 = vlaneseq
        %v7922 = vshrl.u32 %v7921, 7
        %v7923 = vsub.s32 1, %v7922
        %v7924 = vrot.slane %v7118, %v7923
        %v7925 = vlaneseq
        %v7926 = vshrl.u32 %v7925, 7
        %v7927 = vsub.s32 2, %v7926
        %v7928 = vrot.slane %v7118, %v7927
        %v7929 = vlaneseq
        %v7930 = vshrl.u32 %v7929, 7
        %v7931 = vsub.s32 3, %v7930
        %v7932 = vrot.slane %v7118, %v7931
        %v7933 = vlaneseq
        %v7934 = vshrl.u32 %v7933, 7
        %v7935 = vsub.s32 0, %v7934
        %v7936 = vrot.slane %v7132, %v7935
        %v7937 = vlaneseq
        %v7938 = vshrl.u32 %v7937, 7
        %v7939 = vsub.s32 1, %v7938
        %v7940 = vrot.slane %v7132, %v7939
        %v7941 = vlaneseq
        %v7942 = vshrl.u32 %v7941, 7
        %v7943 = vsub.s32 2, %v7942
        %v7944 = vrot.slane %v7132, %v7943
        %v7945 = vlaneseq
        %v7946 = vshrl.u32 %v7945, 7
        %v7947 = vsub.s32 3, %v7946
        %v7948 = vrot.slane %v7132, %v7947
        %v7949 = vlaneseq
        %v7950 = vshrl.u32 %v7949, 7
        %v7951 = vsub.s32 0, %v7950
        %v7952 = vrot.slane %v7134, %v7951
        %v7953 = vlaneseq
        %v7954 = vshrl.u32 %v7953, 7
        %v7955 = vsub.s32 1, %v7954
        %v7956 = vrot.slane %v7134, %v7955
        %v7957 = vlaneseq
        %v7958 = vshrl.u32 %v7957, 7
        %v7959 = vsub.s32 2, %v7958
        %v7960 = vrot.slane %v7134, %v7959
        %v7961 = vlaneseq
        %v7962 = vshrl.u32 %v7961, 7
        %v7963 = vsub.s32 3, %v7962
        %v7964 = vrot.slane %v7134, %v7963
        %v7965 = vlaneseq
        %v7966 = vshrl.u32 %v7965, 7
        %v7967 = vsub.s32 0, %v7966
        %v7968 = vrot.slane %v7136, %v7967
        %v7969 = vlaneseq
        %v7970 = vshrl.u32 %v7969, 7
        %v7971 = vsub.s32 1, %v7970
        %v7972 = vrot.slane %v7136, %v7971
        %v7973 = vlaneseq
        %v7974 = vshrl.u32 %v7973, 7
        %v7975 = vsub.s32 2, %v7974
        %v7976 = vrot.slane %v7136, %v7975
        %v7977 = vlaneseq
        %v7978 = vshrl.u32 %v7977, 7
        %v7979 = vsub.s32 3, %v7978
        %v7980 = vrot.slane %v7136, %v7979
        %v7981 = vlaneseq
        %v7982 = vshrl.u32 %v7981, 7
        %v7983 = vsub.s32 0, %v7982
        %v7984 = vrot.slane %v7179, %v7983
        %v7985 = vlaneseq
        %v7986 = vshrl.u32 %v7985, 7
        %v7987 = vsub.s32 1, %v7986
        %v7988 = vrot.slane %v7179, %v7987
        %v7989 = vlaneseq
        %v7990 = vshrl.u32 %v7989, 7
        %v7991 = vsub.s32 2, %v7990
        %v7992 = vrot.slane %v7179, %v7991
        %v7993 = vlaneseq
        %v7994 = vshrl.u32 %v7993, 7
        %v7995 = vsub.s32 3, %v7994
        %v7996 = vrot.slane %v7179, %v7995
        %v7997 = vlaneseq
        %v7998 = vshrl.u32 %v7997, 7
        %v7999 = vsub.s32 0, %v7998
        %v8000 = vrot.slane %v7193, %v7999
        %v8001 = vlaneseq
        %v8002 = vshrl.u32 %v8001, 7
        %v8003 = vsub.s32 1, %v8002
        %v8004 = vrot.slane %v7193, %v8003
        %v8005 = vlaneseq
        %v8006 = vshrl.u32 %v8005, 7
        %v8007 = vsub.s32 2, %v8006
        %v8008 = vrot.slane %v7193, %v8007
        %v8009 = vlaneseq
        %v8010 = vshrl.u32 %v8009, 7
        %v8011 = vsub.s32 3, %v8010
        %v8012 = vrot.slane %v7193, %v8011
        %v8013 = vlaneseq
        %v8014 = vshrl.u32 %v8013, 7
        %v8015 = vsub.s32 0, %v8014
        %v8016 = vrot.slane %v7201, %v8015
        %v8017 = vlaneseq
        %v8018 = vshrl.u32 %v8017, 7
        %v8019 = vsub.s32 1, %v8018
        %v8020 = vrot.slane %v7201, %v8019
        %v8021 = vlaneseq
        %v8022 = vshrl.u32 %v8021, 7
        %v8023 = vsub.s32 2, %v8022
        %v8024 = vrot.slane %v7201, %v8023
        %v8025 = vlaneseq
        %v8026 = vshrl.u32 %v8025, 7
        %v8027 = vsub.s32 3, %v8026
        %v8028 = vrot.slane %v7201, %v8027
        %v8029 = vlaneseq
        %v8030 = vshrl.u32 %v8029, 7
        %v8031 = vsub.s32 0, %v8030
        %v8032 = vrot.slane %v7203, %v8031
        %v8033 = vlaneseq
        %v8034 = vshrl.u32 %v8033, 7
        %v8035 = vsub.s32 1, %v8034
        %v8036 = vrot.slane %v7203, %v8035
        %v8037 = vlaneseq
        %v8038 = vshrl.u32 %v8037, 7
        %v8039 = vsub.s32 2, %v8038
        %v8040 = vrot.slane %v7203, %v8039
        %v8041 = vlaneseq
        %v8042 = vshrl.u32 %v8041, 7
        %v8043 = vsub.s32 3, %v8042
        %v8044 = vrot.slane %v7203, %v8043
        %v8045 = vlaneseq
        %v8046 = vshrl.u32 %v8045, 7
        %v8047 = vsub.s32 0, %v8046
        %v8048 = vrot.slane %v7186, %v8047
        %v8049 = vlaneseq
        %v8050 = vshrl.u32 %v8049, 7
        %v8051 = vsub.s32 1, %v8050
        %v8052 = vrot.slane %v7186, %v8051
        %v8053 = vlaneseq
        %v8054 = vshrl.u32 %v8053, 7
        %v8055 = vsub.s32 2, %v8054
        %v8056 = vrot.slane %v7186, %v8055
        %v8057 = vlaneseq
        %v8058 = vshrl.u32 %v8057, 7
        %v8059 = vsub.s32 3, %v8058
        %v8060 = vrot.slane %v7186, %v8059
        %v8061 = vlaneseq
        %v8062 = vshrl.u32 %v8061, 7
        %v8063 = vsub.s32 0, %v8062
        %v8064 = vrot.slane %v7200, %v8063
        %v8065 = vlaneseq
        %v8066 = vshrl.u32 %v8065, 7
        %v8067 = vsub.s32 1, %v8066
        %v8068 = vrot.slane %v7200, %v8067
        %v8069 = vlaneseq
        %v8070 = vshrl.u32 %v8069, 7
        %v8071 = vsub.s32 2, %v8070
        %v8072 = vrot.slane %v7200, %v8071
        %v8073 = vlaneseq
        %v8074 = vshrl.u32 %v8073, 7
        %v8075 = vsub.s32 3, %v8074
        %v8076 = vrot.slane %v7200, %v8075
        %v8077 = vlaneseq
        %v8078 = vshrl.u32 %v8077, 7
        %v8079 = vsub.s32 0, %v8078
        %v8080 = vrot.slane %v7202, %v8079
        %v8081 = vlaneseq
        %v8082 = vshrl.u32 %v8081, 7
        %v8083 = vsub.s32 1, %v8082
        %v8084 = vrot.slane %v7202, %v8083
        %v8085 = vlaneseq
        %v8086 = vshrl.u32 %v8085, 7
        %v8087 = vsub.s32 2, %v8086
        %v8088 = vrot.slane %v7202, %v8087
        %v8089 = vlaneseq
        %v8090 = vshrl.u32 %v8089, 7
        %v8091 = vsub.s32 3, %v8090
        %v8092 = vrot.slane %v7202, %v8091
        %v8093 = vlaneseq
        %v8094 = vshrl.u32 %v8093, 7
        %v8095 = vsub.s32 0, %v8094
        %v8096 = vrot.slane %v7204, %v8095
        %v8097 = vlaneseq
        %v8098 = vshrl.u32 %v8097, 7
        %v8099 = vsub.s32 1, %v8098
        %v8100 = vrot.slane %v7204, %v8099
        %v8101 = vlaneseq
        %v8102 = vshrl.u32 %v8101, 7
        %v8103 = vsub.s32 2, %v8102
        %v8104 = vrot.slane %v7204, %v8103
        %v8105 = vlaneseq
        %v8106 = vshrl.u32 %v8105, 7
        %v8107 = vsub.s32 3, %v8106
        %v8108 = vrot.slane %v7204, %v8107
        %v8109 = vlaneseq
        %v8110 = vshrl.u32 %v8109, 7
        %v8111 = vsub.s32 0, %v8110
        %v8112 = vrot.slane %v7247, %v8111
        %v8113 = vlaneseq
        %v8114 = vshrl.u32 %v8113, 7
        %v8115 = vsub.s32 1, %v8114
        %v8116 = vrot.slane %v7247, %v8115
        %v8117 = vlaneseq
        %v8118 = vshrl.u32 %v8117, 7
        %v8119 = vsub.s32 2, %v8118
        %v8120 = vrot.slane %v7247, %v8119
        %v8121 = vlaneseq
        %v8122 = vshrl.u32 %v8121, 7
        %v8123 = vsub.s32 3, %v8122
        %v8124 = vrot.slane %v7247, %v8123
        %v8125 = vlaneseq
        %v8126 = vshrl.u32 %v8125, 7
        %v8127 = vsub.s32 0, %v8126
        %v8128 = vrot.slane %v7261, %v8127
        %v8129 = vlaneseq
        %v8130 = vshrl.u32 %v8129, 7
        %v8131 = vsub.s32 1, %v8130
        %v8132 = vrot.slane %v7261, %v8131
        %v8133 = vlaneseq
        %v8134 = vshrl.u32 %v8133, 7
        %v8135 = vsub.s32 2, %v8134
        %v8136 = vrot.slane %v7261, %v8135
        %v8137 = vlaneseq
        %v8138 = vshrl.u32 %v8137, 7
        %v8139 = vsub.s32 3, %v8138
        %v8140 = vrot.slane %v7261, %v8139
        %v8141 = vlaneseq
        %v8142 = vshrl.u32 %v8141, 7
        %v8143 = vsub.s32 0, %v8142
        %v8144 = vrot.slane %v7269, %v8143
        %v8145 = vlaneseq
        %v8146 = vshrl.u32 %v8145, 7
        %v8147 = vsub.s32 1, %v8146
        %v8148 = vrot.slane %v7269, %v8147
        %v8149 = vlaneseq
        %v8150 = vshrl.u32 %v8149, 7
        %v8151 = vsub.s32 2, %v8150
        %v8152 = vrot.slane %v7269, %v8151
        %v8153 = vlaneseq
        %v8154 = vshrl.u32 %v8153, 7
        %v8155 = vsub.s32 3, %v8154
        %v8156 = vrot.slane %v7269, %v8155
        %v8157 = vlaneseq
        %v8158 = vshrl.u32 %v8157, 7
        %v8159 = vsub.s32 0, %v8158
        %v8160 = vrot.slane %v7271, %v8159
        %v8161 = vlaneseq
        %v8162 = vshrl.u32 %v8161, 7
        %v8163 = vsub.s32 1, %v8162
        %v8164 = vrot.slane %v7271, %v8163
        %v8165 = vlaneseq
        %v8166 = vshrl.u32 %v8165, 7
        %v8167 = vsub.s32 2, %v8166
        %v8168 = vrot.slane %v7271, %v8167
        %v8169 = vlaneseq
        %v8170 = vshrl.u32 %v8169, 7
        %v8171 = vsub.s32 3, %v8170
        %v8172 = vrot.slane %v7271, %v8171
        %v8173 = vlaneseq
        %v8174 = vshrl.u32 %v8173, 7
        %v8175 = vsub.s32 0, %v8174
        %v8176 = vrot.slane %v7254, %v8175
        %v8177 = vlaneseq
        %v8178 = vshrl.u32 %v8177, 7
        %v8179 = vsub.s32 1, %v8178
        %v8180 = vrot.slane %v7254, %v8179
        %v8181 = vlaneseq
        %v8182 = vshrl.u32 %v8181, 7
        %v8183 = vsub.s32 2, %v8182
        %v8184 = vrot.slane %v7254, %v8183
        %v8185 = vlaneseq
        %v8186 = vshrl.u32 %v8185, 7
        %v8187 = vsub.s32 3, %v8186
        %v8188 = vrot.slane %v7254, %v8187
        %v8189 = vlaneseq
        %v8190 = vshrl.u32 %v8189, 7
        %v8191 = vsub.s32 0, %v8190
        %v8192 = vrot.slane %v7268, %v8191
        %v8193 = vlaneseq
        %v8194 = vshrl.u32 %v8193, 7
        %v8195 = vsub.s32 1, %v8194
        %v8196 = vrot.slane %v7268, %v8195
        %v8197 = vlaneseq
        %v8198 = vshrl.u32 %v8197, 7
        %v8199 = vsub.s32 2, %v8198
        %v8200 = vrot.slane %v7268, %v8199
        %v8201 = vlaneseq
        %v8202 = vshrl.u32 %v8201, 7
        %v8203 = vsub.s32 3, %v8202
        %v8204 = vrot.slane %v7268, %v8203
        %v8205 = vlaneseq
        %v8206 = vshrl.u32 %v8205, 7
        %v8207 = vsub.s32 0, %v8206
        %v8208 = vrot.slane %v7270, %v8207
        %v8209 = vlaneseq
        %v8210 = vshrl.u32 %v8209, 7
        %v8211 = vsub.s32 1, %v8210
        %v8212 = vrot.slane %v7270, %v8211
        %v8213 = vlaneseq
        %v8214 = vshrl.u32 %v8213, 7
        %v8215 = vsub.s32 2, %v8214
        %v8216 = vrot.slane %v7270, %v8215
        %v8217 = vlaneseq
        %v8218 = vshrl.u32 %v8217, 7
        %v8219 = vsub.s32 3, %v8218
        %v8220 = vrot.slane %v7270, %v8219
        %v8221 = vlaneseq
        %v8222 = vshrl.u32 %v8221, 7
        %v8223 = vsub.s32 0, %v8222
        %v8224 = vrot.slane %v7272, %v8223
        %v8225 = vlaneseq
        %v8226 = vshrl.u32 %v8225, 7
        %v8227 = vsub.s32 1, %v8226
        %v8228 = vrot.slane %v7272, %v8227
        %v8229 = vlaneseq
        %v8230 = vshrl.u32 %v8229, 7
        %v8231 = vsub.s32 2, %v8230
        %v8232 = vrot.slane %v7272, %v8231
        %v8233 = vlaneseq
        %v8234 = vshrl.u32 %v8233, 7
        %v8235 = vsub.s32 3, %v8234
        %v8236 = vrot.slane %v7272, %v8235
        %v8237 = vlaneseq
        %v8238 = vshrl.u32 %v8237, 7
        %v8239 = vsub.s32 0, %v8238
        %v8240 = vrot.slane %v7315, %v8239
        %v8241 = vlaneseq
        %v8242 = vshrl.u32 %v8241, 7
        %v8243 = vsub.s32 1, %v8242
        %v8244 = vrot.slane %v7315, %v8243
        %v8245 = vlaneseq
        %v8246 = vshrl.u32 %v8245, 7
        %v8247 = vsub.s32 2, %v8246
        %v8248 = vrot.slane %v7315, %v8247
        %v8249 = vlaneseq
        %v8250 = vshrl.u32 %v8249, 7
        %v8251 = vsub.s32 3, %v8250
        %v8252 = vrot.slane %v7315, %v8251
        %v8253 = vlaneseq
        %v8254 = vshrl.u32 %v8253, 7
        %v8255 = vsub.s32 0, %v8254
        %v8256 = vrot.slane %v7329, %v8255
        %v8257 = vlaneseq
        %v8258 = vshrl.u32 %v8257, 7
        %v8259 = vsub.s32 1, %v8258
        %v8260 = vrot.slane %v7329, %v8259
        %v8261 = vlaneseq
        %v8262 = vshrl.u32 %v8261, 7
        %v8263 = vsub.s32 2, %v8262
        %v8264 = vrot.slane %v7329, %v8263
        %v8265 = vlaneseq
        %v8266 = vshrl.u32 %v8265, 7
        %v8267 = vsub.s32 3, %v8266
        %v8268 = vrot.slane %v7329, %v8267
        %v8269 = vlaneseq
        %v8270 = vshrl.u32 %v8269, 7
        %v8271 = vsub.s32 0, %v8270
        %v8272 = vrot.slane %v7337, %v8271
        %v8273 = vlaneseq
        %v8274 = vshrl.u32 %v8273, 7
        %v8275 = vsub.s32 1, %v8274
        %v8276 = vrot.slane %v7337, %v8275
        %v8277 = vlaneseq
        %v8278 = vshrl.u32 %v8277, 7
        %v8279 = vsub.s32 2, %v8278
        %v8280 = vrot.slane %v7337, %v8279
        %v8281 = vlaneseq
        %v8282 = vshrl.u32 %v8281, 7
        %v8283 = vsub.s32 3, %v8282
        %v8284 = vrot.slane %v7337, %v8283
        %v8285 = vlaneseq
        %v8286 = vshrl.u32 %v8285, 7
        %v8287 = vsub.s32 0, %v8286
        %v8288 = vrot.slane %v7339, %v8287
        %v8289 = vlaneseq
        %v8290 = vshrl.u32 %v8289, 7
        %v8291 = vsub.s32 1, %v8290
        %v8292 = vrot.slane %v7339, %v8291
        %v8293 = vlaneseq
        %v8294 = vshrl.u32 %v8293, 7
        %v8295 = vsub.s32 2, %v8294
        %v8296 = vrot.slane %v7339, %v8295
        %v8297 = vlaneseq
        %v8298 = vshrl.u32 %v8297, 7
        %v8299 = vsub.s32 3, %v8298
        %v8300 = vrot.slane %v7339, %v8299
        %v8301 = vlaneseq
        %v8302 = vshrl.u32 %v8301, 7
        %v8303 = vsub.s32 0, %v8302
        %v8304 = vrot.slane %v7322, %v8303
        %v8305 = vlaneseq
        %v8306 = vshrl.u32 %v8305, 7
        %v8307 = vsub.s32 1, %v8306
        %v8308 = vrot.slane %v7322, %v8307
        %v8309 = vlaneseq
        %v8310 = vshrl.u32 %v8309, 7
        %v8311 = vsub.s32 2, %v8310
        %v8312 = vrot.slane %v7322, %v8311
        %v8313 = vlaneseq
        %v8314 = vshrl.u32 %v8313, 7
        %v8315 = vsub.s32 3, %v8314
        %v8316 = vrot.slane %v7322, %v8315
        %v8317 = vlaneseq
        %v8318 = vshrl.u32 %v8317, 7
        %v8319 = vsub.s32 0, %v8318
        %v8320 = vrot.slane %v7336, %v8319
        %v8321 = vlaneseq
        %v8322 = vshrl.u32 %v8321, 7
        %v8323 = vsub.s32 1, %v8322
        %v8324 = vrot.slane %v7336, %v8323
        %v8325 = vlaneseq
        %v8326 = vshrl.u32 %v8325, 7
        %v8327 = vsub.s32 2, %v8326
        %v8328 = vrot.slane %v7336, %v8327
        %v8329 = vlaneseq
        %v8330 = vshrl.u32 %v8329, 7
        %v8331 = vsub.s32 3, %v8330
        %v8332 = vrot.slane %v7336, %v8331
        %v8333 = vlaneseq
        %v8334 = vshrl.u32 %v8333, 7
        %v8335 = vsub.s32 0, %v8334
        %v8336 = vrot.slane %v7338, %v8335
        %v8337 = vlaneseq
        %v8338 = vshrl.u32 %v8337, 7
        %v8339 = vsub.s32 1, %v8338
        %v8340 = vrot.slane %v7338, %v8339
        %v8341 = vlaneseq
        %v8342 = vshrl.u32 %v8341, 7
        %v8343 = vsub.s32 2, %v8342
        %v8344 = vrot.slane %v7338, %v8343
        %v8345 = vlaneseq
        %v8346 = vshrl.u32 %v8345, 7
        %v8347 = vsub.s32 3, %v8346
        %v8348 = vrot.slane %v7338, %v8347
        %v8349 = vlaneseq
        %v8350 = vshrl.u32 %v8349, 7
        %v8351 = vsub.s32 0, %v8350
        %v8352 = vrot.slane %v7340, %v8351
        %v8353 = vlaneseq
        %v8354 = vshrl.u32 %v8353, 7
        %v8355 = vsub.s32 1, %v8354
        %v8356 = vrot.slane %v7340, %v8355
        %v8357 = vlaneseq
        %v8358 = vshrl.u32 %v8357, 7
        %v8359 = vsub.s32 2, %v8358
        %v8360 = vrot.slane %v7340, %v8359
        %v8361 = vlaneseq
        %v8362 = vshrl.u32 %v8361, 7
        %v8363 = vsub.s32 3, %v8362
        %v8364 = vrot.slane %v7340, %v8363
        %v8621 = vmul.f32 %v7344, %v6497
        %v8622 = vmul.f32 %v7348, %v6498
        %v8623 = vmul.f32 %v7352, %v6499
        %v8624 = vmul.f32 %v7356, %v6500
        %v8625 = vmul.f32 %v7360, %v6497
        %v8626 = vmul.f32 %v7364, %v6498
        %v8627 = vmul.f32 %v7368, %v6499
        %v8628 = vmul.f32 %v7372, %v6500
        %v8629 = vmul.f32 %v7376, %v6497
        %v8630 = vmul.f32 %v7380, %v6498
        %v8631 = vmul.f32 %v7384, %v6499
        %v8632 = vmul.f32 %v7388, %v6500
        %v8633 = vmul.f32 %v7392, %v6497
        %v8634 = vmul.f32 %v7396, %v6498
        %v8635 = vmul.f32 %v7400, %v6499
        %v8636 = vmul.f32 %v7404, %v6500
        %v8637 = vmul.f32 %v7408, %v6497
        %v8638 = vmul.f32 %v7412, %v6498
        %v8639 = vmul.f32 %v7416, %v6499
        %v8640 = vmul.f32 %v7420, %v6500
        %v8641 = vmul.f32 %v7424, %v6497
        %v8642 = vmul.f32 %v7428, %v6498
        %v8643 = vmul.f32 %v7432, %v6499
        %v8644 = vmul.f32 %v7436, %v6500
        %v8645 = vmul.f32 %v7440, %v6497
        %v8646 = vmul.f32 %v7444, %v6498
        %v8647 = vmul.f32 %v7448, %v6499
        %v8648 = vmul.f32 %v7452, %v6500
        %v8649 = vmul.f32 %v7456, %v6497
        %v8650 = vmul.f32 %v7460, %v6498
        %v8651 = vmul.f32 %v7464, %v6499
        %v8652 = vmul.f32 %v7468, %v6500
        %v8653 = vmul.f32 %v7472, %v6497
        %v8654 = vmul.f32 %v7476, %v6498
        %v8655 = vmul.f32 %v7480, %v6499
        %v8656 = vmul.f32 %v7484, %v6500
        %v8657 = vmul.f32 %v7488, %v6497
        %v8658 = vmul.f32 %v7492, %v6498
        %v8659 = vmul.f32 %v7496, %v6499
        %v8660 = vmul.f32 %v7500, %v6500
        %v8661 = vmul.f32 %v7504, %v6497
        %v8662 = vmul.f32 %v7508, %v6498
        %v8663 = vmul.f32 %v7512, %v6499
        %v8664 = vmul.f32 %v7516, %v6500
        %v8665 = vmul.f32 %v7520, %v6497
        %v8666 = vmul.f32 %v7524, %v6498
        %v8667 = vmul.f32 %v7528, %v6499
        %v8668 = vmul.f32 %v7532, %v6500
        %v8669 = vmul.f32 %v7536, %v6497
        %v8670 = vmul.f32 %v7540, %v6498
        %v8671 = vmul.f32 %v7544, %v6499
        %v8672 = vmul.f32 %v7548, %v6500
        %v8673 = vmul.f32 %v7552, %v6497
        %v8674 = vmul.f32 %v7556, %v6498
        %v8675 = vmul.f32 %v7560, %v6499
        %v8676 = vmul.f32 %v7564, %v6500
        %v8677 = vmul.f32 %v7568, %v6497
        %v8678 = vmul.f32 %v7572, %v6498
        %v8679 = vmul.f32 %v7576, %v6499
        %v8680 = vmul.f32 %v7580, %v6500
        %v8681 = vmul.f32 %v7584, %v6497
        %v8682 = vmul.f32 %v7588, %v6498
        %v8683 = vmul.f32 %v7592, %v6499
        %v8684 = vmul.f32 %v7596, %v6500
        %v8685 = vmul.f32 %v7600, %v6497
        %v8686 = vmul.f32 %v7604, %v6498
        %v8687 = vmul.f32 %v7608, %v6499
        %v8688 = vmul.f32 %v7612, %v6500
        %v8689 = vmul.f32 %v7616, %v6497
        %v8690 = vmul.f32 %v7620, %v6498
        %v8691 = vmul.f32 %v7624, %v6499
        %v8692 = vmul.f32 %v7628, %v6500
        %v8693 = vmul.f32 %v7632, %v6497
        %v8694 = vmul.f32 %v7636, %v6498
        %v8695 = vmul.f32 %v7640, %v6499
        %v8696 = vmul.f32 %v7644, %v6500
        %v8697 = vmul.f32 %v7648, %v6497
        %v8698 = vmul.f32 %v7652, %v6498
        %v8699 = vmul.f32 %v7656, %v6499
        %v8700 = vmul.f32 %v7660, %v6500
        %v8701 = vmul.f32 %v7664, %v6497
        %v8702 = vmul.f32 %v7668, %v6498
        %v8703 = vmul.f32 %v7672, %v6499
        %v8704 = vmul.f32 %v7676, %v6500
        %v8705 = vmul.f32 %v7680, %v6497
        %v8706 = vmul.f32 %v7684, %v6498
        %v8707 = vmul.f32 %v7688, %v6499
        %v8708 = vmul.f32 %v7692, %v6500
        %v8709 = vmul.f32 %v7696, %v6497
        %v8710 = vmul.f32 %v7700, %v6498
        %v8711 = vmul.f32 %v7704, %v6499
        %v8712 = vmul.f32 %v7708, %v6500
        %v8713 = vmul.f32 %v7712, %v6497
        %v8714 = vmul.f32 %v7716, %v6498
        %v8715 = vmul.f32 %v7720, %v6499
        %v8716 = vmul.f32 %v7724, %v6500
        %v8717 = vmul.f32 %v7728, %v6497
        %v8718 = vmul.f32 %v7732, %v6498
        %v8719 = vmul.f32 %v7736, %v6499
        %v8720 = vmul.f32 %v7740, %v6500
        %v8721 = vmul.f32 %v7744, %v6497
        %v8722 = vmul.f32 %v7748, %v6498
        %v8723 = vmul.f32 %v7752, %v6499
        %v8724 = vmul.f32 %v7756, %v6500
        %v8725 = vmul.f32 %v7760, %v6497
        %v8726 = vmul.f32 %v7764, %v6498
        %v8727 = vmul.f32 %v7768, %v6499
        %v8728 = vmul.f32 %v7772, %v6500
        %v8729 = vmul.f32 %v7776, %v6497
        %v8730 = vmul.f32 %v7780, %v6498
        %v8731 = vmul.f32 %v7784, %v6499
        %v8732 = vmul.f32 %v7788, %v6500
        %v8733 = vmul.f32 %v7792, %v6497
        %v8734 = vmul.f32 %v7796, %v6498
        %v8735 = vmul.f32 %v7800, %v6499
        %v8736 = vmul.f32 %v7804, %v6500
        %v8737 = vmul.f32 %v7808, %v6497
        %v8738 = vmul.f32 %v7812, %v6498
        %v8739 = vmul.f32 %v7816, %v6499
        %v8740 = vmul.f32 %v7820, %v6500
        %v8741 = vmul.f32 %v7824, %v6497
        %v8742 = vmul.f32 %v7828, %v6498
        %v8743 = vmul.f32 %v7832, %v6499
        %v8744 = vmul.f32 %v7836, %v6500
        %v8745 = vmul.f32 %v7840, %v6497
        %v8746 = vmul.f32 %v7844, %v6498
        %v8747 = vmul.f32 %v7848, %v6499
        %v8748 = vmul.f32 %v7852, %v6500
        %v8749 = vmul.f32 %v7856, %v6497
        %v8750 = vmul.f32 %v7860, %v6498
        %v8751 = vmul.f32 %v7864, %v6499
        %v8752 = vmul.f32 %v7868, %v6500
        %v8753 = vmul.f32 %v7872, %v6497
        %v8754 = vmul.f32 %v7876, %v6498
        %v8755 = vmul.f32 %v7880, %v6499
        %v8756 = vmul.f32 %v7884, %v6500
        %v8757 = vmul.f32 %v7888, %v6497
        %v8758 = vmul.f32 %v7892, %v6498
        %v8759 = vmul.f32 %v7896, %v6499
        %v8760 = vmul.f32 %v7900, %v6500
        %v8761 = vmul.f32 %v7904, %v6497
        %v8762 = vmul.f32 %v7908, %v6498
        %v8763 = vmul.f32 %v7912, %v6499
        %v8764 = vmul.f32 %v7916, %v6500
        %v8765 = vmul.f32 %v7920, %v6497
        %v8766 = vmul.f32 %v7924, %v6498
        %v8767 = vmul.f32 %v7928, %v6499
        %v8768 = vmul.f32 %v7932, %v6500
        %v8769 = vmul.f32 %v7936, %v6497
        %v8770 = vmul.f32 %v7940, %v6498
        %v8771 = vmul.f32 %v7944, %v6499
        %v8772 = vmul.f32 %v7948, %v6500
        %v8773 = vmul.f32 %v7952, %v6497
        %v8774 = vmul.f32 %v7956, %v6498
        %v8775 = vmul.f32 %v7960, %v6499
        %v8776 = vmul.f32 %v7964, %v6500
        %v8777 = vmul.f32 %v7968, %v6497
        %v8778 = vmul.f32 %v7972, %v6498
        %v8779 = vmul.f32 %v7976, %v6499
        %v8780 = vmul.f32 %v7980, %v6500
        %v8781 = vmul.f32 %v7984, %v6497
        %v8782 = vmul.f32 %v7988, %v6498
        %v8783 = vmul.f32 %v7992, %v6499
        %v8784 = vmul.f32 %v7996, %v6500
        %v8785 = vmul.f32 %v8000, %v6497
        %v8786 = vmul.f32 %v8004, %v6498
        %v8787 = vmul.f32 %v8008, %v6499
        %v8788 = vmul.f32 %v8012, %v6500
        %v8789 = vmul.f32 %v8016, %v6497
        %v8790 = vmul.f32 %v8020, %v6498
        %v8791 = vmul.f32 %v8024, %v6499
        %v8792 = vmul.f32 %v8028, %v6500
        %v8793 = vmul.f32 %v8032, %v6497
        %v8794 = vmul.f32 %v8036, %v6498
        %v8795 = vmul.f32 %v8040, %v6499
        %v8796 = vmul.f32 %v8044, %v6500
        %v8797 = vmul.f32 %v8048, %v6497
        %v8798 = vmul.f32 %v8052, %v6498
        %v8799 = vmul.f32 %v8056, %v6499
        %v8800 = vmul.f32 %v8060, %v6500
        %v8801 = vmul.f32 %v8064, %v6497
        %v8802 = vmul.f32 %v8068, %v6498
        %v8803 = vmul.f32 %v8072, %v6499
        %v8804 = vmul.f32 %v8076, %v6500
        %v8805 = vmul.f32 %v8080, %v6497
        %v8806 = vmul.f32 %v8084, %v6498
        %v8807 = vmul.f32 %v8088, %v6499
        %v8808 = vmul.f32 %v8092, %v6500
        %v8809 = vmul.f32 %v8096, %v6497
        %v8810 = vmul.f32 %v8100, %v6498
        %v8811 = vmul.f32 %v8104, %v6499
        %v8812 = vmul.f32 %v8108, %v6500
        %v8813 = vmul.f32 %v8112, %v6497
        %v8814 = vmul.f32 %v8116, %v6498
        %v8815 = vmul.f32 %v8120, %v6499
        %v8816 = vmul.f32 %v8124, %v6500
        %v8817 = vmul.f32 %v8128, %v6497
        %v8818 = vmul.f32 %v8132, %v6498
        %v8819 = vmul.f32 %v8136, %v6499
        %v8820 = vmul.f32 %v8140, %v6500
        %v8821 = vmul.f32 %v8144, %v6497
        %v8822 = vmul.f32 %v8148, %v6498
        %v8823 = vmul.f32 %v8152, %v6499
        %v8824 = vmul.f32 %v8156, %v6500
        %v8825 = vmul.f32 %v8160, %v6497
        %v8826 = vmul.f32 %v8164, %v6498
        %v8827 = vmul.f32 %v8168, %v6499
        %v8828 = vmul.f32 %v8172, %v6500
        %v8829 = vmul.f32 %v8176, %v6497
        %v8830 = vmul.f32 %v8180, %v6498
        %v8831 = vmul.f32 %v8184, %v6499
        %v8832 = vmul.f32 %v8188, %v6500
        %v8833 = vmul.f32 %v8192, %v6497
        %v8834 = vmul.f32 %v8196, %v6498
        %v8835 = vmul.f32 %v8200, %v6499
        %v8836 = vmul.f32 %v8204, %v6500
        %v8837 = vmul.f32 %v8208, %v6497
        %v8838 = vmul.f32 %v8212, %v6498
        %v8839 = vmul.f32 %v8216, %v6499
        %v8840 = vmul.f32 %v8220, %v6500
        %v8841 = vmul.f32 %v8224, %v6497
        %v8842 = vmul.f32 %v8228, %v6498
        %v8843 = vmul.f32 %v8232, %v6499
        %v8844 = vmul.f32 %v8236, %v6500
        %v8845 = vmul.f32 %v8240, %v6497
        %v8846 = vmul.f32 %v8244, %v6498
        %v8847 = vmul.f32 %v8248, %v6499
        %v8848 = vmul.f32 %v8252, %v6500
        %v8849 = vmul.f32 %v8256, %v6497
        %v8850 = vmul.f32 %v8260, %v6498
        %v8851 = vmul.f32 %v8264, %v6499
        %v8852 = vmul.f32 %v8268, %v6500
        %v8853 = vmul.f32 %v8272, %v6497
        %v8854 = vmul.f32 %v8276, %v6498
        %v8855 = vmul.f32 %v8280, %v6499
        %v8856 = vmul.f32 %v8284, %v6500
        %v8857 = vmul.f32 %v8288, %v6497
        %v8858 = vmul.f32 %v8292, %v6498
        %v8859 = vmul.f32 %v8296, %v6499
        %v8860 = vmul.f32 %v8300, %v6500
        %v8861 = vmul.f32 %v8304, %v6497
        %v8862 = vmul.f32 %v8308, %v6498
        %v8863 = vmul.f32 %v8312, %v6499
        %v8864 = vmul.f32 %v8316, %v6500
        %v8865 = vmul.f32 %v8320, %v6497
        %v8866 = vmul.f32 %v8324, %v6498
        %v8867 = vmul.f32 %v8328, %v6499
        %v8868 = vmul.f32 %v8332, %v6500
        %v8869 = vmul.f32 %v8336, %v6497
        %v8870 = vmul.f32 %v8340, %v6498
        %v8871 = vmul.f32 %v8344, %v6499
        %v8872 = vmul.f32 %v8348, %v6500
        %v8873 = vmul.f32 %v8352, %v6497
        %v8874 = vmul.f32 %v8356, %v6498
        %v8875 = vmul.f32 %v8360, %v6499
        %v8876 = vmul.f32 %v8364, %v6500
        %v8877 = vpack.c.bf16 %v8625, %v8621
        %v8878 = vpack.c.bf16 %v8626, %v8622
        %v8879 = vpack.c.bf16 %v8627, %v8623
        %v8880 = vpack.c.bf16 %v8628, %v8624
        %v8881 = vpack.c.bf16 %v8633, %v8629
        %v8882 = vpack.c.bf16 %v8634, %v8630
        %v8883 = vpack.c.bf16 %v8635, %v8631
        %v8884 = vpack.c.bf16 %v8636, %v8632
        %v8885 = vpack.c.bf16 %v8641, %v8637
        %v8886 = vpack.c.bf16 %v8642, %v8638
        %v8887 = vpack.c.bf16 %v8643, %v8639
        %v8888 = vpack.c.bf16 %v8644, %v8640
        %v8889 = vpack.c.bf16 %v8649, %v8645
        %v8890 = vpack.c.bf16 %v8650, %v8646
        %v8891 = vpack.c.bf16 %v8651, %v8647
        %v8892 = vpack.c.bf16 %v8652, %v8648
        %v8893 = vpack.c.bf16 %v8657, %v8653
        %v8894 = vpack.c.bf16 %v8658, %v8654
        %v8895 = vpack.c.bf16 %v8659, %v8655
        %v8896 = vpack.c.bf16 %v8660, %v8656
        %v8897 = vpack.c.bf16 %v8665, %v8661
        %v8898 = vpack.c.bf16 %v8666, %v8662
        %v8899 = vpack.c.bf16 %v8667, %v8663
        %v8900 = vpack.c.bf16 %v8668, %v8664
        %v8901 = vpack.c.bf16 %v8673, %v8669
        %v8902 = vpack.c.bf16 %v8674, %v8670
        %v8903 = vpack.c.bf16 %v8675, %v8671
        %v8904 = vpack.c.bf16 %v8676, %v8672
        %v8905 = vpack.c.bf16 %v8681, %v8677
        %v8906 = vpack.c.bf16 %v8682, %v8678
        %v8907 = vpack.c.bf16 %v8683, %v8679
        %v8908 = vpack.c.bf16 %v8684, %v8680
        %v8909 = vpack.c.bf16 %v8689, %v8685
        %v8910 = vpack.c.bf16 %v8690, %v8686
        %v8911 = vpack.c.bf16 %v8691, %v8687
        %v8912 = vpack.c.bf16 %v8692, %v8688
        %v8913 = vpack.c.bf16 %v8697, %v8693
        %v8914 = vpack.c.bf16 %v8698, %v8694
        %v8915 = vpack.c.bf16 %v8699, %v8695
        %v8916 = vpack.c.bf16 %v8700, %v8696
        %v8917 = vpack.c.bf16 %v8705, %v8701
        %v8918 = vpack.c.bf16 %v8706, %v8702
        %v8919 = vpack.c.bf16 %v8707, %v8703
        %v8920 = vpack.c.bf16 %v8708, %v8704
        %v8921 = vpack.c.bf16 %v8713, %v8709
        %v8922 = vpack.c.bf16 %v8714, %v8710
        %v8923 = vpack.c.bf16 %v8715, %v8711
        %v8924 = vpack.c.bf16 %v8716, %v8712
        %v8925 = vpack.c.bf16 %v8721, %v8717
        %v8926 = vpack.c.bf16 %v8722, %v8718
        %v8927 = vpack.c.bf16 %v8723, %v8719
        %v8928 = vpack.c.bf16 %v8724, %v8720
        %v8929 = vpack.c.bf16 %v8729, %v8725
        %v8930 = vpack.c.bf16 %v8730, %v8726
        %v8931 = vpack.c.bf16 %v8731, %v8727
        %v8932 = vpack.c.bf16 %v8732, %v8728
        %v8933 = vpack.c.bf16 %v8737, %v8733
        %v8934 = vpack.c.bf16 %v8738, %v8734
        %v8935 = vpack.c.bf16 %v8739, %v8735
        %v8936 = vpack.c.bf16 %v8740, %v8736
        %v8937 = vpack.c.bf16 %v8745, %v8741
        %v8938 = vpack.c.bf16 %v8746, %v8742
        %v8939 = vpack.c.bf16 %v8747, %v8743
        %v8940 = vpack.c.bf16 %v8748, %v8744
        %v8941 = vpack.c.bf16 %v8753, %v8749
        %v8942 = vpack.c.bf16 %v8754, %v8750
        %v8943 = vpack.c.bf16 %v8755, %v8751
        %v8944 = vpack.c.bf16 %v8756, %v8752
        %v8945 = vpack.c.bf16 %v8761, %v8757
        %v8946 = vpack.c.bf16 %v8762, %v8758
        %v8947 = vpack.c.bf16 %v8763, %v8759
        %v8948 = vpack.c.bf16 %v8764, %v8760
        %v8949 = vpack.c.bf16 %v8769, %v8765
        %v8950 = vpack.c.bf16 %v8770, %v8766
        %v8951 = vpack.c.bf16 %v8771, %v8767
        %v8952 = vpack.c.bf16 %v8772, %v8768
        %v8953 = vpack.c.bf16 %v8777, %v8773
        %v8954 = vpack.c.bf16 %v8778, %v8774
        %v8955 = vpack.c.bf16 %v8779, %v8775
        %v8956 = vpack.c.bf16 %v8780, %v8776
        %v8957 = vpack.c.bf16 %v8785, %v8781
        %v8958 = vpack.c.bf16 %v8786, %v8782
        %v8959 = vpack.c.bf16 %v8787, %v8783
        %v8960 = vpack.c.bf16 %v8788, %v8784
        %v8961 = vpack.c.bf16 %v8793, %v8789
        %v8962 = vpack.c.bf16 %v8794, %v8790
        %v8963 = vpack.c.bf16 %v8795, %v8791
        %v8964 = vpack.c.bf16 %v8796, %v8792
        %v8965 = vpack.c.bf16 %v8801, %v8797
        %v8966 = vpack.c.bf16 %v8802, %v8798
        %v8967 = vpack.c.bf16 %v8803, %v8799
        %v8968 = vpack.c.bf16 %v8804, %v8800
        %v8969 = vpack.c.bf16 %v8809, %v8805
        %v8970 = vpack.c.bf16 %v8810, %v8806
        %v8971 = vpack.c.bf16 %v8811, %v8807
        %v8972 = vpack.c.bf16 %v8812, %v8808
        %v8973 = vpack.c.bf16 %v8817, %v8813
        %v8974 = vpack.c.bf16 %v8818, %v8814
        %v8975 = vpack.c.bf16 %v8819, %v8815
        %v8976 = vpack.c.bf16 %v8820, %v8816
        %v8977 = vpack.c.bf16 %v8825, %v8821
        %v8978 = vpack.c.bf16 %v8826, %v8822
        %v8979 = vpack.c.bf16 %v8827, %v8823
        %v8980 = vpack.c.bf16 %v8828, %v8824
        %v8981 = vpack.c.bf16 %v8833, %v8829
        %v8982 = vpack.c.bf16 %v8834, %v8830
        %v8983 = vpack.c.bf16 %v8835, %v8831
        %v8984 = vpack.c.bf16 %v8836, %v8832
        %v8985 = vpack.c.bf16 %v8841, %v8837
        %v8986 = vpack.c.bf16 %v8842, %v8838
        %v8987 = vpack.c.bf16 %v8843, %v8839
        %v8988 = vpack.c.bf16 %v8844, %v8840
        %v8989 = vpack.c.bf16 %v8849, %v8845
        %v8990 = vpack.c.bf16 %v8850, %v8846
        %v8991 = vpack.c.bf16 %v8851, %v8847
        %v8992 = vpack.c.bf16 %v8852, %v8848
        %v8993 = vpack.c.bf16 %v8857, %v8853
        %v8994 = vpack.c.bf16 %v8858, %v8854
        %v8995 = vpack.c.bf16 %v8859, %v8855
        %v8996 = vpack.c.bf16 %v8860, %v8856
        %v8997 = vpack.c.bf16 %v8865, %v8861
        %v8998 = vpack.c.bf16 %v8866, %v8862
        %v8999 = vpack.c.bf16 %v8867, %v8863
        %v9000 = vpack.c.bf16 %v8868, %v8864
        %v9001 = vpack.c.bf16 %v8873, %v8869
        %v9002 = vpack.c.bf16 %v8874, %v8870
        %v9003 = vpack.c.bf16 %v8875, %v8871
        %v9004 = vpack.c.bf16 %v8876, %v8872
        %v9005 = vld [vmem:[#allocation5] sm:$0x44]
        %v9006 = vld [vmem:[#allocation5 + $0x8] sm:$0x44]
        %v9009 = vunpack.c.l.b16 %v9005
        %v9010 = vunpack.c.h.b16 %v9005
        %v9011 = vunpack.c.l.b16 %v9006
        %v9012 = vunpack.c.h.b16 %v9006
        %v9013 = vpack.c.b16 %v9009, %v9009
        %v9014 = vpack.c.b16 %v9010, %v9010
        %v9015 = vpack.c.b16 %v9011, %v9011
        %v9016 = vpack.c.b16 %v9012, %v9012
        %v9017 = vrot.slane %v9013, 2
        %v9018 = vrot.slane %v9014, 2
        %v9019 = vrot.slane %v9015, 2
        %v9020 = vrot.slane %v9016, 2
        %9025 = vmatprep.subr.bf16.mxu0 %v8906
        %9026 = vmatpush1.bf16.msra.mxu0 %v8905
        %9027 = vmatprep.subr.bf16.mxu0 %v8902
        %9028 = vmatpush1.bf16.msra.mxu0 %v8901
        %9029 = vmatprep.subr.bf16.mxu0 %v8898
        %9030 = vmatpush1.bf16.msra.mxu0 %v8897
        %9031 = vmatprep.subr.bf16.mxu0 %v8894
        %9032 = vmatpush1.bf16.msra.mxu0 %v8893
        %9033 = vmatprep.subr.bf16.mxu0 %v8890
        %9034 = vmatpush1.bf16.msra.mxu0 %v8889
        %9035 = vmatprep.subr.bf16.mxu0 %v8886
        %9036 = vmatpush1.bf16.msra.mxu0 %v8885
        %9037 = vmatprep.subr.bf16.mxu0 %v8882
        %9038 = vmatpush1.bf16.msra.mxu0 %v8881
        %9039 = vmatprep.subr.bf16.mxu0 %v8878
        %9040 = vmatpush1.bf16.msra.mxu0 %v8877
        %9041 = vmatprep.subr.bf16.mxu0 %v8938
        %9042 = vmatpush2.bf16.msra.mxu0 %v8937
        %9043 = vmatprep.subr.bf16.mxu0 %v8934
        %9044 = vmatpush2.bf16.msra.mxu0 %v8933
        %9045 = vmatprep.subr.bf16.mxu0 %v8930
        %9046 = vmatpush2.bf16.msra.mxu0 %v8929
        %9047 = vmatprep.subr.bf16.mxu0 %v8926
        %9048 = vmatpush2.bf16.msra.mxu0 %v8925
        %9049 = vmatprep.subr.bf16.mxu0 %v8922
        %9050 = vmatpush2.bf16.msra.mxu0 %v8921
        %9051 = vmatprep.subr.bf16.mxu0 %v8918
        %9052 = vmatpush2.bf16.msra.mxu0 %v8917
        %9053 = vmatprep.subr.bf16.mxu0 %v8914
        %9054 = vmatpush2.bf16.msra.mxu0 %v8913
        %9055 = vmatprep.subr.bf16.mxu0 %v8910
        %9056 = vmatpush2.bf16.msra.mxu0 %v8909
        %9057 = vmatprep.mubr.bf16.mxu0 %v9018
        %9058 = vmatmul.mubr.bf16.gmra.mxu0 %v9017
        %v9059 = vpop.f32.mrf.mxu0
        %v9060 = vadd.f32 0.0, %v9059
        %v9061 = vpop.f32.mrf.mxu0
        %v9062 = vadd.f32 0.0, %v9061
        %v9063 = vpop.f32.mrf.mxu0
        %v9064 = vpop.f32.mrf.mxu0
        %9065 = vdwg.mxu0
        %9066 = vmatprep.subr.bf16.mxu0 %v8970
        %9067 = vmatpush1.bf16.msra.mxu0 %v8969
        %9068 = vmatprep.subr.bf16.mxu0 %v8966
        %9069 = vmatpush1.bf16.msra.mxu0 %v8965
        %9070 = vmatprep.subr.bf16.mxu0 %v8962
        %9071 = vmatpush1.bf16.msra.mxu0 %v8961
        %9072 = vmatprep.subr.bf16.mxu0 %v8958
        %9073 = vmatpush1.bf16.msra.mxu0 %v8957
        %9074 = vmatprep.subr.bf16.mxu0 %v8954
        %9075 = vmatpush1.bf16.msra.mxu0 %v8953
        %9076 = vmatprep.subr.bf16.mxu0 %v8950
        %9077 = vmatpush1.bf16.msra.mxu0 %v8949
        %9078 = vmatprep.subr.bf16.mxu0 %v8946
        %9079 = vmatpush1.bf16.msra.mxu0 %v8945
        %9080 = vmatprep.subr.bf16.mxu0 %v8942
        %9081 = vmatpush1.bf16.msra.mxu0 %v8941
        %9082 = vmatprep.subr.bf16.mxu0 %v9002
        %9083 = vmatpush2.bf16.msra.mxu0 %v9001
        %9084 = vmatprep.subr.bf16.mxu0 %v8998
        %9085 = vmatpush2.bf16.msra.mxu0 %v8997
        %9086 = vmatprep.subr.bf16.mxu0 %v8994
        %9087 = vmatpush2.bf16.msra.mxu0 %v8993
        %9088 = vmatprep.subr.bf16.mxu0 %v8990
        %9089 = vmatpush2.bf16.msra.mxu0 %v8989
        %9090 = vmatprep.subr.bf16.mxu0 %v8986
        %9091 = vmatpush2.bf16.msra.mxu0 %v8985
        %9092 = vmatprep.subr.bf16.mxu0 %v8982
        %9093 = vmatpush2.bf16.msra.mxu0 %v8981
        %9094 = vmatprep.subr.bf16.mxu0 %v8978
        %9095 = vmatpush2.bf16.msra.mxu0 %v8977
        %9096 = vmatprep.subr.bf16.mxu0 %v8974
        %9097 = vmatpush2.bf16.msra.mxu0 %v8973
        %9098 = vmatprep.mubr.bf16.mxu0 %v9020
        %9099 = vmatmul.mubr.bf16.gmra.mxu0 %v9019
        %v9100 = vpop.f32.mrf.mxu0
        %v9101 = vadd.f32 %v9060, %v9100
        %v9102 = vpop.f32.mrf.mxu0
        %v9103 = vadd.f32 %v9062, %v9102
        %v9104 = vpop.f32.mrf.mxu0
        %v9105 = vpop.f32.mrf.mxu0
        %9106 = vdwg.mxu0
        %9107 = vmatprep.subr.bf16.mxu0 %v8908
        %9108 = vmatpush1.bf16.msra.mxu0 %v8907
        %9109 = vmatprep.subr.bf16.mxu0 %v8904
        %9110 = vmatpush1.bf16.msra.mxu0 %v8903
        %9111 = vmatprep.subr.bf16.mxu0 %v8900
        %9112 = vmatpush1.bf16.msra.mxu0 %v8899
        %9113 = vmatprep.subr.bf16.mxu0 %v8896
        %9114 = vmatpush1.bf16.msra.mxu0 %v8895
        %9115 = vmatprep.subr.bf16.mxu0 %v8892
        %9116 = vmatpush1.bf16.msra.mxu0 %v8891
        %9117 = vmatprep.subr.bf16.mxu0 %v8888
        %9118 = vmatpush1.bf16.msra.mxu0 %v8887
        %9119 = vmatprep.subr.bf16.mxu0 %v8884
        %9120 = vmatpush1.bf16.msra.mxu0 %v8883
        %9121 = vmatprep.subr.bf16.mxu0 %v8880
        %9122 = vmatpush1.bf16.msra.mxu0 %v8879
        %9123 = vmatprep.subr.bf16.mxu0 %v8940
        %9124 = vmatpush2.bf16.msra.mxu0 %v8939
        %9125 = vmatprep.subr.bf16.mxu0 %v8936
        %9126 = vmatpush2.bf16.msra.mxu0 %v8935
        %9127 = vmatprep.subr.bf16.mxu0 %v8932
        %9128 = vmatpush2.bf16.msra.mxu0 %v8931
        %9129 = vmatprep.subr.bf16.mxu0 %v8928
        %9130 = vmatpush2.bf16.msra.mxu0 %v8927
        %9131 = vmatprep.subr.bf16.mxu0 %v8924
        %9132 = vmatpush2.bf16.msra.mxu0 %v8923
        %9133 = vmatprep.subr.bf16.mxu0 %v8920
        %9134 = vmatpush2.bf16.msra.mxu0 %v8919
        %9135 = vmatprep.subr.bf16.mxu0 %v8916
        %9136 = vmatpush2.bf16.msra.mxu0 %v8915
        %9137 = vmatprep.subr.bf16.mxu0 %v8912
        %9138 = vmatpush2.bf16.msra.mxu0 %v8911
        %9139 = vmatprep.mubr.bf16.mxu0 %v9018
        %9140 = vmatmul.mubr.bf16.gmra.mxu0 %v9017
        %v9141 = vpop.f32.mrf.mxu0
        %v9142 = vadd.f32 0.0, %v9141
        %v9143 = vpop.f32.mrf.mxu0
        %v9144 = vadd.f32 0.0, %v9143
        %v9145 = vpop.f32.mrf.mxu0
        %v9146 = vpop.f32.mrf.mxu0
        %9147 = vdwg.mxu0
        %9148 = vmatprep.subr.bf16.mxu0 %v8972
        %9149 = vmatpush1.bf16.msra.mxu0 %v8971
        %9150 = vmatprep.subr.bf16.mxu0 %v8968
        %9151 = vmatpush1.bf16.msra.mxu0 %v8967
        %9152 = vmatprep.subr.bf16.mxu0 %v8964
        %9153 = vmatpush1.bf16.msra.mxu0 %v8963
        %9154 = vmatprep.subr.bf16.mxu0 %v8960
        %9155 = vmatpush1.bf16.msra.mxu0 %v8959
        %9156 = vmatprep.subr.bf16.mxu0 %v8956
        %9157 = vmatpush1.bf16.msra.mxu0 %v8955
        %9158 = vmatprep.subr.bf16.mxu0 %v8952
        %9159 = vmatpush1.bf16.msra.mxu0 %v8951
        %9160 = vmatprep.subr.bf16.mxu0 %v8948
        %9161 = vmatpush1.bf16.msra.mxu0 %v8947
        %9162 = vmatprep.subr.bf16.mxu0 %v8944
        %9163 = vmatpush1.bf16.msra.mxu0 %v8943
        %9164 = vmatprep.subr.bf16.mxu0 %v9004
        %9165 = vmatpush2.bf16.msra.mxu0 %v9003
        %9166 = vmatprep.subr.bf16.mxu0 %v9000
        %9167 = vmatpush2.bf16.msra.mxu0 %v8999
        %9168 = vmatprep.subr.bf16.mxu0 %v8996
        %9169 = vmatpush2.bf16.msra.mxu0 %v8995
        %9170 = vmatprep.subr.bf16.mxu0 %v8992
        %9171 = vmatpush2.bf16.msra.mxu0 %v8991
        %9172 = vmatprep.subr.bf16.mxu0 %v8988
        %9173 = vmatpush2.bf16.msra.mxu0 %v8987
        %9174 = vmatprep.subr.bf16.mxu0 %v8984
        %9175 = vmatpush2.bf16.msra.mxu0 %v8983
        %9176 = vmatprep.subr.bf16.mxu0 %v8980
        %9177 = vmatpush2.bf16.msra.mxu0 %v8979
        %9178 = vmatprep.subr.bf16.mxu0 %v8976
        %9179 = vmatpush2.bf16.msra.mxu0 %v8975
        %9180 = vmatprep.mubr.bf16.mxu0 %v9020
        %9181 = vmatmul.mubr.bf16.gmra.mxu0 %v9019
        %v9182 = vpop.f32.mrf.mxu0
        %v9183 = vadd.f32 %v9142, %v9182
        %v9184 = vpop.f32.mrf.mxu0
        %v9185 = vadd.f32 %v9144, %v9184
        %v9186 = vpop.f32.mrf.mxu0
        %v9187 = vpop.f32.mrf.mxu0
        %9188 = vdwg.mxu0
        %v9193 = vrot.slane %v9101, 4
        %v9194 = vrot.slane %v9103, 4
        %v9195 = vrot.slane %v9183, 4
        %v9196 = vrot.slane %v9185, 4
        %9201 = vst [vmem:[%s172] sm:$0x30] %v9193
        %9202 = vst [vmem:[%s172 + $0x8] sm:$0x30] %v9194
        %9203 = vst [vmem:[%s172 + $0x10] sm:$0x30] %v9195
        %9204 = vst [vmem:[%s172 + $0x18] sm:$0x30] %v9196
        %v9205 = vmul.f32 %v175, 15.0
        %v9206 = vmul.f32 %v177, 15.0
        %v9207 = vmul.f32 %v179, 15.0
        %v9208 = vfloor.f32 %v9205
        %v9209 = vfloor.f32 %v9206
        %v9210 = vfloor.f32 %v9207
        %v9211 = vsub.f32 %v9205, %v9208
        %v9212 = vsub.f32 %v9206, %v9209
        %v9213 = vsub.f32 %v9207, %v9210
        %v9214 = vcvt.f32.s32.to.zero.pseudo %v9208
        %v9215 = vand.u32 %v9214, 7
        %v9216 = vcvt.f32.s32.to.zero.pseudo %v9209
        %v9217 = vand.u32 %v9216, 7
        %v9218 = vcvt.f32.s32.to.zero.pseudo %v9210
        %v9219 = vand.u32 %v9218, 7
        %v9220 = vceil.f32 %v9205
        %v9221 = vcvt.f32.s32.to.zero.pseudo %v9220
        %v9222 = vand.u32 %v9221, 7
        %v9223 = vceil.f32 %v9206
        %v9224 = vcvt.f32.s32.to.zero.pseudo %v9223
        %v9225 = vand.u32 %v9224, 7
        %v9226 = vceil.f32 %v9207
        %v9227 = vcvt.f32.s32.to.zero.pseudo %v9226
        %v9228 = vand.u32 %v9227, 7
        %v9229 = vlaneseq
        %v9230 = vshrl.u32 %v9229, 7
        %v9231 = vsub.s32 0, %v9230
        %v9232 = vrot.slane %v9215, %v9231
        %v9233 = vlaneseq
        %v9234 = vshrl.u32 %v9233, 7
        %v9235 = vsub.s32 1, %v9234
        %v9236 = vrot.slane %v9215, %v9235
        %v9237 = vlaneseq
        %v9238 = vshrl.u32 %v9237, 7
        %v9239 = vsub.s32 2, %v9238
        %v9240 = vrot.slane %v9215, %v9239
        %v9241 = vlaneseq
        %v9242 = vshrl.u32 %v9241, 7
        %v9243 = vsub.s32 3, %v9242
        %v9244 = vrot.slane %v9215, %v9243
        %vm9245 = vcmp.eq.s32.totalorder %v181, %v9232
        %vm9246 = vcmp.eq.s32.totalorder %v181, %v9236
        %vm9247 = vcmp.eq.s32.totalorder %v181, %v9240
        %vm9248 = vcmp.eq.s32.totalorder %v181, %v9244
        %v9249 = vsub.f32 1.0, %v9211
        %v9251 = vlaneseq
        %v9252 = vshrl.u32 %v9251, 7
        %v9253 = vsub.s32 0, %v9252
        %v9254 = vrot.slane %v9249, %v9253
        %v9255 = vlaneseq
        %v9256 = vshrl.u32 %v9255, 7
        %v9257 = vsub.s32 1, %v9256
        %v9258 = vrot.slane %v9249, %v9257
        %v9259 = vlaneseq
        %v9260 = vshrl.u32 %v9259, 7
        %v9261 = vsub.s32 2, %v9260
        %v9262 = vrot.slane %v9249, %v9261
        %v9263 = vlaneseq
        %v9264 = vshrl.u32 %v9263, 7
        %v9265 = vsub.s32 3, %v9264
        %v9266 = vrot.slane %v9249, %v9265
        %v9271 = vsel %vm9245, %v9254, 0.0
        %v9272 = vsel %vm9246, %v9258, 0.0
        %v9273 = vsel %vm9247, %v9262, 0.0
        %v9274 = vsel %vm9248, %v9266, 0.0
        %v9275 = vlaneseq
        %v9276 = vshrl.u32 %v9275, 7
        %v9277 = vsub.s32 0, %v9276
        %v9278 = vrot.slane %v9222, %v9277
        %v9279 = vlaneseq
        %v9280 = vshrl.u32 %v9279, 7
        %v9281 = vsub.s32 1, %v9280
        %v9282 = vrot.slane %v9222, %v9281
        %v9283 = vlaneseq
        %v9284 = vshrl.u32 %v9283, 7
        %v9285 = vsub.s32 2, %v9284
        %v9286 = vrot.slane %v9222, %v9285
        %v9287 = vlaneseq
        %v9288 = vshrl.u32 %v9287, 7
        %v9289 = vsub.s32 3, %v9288
        %v9290 = vrot.slane %v9222, %v9289
        %vm9291 = vcmp.eq.s32.totalorder %v181, %v9278
        %vm9292 = vcmp.eq.s32.totalorder %v181, %v9282
        %vm9293 = vcmp.eq.s32.totalorder %v181, %v9286
        %vm9294 = vcmp.eq.s32.totalorder %v181, %v9290
        %v9296 = vlaneseq
        %v9297 = vshrl.u32 %v9296, 7
        %v9298 = vsub.s32 0, %v9297
        %v9299 = vrot.slane %v9211, %v9298
        %v9300 = vlaneseq
        %v9301 = vshrl.u32 %v9300, 7
        %v9302 = vsub.s32 1, %v9301
        %v9303 = vrot.slane %v9211, %v9302
        %v9304 = vlaneseq
        %v9305 = vshrl.u32 %v9304, 7
        %v9306 = vsub.s32 2, %v9305
        %v9307 = vrot.slane %v9211, %v9306
        %v9308 = vlaneseq
        %v9309 = vshrl.u32 %v9308, 7
        %v9310 = vsub.s32 3, %v9309
        %v9311 = vrot.slane %v9211, %v9310
        %v9316 = vsel %vm9291, %v9299, 0.0
        %v9317 = vsel %vm9292, %v9303, 0.0
        %v9318 = vsel %vm9293, %v9307, 0.0
        %v9319 = vsel %vm9294, %v9311, 0.0
        %v9320 = vadd.f32 %v9271, %v9316
        %v9321 = vadd.f32 %v9272, %v9317
        %v9322 = vadd.f32 %v9273, %v9318
        %v9323 = vadd.f32 %v9274, %v9319
        %v9324 = vlaneseq
        %v9325 = vshrl.u32 %v9324, 7
        %v9326 = vsub.s32 0, %v9325
        %v9327 = vrot.slane %v9217, %v9326
        %v9328 = vlaneseq
        %v9329 = vshrl.u32 %v9328, 7
        %v9330 = vsub.s32 1, %v9329
        %v9331 = vrot.slane %v9217, %v9330
        %v9332 = vlaneseq
        %v9333 = vshrl.u32 %v9332, 7
        %v9334 = vsub.s32 2, %v9333
        %v9335 = vrot.slane %v9217, %v9334
        %v9336 = vlaneseq
        %v9337 = vshrl.u32 %v9336, 7
        %v9338 = vsub.s32 3, %v9337
        %v9339 = vrot.slane %v9217, %v9338
        %vm9340 = vcmp.eq.s32.totalorder %v181, %v9327
        %vm9341 = vcmp.eq.s32.totalorder %v181, %v9331
        %vm9342 = vcmp.eq.s32.totalorder %v181, %v9335
        %vm9343 = vcmp.eq.s32.totalorder %v181, %v9339
        %v9344 = vsub.f32 1.0, %v9212
        %v9346 = vlaneseq
        %v9347 = vshrl.u32 %v9346, 7
        %v9348 = vsub.s32 0, %v9347
        %v9349 = vrot.slane %v9344, %v9348
        %v9350 = vlaneseq
        %v9351 = vshrl.u32 %v9350, 7
        %v9352 = vsub.s32 1, %v9351
        %v9353 = vrot.slane %v9344, %v9352
        %v9354 = vlaneseq
        %v9355 = vshrl.u32 %v9354, 7
        %v9356 = vsub.s32 2, %v9355
        %v9357 = vrot.slane %v9344, %v9356
        %v9358 = vlaneseq
        %v9359 = vshrl.u32 %v9358, 7
        %v9360 = vsub.s32 3, %v9359
        %v9361 = vrot.slane %v9344, %v9360
        %v9366 = vsel %vm9340, %v9349, 0.0
        %v9367 = vsel %vm9341, %v9353, 0.0
        %v9368 = vsel %vm9342, %v9357, 0.0
        %v9369 = vsel %vm9343, %v9361, 0.0
        %v9370 = vlaneseq
        %v9371 = vshrl.u32 %v9370, 7
        %v9372 = vsub.s32 0, %v9371
        %v9373 = vrot.slane %v9225, %v9372
        %v9374 = vlaneseq
        %v9375 = vshrl.u32 %v9374, 7
        %v9376 = vsub.s32 1, %v9375
        %v9377 = vrot.slane %v9225, %v9376
        %v9378 = vlaneseq
        %v9379 = vshrl.u32 %v9378, 7
        %v9380 = vsub.s32 2, %v9379
        %v9381 = vrot.slane %v9225, %v9380
        %v9382 = vlaneseq
        %v9383 = vshrl.u32 %v9382, 7
        %v9384 = vsub.s32 3, %v9383
        %v9385 = vrot.slane %v9225, %v9384
        %vm9386 = vcmp.eq.s32.totalorder %v181, %v9373
        %vm9387 = vcmp.eq.s32.totalorder %v181, %v9377
        %vm9388 = vcmp.eq.s32.totalorder %v181, %v9381
        %vm9389 = vcmp.eq.s32.totalorder %v181, %v9385
        %v9391 = vlaneseq
        %v9392 = vshrl.u32 %v9391, 7
        %v9393 = vsub.s32 0, %v9392
        %v9394 = vrot.slane %v9212, %v9393
        %v9395 = vlaneseq
        %v9396 = vshrl.u32 %v9395, 7
        %v9397 = vsub.s32 1, %v9396
        %v9398 = vrot.slane %v9212, %v9397
        %v9399 = vlaneseq
        %v9400 = vshrl.u32 %v9399, 7
        %v9401 = vsub.s32 2, %v9400
        %v9402 = vrot.slane %v9212, %v9401
        %v9403 = vlaneseq
        %v9404 = vshrl.u32 %v9403, 7
        %v9405 = vsub.s32 3, %v9404
        %v9406 = vrot.slane %v9212, %v9405
        %v9411 = vsel %vm9386, %v9394, 0.0
        %v9412 = vsel %vm9387, %v9398, 0.0
        %v9413 = vsel %vm9388, %v9402, 0.0
        %v9414 = vsel %vm9389, %v9406, 0.0
        %v9415 = vadd.f32 %v9366, %v9411
        %v9416 = vadd.f32 %v9367, %v9412
        %v9417 = vadd.f32 %v9368, %v9413
        %v9418 = vadd.f32 %v9369, %v9414
        %v9419 = vlaneseq
        %v9420 = vshrl.u32 %v9419, 7
        %v9421 = vsub.s32 0, %v9420
        %v9422 = vrot.slane %v9219, %v9421
        %v9423 = vlaneseq
        %v9424 = vshrl.u32 %v9423, 7
        %v9425 = vsub.s32 1, %v9424
        %v9426 = vrot.slane %v9219, %v9425
        %v9427 = vlaneseq
        %v9428 = vshrl.u32 %v9427, 7
        %v9429 = vsub.s32 2, %v9428
        %v9430 = vrot.slane %v9219, %v9429
        %v9431 = vlaneseq
        %v9432 = vshrl.u32 %v9431, 7
        %v9433 = vsub.s32 3, %v9432
        %v9434 = vrot.slane %v9219, %v9433
        %vm9435 = vcmp.eq.s32.totalorder %v181, %v9422
        %vm9436 = vcmp.eq.s32.totalorder %v181, %v9426
        %vm9437 = vcmp.eq.s32.totalorder %v181, %v9430
        %vm9438 = vcmp.eq.s32.totalorder %v181, %v9434
        %v9439 = vsub.f32 1.0, %v9213
        %v9441 = vlaneseq
        %v9442 = vshrl.u32 %v9441, 7
        %v9443 = vsub.s32 0, %v9442
        %v9444 = vrot.slane %v9439, %v9443
        %v9445 = vlaneseq
        %v9446 = vshrl.u32 %v9445, 7
        %v9447 = vsub.s32 1, %v9446
        %v9448 = vrot.slane %v9439, %v9447
        %v9449 = vlaneseq
        %v9450 = vshrl.u32 %v9449, 7
        %v9451 = vsub.s32 2, %v9450
        %v9452 = vrot.slane %v9439, %v9451
        %v9453 = vlaneseq
        %v9454 = vshrl.u32 %v9453, 7
        %v9455 = vsub.s32 3, %v9454
        %v9456 = vrot.slane %v9439, %v9455
        %v9461 = vsel %vm9435, %v9444, 0.0
        %v9462 = vsel %vm9436, %v9448, 0.0
        %v9463 = vsel %vm9437, %v9452, 0.0
        %v9464 = vsel %vm9438, %v9456, 0.0
        %v9465 = vlaneseq
        %v9466 = vshrl.u32 %v9465, 7
        %v9467 = vsub.s32 0, %v9466
        %v9468 = vrot.slane %v9228, %v9467
        %v9469 = vlaneseq
        %v9470 = vshrl.u32 %v9469, 7
        %v9471 = vsub.s32 1, %v9470
        %v9472 = vrot.slane %v9228, %v9471
        %v9473 = vlaneseq
        %v9474 = vshrl.u32 %v9473, 7
        %v9475 = vsub.s32 2, %v9474
        %v9476 = vrot.slane %v9228, %v9475
        %v9477 = vlaneseq
        %v9478 = vshrl.u32 %v9477, 7
        %v9479 = vsub.s32 3, %v9478
        %v9480 = vrot.slane %v9228, %v9479
        %vm9481 = vcmp.eq.s32.totalorder %v181, %v9468
        %vm9482 = vcmp.eq.s32.totalorder %v181, %v9472
        %vm9483 = vcmp.eq.s32.totalorder %v181, %v9476
        %vm9484 = vcmp.eq.s32.totalorder %v181, %v9480
        %v9486 = vlaneseq
        %v9487 = vshrl.u32 %v9486, 7
        %v9488 = vsub.s32 0, %v9487
        %v9489 = vrot.slane %v9213, %v9488
        %v9490 = vlaneseq
        %v9491 = vshrl.u32 %v9490, 7
        %v9492 = vsub.s32 1, %v9491
        %v9493 = vrot.slane %v9213, %v9492
        %v9494 = vlaneseq
        %v9495 = vshrl.u32 %v9494, 7
        %v9496 = vsub.s32 2, %v9495
        %v9497 = vrot.slane %v9213, %v9496
        %v9498 = vlaneseq
        %v9499 = vshrl.u32 %v9498, 7
        %v9500 = vsub.s32 3, %v9499
        %v9501 = vrot.slane %v9213, %v9500
        %v9506 = vsel %vm9481, %v9489, 0.0
        %v9507 = vsel %vm9482, %v9493, 0.0
        %v9508 = vsel %vm9483, %v9497, 0.0
        %v9509 = vsel %vm9484, %v9501, 0.0
        %v9510 = vadd.f32 %v9461, %v9506
        %v9511 = vadd.f32 %v9462, %v9507
        %v9512 = vadd.f32 %v9463, %v9508
        %v9513 = vadd.f32 %v9464, %v9509
        %v9518 = vcombine.low %v9320, %v9321
        %v9519 = vcombine.high %v9320, %v9321
        %v9520 = vcombine.low %v9322, %v9323
        %v9521 = vcombine.high %v9322, %v9323
        %v9523 = vunpack.c.l.s4 1966171168
        %v9524 = vunpack.c.0.s8 %v9523
        %v9525 = vlaneseq
        %v9526 = vshrl.u32 %v9525, 7
        %v9527 = vsub.s32 %v9524, %v9526
        %v9528 = vrot.slane %v9518, %v9527
        %v9530 = vunpack.c.l.s4 1966171168
        %v9531 = vunpack.c.0.s8 %v9530
        %v9532 = vlaneseq
        %v9533 = vshrl.u32 %v9532, 7
        %v9534 = vsub.s32 %v9531, %v9533
        %v9535 = vrot.slane %v9519, %v9534
        %v9537 = vunpack.c.l.s4 1966171168
        %v9538 = vunpack.c.0.s8 %v9537
        %v9539 = vlaneseq
        %v9540 = vshrl.u32 %v9539, 7
        %v9541 = vsub.s32 %v9538, %v9540
        %v9542 = vrot.slane %v9520, %v9541
        %v9544 = vunpack.c.l.s4 1966171168
        %v9545 = vunpack.c.0.s8 %v9544
        %v9546 = vlaneseq
        %v9547 = vshrl.u32 %v9546, 7
        %v9548 = vsub.s32 %v9545, %v9547
        %v9549 = vrot.slane %v9521, %v9548
        %v9550 = vcombine.low %v9528, %v9542
        %v9551 = vcombine.high %v9528, %v9542
        %v9552 = vcombine.low %v9535, %v9549
        %v9553 = vcombine.high %v9535, %v9549
        %v9555 = vunpack.c.l.s4 1966171168
        %v9556 = vunpack.c.0.s8 %v9555
        %v9557 = vlaneseq
        %v9558 = vshrl.u32 %v9557, 7
        %v9559 = vsub.s32 %v9556, %v9558
        %v9560 = vrot.slane %v9550, %v9559
        %v9562 = vunpack.c.l.s4 1966171168
        %v9563 = vunpack.c.0.s8 %v9562
        %v9564 = vlaneseq
        %v9565 = vshrl.u32 %v9564, 7
        %v9566 = vsub.s32 %v9563, %v9565
        %v9567 = vrot.slane %v9552, %v9566
        %v9569 = vunpack.c.l.s4 1966171168
        %v9570 = vunpack.c.0.s8 %v9569
        %v9571 = vlaneseq
        %v9572 = vshrl.u32 %v9571, 7
        %v9573 = vsub.s32 %v9570, %v9572
        %v9574 = vrot.slane %v9551, %v9573
        %v9576 = vunpack.c.l.s4 1966171168
        %v9577 = vunpack.c.0.s8 %v9576
        %v9578 = vlaneseq
        %v9579 = vshrl.u32 %v9578, 7
        %v9580 = vsub.s32 %v9577, %v9579
        %v9581 = vrot.slane %v9553, %v9580
        %v9582 = vcombine.high %v9560, %v9560
        %v9583 = vcombine.high %v9567, %v9567
        %v9584 = vcombine.high %v9574, %v9574
        %v9585 = vcombine.high %v9581, %v9581
        %v9586 = vlaneseq
        %v9587 = vshrl.u32 %v9586, 7
        %v9588 = vsub.s32 0, %v9587
        %v9589 = vrot.slane %v9560, %v9588
        %v9590 = vlaneseq
        %v9591 = vshrl.u32 %v9590, 7
        %v9592 = vsub.s32 1, %v9591
        %v9593 = vrot.slane %v9560, %v9592
        %v9594 = vlaneseq
        %v9595 = vshrl.u32 %v9594, 7
        %v9596 = vsub.s32 2, %v9595
        %v9597 = vrot.slane %v9560, %v9596
        %v9598 = vlaneseq
        %v9599 = vshrl.u32 %v9598, 7
        %v9600 = vsub.s32 3, %v9599
        %v9601 = vrot.slane %v9560, %v9600
        %v9602 = vlaneseq
        %v9603 = vshrl.u32 %v9602, 7
        %v9604 = vsub.s32 0, %v9603
        %v9605 = vrot.slane %v9574, %v9604
        %v9606 = vlaneseq
        %v9607 = vshrl.u32 %v9606, 7
        %v9608 = vsub.s32 1, %v9607
        %v9609 = vrot.slane %v9574, %v9608
        %v9610 = vlaneseq
        %v9611 = vshrl.u32 %v9610, 7
        %v9612 = vsub.s32 2, %v9611
        %v9613 = vrot.slane %v9574, %v9612
        %v9614 = vlaneseq
        %v9615 = vshrl.u32 %v9614, 7
        %v9616 = vsub.s32 3, %v9615
        %v9617 = vrot.slane %v9574, %v9616
        %v9618 = vlaneseq
        %v9619 = vshrl.u32 %v9618, 7
        %v9620 = vsub.s32 0, %v9619
        %v9621 = vrot.slane %v9582, %v9620
        %v9622 = vlaneseq
        %v9623 = vshrl.u32 %v9622, 7
        %v9624 = vsub.s32 1, %v9623
        %v9625 = vrot.slane %v9582, %v9624
        %v9626 = vlaneseq
        %v9627 = vshrl.u32 %v9626, 7
        %v9628 = vsub.s32 2, %v9627
        %v9629 = vrot.slane %v9582, %v9628
        %v9630 = vlaneseq
        %v9631 = vshrl.u32 %v9630, 7
        %v9632 = vsub.s32 3, %v9631
        %v9633 = vrot.slane %v9582, %v9632
        %v9634 = vlaneseq
        %v9635 = vshrl.u32 %v9634, 7
        %v9636 = vsub.s32 0, %v9635
        %v9637 = vrot.slane %v9584, %v9636
        %v9638 = vlaneseq
        %v9639 = vshrl.u32 %v9638, 7
        %v9640 = vsub.s32 1, %v9639
        %v9641 = vrot.slane %v9584, %v9640
        %v9642 = vlaneseq
        %v9643 = vshrl.u32 %v9642, 7
        %v9644 = vsub.s32 2, %v9643
        %v9645 = vrot.slane %v9584, %v9644
        %v9646 = vlaneseq
        %v9647 = vshrl.u32 %v9646, 7
        %v9648 = vsub.s32 3, %v9647
        %v9649 = vrot.slane %v9584, %v9648
        %v9650 = vlaneseq
        %v9651 = vshrl.u32 %v9650, 7
        %v9652 = vsub.s32 0, %v9651
        %v9653 = vrot.slane %v9567, %v9652
        %v9654 = vlaneseq
        %v9655 = vshrl.u32 %v9654, 7
        %v9656 = vsub.s32 1, %v9655
        %v9657 = vrot.slane %v9567, %v9656
        %v9658 = vlaneseq
        %v9659 = vshrl.u32 %v9658, 7
        %v9660 = vsub.s32 2, %v9659
        %v9661 = vrot.slane %v9567, %v9660
        %v9662 = vlaneseq
        %v9663 = vshrl.u32 %v9662, 7
        %v9664 = vsub.s32 3, %v9663
        %v9665 = vrot.slane %v9567, %v9664
        %v9666 = vlaneseq
        %v9667 = vshrl.u32 %v9666, 7
        %v9668 = vsub.s32 0, %v9667
        %v9669 = vrot.slane %v9581, %v9668
        %v9670 = vlaneseq
        %v9671 = vshrl.u32 %v9670, 7
        %v9672 = vsub.s32 1, %v9671
        %v9673 = vrot.slane %v9581, %v9672
        %v9674 = vlaneseq
        %v9675 = vshrl.u32 %v9674, 7
        %v9676 = vsub.s32 2, %v9675
        %v9677 = vrot.slane %v9581, %v9676
        %v9678 = vlaneseq
        %v9679 = vshrl.u32 %v9678, 7
        %v9680 = vsub.s32 3, %v9679
        %v9681 = vrot.slane %v9581, %v9680
        %v9682 = vlaneseq
        %v9683 = vshrl.u32 %v9682, 7
        %v9684 = vsub.s32 0, %v9683
        %v9685 = vrot.slane %v9583, %v9684
        %v9686 = vlaneseq
        %v9687 = vshrl.u32 %v9686, 7
        %v9688 = vsub.s32 1, %v9687
        %v9689 = vrot.slane %v9583, %v9688
        %v9690 = vlaneseq
        %v9691 = vshrl.u32 %v9690, 7
        %v9692 = vsub.s32 2, %v9691
        %v9693 = vrot.slane %v9583, %v9692
        %v9694 = vlaneseq
        %v9695 = vshrl.u32 %v9694, 7
        %v9696 = vsub.s32 3, %v9695
        %v9697 = vrot.slane %v9583, %v9696
        %v9698 = vlaneseq
        %v9699 = vshrl.u32 %v9698, 7
        %v9700 = vsub.s32 0, %v9699
        %v9701 = vrot.slane %v9585, %v9700
        %v9702 = vlaneseq
        %v9703 = vshrl.u32 %v9702, 7
        %v9704 = vsub.s32 1, %v9703
        %v9705 = vrot.slane %v9585, %v9704
        %v9706 = vlaneseq
        %v9707 = vshrl.u32 %v9706, 7
        %v9708 = vsub.s32 2, %v9707
        %v9709 = vrot.slane %v9585, %v9708
        %v9710 = vlaneseq
        %v9711 = vshrl.u32 %v9710, 7
        %v9712 = vsub.s32 3, %v9711
        %v9713 = vrot.slane %v9585, %v9712
        %v9746 = vmul.f32 %v9589, %v9415
        %v9747 = vmul.f32 %v9593, %v9416
        %v9748 = vmul.f32 %v9597, %v9417
        %v9749 = vmul.f32 %v9601, %v9418
        %v9750 = vmul.f32 %v9605, %v9415
        %v9751 = vmul.f32 %v9609, %v9416
        %v9752 = vmul.f32 %v9613, %v9417
        %v9753 = vmul.f32 %v9617, %v9418
        %v9754 = vmul.f32 %v9621, %v9415
        %v9755 = vmul.f32 %v9625, %v9416
        %v9756 = vmul.f32 %v9629, %v9417
        %v9757 = vmul.f32 %v9633, %v9418
        %v9758 = vmul.f32 %v9637, %v9415
        %v9759 = vmul.f32 %v9641, %v9416
        %v9760 = vmul.f32 %v9645, %v9417
        %v9761 = vmul.f32 %v9649, %v9418
        %v9762 = vmul.f32 %v9653, %v9415
        %v9763 = vmul.f32 %v9657, %v9416
        %v9764 = vmul.f32 %v9661, %v9417
        %v9765 = vmul.f32 %v9665, %v9418
        %v9766 = vmul.f32 %v9669, %v9415
        %v9767 = vmul.f32 %v9673, %v9416
        %v9768 = vmul.f32 %v9677, %v9417
        %v9769 = vmul.f32 %v9681, %v9418
        %v9770 = vmul.f32 %v9685, %v9415
        %v9771 = vmul.f32 %v9689, %v9416
        %v9772 = vmul.f32 %v9693, %v9417
        %v9773 = vmul.f32 %v9697, %v9418
        %v9774 = vmul.f32 %v9701, %v9415
        %v9775 = vmul.f32 %v9705, %v9416
        %v9776 = vmul.f32 %v9709, %v9417
        %v9777 = vmul.f32 %v9713, %v9418
        %v9810 = vcombine.low %v9746, %v9747
        %v9811 = vcombine.high %v9746, %v9747
        %v9812 = vcombine.low %v9748, %v9749
        %v9813 = vcombine.high %v9748, %v9749
        %v9815 = vunpack.c.l.s4 1966171168
        %v9816 = vunpack.c.0.s8 %v9815
        %v9817 = vlaneseq
        %v9818 = vshrl.u32 %v9817, 7
        %v9819 = vsub.s32 %v9816, %v9818
        %v9820 = vrot.slane %v9810, %v9819
        %v9822 = vunpack.c.l.s4 1966171168
        %v9823 = vunpack.c.0.s8 %v9822
        %v9824 = vlaneseq
        %v9825 = vshrl.u32 %v9824, 7
        %v9826 = vsub.s32 %v9823, %v9825
        %v9827 = vrot.slane %v9811, %v9826
        %v9829 = vunpack.c.l.s4 1966171168
        %v9830 = vunpack.c.0.s8 %v9829
        %v9831 = vlaneseq
        %v9832 = vshrl.u32 %v9831, 7
        %v9833 = vsub.s32 %v9830, %v9832
        %v9834 = vrot.slane %v9812, %v9833
        %v9836 = vunpack.c.l.s4 1966171168
        %v9837 = vunpack.c.0.s8 %v9836
        %v9838 = vlaneseq
        %v9839 = vshrl.u32 %v9838, 7
        %v9840 = vsub.s32 %v9837, %v9839
        %v9841 = vrot.slane %v9813, %v9840
        %v9842 = vcombine.low %v9820, %v9834
        %v9843 = vcombine.high %v9820, %v9834
        %v9844 = vcombine.low %v9827, %v9841
        %v9845 = vcombine.high %v9827, %v9841
        %v9847 = vunpack.c.l.s4 1966171168
        %v9848 = vunpack.c.0.s8 %v9847
        %v9849 = vlaneseq
        %v9850 = vshrl.u32 %v9849, 7
        %v9851 = vsub.s32 %v9848, %v9850
        %v9852 = vrot.slane %v9842, %v9851
        %v9854 = vunpack.c.l.s4 1966171168
        %v9855 = vunpack.c.0.s8 %v9854
        %v9856 = vlaneseq
        %v9857 = vshrl.u32 %v9856, 7
        %v9858 = vsub.s32 %v9855, %v9857
        %v9859 = vrot.slane %v9844, %v9858
        %v9861 = vunpack.c.l.s4 1966171168
        %v9862 = vunpack.c.0.s8 %v9861
        %v9863 = vlaneseq
        %v9864 = vshrl.u32 %v9863, 7
        %v9865 = vsub.s32 %v9862, %v9864
        %v9866 = vrot.slane %v9843, %v9865
        %v9868 = vunpack.c.l.s4 1966171168
        %v9869 = vunpack.c.0.s8 %v9868
        %v9870 = vlaneseq
        %v9871 = vshrl.u32 %v9870, 7
        %v9872 = vsub.s32 %v9869, %v9871
        %v9873 = vrot.slane %v9845, %v9872
        %v9874 = vcombine.high %v9852, %v9852
        %v9875 = vcombine.high %v9859, %v9859
        %v9876 = vcombine.high %v9866, %v9866
        %v9877 = vcombine.high %v9873, %v9873
        %v9878 = vcombine.low %v9750, %v9751
        %v9879 = vcombine.high %v9750, %v9751
        %v9880 = vcombine.low %v9752, %v9753
        %v9881 = vcombine.high %v9752, %v9753
        %v9883 = vunpack.c.l.s4 1966171168
        %v9884 = vunpack.c.0.s8 %v9883
        %v9885 = vlaneseq
        %v9886 = vshrl.u32 %v9885, 7
        %v9887 = vsub.s32 %v9884, %v9886
        %v9888 = vrot.slane %v9878, %v9887
        %v9890 = vunpack.c.l.s4 1966171168
        %v9891 = vunpack.c.0.s8 %v9890
        %v9892 = vlaneseq
        %v9893 = vshrl.u32 %v9892, 7
        %v9894 = vsub.s32 %v9891, %v9893
        %v9895 = vrot.slane %v9879, %v9894
        %v9897 = vunpack.c.l.s4 1966171168
        %v9898 = vunpack.c.0.s8 %v9897
        %v9899 = vlaneseq
        %v9900 = vshrl.u32 %v9899, 7
        %v9901 = vsub.s32 %v9898, %v9900
        %v9902 = vrot.slane %v9880, %v9901
        %v9904 = vunpack.c.l.s4 1966171168
        %v9905 = vunpack.c.0.s8 %v9904
        %v9906 = vlaneseq
        %v9907 = vshrl.u32 %v9906, 7
        %v9908 = vsub.s32 %v9905, %v9907
        %v9909 = vrot.slane %v9881, %v9908
        %v9910 = vcombine.low %v9888, %v9902
        %v9911 = vcombine.high %v9888, %v9902
        %v9912 = vcombine.low %v9895, %v9909
        %v9913 = vcombine.high %v9895, %v9909
        %v9915 = vunpack.c.l.s4 1966171168
        %v9916 = vunpack.c.0.s8 %v9915
        %v9917 = vlaneseq
        %v9918 = vshrl.u32 %v9917, 7
        %v9919 = vsub.s32 %v9916, %v9918
        %v9920 = vrot.slane %v9910, %v9919
        %v9922 = vunpack.c.l.s4 1966171168
        %v9923 = vunpack.c.0.s8 %v9922
        %v9924 = vlaneseq
        %v9925 = vshrl.u32 %v9924, 7
        %v9926 = vsub.s32 %v9923, %v9925
        %v9927 = vrot.slane %v9912, %v9926
        %v9929 = vunpack.c.l.s4 1966171168
        %v9930 = vunpack.c.0.s8 %v9929
        %v9931 = vlaneseq
        %v9932 = vshrl.u32 %v9931, 7
        %v9933 = vsub.s32 %v9930, %v9932
        %v9934 = vrot.slane %v9911, %v9933
        %v9936 = vunpack.c.l.s4 1966171168
        %v9937 = vunpack.c.0.s8 %v9936
        %v9938 = vlaneseq
        %v9939 = vshrl.u32 %v9938, 7
        %v9940 = vsub.s32 %v9937, %v9939
        %v9941 = vrot.slane %v9913, %v9940
        %v9942 = vcombine.high %v9920, %v9920
        %v9943 = vcombine.high %v9927, %v9927
        %v9944 = vcombine.high %v9934, %v9934
        %v9945 = vcombine.high %v9941, %v9941
        %v9946 = vcombine.low %v9754, %v9755
        %v9947 = vcombine.high %v9754, %v9755
        %v9948 = vcombine.low %v9756, %v9757
        %v9949 = vcombine.high %v9756, %v9757
        %v9951 = vunpack.c.l.s4 1966171168
        %v9952 = vunpack.c.0.s8 %v9951
        %v9953 = vlaneseq
        %v9954 = vshrl.u32 %v9953, 7
        %v9955 = vsub.s32 %v9952, %v9954
        %v9956 = vrot.slane %v9946, %v9955
        %v9958 = vunpack.c.l.s4 1966171168
        %v9959 = vunpack.c.0.s8 %v9958
        %v9960 = vlaneseq
        %v9961 = vshrl.u32 %v9960, 7
        %v9962 = vsub.s32 %v9959, %v9961
        %v9963 = vrot.slane %v9947, %v9962
        %v9965 = vunpack.c.l.s4 1966171168
        %v9966 = vunpack.c.0.s8 %v9965
        %v9967 = vlaneseq
        %v9968 = vshrl.u32 %v9967, 7
        %v9969 = vsub.s32 %v9966, %v9968
        %v9970 = vrot.slane %v9948, %v9969
        %v9972 = vunpack.c.l.s4 1966171168
        %v9973 = vunpack.c.0.s8 %v9972
        %v9974 = vlaneseq
        %v9975 = vshrl.u32 %v9974, 7
        %v9976 = vsub.s32 %v9973, %v9975
        %v9977 = vrot.slane %v9949, %v9976
        %v9978 = vcombine.low %v9956, %v9970
        %v9979 = vcombine.high %v9956, %v9970
        %v9980 = vcombine.low %v9963, %v9977
        %v9981 = vcombine.high %v9963, %v9977
        %v9983 = vunpack.c.l.s4 1966171168
        %v9984 = vunpack.c.0.s8 %v9983
        %v9985 = vlaneseq
        %v9986 = vshrl.u32 %v9985, 7
        %v9987 = vsub.s32 %v9984, %v9986
        %v9988 = vrot.slane %v9978, %v9987
        %v9990 = vunpack.c.l.s4 1966171168
        %v9991 = vunpack.c.0.s8 %v9990
        %v9992 = vlaneseq
        %v9993 = vshrl.u32 %v9992, 7
        %v9994 = vsub.s32 %v9991, %v9993
        %v9995 = vrot.slane %v9980, %v9994
        %v9997 = vunpack.c.l.s4 1966171168
        %v9998 = vunpack.c.0.s8 %v9997
        %v9999 = vlaneseq
        %v10000 = vshrl.u32 %v9999, 7
        %v10001 = vsub.s32 %v9998, %v10000
        %v10002 = vrot.slane %v9979, %v10001
        %v10004 = vunpack.c.l.s4 1966171168
        %v10005 = vunpack.c.0.s8 %v10004
        %v10006 = vlaneseq
        %v10007 = vshrl.u32 %v10006, 7
        %v10008 = vsub.s32 %v10005, %v10007
        %v10009 = vrot.slane %v9981, %v10008
        %v10010 = vcombine.high %v9988, %v9988
        %v10011 = vcombine.high %v9995, %v9995
        %v10012 = vcombine.high %v10002, %v10002
        %v10013 = vcombine.high %v10009, %v10009
        %v10014 = vcombine.low %v9758, %v9759
        %v10015 = vcombine.high %v9758, %v9759
        %v10016 = vcombine.low %v9760, %v9761
        %v10017 = vcombine.high %v9760, %v9761
        %v10019 = vunpack.c.l.s4 1966171168
        %v10020 = vunpack.c.0.s8 %v10019
        %v10021 = vlaneseq
        %v10022 = vshrl.u32 %v10021, 7
        %v10023 = vsub.s32 %v10020, %v10022
        %v10024 = vrot.slane %v10014, %v10023
        %v10026 = vunpack.c.l.s4 1966171168
        %v10027 = vunpack.c.0.s8 %v10026
        %v10028 = vlaneseq
        %v10029 = vshrl.u32 %v10028, 7
        %v10030 = vsub.s32 %v10027, %v10029
        %v10031 = vrot.slane %v10015, %v10030
        %v10033 = vunpack.c.l.s4 1966171168
        %v10034 = vunpack.c.0.s8 %v10033
        %v10035 = vlaneseq
        %v10036 = vshrl.u32 %v10035, 7
        %v10037 = vsub.s32 %v10034, %v10036
        %v10038 = vrot.slane %v10016, %v10037
        %v10040 = vunpack.c.l.s4 1966171168
        %v10041 = vunpack.c.0.s8 %v10040
        %v10042 = vlaneseq
        %v10043 = vshrl.u32 %v10042, 7
        %v10044 = vsub.s32 %v10041, %v10043
        %v10045 = vrot.slane %v10017, %v10044
        %v10046 = vcombine.low %v10024, %v10038
        %v10047 = vcombine.high %v10024, %v10038
        %v10048 = vcombine.low %v10031, %v10045
        %v10049 = vcombine.high %v10031, %v10045
        %v10051 = vunpack.c.l.s4 1966171168
        %v10052 = vunpack.c.0.s8 %v10051
        %v10053 = vlaneseq
        %v10054 = vshrl.u32 %v10053, 7
        %v10055 = vsub.s32 %v10052, %v10054
        %v10056 = vrot.slane %v10046, %v10055
        %v10058 = vunpack.c.l.s4 1966171168
        %v10059 = vunpack.c.0.s8 %v10058
        %v10060 = vlaneseq
        %v10061 = vshrl.u32 %v10060, 7
        %v10062 = vsub.s32 %v10059, %v10061
        %v10063 = vrot.slane %v10048, %v10062
        %v10065 = vunpack.c.l.s4 1966171168
        %v10066 = vunpack.c.0.s8 %v10065
        %v10067 = vlaneseq
        %v10068 = vshrl.u32 %v10067, 7
        %v10069 = vsub.s32 %v10066, %v10068
        %v10070 = vrot.slane %v10047, %v10069
        %v10072 = vunpack.c.l.s4 1966171168
        %v10073 = vunpack.c.0.s8 %v10072
        %v10074 = vlaneseq
        %v10075 = vshrl.u32 %v10074, 7
        %v10076 = vsub.s32 %v10073, %v10075
        %v10077 = vrot.slane %v10049, %v10076
        %v10078 = vcombine.high %v10056, %v10056
        %v10079 = vcombine.high %v10063, %v10063
        %v10080 = vcombine.high %v10070, %v10070
        %v10081 = vcombine.high %v10077, %v10077
        %v10082 = vcombine.low %v9762, %v9763
        %v10083 = vcombine.high %v9762, %v9763
        %v10084 = vcombine.low %v9764, %v9765
        %v10085 = vcombine.high %v9764, %v9765
        %v10087 = vunpack.c.l.s4 1966171168
        %v10088 = vunpack.c.0.s8 %v10087
        %v10089 = vlaneseq
        %v10090 = vshrl.u32 %v10089, 7
        %v10091 = vsub.s32 %v10088, %v10090
        %v10092 = vrot.slane %v10082, %v10091
        %v10094 = vunpack.c.l.s4 1966171168
        %v10095 = vunpack.c.0.s8 %v10094
        %v10096 = vlaneseq
        %v10097 = vshrl.u32 %v10096, 7
        %v10098 = vsub.s32 %v10095, %v10097
        %v10099 = vrot.slane %v10083, %v10098
        %v10101 = vunpack.c.l.s4 1966171168
        %v10102 = vunpack.c.0.s8 %v10101
        %v10103 = vlaneseq
        %v10104 = vshrl.u32 %v10103, 7
        %v10105 = vsub.s32 %v10102, %v10104
        %v10106 = vrot.slane %v10084, %v10105
        %v10108 = vunpack.c.l.s4 1966171168
        %v10109 = vunpack.c.0.s8 %v10108
        %v10110 = vlaneseq
        %v10111 = vshrl.u32 %v10110, 7
        %v10112 = vsub.s32 %v10109, %v10111
        %v10113 = vrot.slane %v10085, %v10112
        %v10114 = vcombine.low %v10092, %v10106
        %v10115 = vcombine.high %v10092, %v10106
        %v10116 = vcombine.low %v10099, %v10113
        %v10117 = vcombine.high %v10099, %v10113
        %v10119 = vunpack.c.l.s4 1966171168
        %v10120 = vunpack.c.0.s8 %v10119
        %v10121 = vlaneseq
        %v10122 = vshrl.u32 %v10121, 7
        %v10123 = vsub.s32 %v10120, %v10122
        %v10124 = vrot.slane %v10114, %v10123
        %v10126 = vunpack.c.l.s4 1966171168
        %v10127 = vunpack.c.0.s8 %v10126
        %v10128 = vlaneseq
        %v10129 = vshrl.u32 %v10128, 7
        %v10130 = vsub.s32 %v10127, %v10129
        %v10131 = vrot.slane %v10116, %v10130
        %v10133 = vunpack.c.l.s4 1966171168
        %v10134 = vunpack.c.0.s8 %v10133
        %v10135 = vlaneseq
        %v10136 = vshrl.u32 %v10135, 7
        %v10137 = vsub.s32 %v10134, %v10136
        %v10138 = vrot.slane %v10115, %v10137
        %v10140 = vunpack.c.l.s4 1966171168
        %v10141 = vunpack.c.0.s8 %v10140
        %v10142 = vlaneseq
        %v10143 = vshrl.u32 %v10142, 7
        %v10144 = vsub.s32 %v10141, %v10143
        %v10145 = vrot.slane %v10117, %v10144
        %v10146 = vcombine.high %v10124, %v10124
        %v10147 = vcombine.high %v10131, %v10131
        %v10148 = vcombine.high %v10138, %v10138
        %v10149 = vcombine.high %v10145, %v10145
        %v10150 = vcombine.low %v9766, %v9767
        %v10151 = vcombine.high %v9766, %v9767
        %v10152 = vcombine.low %v9768, %v9769
        %v10153 = vcombine.high %v9768, %v9769
        %v10155 = vunpack.c.l.s4 1966171168
        %v10156 = vunpack.c.0.s8 %v10155
        %v10157 = vlaneseq
        %v10158 = vshrl.u32 %v10157, 7
        %v10159 = vsub.s32 %v10156, %v10158
        %v10160 = vrot.slane %v10150, %v10159
        %v10162 = vunpack.c.l.s4 1966171168
        %v10163 = vunpack.c.0.s8 %v10162
        %v10164 = vlaneseq
        %v10165 = vshrl.u32 %v10164, 7
        %v10166 = vsub.s32 %v10163, %v10165
        %v10167 = vrot.slane %v10151, %v10166
        %v10169 = vunpack.c.l.s4 1966171168
        %v10170 = vunpack.c.0.s8 %v10169
        %v10171 = vlaneseq
        %v10172 = vshrl.u32 %v10171, 7
        %v10173 = vsub.s32 %v10170, %v10172
        %v10174 = vrot.slane %v10152, %v10173
        %v10176 = vunpack.c.l.s4 1966171168
        %v10177 = vunpack.c.0.s8 %v10176
        %v10178 = vlaneseq
        %v10179 = vshrl.u32 %v10178, 7
        %v10180 = vsub.s32 %v10177, %v10179
        %v10181 = vrot.slane %v10153, %v10180
        %v10182 = vcombine.low %v10160, %v10174
        %v10183 = vcombine.high %v10160, %v10174
        %v10184 = vcombine.low %v10167, %v10181
        %v10185 = vcombine.high %v10167, %v10181
        %v10187 = vunpack.c.l.s4 1966171168
        %v10188 = vunpack.c.0.s8 %v10187
        %v10189 = vlaneseq
        %v10190 = vshrl.u32 %v10189, 7
        %v10191 = vsub.s32 %v10188, %v10190
        %v10192 = vrot.slane %v10182, %v10191
        %v10194 = vunpack.c.l.s4 1966171168
        %v10195 = vunpack.c.0.s8 %v10194
        %v10196 = vlaneseq
        %v10197 = vshrl.u32 %v10196, 7
        %v10198 = vsub.s32 %v10195, %v10197
        %v10199 = vrot.slane %v10184, %v10198
        %v10201 = vunpack.c.l.s4 1966171168
        %v10202 = vunpack.c.0.s8 %v10201
        %v10203 = vlaneseq
        %v10204 = vshrl.u32 %v10203, 7
        %v10205 = vsub.s32 %v10202, %v10204
        %v10206 = vrot.slane %v10183, %v10205
        %v10208 = vunpack.c.l.s4 1966171168
        %v10209 = vunpack.c.0.s8 %v10208
        %v10210 = vlaneseq
        %v10211 = vshrl.u32 %v10210, 7
        %v10212 = vsub.s32 %v10209, %v10211
        %v10213 = vrot.slane %v10185, %v10212
        %v10214 = vcombine.high %v10192, %v10192
        %v10215 = vcombine.high %v10199, %v10199
        %v10216 = vcombine.high %v10206, %v10206
        %v10217 = vcombine.high %v10213, %v10213
        %v10218 = vcombine.low %v9770, %v9771
        %v10219 = vcombine.high %v9770, %v9771
        %v10220 = vcombine.low %v9772, %v9773
        %v10221 = vcombine.high %v9772, %v9773
        %v10223 = vunpack.c.l.s4 1966171168
        %v10224 = vunpack.c.0.s8 %v10223
        %v10225 = vlaneseq
        %v10226 = vshrl.u32 %v10225, 7
        %v10227 = vsub.s32 %v10224, %v10226
        %v10228 = vrot.slane %v10218, %v10227
        %v10230 = vunpack.c.l.s4 1966171168
        %v10231 = vunpack.c.0.s8 %v10230
        %v10232 = vlaneseq
        %v10233 = vshrl.u32 %v10232, 7
        %v10234 = vsub.s32 %v10231, %v10233
        %v10235 = vrot.slane %v10219, %v10234
        %v10237 = vunpack.c.l.s4 1966171168
        %v10238 = vunpack.c.0.s8 %v10237
        %v10239 = vlaneseq
        %v10240 = vshrl.u32 %v10239, 7
        %v10241 = vsub.s32 %v10238, %v10240
        %v10242 = vrot.slane %v10220, %v10241
        %v10244 = vunpack.c.l.s4 1966171168
        %v10245 = vunpack.c.0.s8 %v10244
        %v10246 = vlaneseq
        %v10247 = vshrl.u32 %v10246, 7
        %v10248 = vsub.s32 %v10245, %v10247
        %v10249 = vrot.slane %v10221, %v10248
        %v10250 = vcombine.low %v10228, %v10242
        %v10251 = vcombine.high %v10228, %v10242
        %v10252 = vcombine.low %v10235, %v10249
        %v10253 = vcombine.high %v10235, %v10249
        %v10255 = vunpack.c.l.s4 1966171168
        %v10256 = vunpack.c.0.s8 %v10255
        %v10257 = vlaneseq
        %v10258 = vshrl.u32 %v10257, 7
        %v10259 = vsub.s32 %v10256, %v10258
        %v10260 = vrot.slane %v10250, %v10259
        %v10262 = vunpack.c.l.s4 1966171168
        %v10263 = vunpack.c.0.s8 %v10262
        %v10264 = vlaneseq
        %v10265 = vshrl.u32 %v10264, 7
        %v10266 = vsub.s32 %v10263, %v10265
        %v10267 = vrot.slane %v10252, %v10266
        %v10269 = vunpack.c.l.s4 1966171168
        %v10270 = vunpack.c.0.s8 %v10269
        %v10271 = vlaneseq
        %v10272 = vshrl.u32 %v10271, 7
        %v10273 = vsub.s32 %v10270, %v10272
        %v10274 = vrot.slane %v10251, %v10273
        %v10276 = vunpack.c.l.s4 1966171168
        %v10277 = vunpack.c.0.s8 %v10276
        %v10278 = vlaneseq
        %v10279 = vshrl.u32 %v10278, 7
        %v10280 = vsub.s32 %v10277, %v10279
        %v10281 = vrot.slane %v10253, %v10280
        %v10282 = vcombine.high %v10260, %v10260
        %v10283 = vcombine.high %v10267, %v10267
        %v10284 = vcombine.high %v10274, %v10274
        %v10285 = vcombine.high %v10281, %v10281
        %v10286 = vcombine.low %v9774, %v9775
        %v10287 = vcombine.high %v9774, %v9775
        %v10288 = vcombine.low %v9776, %v9777
        %v10289 = vcombine.high %v9776, %v9777
        %v10291 = vunpack.c.l.s4 1966171168
        %v10292 = vunpack.c.0.s8 %v10291
        %v10293 = vlaneseq
        %v10294 = vshrl.u32 %v10293, 7
        %v10295 = vsub.s32 %v10292, %v10294
        %v10296 = vrot.slane %v10286, %v10295
        %v10298 = vunpack.c.l.s4 1966171168
        %v10299 = vunpack.c.0.s8 %v10298
        %v10300 = vlaneseq
        %v10301 = vshrl.u32 %v10300, 7
        %v10302 = vsub.s32 %v10299, %v10301
        %v10303 = vrot.slane %v10287, %v10302
        %v10305 = vunpack.c.l.s4 1966171168
        %v10306 = vunpack.c.0.s8 %v10305
        %v10307 = vlaneseq
        %v10308 = vshrl.u32 %v10307, 7
        %v10309 = vsub.s32 %v10306, %v10308
        %v10310 = vrot.slane %v10288, %v10309
        %v10312 = vunpack.c.l.s4 1966171168
        %v10313 = vunpack.c.0.s8 %v10312
        %v10314 = vlaneseq
        %v10315 = vshrl.u32 %v10314, 7
        %v10316 = vsub.s32 %v10313, %v10315
        %v10317 = vrot.slane %v10289, %v10316
        %v10318 = vcombine.low %v10296, %v10310
        %v10319 = vcombine.high %v10296, %v10310
        %v10320 = vcombine.low %v10303, %v10317
        %v10321 = vcombine.high %v10303, %v10317
        %v10323 = vunpack.c.l.s4 1966171168
        %v10324 = vunpack.c.0.s8 %v10323
        %v10325 = vlaneseq
        %v10326 = vshrl.u32 %v10325, 7
        %v10327 = vsub.s32 %v10324, %v10326
        %v10328 = vrot.slane %v10318, %v10327
        %v10330 = vunpack.c.l.s4 1966171168
        %v10331 = vunpack.c.0.s8 %v10330
        %v10332 = vlaneseq
        %v10333 = vshrl.u32 %v10332, 7
        %v10334 = vsub.s32 %v10331, %v10333
        %v10335 = vrot.slane %v10320, %v10334
        %v10337 = vunpack.c.l.s4 1966171168
        %v10338 = vunpack.c.0.s8 %v10337
        %v10339 = vlaneseq
        %v10340 = vshrl.u32 %v10339, 7
        %v10341 = vsub.s32 %v10338, %v10340
        %v10342 = vrot.slane %v10319, %v10341
        %v10344 = vunpack.c.l.s4 1966171168
        %v10345 = vunpack.c.0.s8 %v10344
        %v10346 = vlaneseq
        %v10347 = vshrl.u32 %v10346, 7
        %v10348 = vsub.s32 %v10345, %v10347
        %v10349 = vrot.slane %v10321, %v10348
        %v10350 = vcombine.high %v10328, %v10328
        %v10351 = vcombine.high %v10335, %v10335
        %v10352 = vcombine.high %v10342, %v10342
        %v10353 = vcombine.high %v10349, %v10349
        %v10354 = vlaneseq
        %v10355 = vshrl.u32 %v10354, 7
        %v10356 = vsub.s32 0, %v10355
        %v10357 = vrot.slane %v9852, %v10356
        %v10358 = vlaneseq
        %v10359 = vshrl.u32 %v10358, 7
        %v10360 = vsub.s32 1, %v10359
        %v10361 = vrot.slane %v9852, %v10360
        %v10362 = vlaneseq
        %v10363 = vshrl.u32 %v10362, 7
        %v10364 = vsub.s32 2, %v10363
        %v10365 = vrot.slane %v9852, %v10364
        %v10366 = vlaneseq
        %v10367 = vshrl.u32 %v10366, 7
        %v10368 = vsub.s32 3, %v10367
        %v10369 = vrot.slane %v9852, %v10368
        %v10370 = vlaneseq
        %v10371 = vshrl.u32 %v10370, 7
        %v10372 = vsub.s32 0, %v10371
        %v10373 = vrot.slane %v9866, %v10372
        %v10374 = vlaneseq
        %v10375 = vshrl.u32 %v10374, 7
        %v10376 = vsub.s32 1, %v10375
        %v10377 = vrot.slane %v9866, %v10376
        %v10378 = vlaneseq
        %v10379 = vshrl.u32 %v10378, 7
        %v10380 = vsub.s32 2, %v10379
        %v10381 = vrot.slane %v9866, %v10380
        %v10382 = vlaneseq
        %v10383 = vshrl.u32 %v10382, 7
        %v10384 = vsub.s32 3, %v10383
        %v10385 = vrot.slane %v9866, %v10384
        %v10386 = vlaneseq
        %v10387 = vshrl.u32 %v10386, 7
        %v10388 = vsub.s32 0, %v10387
        %v10389 = vrot.slane %v9874, %v10388
        %v10390 = vlaneseq
        %v10391 = vshrl.u32 %v10390, 7
        %v10392 = vsub.s32 1, %v10391
        %v10393 = vrot.slane %v9874, %v10392
        %v10394 = vlaneseq
        %v10395 = vshrl.u32 %v10394, 7
        %v10396 = vsub.s32 2, %v10395
        %v10397 = vrot.slane %v9874, %v10396
        %v10398 = vlaneseq
        %v10399 = vshrl.u32 %v10398, 7
        %v10400 = vsub.s32 3, %v10399
        %v10401 = vrot.slane %v9874, %v10400
        %v10402 = vlaneseq
        %v10403 = vshrl.u32 %v10402, 7
        %v10404 = vsub.s32 0, %v10403
        %v10405 = vrot.slane %v9876, %v10404
        %v10406 = vlaneseq
        %v10407 = vshrl.u32 %v10406, 7
        %v10408 = vsub.s32 1, %v10407
        %v10409 = vrot.slane %v9876, %v10408
        %v10410 = vlaneseq
        %v10411 = vshrl.u32 %v10410, 7
        %v10412 = vsub.s32 2, %v10411
        %v10413 = vrot.slane %v9876, %v10412
        %v10414 = vlaneseq
        %v10415 = vshrl.u32 %v10414, 7
        %v10416 = vsub.s32 3, %v10415
        %v10417 = vrot.slane %v9876, %v10416
        %v10418 = vlaneseq
        %v10419 = vshrl.u32 %v10418, 7
        %v10420 = vsub.s32 0, %v10419
        %v10421 = vrot.slane %v9859, %v10420
        %v10422 = vlaneseq
        %v10423 = vshrl.u32 %v10422, 7
        %v10424 = vsub.s32 1, %v10423
        %v10425 = vrot.slane %v9859, %v10424
        %v10426 = vlaneseq
        %v10427 = vshrl.u32 %v10426, 7
        %v10428 = vsub.s32 2, %v10427
        %v10429 = vrot.slane %v9859, %v10428
        %v10430 = vlaneseq
        %v10431 = vshrl.u32 %v10430, 7
        %v10432 = vsub.s32 3, %v10431
        %v10433 = vrot.slane %v9859, %v10432
        %v10434 = vlaneseq
        %v10435 = vshrl.u32 %v10434, 7
        %v10436 = vsub.s32 0, %v10435
        %v10437 = vrot.slane %v9873, %v10436
        %v10438 = vlaneseq
        %v10439 = vshrl.u32 %v10438, 7
        %v10440 = vsub.s32 1, %v10439
        %v10441 = vrot.slane %v9873, %v10440
        %v10442 = vlaneseq
        %v10443 = vshrl.u32 %v10442, 7
        %v10444 = vsub.s32 2, %v10443
        %v10445 = vrot.slane %v9873, %v10444
        %v10446 = vlaneseq
        %v10447 = vshrl.u32 %v10446, 7
        %v10448 = vsub.s32 3, %v10447
        %v10449 = vrot.slane %v9873, %v10448
        %v10450 = vlaneseq
        %v10451 = vshrl.u32 %v10450, 7
        %v10452 = vsub.s32 0, %v10451
        %v10453 = vrot.slane %v9875, %v10452
        %v10454 = vlaneseq
        %v10455 = vshrl.u32 %v10454, 7
        %v10456 = vsub.s32 1, %v10455
        %v10457 = vrot.slane %v9875, %v10456
        %v10458 = vlaneseq
        %v10459 = vshrl.u32 %v10458, 7
        %v10460 = vsub.s32 2, %v10459
        %v10461 = vrot.slane %v9875, %v10460
        %v10462 = vlaneseq
        %v10463 = vshrl.u32 %v10462, 7
        %v10464 = vsub.s32 3, %v10463
        %v10465 = vrot.slane %v9875, %v10464
        %v10466 = vlaneseq
        %v10467 = vshrl.u32 %v10466, 7
        %v10468 = vsub.s32 0, %v10467
        %v10469 = vrot.slane %v9877, %v10468
        %v10470 = vlaneseq
        %v10471 = vshrl.u32 %v10470, 7
        %v10472 = vsub.s32 1, %v10471
        %v10473 = vrot.slane %v9877, %v10472
        %v10474 = vlaneseq
        %v10475 = vshrl.u32 %v10474, 7
        %v10476 = vsub.s32 2, %v10475
        %v10477 = vrot.slane %v9877, %v10476
        %v10478 = vlaneseq
        %v10479 = vshrl.u32 %v10478, 7
        %v10480 = vsub.s32 3, %v10479
        %v10481 = vrot.slane %v9877, %v10480
        %v10482 = vlaneseq
        %v10483 = vshrl.u32 %v10482, 7
        %v10484 = vsub.s32 0, %v10483
        %v10485 = vrot.slane %v9920, %v10484
        %v10486 = vlaneseq
        %v10487 = vshrl.u32 %v10486, 7
        %v10488 = vsub.s32 1, %v10487
        %v10489 = vrot.slane %v9920, %v10488
        %v10490 = vlaneseq
        %v10491 = vshrl.u32 %v10490, 7
        %v10492 = vsub.s32 2, %v10491
        %v10493 = vrot.slane %v9920, %v10492
        %v10494 = vlaneseq
        %v10495 = vshrl.u32 %v10494, 7
        %v10496 = vsub.s32 3, %v10495
        %v10497 = vrot.slane %v9920, %v10496
        %v10498 = vlaneseq
        %v10499 = vshrl.u32 %v10498, 7
        %v10500 = vsub.s32 0, %v10499
        %v10501 = vrot.slane %v9934, %v10500
        %v10502 = vlaneseq
        %v10503 = vshrl.u32 %v10502, 7
        %v10504 = vsub.s32 1, %v10503
        %v10505 = vrot.slane %v9934, %v10504
        %v10506 = vlaneseq
        %v10507 = vshrl.u32 %v10506, 7
        %v10508 = vsub.s32 2, %v10507
        %v10509 = vrot.slane %v9934, %v10508
        %v10510 = vlaneseq
        %v10511 = vshrl.u32 %v10510, 7
        %v10512 = vsub.s32 3, %v10511
        %v10513 = vrot.slane %v9934, %v10512
        %v10514 = vlaneseq
        %v10515 = vshrl.u32 %v10514, 7
        %v10516 = vsub.s32 0, %v10515
        %v10517 = vrot.slane %v9942, %v10516
        %v10518 = vlaneseq
        %v10519 = vshrl.u32 %v10518, 7
        %v10520 = vsub.s32 1, %v10519
        %v10521 = vrot.slane %v9942, %v10520
        %v10522 = vlaneseq
        %v10523 = vshrl.u32 %v10522, 7
        %v10524 = vsub.s32 2, %v10523
        %v10525 = vrot.slane %v9942, %v10524
        %v10526 = vlaneseq
        %v10527 = vshrl.u32 %v10526, 7
        %v10528 = vsub.s32 3, %v10527
        %v10529 = vrot.slane %v9942, %v10528
        %v10530 = vlaneseq
        %v10531 = vshrl.u32 %v10530, 7
        %v10532 = vsub.s32 0, %v10531
        %v10533 = vrot.slane %v9944, %v10532
        %v10534 = vlaneseq
        %v10535 = vshrl.u32 %v10534, 7
        %v10536 = vsub.s32 1, %v10535
        %v10537 = vrot.slane %v9944, %v10536
        %v10538 = vlaneseq
        %v10539 = vshrl.u32 %v10538, 7
        %v10540 = vsub.s32 2, %v10539
        %v10541 = vrot.slane %v9944, %v10540
        %v10542 = vlaneseq
        %v10543 = vshrl.u32 %v10542, 7
        %v10544 = vsub.s32 3, %v10543
        %v10545 = vrot.slane %v9944, %v10544
        %v10546 = vlaneseq
        %v10547 = vshrl.u32 %v10546, 7
        %v10548 = vsub.s32 0, %v10547
        %v10549 = vrot.slane %v9927, %v10548
        %v10550 = vlaneseq
        %v10551 = vshrl.u32 %v10550, 7
        %v10552 = vsub.s32 1, %v10551
        %v10553 = vrot.slane %v9927, %v10552
        %v10554 = vlaneseq
        %v10555 = vshrl.u32 %v10554, 7
        %v10556 = vsub.s32 2, %v10555
        %v10557 = vrot.slane %v9927, %v10556
        %v10558 = vlaneseq
        %v10559 = vshrl.u32 %v10558, 7
        %v10560 = vsub.s32 3, %v10559
        %v10561 = vrot.slane %v9927, %v10560
        %v10562 = vlaneseq
        %v10563 = vshrl.u32 %v10562, 7
        %v10564 = vsub.s32 0, %v10563
        %v10565 = vrot.slane %v9941, %v10564
        %v10566 = vlaneseq
        %v10567 = vshrl.u32 %v10566, 7
        %v10568 = vsub.s32 1, %v10567
        %v10569 = vrot.slane %v9941, %v10568
        %v10570 = vlaneseq
        %v10571 = vshrl.u32 %v10570, 7
        %v10572 = vsub.s32 2, %v10571
        %v10573 = vrot.slane %v9941, %v10572
        %v10574 = vlaneseq
        %v10575 = vshrl.u32 %v10574, 7
        %v10576 = vsub.s32 3, %v10575
        %v10577 = vrot.slane %v9941, %v10576
        %v10578 = vlaneseq
        %v10579 = vshrl.u32 %v10578, 7
        %v10580 = vsub.s32 0, %v10579
        %v10581 = vrot.slane %v9943, %v10580
        %v10582 = vlaneseq
        %v10583 = vshrl.u32 %v10582, 7
        %v10584 = vsub.s32 1, %v10583
        %v10585 = vrot.slane %v9943, %v10584
        %v10586 = vlaneseq
        %v10587 = vshrl.u32 %v10586, 7
        %v10588 = vsub.s32 2, %v10587
        %v10589 = vrot.slane %v9943, %v10588
        %v10590 = vlaneseq
        %v10591 = vshrl.u32 %v10590, 7
        %v10592 = vsub.s32 3, %v10591
        %v10593 = vrot.slane %v9943, %v10592
        %v10594 = vlaneseq
        %v10595 = vshrl.u32 %v10594, 7
        %v10596 = vsub.s32 0, %v10595
        %v10597 = vrot.slane %v9945, %v10596
        %v10598 = vlaneseq
        %v10599 = vshrl.u32 %v10598, 7
        %v10600 = vsub.s32 1, %v10599
        %v10601 = vrot.slane %v9945, %v10600
        %v10602 = vlaneseq
        %v10603 = vshrl.u32 %v10602, 7
        %v10604 = vsub.s32 2, %v10603
        %v10605 = vrot.slane %v9945, %v10604
        %v10606 = vlaneseq
        %v10607 = vshrl.u32 %v10606, 7
        %v10608 = vsub.s32 3, %v10607
        %v10609 = vrot.slane %v9945, %v10608
        %v10610 = vlaneseq
        %v10611 = vshrl.u32 %v10610, 7
        %v10612 = vsub.s32 0, %v10611
        %v10613 = vrot.slane %v9988, %v10612
        %v10614 = vlaneseq
        %v10615 = vshrl.u32 %v10614, 7
        %v10616 = vsub.s32 1, %v10615
        %v10617 = vrot.slane %v9988, %v10616
        %v10618 = vlaneseq
        %v10619 = vshrl.u32 %v10618, 7
        %v10620 = vsub.s32 2, %v10619
        %v10621 = vrot.slane %v9988, %v10620
        %v10622 = vlaneseq
        %v10623 = vshrl.u32 %v10622, 7
        %v10624 = vsub.s32 3, %v10623
        %v10625 = vrot.slane %v9988, %v10624
        %v10626 = vlaneseq
        %v10627 = vshrl.u32 %v10626, 7
        %v10628 = vsub.s32 0, %v10627
        %v10629 = vrot.slane %v10002, %v10628
        %v10630 = vlaneseq
        %v10631 = vshrl.u32 %v10630, 7
        %v10632 = vsub.s32 1, %v10631
        %v10633 = vrot.slane %v10002, %v10632
        %v10634 = vlaneseq
        %v10635 = vshrl.u32 %v10634, 7
        %v10636 = vsub.s32 2, %v10635
        %v10637 = vrot.slane %v10002, %v10636
        %v10638 = vlaneseq
        %v10639 = vshrl.u32 %v10638, 7
        %v10640 = vsub.s32 3, %v10639
        %v10641 = vrot.slane %v10002, %v10640
        %v10642 = vlaneseq
        %v10643 = vshrl.u32 %v10642, 7
        %v10644 = vsub.s32 0, %v10643
        %v10645 = vrot.slane %v10010, %v10644
        %v10646 = vlaneseq
        %v10647 = vshrl.u32 %v10646, 7
        %v10648 = vsub.s32 1, %v10647
        %v10649 = vrot.slane %v10010, %v10648
        %v10650 = vlaneseq
        %v10651 = vshrl.u32 %v10650, 7
        %v10652 = vsub.s32 2, %v10651
        %v10653 = vrot.slane %v10010, %v10652
        %v10654 = vlaneseq
        %v10655 = vshrl.u32 %v10654, 7
        %v10656 = vsub.s32 3, %v10655
        %v10657 = vrot.slane %v10010, %v10656
        %v10658 = vlaneseq
        %v10659 = vshrl.u32 %v10658, 7
        %v10660 = vsub.s32 0, %v10659
        %v10661 = vrot.slane %v10012, %v10660
        %v10662 = vlaneseq
        %v10663 = vshrl.u32 %v10662, 7
        %v10664 = vsub.s32 1, %v10663
        %v10665 = vrot.slane %v10012, %v10664
        %v10666 = vlaneseq
        %v10667 = vshrl.u32 %v10666, 7
        %v10668 = vsub.s32 2, %v10667
        %v10669 = vrot.slane %v10012, %v10668
        %v10670 = vlaneseq
        %v10671 = vshrl.u32 %v10670, 7
        %v10672 = vsub.s32 3, %v10671
        %v10673 = vrot.slane %v10012, %v10672
        %v10674 = vlaneseq
        %v10675 = vshrl.u32 %v10674, 7
        %v10676 = vsub.s32 0, %v10675
        %v10677 = vrot.slane %v9995, %v10676
        %v10678 = vlaneseq
        %v10679 = vshrl.u32 %v10678, 7
        %v10680 = vsub.s32 1, %v10679
        %v10681 = vrot.slane %v9995, %v10680
        %v10682 = vlaneseq
        %v10683 = vshrl.u32 %v10682, 7
        %v10684 = vsub.s32 2, %v10683
        %v10685 = vrot.slane %v9995, %v10684
        %v10686 = vlaneseq
        %v10687 = vshrl.u32 %v10686, 7
        %v10688 = vsub.s32 3, %v10687
        %v10689 = vrot.slane %v9995, %v10688
        %v10690 = vlaneseq
        %v10691 = vshrl.u32 %v10690, 7
        %v10692 = vsub.s32 0, %v10691
        %v10693 = vrot.slane %v10009, %v10692
        %v10694 = vlaneseq
        %v10695 = vshrl.u32 %v10694, 7
        %v10696 = vsub.s32 1, %v10695
        %v10697 = vrot.slane %v10009, %v10696
        %v10698 = vlaneseq
        %v10699 = vshrl.u32 %v10698, 7
        %v10700 = vsub.s32 2, %v10699
        %v10701 = vrot.slane %v10009, %v10700
        %v10702 = vlaneseq
        %v10703 = vshrl.u32 %v10702, 7
        %v10704 = vsub.s32 3, %v10703
        %v10705 = vrot.slane %v10009, %v10704
        %v10706 = vlaneseq
        %v10707 = vshrl.u32 %v10706, 7
        %v10708 = vsub.s32 0, %v10707
        %v10709 = vrot.slane %v10011, %v10708
        %v10710 = vlaneseq
        %v10711 = vshrl.u32 %v10710, 7
        %v10712 = vsub.s32 1, %v10711
        %v10713 = vrot.slane %v10011, %v10712
        %v10714 = vlaneseq
        %v10715 = vshrl.u32 %v10714, 7
        %v10716 = vsub.s32 2, %v10715
        %v10717 = vrot.slane %v10011, %v10716
        %v10718 = vlaneseq
        %v10719 = vshrl.u32 %v10718, 7
        %v10720 = vsub.s32 3, %v10719
        %v10721 = vrot.slane %v10011, %v10720
        %v10722 = vlaneseq
        %v10723 = vshrl.u32 %v10722, 7
        %v10724 = vsub.s32 0, %v10723
        %v10725 = vrot.slane %v10013, %v10724
        %v10726 = vlaneseq
        %v10727 = vshrl.u32 %v10726, 7
        %v10728 = vsub.s32 1, %v10727
        %v10729 = vrot.slane %v10013, %v10728
        %v10730 = vlaneseq
        %v10731 = vshrl.u32 %v10730, 7
        %v10732 = vsub.s32 2, %v10731
        %v10733 = vrot.slane %v10013, %v10732
        %v10734 = vlaneseq
        %v10735 = vshrl.u32 %v10734, 7
        %v10736 = vsub.s32 3, %v10735
        %v10737 = vrot.slane %v10013, %v10736
        %v10738 = vlaneseq
        %v10739 = vshrl.u32 %v10738, 7
        %v10740 = vsub.s32 0, %v10739
        %v10741 = vrot.slane %v10056, %v10740
        %v10742 = vlaneseq
        %v10743 = vshrl.u32 %v10742, 7
        %v10744 = vsub.s32 1, %v10743
        %v10745 = vrot.slane %v10056, %v10744
        %v10746 = vlaneseq
        %v10747 = vshrl.u32 %v10746, 7
        %v10748 = vsub.s32 2, %v10747
        %v10749 = vrot.slane %v10056, %v10748
        %v10750 = vlaneseq
        %v10751 = vshrl.u32 %v10750, 7
        %v10752 = vsub.s32 3, %v10751
        %v10753 = vrot.slane %v10056, %v10752
        %v10754 = vlaneseq
        %v10755 = vshrl.u32 %v10754, 7
        %v10756 = vsub.s32 0, %v10755
        %v10757 = vrot.slane %v10070, %v10756
        %v10758 = vlaneseq
        %v10759 = vshrl.u32 %v10758, 7
        %v10760 = vsub.s32 1, %v10759
        %v10761 = vrot.slane %v10070, %v10760
        %v10762 = vlaneseq
        %v10763 = vshrl.u32 %v10762, 7
        %v10764 = vsub.s32 2, %v10763
        %v10765 = vrot.slane %v10070, %v10764
        %v10766 = vlaneseq
        %v10767 = vshrl.u32 %v10766, 7
        %v10768 = vsub.s32 3, %v10767
        %v10769 = vrot.slane %v10070, %v10768
        %v10770 = vlaneseq
        %v10771 = vshrl.u32 %v10770, 7
        %v10772 = vsub.s32 0, %v10771
        %v10773 = vrot.slane %v10078, %v10772
        %v10774 = vlaneseq
        %v10775 = vshrl.u32 %v10774, 7
        %v10776 = vsub.s32 1, %v10775
        %v10777 = vrot.slane %v10078, %v10776
        %v10778 = vlaneseq
        %v10779 = vshrl.u32 %v10778, 7
        %v10780 = vsub.s32 2, %v10779
        %v10781 = vrot.slane %v10078, %v10780
        %v10782 = vlaneseq
        %v10783 = vshrl.u32 %v10782, 7
        %v10784 = vsub.s32 3, %v10783
        %v10785 = vrot.slane %v10078, %v10784
        %v10786 = vlaneseq
        %v10787 = vshrl.u32 %v10786, 7
        %v10788 = vsub.s32 0, %v10787
        %v10789 = vrot.slane %v10080, %v10788
        %v10790 = vlaneseq
        %v10791 = vshrl.u32 %v10790, 7
        %v10792 = vsub.s32 1, %v10791
        %v10793 = vrot.slane %v10080, %v10792
        %v10794 = vlaneseq
        %v10795 = vshrl.u32 %v10794, 7
        %v10796 = vsub.s32 2, %v10795
        %v10797 = vrot.slane %v10080, %v10796
        %v10798 = vlaneseq
        %v10799 = vshrl.u32 %v10798, 7
        %v10800 = vsub.s32 3, %v10799
        %v10801 = vrot.slane %v10080, %v10800
        %v10802 = vlaneseq
        %v10803 = vshrl.u32 %v10802, 7
        %v10804 = vsub.s32 0, %v10803
        %v10805 = vrot.slane %v10063, %v10804
        %v10806 = vlaneseq
        %v10807 = vshrl.u32 %v10806, 7
        %v10808 = vsub.s32 1, %v10807
        %v10809 = vrot.slane %v10063, %v10808
        %v10810 = vlaneseq
        %v10811 = vshrl.u32 %v10810, 7
        %v10812 = vsub.s32 2, %v10811
        %v10813 = vrot.slane %v10063, %v10812
        %v10814 = vlaneseq
        %v10815 = vshrl.u32 %v10814, 7
        %v10816 = vsub.s32 3, %v10815
        %v10817 = vrot.slane %v10063, %v10816
        %v10818 = vlaneseq
        %v10819 = vshrl.u32 %v10818, 7
        %v10820 = vsub.s32 0, %v10819
        %v10821 = vrot.slane %v10077, %v10820
        %v10822 = vlaneseq
        %v10823 = vshrl.u32 %v10822, 7
        %v10824 = vsub.s32 1, %v10823
        %v10825 = vrot.slane %v10077, %v10824
        %v10826 = vlaneseq
        %v10827 = vshrl.u32 %v10826, 7
        %v10828 = vsub.s32 2, %v10827
        %v10829 = vrot.slane %v10077, %v10828
        %v10830 = vlaneseq
        %v10831 = vshrl.u32 %v10830, 7
        %v10832 = vsub.s32 3, %v10831
        %v10833 = vrot.slane %v10077, %v10832
        %v10834 = vlaneseq
        %v10835 = vshrl.u32 %v10834, 7
        %v10836 = vsub.s32 0, %v10835
        %v10837 = vrot.slane %v10079, %v10836
        %v10838 = vlaneseq
        %v10839 = vshrl.u32 %v10838, 7
        %v10840 = vsub.s32 1, %v10839
        %v10841 = vrot.slane %v10079, %v10840
        %v10842 = vlaneseq
        %v10843 = vshrl.u32 %v10842, 7
        %v10844 = vsub.s32 2, %v10843
        %v10845 = vrot.slane %v10079, %v10844
        %v10846 = vlaneseq
        %v10847 = vshrl.u32 %v10846, 7
        %v10848 = vsub.s32 3, %v10847
        %v10849 = vrot.slane %v10079, %v10848
        %v10850 = vlaneseq
        %v10851 = vshrl.u32 %v10850, 7
        %v10852 = vsub.s32 0, %v10851
        %v10853 = vrot.slane %v10081, %v10852
        %v10854 = vlaneseq
        %v10855 = vshrl.u32 %v10854, 7
        %v10856 = vsub.s32 1, %v10855
        %v10857 = vrot.slane %v10081, %v10856
        %v10858 = vlaneseq
        %v10859 = vshrl.u32 %v10858, 7
        %v10860 = vsub.s32 2, %v10859
        %v10861 = vrot.slane %v10081, %v10860
        %v10862 = vlaneseq
        %v10863 = vshrl.u32 %v10862, 7
        %v10864 = vsub.s32 3, %v10863
        %v10865 = vrot.slane %v10081, %v10864
        %v10866 = vlaneseq
        %v10867 = vshrl.u32 %v10866, 7
        %v10868 = vsub.s32 0, %v10867
        %v10869 = vrot.slane %v10124, %v10868
        %v10870 = vlaneseq
        %v10871 = vshrl.u32 %v10870, 7
        %v10872 = vsub.s32 1, %v10871
        %v10873 = vrot.slane %v10124, %v10872
        %v10874 = vlaneseq
        %v10875 = vshrl.u32 %v10874, 7
        %v10876 = vsub.s32 2, %v10875
        %v10877 = vrot.slane %v10124, %v10876
        %v10878 = vlaneseq
        %v10879 = vshrl.u32 %v10878, 7
        %v10880 = vsub.s32 3, %v10879
        %v10881 = vrot.slane %v10124, %v10880
        %v10882 = vlaneseq
        %v10883 = vshrl.u32 %v10882, 7
        %v10884 = vsub.s32 0, %v10883
        %v10885 = vrot.slane %v10138, %v10884
        %v10886 = vlaneseq
        %v10887 = vshrl.u32 %v10886, 7
        %v10888 = vsub.s32 1, %v10887
        %v10889 = vrot.slane %v10138, %v10888
        %v10890 = vlaneseq
        %v10891 = vshrl.u32 %v10890, 7
        %v10892 = vsub.s32 2, %v10891
        %v10893 = vrot.slane %v10138, %v10892
        %v10894 = vlaneseq
        %v10895 = vshrl.u32 %v10894, 7
        %v10896 = vsub.s32 3, %v10895
        %v10897 = vrot.slane %v10138, %v10896
        %v10898 = vlaneseq
        %v10899 = vshrl.u32 %v10898, 7
        %v10900 = vsub.s32 0, %v10899
        %v10901 = vrot.slane %v10146, %v10900
        %v10902 = vlaneseq
        %v10903 = vshrl.u32 %v10902, 7
        %v10904 = vsub.s32 1, %v10903
        %v10905 = vrot.slane %v10146, %v10904
        %v10906 = vlaneseq
        %v10907 = vshrl.u32 %v10906, 7
        %v10908 = vsub.s32 2, %v10907
        %v10909 = vrot.slane %v10146, %v10908
        %v10910 = vlaneseq
        %v10911 = vshrl.u32 %v10910, 7
        %v10912 = vsub.s32 3, %v10911
        %v10913 = vrot.slane %v10146, %v10912
        %v10914 = vlaneseq
        %v10915 = vshrl.u32 %v10914, 7
        %v10916 = vsub.s32 0, %v10915
        %v10917 = vrot.slane %v10148, %v10916
        %v10918 = vlaneseq
        %v10919 = vshrl.u32 %v10918, 7
        %v10920 = vsub.s32 1, %v10919
        %v10921 = vrot.slane %v10148, %v10920
        %v10922 = vlaneseq
        %v10923 = vshrl.u32 %v10922, 7
        %v10924 = vsub.s32 2, %v10923
        %v10925 = vrot.slane %v10148, %v10924
        %v10926 = vlaneseq
        %v10927 = vshrl.u32 %v10926, 7
        %v10928 = vsub.s32 3, %v10927
        %v10929 = vrot.slane %v10148, %v10928
        %v10930 = vlaneseq
        %v10931 = vshrl.u32 %v10930, 7
        %v10932 = vsub.s32 0, %v10931
        %v10933 = vrot.slane %v10131, %v10932
        %v10934 = vlaneseq
        %v10935 = vshrl.u32 %v10934, 7
        %v10936 = vsub.s32 1, %v10935
        %v10937 = vrot.slane %v10131, %v10936
        %v10938 = vlaneseq
        %v10939 = vshrl.u32 %v10938, 7
        %v10940 = vsub.s32 2, %v10939
        %v10941 = vrot.slane %v10131, %v10940
        %v10942 = vlaneseq
        %v10943 = vshrl.u32 %v10942, 7
        %v10944 = vsub.s32 3, %v10943
        %v10945 = vrot.slane %v10131, %v10944
        %v10946 = vlaneseq
        %v10947 = vshrl.u32 %v10946, 7
        %v10948 = vsub.s32 0, %v10947
        %v10949 = vrot.slane %v10145, %v10948
        %v10950 = vlaneseq
        %v10951 = vshrl.u32 %v10950, 7
        %v10952 = vsub.s32 1, %v10951
        %v10953 = vrot.slane %v10145, %v10952
        %v10954 = vlaneseq
        %v10955 = vshrl.u32 %v10954, 7
        %v10956 = vsub.s32 2, %v10955
        %v10957 = vrot.slane %v10145, %v10956
        %v10958 = vlaneseq
        %v10959 = vshrl.u32 %v10958, 7
        %v10960 = vsub.s32 3, %v10959
        %v10961 = vrot.slane %v10145, %v10960
        %v10962 = vlaneseq
        %v10963 = vshrl.u32 %v10962, 7
        %v10964 = vsub.s32 0, %v10963
        %v10965 = vrot.slane %v10147, %v10964
        %v10966 = vlaneseq
        %v10967 = vshrl.u32 %v10966, 7
        %v10968 = vsub.s32 1, %v10967
        %v10969 = vrot.slane %v10147, %v10968
        %v10970 = vlaneseq
        %v10971 = vshrl.u32 %v10970, 7
        %v10972 = vsub.s32 2, %v10971
        %v10973 = vrot.slane %v10147, %v10972
        %v10974 = vlaneseq
        %v10975 = vshrl.u32 %v10974, 7
        %v10976 = vsub.s32 3, %v10975
        %v10977 = vrot.slane %v10147, %v10976
        %v10978 = vlaneseq
        %v10979 = vshrl.u32 %v10978, 7
        %v10980 = vsub.s32 0, %v10979
        %v10981 = vrot.slane %v10149, %v10980
        %v10982 = vlaneseq
        %v10983 = vshrl.u32 %v10982, 7
        %v10984 = vsub.s32 1, %v10983
        %v10985 = vrot.slane %v10149, %v10984
        %v10986 = vlaneseq
        %v10987 = vshrl.u32 %v10986, 7
        %v10988 = vsub.s32 2, %v10987
        %v10989 = vrot.slane %v10149, %v10988
        %v10990 = vlaneseq
        %v10991 = vshrl.u32 %v10990, 7
        %v10992 = vsub.s32 3, %v10991
        %v10993 = vrot.slane %v10149, %v10992
        %v10994 = vlaneseq
        %v10995 = vshrl.u32 %v10994, 7
        %v10996 = vsub.s32 0, %v10995
        %v10997 = vrot.slane %v10192, %v10996
        %v10998 = vlaneseq
        %v10999 = vshrl.u32 %v10998, 7
        %v11000 = vsub.s32 1, %v10999
        %v11001 = vrot.slane %v10192, %v11000
        %v11002 = vlaneseq
        %v11003 = vshrl.u32 %v11002, 7
        %v11004 = vsub.s32 2, %v11003
        %v11005 = vrot.slane %v10192, %v11004
        %v11006 = vlaneseq
        %v11007 = vshrl.u32 %v11006, 7
        %v11008 = vsub.s32 3, %v11007
        %v11009 = vrot.slane %v10192, %v11008
        %v11010 = vlaneseq
        %v11011 = vshrl.u32 %v11010, 7
        %v11012 = vsub.s32 0, %v11011
        %v11013 = vrot.slane %v10206, %v11012
        %v11014 = vlaneseq
        %v11015 = vshrl.u32 %v11014, 7
        %v11016 = vsub.s32 1, %v11015
        %v11017 = vrot.slane %v10206, %v11016
        %v11018 = vlaneseq
        %v11019 = vshrl.u32 %v11018, 7
        %v11020 = vsub.s32 2, %v11019
        %v11021 = vrot.slane %v10206, %v11020
        %v11022 = vlaneseq
        %v11023 = vshrl.u32 %v11022, 7
        %v11024 = vsub.s32 3, %v11023
        %v11025 = vrot.slane %v10206, %v11024
        %v11026 = vlaneseq
        %v11027 = vshrl.u32 %v11026, 7
        %v11028 = vsub.s32 0, %v11027
        %v11029 = vrot.slane %v10214, %v11028
        %v11030 = vlaneseq
        %v11031 = vshrl.u32 %v11030, 7
        %v11032 = vsub.s32 1, %v11031
        %v11033 = vrot.slane %v10214, %v11032
        %v11034 = vlaneseq
        %v11035 = vshrl.u32 %v11034, 7
        %v11036 = vsub.s32 2, %v11035
        %v11037 = vrot.slane %v10214, %v11036
        %v11038 = vlaneseq
        %v11039 = vshrl.u32 %v11038, 7
        %v11040 = vsub.s32 3, %v11039
        %v11041 = vrot.slane %v10214, %v11040
        %v11042 = vlaneseq
        %v11043 = vshrl.u32 %v11042, 7
        %v11044 = vsub.s32 0, %v11043
        %v11045 = vrot.slane %v10216, %v11044
        %v11046 = vlaneseq
        %v11047 = vshrl.u32 %v11046, 7
        %v11048 = vsub.s32 1, %v11047
        %v11049 = vrot.slane %v10216, %v11048
        %v11050 = vlaneseq
        %v11051 = vshrl.u32 %v11050, 7
        %v11052 = vsub.s32 2, %v11051
        %v11053 = vrot.slane %v10216, %v11052
        %v11054 = vlaneseq
        %v11055 = vshrl.u32 %v11054, 7
        %v11056 = vsub.s32 3, %v11055
        %v11057 = vrot.slane %v10216, %v11056
        %v11058 = vlaneseq
        %v11059 = vshrl.u32 %v11058, 7
        %v11060 = vsub.s32 0, %v11059
        %v11061 = vrot.slane %v10199, %v11060
        %v11062 = vlaneseq
        %v11063 = vshrl.u32 %v11062, 7
        %v11064 = vsub.s32 1, %v11063
        %v11065 = vrot.slane %v10199, %v11064
        %v11066 = vlaneseq
        %v11067 = vshrl.u32 %v11066, 7
        %v11068 = vsub.s32 2, %v11067
        %v11069 = vrot.slane %v10199, %v11068
        %v11070 = vlaneseq
        %v11071 = vshrl.u32 %v11070, 7
        %v11072 = vsub.s32 3, %v11071
        %v11073 = vrot.slane %v10199, %v11072
        %v11074 = vlaneseq
        %v11075 = vshrl.u32 %v11074, 7
        %v11076 = vsub.s32 0, %v11075
        %v11077 = vrot.slane %v10213, %v11076
        %v11078 = vlaneseq
        %v11079 = vshrl.u32 %v11078, 7
        %v11080 = vsub.s32 1, %v11079
        %v11081 = vrot.slane %v10213, %v11080
        %v11082 = vlaneseq
        %v11083 = vshrl.u32 %v11082, 7
        %v11084 = vsub.s32 2, %v11083
        %v11085 = vrot.slane %v10213, %v11084
        %v11086 = vlaneseq
        %v11087 = vshrl.u32 %v11086, 7
        %v11088 = vsub.s32 3, %v11087
        %v11089 = vrot.slane %v10213, %v11088
        %v11090 = vlaneseq
        %v11091 = vshrl.u32 %v11090, 7
        %v11092 = vsub.s32 0, %v11091
        %v11093 = vrot.slane %v10215, %v11092
        %v11094 = vlaneseq
        %v11095 = vshrl.u32 %v11094, 7
        %v11096 = vsub.s32 1, %v11095
        %v11097 = vrot.slane %v10215, %v11096
        %v11098 = vlaneseq
        %v11099 = vshrl.u32 %v11098, 7
        %v11100 = vsub.s32 2, %v11099
        %v11101 = vrot.slane %v10215, %v11100
        %v11102 = vlaneseq
        %v11103 = vshrl.u32 %v11102, 7
        %v11104 = vsub.s32 3, %v11103
        %v11105 = vrot.slane %v10215, %v11104
        %v11106 = vlaneseq
        %v11107 = vshrl.u32 %v11106, 7
        %v11108 = vsub.s32 0, %v11107
        %v11109 = vrot.slane %v10217, %v11108
        %v11110 = vlaneseq
        %v11111 = vshrl.u32 %v11110, 7
        %v11112 = vsub.s32 1, %v11111
        %v11113 = vrot.slane %v10217, %v11112
        %v11114 = vlaneseq
        %v11115 = vshrl.u32 %v11114, 7
        %v11116 = vsub.s32 2, %v11115
        %v11117 = vrot.slane %v10217, %v11116
        %v11118 = vlaneseq
        %v11119 = vshrl.u32 %v11118, 7
        %v11120 = vsub.s32 3, %v11119
        %v11121 = vrot.slane %v10217, %v11120
        %v11122 = vlaneseq
        %v11123 = vshrl.u32 %v11122, 7
        %v11124 = vsub.s32 0, %v11123
        %v11125 = vrot.slane %v10260, %v11124
        %v11126 = vlaneseq
        %v11127 = vshrl.u32 %v11126, 7
        %v11128 = vsub.s32 1, %v11127
        %v11129 = vrot.slane %v10260, %v11128
        %v11130 = vlaneseq
        %v11131 = vshrl.u32 %v11130, 7
        %v11132 = vsub.s32 2, %v11131
        %v11133 = vrot.slane %v10260, %v11132
        %v11134 = vlaneseq
        %v11135 = vshrl.u32 %v11134, 7
        %v11136 = vsub.s32 3, %v11135
        %v11137 = vrot.slane %v10260, %v11136
        %v11138 = vlaneseq
        %v11139 = vshrl.u32 %v11138, 7
        %v11140 = vsub.s32 0, %v11139
        %v11141 = vrot.slane %v10274, %v11140
        %v11142 = vlaneseq
        %v11143 = vshrl.u32 %v11142, 7
        %v11144 = vsub.s32 1, %v11143
        %v11145 = vrot.slane %v10274, %v11144
        %v11146 = vlaneseq
        %v11147 = vshrl.u32 %v11146, 7
        %v11148 = vsub.s32 2, %v11147
        %v11149 = vrot.slane %v10274, %v11148
        %v11150 = vlaneseq
        %v11151 = vshrl.u32 %v11150, 7
        %v11152 = vsub.s32 3, %v11151
        %v11153 = vrot.slane %v10274, %v11152
        %v11154 = vlaneseq
        %v11155 = vshrl.u32 %v11154, 7
        %v11156 = vsub.s32 0, %v11155
        %v11157 = vrot.slane %v10282, %v11156
        %v11158 = vlaneseq
        %v11159 = vshrl.u32 %v11158, 7
        %v11160 = vsub.s32 1, %v11159
        %v11161 = vrot.slane %v10282, %v11160
        %v11162 = vlaneseq
        %v11163 = vshrl.u32 %v11162, 7
        %v11164 = vsub.s32 2, %v11163
        %v11165 = vrot.slane %v10282, %v11164
        %v11166 = vlaneseq
        %v11167 = vshrl.u32 %v11166, 7
        %v11168 = vsub.s32 3, %v11167
        %v11169 = vrot.slane %v10282, %v11168
        %v11170 = vlaneseq
        %v11171 = vshrl.u32 %v11170, 7
        %v11172 = vsub.s32 0, %v11171
        %v11173 = vrot.slane %v10284, %v11172
        %v11174 = vlaneseq
        %v11175 = vshrl.u32 %v11174, 7
        %v11176 = vsub.s32 1, %v11175
        %v11177 = vrot.slane %v10284, %v11176
        %v11178 = vlaneseq
        %v11179 = vshrl.u32 %v11178, 7
        %v11180 = vsub.s32 2, %v11179
        %v11181 = vrot.slane %v10284, %v11180
        %v11182 = vlaneseq
        %v11183 = vshrl.u32 %v11182, 7
        %v11184 = vsub.s32 3, %v11183
        %v11185 = vrot.slane %v10284, %v11184
        %v11186 = vlaneseq
        %v11187 = vshrl.u32 %v11186, 7
        %v11188 = vsub.s32 0, %v11187
        %v11189 = vrot.slane %v10267, %v11188
        %v11190 = vlaneseq
        %v11191 = vshrl.u32 %v11190, 7
        %v11192 = vsub.s32 1, %v11191
        %v11193 = vrot.slane %v10267, %v11192
        %v11194 = vlaneseq
        %v11195 = vshrl.u32 %v11194, 7
        %v11196 = vsub.s32 2, %v11195
        %v11197 = vrot.slane %v10267, %v11196
        %v11198 = vlaneseq
        %v11199 = vshrl.u32 %v11198, 7
        %v11200 = vsub.s32 3, %v11199
        %v11201 = vrot.slane %v10267, %v11200
        %v11202 = vlaneseq
        %v11203 = vshrl.u32 %v11202, 7
        %v11204 = vsub.s32 0, %v11203
        %v11205 = vrot.slane %v10281, %v11204
        %v11206 = vlaneseq
        %v11207 = vshrl.u32 %v11206, 7
        %v11208 = vsub.s32 1, %v11207
        %v11209 = vrot.slane %v10281, %v11208
        %v11210 = vlaneseq
        %v11211 = vshrl.u32 %v11210, 7
        %v11212 = vsub.s32 2, %v11211
        %v11213 = vrot.slane %v10281, %v11212
        %v11214 = vlaneseq
        %v11215 = vshrl.u32 %v11214, 7
        %v11216 = vsub.s32 3, %v11215
        %v11217 = vrot.slane %v10281, %v11216
        %v11218 = vlaneseq
        %v11219 = vshrl.u32 %v11218, 7
        %v11220 = vsub.s32 0, %v11219
        %v11221 = vrot.slane %v10283, %v11220
        %v11222 = vlaneseq
        %v11223 = vshrl.u32 %v11222, 7
        %v11224 = vsub.s32 1, %v11223
        %v11225 = vrot.slane %v10283, %v11224
        %v11226 = vlaneseq
        %v11227 = vshrl.u32 %v11226, 7
        %v11228 = vsub.s32 2, %v11227
        %v11229 = vrot.slane %v10283, %v11228
        %v11230 = vlaneseq
        %v11231 = vshrl.u32 %v11230, 7
        %v11232 = vsub.s32 3, %v11231
        %v11233 = vrot.slane %v10283, %v11232
        %v11234 = vlaneseq
        %v11235 = vshrl.u32 %v11234, 7
        %v11236 = vsub.s32 0, %v11235
        %v11237 = vrot.slane %v10285, %v11236
        %v11238 = vlaneseq
        %v11239 = vshrl.u32 %v11238, 7
        %v11240 = vsub.s32 1, %v11239
        %v11241 = vrot.slane %v10285, %v11240
        %v11242 = vlaneseq
        %v11243 = vshrl.u32 %v11242, 7
        %v11244 = vsub.s32 2, %v11243
        %v11245 = vrot.slane %v10285, %v11244
        %v11246 = vlaneseq
        %v11247 = vshrl.u32 %v11246, 7
        %v11248 = vsub.s32 3, %v11247
        %v11249 = vrot.slane %v10285, %v11248
        %v11250 = vlaneseq
        %v11251 = vshrl.u32 %v11250, 7
        %v11252 = vsub.s32 0, %v11251
        %v11253 = vrot.slane %v10328, %v11252
        %v11254 = vlaneseq
        %v11255 = vshrl.u32 %v11254, 7
        %v11256 = vsub.s32 1, %v11255
        %v11257 = vrot.slane %v10328, %v11256
        %v11258 = vlaneseq
        %v11259 = vshrl.u32 %v11258, 7
        %v11260 = vsub.s32 2, %v11259
        %v11261 = vrot.slane %v10328, %v11260
        %v11262 = vlaneseq
        %v11263 = vshrl.u32 %v11262, 7
        %v11264 = vsub.s32 3, %v11263
        %v11265 = vrot.slane %v10328, %v11264
        %v11266 = vlaneseq
        %v11267 = vshrl.u32 %v11266, 7
        %v11268 = vsub.s32 0, %v11267
        %v11269 = vrot.slane %v10342, %v11268
        %v11270 = vlaneseq
        %v11271 = vshrl.u32 %v11270, 7
        %v11272 = vsub.s32 1, %v11271
        %v11273 = vrot.slane %v10342, %v11272
        %v11274 = vlaneseq
        %v11275 = vshrl.u32 %v11274, 7
        %v11276 = vsub.s32 2, %v11275
        %v11277 = vrot.slane %v10342, %v11276
        %v11278 = vlaneseq
        %v11279 = vshrl.u32 %v11278, 7
        %v11280 = vsub.s32 3, %v11279
        %v11281 = vrot.slane %v10342, %v11280
        %v11282 = vlaneseq
        %v11283 = vshrl.u32 %v11282, 7
        %v11284 = vsub.s32 0, %v11283
        %v11285 = vrot.slane %v10350, %v11284
        %v11286 = vlaneseq
        %v11287 = vshrl.u32 %v11286, 7
        %v11288 = vsub.s32 1, %v11287
        %v11289 = vrot.slane %v10350, %v11288
        %v11290 = vlaneseq
        %v11291 = vshrl.u32 %v11290, 7
        %v11292 = vsub.s32 2, %v11291
        %v11293 = vrot.slane %v10350, %v11292
        %v11294 = vlaneseq
        %v11295 = vshrl.u32 %v11294, 7
        %v11296 = vsub.s32 3, %v11295
        %v11297 = vrot.slane %v10350, %v11296
        %v11298 = vlaneseq
        %v11299 = vshrl.u32 %v11298, 7
        %v11300 = vsub.s32 0, %v11299
        %v11301 = vrot.slane %v10352, %v11300
        %v11302 = vlaneseq
        %v11303 = vshrl.u32 %v11302, 7
        %v11304 = vsub.s32 1, %v11303
        %v11305 = vrot.slane %v10352, %v11304
        %v11306 = vlaneseq
        %v11307 = vshrl.u32 %v11306, 7
        %v11308 = vsub.s32 2, %v11307
        %v11309 = vrot.slane %v10352, %v11308
        %v11310 = vlaneseq
        %v11311 = vshrl.u32 %v11310, 7
        %v11312 = vsub.s32 3, %v11311
        %v11313 = vrot.slane %v10352, %v11312
        %v11314 = vlaneseq
        %v11315 = vshrl.u32 %v11314, 7
        %v11316 = vsub.s32 0, %v11315
        %v11317 = vrot.slane %v10335, %v11316
        %v11318 = vlaneseq
        %v11319 = vshrl.u32 %v11318, 7
        %v11320 = vsub.s32 1, %v11319
        %v11321 = vrot.slane %v10335, %v11320
        %v11322 = vlaneseq
        %v11323 = vshrl.u32 %v11322, 7
        %v11324 = vsub.s32 2, %v11323
        %v11325 = vrot.slane %v10335, %v11324
        %v11326 = vlaneseq
        %v11327 = vshrl.u32 %v11326, 7
        %v11328 = vsub.s32 3, %v11327
        %v11329 = vrot.slane %v10335, %v11328
        %v11330 = vlaneseq
        %v11331 = vshrl.u32 %v11330, 7
        %v11332 = vsub.s32 0, %v11331
        %v11333 = vrot.slane %v10349, %v11332
        %v11334 = vlaneseq
        %v11335 = vshrl.u32 %v11334, 7
        %v11336 = vsub.s32 1, %v11335
        %v11337 = vrot.slane %v10349, %v11336
        %v11338 = vlaneseq
        %v11339 = vshrl.u32 %v11338, 7
        %v11340 = vsub.s32 2, %v11339
        %v11341 = vrot.slane %v10349, %v11340
        %v11342 = vlaneseq
        %v11343 = vshrl.u32 %v11342, 7
        %v11344 = vsub.s32 3, %v11343
        %v11345 = vrot.slane %v10349, %v11344
        %v11346 = vlaneseq
        %v11347 = vshrl.u32 %v11346, 7
        %v11348 = vsub.s32 0, %v11347
        %v11349 = vrot.slane %v10351, %v11348
        %v11350 = vlaneseq
        %v11351 = vshrl.u32 %v11350, 7
        %v11352 = vsub.s32 1, %v11351
        %v11353 = vrot.slane %v10351, %v11352
        %v11354 = vlaneseq
        %v11355 = vshrl.u32 %v11354, 7
        %v11356 = vsub.s32 2, %v11355
        %v11357 = vrot.slane %v10351, %v11356
        %v11358 = vlaneseq
        %v11359 = vshrl.u32 %v11358, 7
        %v11360 = vsub.s32 3, %v11359
        %v11361 = vrot.slane %v10351, %v11360
        %v11362 = vlaneseq
        %v11363 = vshrl.u32 %v11362, 7
        %v11364 = vsub.s32 0, %v11363
        %v11365 = vrot.slane %v10353, %v11364
        %v11366 = vlaneseq
        %v11367 = vshrl.u32 %v11366, 7
        %v11368 = vsub.s32 1, %v11367
        %v11369 = vrot.slane %v10353, %v11368
        %v11370 = vlaneseq
        %v11371 = vshrl.u32 %v11370, 7
        %v11372 = vsub.s32 2, %v11371
        %v11373 = vrot.slane %v10353, %v11372
        %v11374 = vlaneseq
        %v11375 = vshrl.u32 %v11374, 7
        %v11376 = vsub.s32 3, %v11375
        %v11377 = vrot.slane %v10353, %v11376
        %v11634 = vmul.f32 %v10357, %v9510
        %v11635 = vmul.f32 %v10361, %v9511
        %v11636 = vmul.f32 %v10365, %v9512
        %v11637 = vmul.f32 %v10369, %v9513
        %v11638 = vmul.f32 %v10373, %v9510
        %v11639 = vmul.f32 %v10377, %v9511
        %v11640 = vmul.f32 %v10381, %v9512
        %v11641 = vmul.f32 %v10385, %v9513
        %v11642 = vmul.f32 %v10389, %v9510
        %v11643 = vmul.f32 %v10393, %v9511
        %v11644 = vmul.f32 %v10397, %v9512
        %v11645 = vmul.f32 %v10401, %v9513
        %v11646 = vmul.f32 %v10405, %v9510
        %v11647 = vmul.f32 %v10409, %v9511
        %v11648 = vmul.f32 %v10413, %v9512
        %v11649 = vmul.f32 %v10417, %v9513
        %v11650 = vmul.f32 %v10421, %v9510
        %v11651 = vmul.f32 %v10425, %v9511
        %v11652 = vmul.f32 %v10429, %v9512
        %v11653 = vmul.f32 %v10433, %v9513
        %v11654 = vmul.f32 %v10437, %v9510
        %v11655 = vmul.f32 %v10441, %v9511
        %v11656 = vmul.f32 %v10445, %v9512
        %v11657 = vmul.f32 %v10449, %v9513
        %v11658 = vmul.f32 %v10453, %v9510
        %v11659 = vmul.f32 %v10457, %v9511
        %v11660 = vmul.f32 %v10461, %v9512
        %v11661 = vmul.f32 %v10465, %v9513
        %v11662 = vmul.f32 %v10469, %v9510
        %v11663 = vmul.f32 %v10473, %v9511
        %v11664 = vmul.f32 %v10477, %v9512
        %v11665 = vmul.f32 %v10481, %v9513
        %v11666 = vmul.f32 %v10485, %v9510
        %v11667 = vmul.f32 %v10489, %v9511
        %v11668 = vmul.f32 %v10493, %v9512
        %v11669 = vmul.f32 %v10497, %v9513
        %v11670 = vmul.f32 %v10501, %v9510
        %v11671 = vmul.f32 %v10505, %v9511
        %v11672 = vmul.f32 %v10509, %v9512
        %v11673 = vmul.f32 %v10513, %v9513
        %v11674 = vmul.f32 %v10517, %v9510
        %v11675 = vmul.f32 %v10521, %v9511
        %v11676 = vmul.f32 %v10525, %v9512
        %v11677 = vmul.f32 %v10529, %v9513
        %v11678 = vmul.f32 %v10533, %v9510
        %v11679 = vmul.f32 %v10537, %v9511
        %v11680 = vmul.f32 %v10541, %v9512
        %v11681 = vmul.f32 %v10545, %v9513
        %v11682 = vmul.f32 %v10549, %v9510
        %v11683 = vmul.f32 %v10553, %v9511
        %v11684 = vmul.f32 %v10557, %v9512
        %v11685 = vmul.f32 %v10561, %v9513
        %v11686 = vmul.f32 %v10565, %v9510
        %v11687 = vmul.f32 %v10569, %v9511
        %v11688 = vmul.f32 %v10573, %v9512
        %v11689 = vmul.f32 %v10577, %v9513
        %v11690 = vmul.f32 %v10581, %v9510
        %v11691 = vmul.f32 %v10585, %v9511
        %v11692 = vmul.f32 %v10589, %v9512
        %v11693 = vmul.f32 %v10593, %v9513
        %v11694 = vmul.f32 %v10597, %v9510
        %v11695 = vmul.f32 %v10601, %v9511
        %v11696 = vmul.f32 %v10605, %v9512
        %v11697 = vmul.f32 %v10609, %v9513
        %v11698 = vmul.f32 %v10613, %v9510
        %v11699 = vmul.f32 %v10617, %v9511
        %v11700 = vmul.f32 %v10621, %v9512
        %v11701 = vmul.f32 %v10625, %v9513
        %v11702 = vmul.f32 %v10629, %v9510
        %v11703 = vmul.f32 %v10633, %v9511
        %v11704 = vmul.f32 %v10637, %v9512
        %v11705 = vmul.f32 %v10641, %v9513
        %v11706 = vmul.f32 %v10645, %v9510
        %v11707 = vmul.f32 %v10649, %v9511
        %v11708 = vmul.f32 %v10653, %v9512
        %v11709 = vmul.f32 %v10657, %v9513
        %v11710 = vmul.f32 %v10661, %v9510
        %v11711 = vmul.f32 %v10665, %v9511
        %v11712 = vmul.f32 %v10669, %v9512
        %v11713 = vmul.f32 %v10673, %v9513
        %v11714 = vmul.f32 %v10677, %v9510
        %v11715 = vmul.f32 %v10681, %v9511
        %v11716 = vmul.f32 %v10685, %v9512
        %v11717 = vmul.f32 %v10689, %v9513
        %v11718 = vmul.f32 %v10693, %v9510
        %v11719 = vmul.f32 %v10697, %v9511
        %v11720 = vmul.f32 %v10701, %v9512
        %v11721 = vmul.f32 %v10705, %v9513
        %v11722 = vmul.f32 %v10709, %v9510
        %v11723 = vmul.f32 %v10713, %v9511
        %v11724 = vmul.f32 %v10717, %v9512
        %v11725 = vmul.f32 %v10721, %v9513
        %v11726 = vmul.f32 %v10725, %v9510
        %v11727 = vmul.f32 %v10729, %v9511
        %v11728 = vmul.f32 %v10733, %v9512
        %v11729 = vmul.f32 %v10737, %v9513
        %v11730 = vmul.f32 %v10741, %v9510
        %v11731 = vmul.f32 %v10745, %v9511
        %v11732 = vmul.f32 %v10749, %v9512
        %v11733 = vmul.f32 %v10753, %v9513
        %v11734 = vmul.f32 %v10757, %v9510
        %v11735 = vmul.f32 %v10761, %v9511
        %v11736 = vmul.f32 %v10765, %v9512
        %v11737 = vmul.f32 %v10769, %v9513
        %v11738 = vmul.f32 %v10773, %v9510
        %v11739 = vmul.f32 %v10777, %v9511
        %v11740 = vmul.f32 %v10781, %v9512
        %v11741 = vmul.f32 %v10785, %v9513
        %v11742 = vmul.f32 %v10789, %v9510
        %v11743 = vmul.f32 %v10793, %v9511
        %v11744 = vmul.f32 %v10797, %v9512
        %v11745 = vmul.f32 %v10801, %v9513
        %v11746 = vmul.f32 %v10805, %v9510
        %v11747 = vmul.f32 %v10809, %v9511
        %v11748 = vmul.f32 %v10813, %v9512
        %v11749 = vmul.f32 %v10817, %v9513
        %v11750 = vmul.f32 %v10821, %v9510
        %v11751 = vmul.f32 %v10825, %v9511
        %v11752 = vmul.f32 %v10829, %v9512
        %v11753 = vmul.f32 %v10833, %v9513
        %v11754 = vmul.f32 %v10837, %v9510
        %v11755 = vmul.f32 %v10841, %v9511
        %v11756 = vmul.f32 %v10845, %v9512
        %v11757 = vmul.f32 %v10849, %v9513
        %v11758 = vmul.f32 %v10853, %v9510
        %v11759 = vmul.f32 %v10857, %v9511
        %v11760 = vmul.f32 %v10861, %v9512
        %v11761 = vmul.f32 %v10865, %v9513
        %v11762 = vmul.f32 %v10869, %v9510
        %v11763 = vmul.f32 %v10873, %v9511
        %v11764 = vmul.f32 %v10877, %v9512
        %v11765 = vmul.f32 %v10881, %v9513
        %v11766 = vmul.f32 %v10885, %v9510
        %v11767 = vmul.f32 %v10889, %v9511
        %v11768 = vmul.f32 %v10893, %v9512
        %v11769 = vmul.f32 %v10897, %v9513
        %v11770 = vmul.f32 %v10901, %v9510
        %v11771 = vmul.f32 %v10905, %v9511
        %v11772 = vmul.f32 %v10909, %v9512
        %v11773 = vmul.f32 %v10913, %v9513
        %v11774 = vmul.f32 %v10917, %v9510
        %v11775 = vmul.f32 %v10921, %v9511
        %v11776 = vmul.f32 %v10925, %v9512
        %v11777 = vmul.f32 %v10929, %v9513
        %v11778 = vmul.f32 %v10933, %v9510
        %v11779 = vmul.f32 %v10937, %v9511
        %v11780 = vmul.f32 %v10941, %v9512
        %v11781 = vmul.f32 %v10945, %v9513
        %v11782 = vmul.f32 %v10949, %v9510
        %v11783 = vmul.f32 %v10953, %v9511
        %v11784 = vmul.f32 %v10957, %v9512
        %v11785 = vmul.f32 %v10961, %v9513
        %v11786 = vmul.f32 %v10965, %v9510
        %v11787 = vmul.f32 %v10969, %v9511
        %v11788 = vmul.f32 %v10973, %v9512
        %v11789 = vmul.f32 %v10977, %v9513
        %v11790 = vmul.f32 %v10981, %v9510
        %v11791 = vmul.f32 %v10985, %v9511
        %v11792 = vmul.f32 %v10989, %v9512
        %v11793 = vmul.f32 %v10993, %v9513
        %v11794 = vmul.f32 %v10997, %v9510
        %v11795 = vmul.f32 %v11001, %v9511
        %v11796 = vmul.f32 %v11005, %v9512
        %v11797 = vmul.f32 %v11009, %v9513
        %v11798 = vmul.f32 %v11013, %v9510
        %v11799 = vmul.f32 %v11017, %v9511
        %v11800 = vmul.f32 %v11021, %v9512
        %v11801 = vmul.f32 %v11025, %v9513
        %v11802 = vmul.f32 %v11029, %v9510
        %v11803 = vmul.f32 %v11033, %v9511
        %v11804 = vmul.f32 %v11037, %v9512
        %v11805 = vmul.f32 %v11041, %v9513
        %v11806 = vmul.f32 %v11045, %v9510
        %v11807 = vmul.f32 %v11049, %v9511
        %v11808 = vmul.f32 %v11053, %v9512
        %v11809 = vmul.f32 %v11057, %v9513
        %v11810 = vmul.f32 %v11061, %v9510
        %v11811 = vmul.f32 %v11065, %v9511
        %v11812 = vmul.f32 %v11069, %v9512
        %v11813 = vmul.f32 %v11073, %v9513
        %v11814 = vmul.f32 %v11077, %v9510
        %v11815 = vmul.f32 %v11081, %v9511
        %v11816 = vmul.f32 %v11085, %v9512
        %v11817 = vmul.f32 %v11089, %v9513
        %v11818 = vmul.f32 %v11093, %v9510
        %v11819 = vmul.f32 %v11097, %v9511
        %v11820 = vmul.f32 %v11101, %v9512
        %v11821 = vmul.f32 %v11105, %v9513
        %v11822 = vmul.f32 %v11109, %v9510
        %v11823 = vmul.f32 %v11113, %v9511
        %v11824 = vmul.f32 %v11117, %v9512
        %v11825 = vmul.f32 %v11121, %v9513
        %v11826 = vmul.f32 %v11125, %v9510
        %v11827 = vmul.f32 %v11129, %v9511
        %v11828 = vmul.f32 %v11133, %v9512
        %v11829 = vmul.f32 %v11137, %v9513
        %v11830 = vmul.f32 %v11141, %v9510
        %v11831 = vmul.f32 %v11145, %v9511
        %v11832 = vmul.f32 %v11149, %v9512
        %v11833 = vmul.f32 %v11153, %v9513
        %v11834 = vmul.f32 %v11157, %v9510
        %v11835 = vmul.f32 %v11161, %v9511
        %v11836 = vmul.f32 %v11165, %v9512
        %v11837 = vmul.f32 %v11169, %v9513
        %v11838 = vmul.f32 %v11173, %v9510
        %v11839 = vmul.f32 %v11177, %v9511
        %v11840 = vmul.f32 %v11181, %v9512
        %v11841 = vmul.f32 %v11185, %v9513
        %v11842 = vmul.f32 %v11189, %v9510
        %v11843 = vmul.f32 %v11193, %v9511
        %v11844 = vmul.f32 %v11197, %v9512
        %v11845 = vmul.f32 %v11201, %v9513
        %v11846 = vmul.f32 %v11205, %v9510
        %v11847 = vmul.f32 %v11209, %v9511
        %v11848 = vmul.f32 %v11213, %v9512
        %v11849 = vmul.f32 %v11217, %v9513
        %v11850 = vmul.f32 %v11221, %v9510
        %v11851 = vmul.f32 %v11225, %v9511
        %v11852 = vmul.f32 %v11229, %v9512
        %v11853 = vmul.f32 %v11233, %v9513
        %v11854 = vmul.f32 %v11237, %v9510
        %v11855 = vmul.f32 %v11241, %v9511
        %v11856 = vmul.f32 %v11245, %v9512
        %v11857 = vmul.f32 %v11249, %v9513
        %v11858 = vmul.f32 %v11253, %v9510
        %v11859 = vmul.f32 %v11257, %v9511
        %v11860 = vmul.f32 %v11261, %v9512
        %v11861 = vmul.f32 %v11265, %v9513
        %v11862 = vmul.f32 %v11269, %v9510
        %v11863 = vmul.f32 %v11273, %v9511
        %v11864 = vmul.f32 %v11277, %v9512
        %v11865 = vmul.f32 %v11281, %v9513
        %v11866 = vmul.f32 %v11285, %v9510
        %v11867 = vmul.f32 %v11289, %v9511
        %v11868 = vmul.f32 %v11293, %v9512
        %v11869 = vmul.f32 %v11297, %v9513
        %v11870 = vmul.f32 %v11301, %v9510
        %v11871 = vmul.f32 %v11305, %v9511
        %v11872 = vmul.f32 %v11309, %v9512
        %v11873 = vmul.f32 %v11313, %v9513
        %v11874 = vmul.f32 %v11317, %v9510
        %v11875 = vmul.f32 %v11321, %v9511
        %v11876 = vmul.f32 %v11325, %v9512
        %v11877 = vmul.f32 %v11329, %v9513
        %v11878 = vmul.f32 %v11333, %v9510
        %v11879 = vmul.f32 %v11337, %v9511
        %v11880 = vmul.f32 %v11341, %v9512
        %v11881 = vmul.f32 %v11345, %v9513
        %v11882 = vmul.f32 %v11349, %v9510
        %v11883 = vmul.f32 %v11353, %v9511
        %v11884 = vmul.f32 %v11357, %v9512
        %v11885 = vmul.f32 %v11361, %v9513
        %v11886 = vmul.f32 %v11365, %v9510
        %v11887 = vmul.f32 %v11369, %v9511
        %v11888 = vmul.f32 %v11373, %v9512
        %v11889 = vmul.f32 %v11377, %v9513
        %v11890 = vpack.c.bf16 %v11638, %v11634
        %v11891 = vpack.c.bf16 %v11639, %v11635
        %v11892 = vpack.c.bf16 %v11640, %v11636
        %v11893 = vpack.c.bf16 %v11641, %v11637
        %v11894 = vpack.c.bf16 %v11646, %v11642
        %v11895 = vpack.c.bf16 %v11647, %v11643
        %v11896 = vpack.c.bf16 %v11648, %v11644
        %v11897 = vpack.c.bf16 %v11649, %v11645
        %v11898 = vpack.c.bf16 %v11654, %v11650
        %v11899 = vpack.c.bf16 %v11655, %v11651
        %v11900 = vpack.c.bf16 %v11656, %v11652
        %v11901 = vpack.c.bf16 %v11657, %v11653
        %v11902 = vpack.c.bf16 %v11662, %v11658
        %v11903 = vpack.c.bf16 %v11663, %v11659
        %v11904 = vpack.c.bf16 %v11664, %v11660
        %v11905 = vpack.c.bf16 %v11665, %v11661
        %v11906 = vpack.c.bf16 %v11670, %v11666
        %v11907 = vpack.c.bf16 %v11671, %v11667
        %v11908 = vpack.c.bf16 %v11672, %v11668
        %v11909 = vpack.c.bf16 %v11673, %v11669
        %v11910 = vpack.c.bf16 %v11678, %v11674
        %v11911 = vpack.c.bf16 %v11679, %v11675
        %v11912 = vpack.c.bf16 %v11680, %v11676
        %v11913 = vpack.c.bf16 %v11681, %v11677
        %v11914 = vpack.c.bf16 %v11686, %v11682
        %v11915 = vpack.c.bf16 %v11687, %v11683
        %v11916 = vpack.c.bf16 %v11688, %v11684
        %v11917 = vpack.c.bf16 %v11689, %v11685
        %v11918 = vpack.c.bf16 %v11694, %v11690
        %v11919 = vpack.c.bf16 %v11695, %v11691
        %v11920 = vpack.c.bf16 %v11696, %v11692
        %v11921 = vpack.c.bf16 %v11697, %v11693
        %v11922 = vpack.c.bf16 %v11702, %v11698
        %v11923 = vpack.c.bf16 %v11703, %v11699
        %v11924 = vpack.c.bf16 %v11704, %v11700
        %v11925 = vpack.c.bf16 %v11705, %v11701
        %v11926 = vpack.c.bf16 %v11710, %v11706
        %v11927 = vpack.c.bf16 %v11711, %v11707
        %v11928 = vpack.c.bf16 %v11712, %v11708
        %v11929 = vpack.c.bf16 %v11713, %v11709
        %v11930 = vpack.c.bf16 %v11718, %v11714
        %v11931 = vpack.c.bf16 %v11719, %v11715
        %v11932 = vpack.c.bf16 %v11720, %v11716
        %v11933 = vpack.c.bf16 %v11721, %v11717
        %v11934 = vpack.c.bf16 %v11726, %v11722
        %v11935 = vpack.c.bf16 %v11727, %v11723
        %v11936 = vpack.c.bf16 %v11728, %v11724
        %v11937 = vpack.c.bf16 %v11729, %v11725
        %v11938 = vpack.c.bf16 %v11734, %v11730
        %v11939 = vpack.c.bf16 %v11735, %v11731
        %v11940 = vpack.c.bf16 %v11736, %v11732
        %v11941 = vpack.c.bf16 %v11737, %v11733
        %v11942 = vpack.c.bf16 %v11742, %v11738
        %v11943 = vpack.c.bf16 %v11743, %v11739
        %v11944 = vpack.c.bf16 %v11744, %v11740
        %v11945 = vpack.c.bf16 %v11745, %v11741
        %v11946 = vpack.c.bf16 %v11750, %v11746
        %v11947 = vpack.c.bf16 %v11751, %v11747
        %v11948 = vpack.c.bf16 %v11752, %v11748
        %v11949 = vpack.c.bf16 %v11753, %v11749
        %v11950 = vpack.c.bf16 %v11758, %v11754
        %v11951 = vpack.c.bf16 %v11759, %v11755
        %v11952 = vpack.c.bf16 %v11760, %v11756
        %v11953 = vpack.c.bf16 %v11761, %v11757
        %v11954 = vpack.c.bf16 %v11766, %v11762
        %v11955 = vpack.c.bf16 %v11767, %v11763
        %v11956 = vpack.c.bf16 %v11768, %v11764
        %v11957 = vpack.c.bf16 %v11769, %v11765
        %v11958 = vpack.c.bf16 %v11774, %v11770
        %v11959 = vpack.c.bf16 %v11775, %v11771
        %v11960 = vpack.c.bf16 %v11776, %v11772
        %v11961 = vpack.c.bf16 %v11777, %v11773
        %v11962 = vpack.c.bf16 %v11782, %v11778
        %v11963 = vpack.c.bf16 %v11783, %v11779
        %v11964 = vpack.c.bf16 %v11784, %v11780
        %v11965 = vpack.c.bf16 %v11785, %v11781
        %v11966 = vpack.c.bf16 %v11790, %v11786
        %v11967 = vpack.c.bf16 %v11791, %v11787
        %v11968 = vpack.c.bf16 %v11792, %v11788
        %v11969 = vpack.c.bf16 %v11793, %v11789
        %v11970 = vpack.c.bf16 %v11798, %v11794
        %v11971 = vpack.c.bf16 %v11799, %v11795
        %v11972 = vpack.c.bf16 %v11800, %v11796
        %v11973 = vpack.c.bf16 %v11801, %v11797
        %v11974 = vpack.c.bf16 %v11806, %v11802
        %v11975 = vpack.c.bf16 %v11807, %v11803
        %v11976 = vpack.c.bf16 %v11808, %v11804
        %v11977 = vpack.c.bf16 %v11809, %v11805
        %v11978 = vpack.c.bf16 %v11814, %v11810
        %v11979 = vpack.c.bf16 %v11815, %v11811
        %v11980 = vpack.c.bf16 %v11816, %v11812
        %v11981 = vpack.c.bf16 %v11817, %v11813
        %v11982 = vpack.c.bf16 %v11822, %v11818
        %v11983 = vpack.c.bf16 %v11823, %v11819
        %v11984 = vpack.c.bf16 %v11824, %v11820
        %v11985 = vpack.c.bf16 %v11825, %v11821
        %v11986 = vpack.c.bf16 %v11830, %v11826
        %v11987 = vpack.c.bf16 %v11831, %v11827
        %v11988 = vpack.c.bf16 %v11832, %v11828
        %v11989 = vpack.c.bf16 %v11833, %v11829
        %v11990 = vpack.c.bf16 %v11838, %v11834
        %v11991 = vpack.c.bf16 %v11839, %v11835
        %v11992 = vpack.c.bf16 %v11840, %v11836
        %v11993 = vpack.c.bf16 %v11841, %v11837
        %v11994 = vpack.c.bf16 %v11846, %v11842
        %v11995 = vpack.c.bf16 %v11847, %v11843
        %v11996 = vpack.c.bf16 %v11848, %v11844
        %v11997 = vpack.c.bf16 %v11849, %v11845
        %v11998 = vpack.c.bf16 %v11854, %v11850
        %v11999 = vpack.c.bf16 %v11855, %v11851
        %v12000 = vpack.c.bf16 %v11856, %v11852
        %v12001 = vpack.c.bf16 %v11857, %v11853
        %v12002 = vpack.c.bf16 %v11862, %v11858
        %v12003 = vpack.c.bf16 %v11863, %v11859
        %v12004 = vpack.c.bf16 %v11864, %v11860
        %v12005 = vpack.c.bf16 %v11865, %v11861
        %v12006 = vpack.c.bf16 %v11870, %v11866
        %v12007 = vpack.c.bf16 %v11871, %v11867
        %v12008 = vpack.c.bf16 %v11872, %v11868
        %v12009 = vpack.c.bf16 %v11873, %v11869
        %v12010 = vpack.c.bf16 %v11878, %v11874
        %v12011 = vpack.c.bf16 %v11879, %v11875
        %v12012 = vpack.c.bf16 %v11880, %v11876
        %v12013 = vpack.c.bf16 %v11881, %v11877
        %v12014 = vpack.c.bf16 %v11886, %v11882
        %v12015 = vpack.c.bf16 %v11887, %v11883
        %v12016 = vpack.c.bf16 %v11888, %v11884
        %v12017 = vpack.c.bf16 %v11889, %v11885
        %v12018 = vld [vmem:[#allocation5] sm:$0x88]
        %v12019 = vld [vmem:[#allocation5 + $0x8] sm:$0x88]
        %v12022 = vunpack.c.l.b16 %v12018
        %v12023 = vunpack.c.h.b16 %v12018
        %v12024 = vunpack.c.l.b16 %v12019
        %v12025 = vunpack.c.h.b16 %v12019
        %v12026 = vpack.c.b16 %v12022, %v12022
        %v12027 = vpack.c.b16 %v12023, %v12023
        %v12028 = vpack.c.b16 %v12024, %v12024
        %v12029 = vpack.c.b16 %v12025, %v12025
        %v12030 = vrot.slane %v12026, 3
        %v12031 = vrot.slane %v12027, 3
        %v12032 = vrot.slane %v12028, 3
        %v12033 = vrot.slane %v12029, 3
        %12038 = vmatprep.subr.bf16.mxu0 %v11919
        %12039 = vmatpush1.bf16.msra.mxu0 %v11918
        %12040 = vmatprep.subr.bf16.mxu0 %v11915
        %12041 = vmatpush1.bf16.msra.mxu0 %v11914
        %12042 = vmatprep.subr.bf16.mxu0 %v11911
        %12043 = vmatpush1.bf16.msra.mxu0 %v11910
        %12044 = vmatprep.subr.bf16.mxu0 %v11907
        %12045 = vmatpush1.bf16.msra.mxu0 %v11906
        %12046 = vmatprep.subr.bf16.mxu0 %v11903
        %12047 = vmatpush1.bf16.msra.mxu0 %v11902
        %12048 = vmatprep.subr.bf16.mxu0 %v11899
        %12049 = vmatpush1.bf16.msra.mxu0 %v11898
        %12050 = vmatprep.subr.bf16.mxu0 %v11895
        %12051 = vmatpush1.bf16.msra.mxu0 %v11894
        %12052 = vmatprep.subr.bf16.mxu0 %v11891
        %12053 = vmatpush1.bf16.msra.mxu0 %v11890
        %12054 = vmatprep.subr.bf16.mxu0 %v11951
        %12055 = vmatpush2.bf16.msra.mxu0 %v11950
        %12056 = vmatprep.subr.bf16.mxu0 %v11947
        %12057 = vmatpush2.bf16.msra.mxu0 %v11946
        %12058 = vmatprep.subr.bf16.mxu0 %v11943
        %12059 = vmatpush2.bf16.msra.mxu0 %v11942
        %12060 = vmatprep.subr.bf16.mxu0 %v11939
        %12061 = vmatpush2.bf16.msra.mxu0 %v11938
        %12062 = vmatprep.subr.bf16.mxu0 %v11935
        %12063 = vmatpush2.bf16.msra.mxu0 %v11934
        %12064 = vmatprep.subr.bf16.mxu0 %v11931
        %12065 = vmatpush2.bf16.msra.mxu0 %v11930
        %12066 = vmatprep.subr.bf16.mxu0 %v11927
        %12067 = vmatpush2.bf16.msra.mxu0 %v11926
        %12068 = vmatprep.subr.bf16.mxu0 %v11923
        %12069 = vmatpush2.bf16.msra.mxu0 %v11922
        %12070 = vmatprep.mubr.bf16.mxu0 %v12031
        %12071 = vmatmul.mubr.bf16.gmra.mxu0 %v12030
        %v12072 = vpop.f32.mrf.mxu0
        %v12073 = vadd.f32 0.0, %v12072
        %v12074 = vpop.f32.mrf.mxu0
        %v12075 = vadd.f32 0.0, %v12074
        %v12076 = vpop.f32.mrf.mxu0
        %v12077 = vpop.f32.mrf.mxu0
        %12078 = vdwg.mxu0
        %12079 = vmatprep.subr.bf16.mxu0 %v11983
        %12080 = vmatpush1.bf16.msra.mxu0 %v11982
        %12081 = vmatprep.subr.bf16.mxu0 %v11979
        %12082 = vmatpush1.bf16.msra.mxu0 %v11978
        %12083 = vmatprep.subr.bf16.mxu0 %v11975
        %12084 = vmatpush1.bf16.msra.mxu0 %v11974
        %12085 = vmatprep.subr.bf16.mxu0 %v11971
        %12086 = vmatpush1.bf16.msra.mxu0 %v11970
        %12087 = vmatprep.subr.bf16.mxu0 %v11967
        %12088 = vmatpush1.bf16.msra.mxu0 %v11966
        %12089 = vmatprep.subr.bf16.mxu0 %v11963
        %12090 = vmatpush1.bf16.msra.mxu0 %v11962
        %12091 = vmatprep.subr.bf16.mxu0 %v11959
        %12092 = vmatpush1.bf16.msra.mxu0 %v11958
        %12093 = vmatprep.subr.bf16.mxu0 %v11955
        %12094 = vmatpush1.bf16.msra.mxu0 %v11954
        %12095 = vmatprep.subr.bf16.mxu0 %v12015
        %12096 = vmatpush2.bf16.msra.mxu0 %v12014
        %12097 = vmatprep.subr.bf16.mxu0 %v12011
        %12098 = vmatpush2.bf16.msra.mxu0 %v12010
        %12099 = vmatprep.subr.bf16.mxu0 %v12007
        %12100 = vmatpush2.bf16.msra.mxu0 %v12006
        %12101 = vmatprep.subr.bf16.mxu0 %v12003
        %12102 = vmatpush2.bf16.msra.mxu0 %v12002
        %12103 = vmatprep.subr.bf16.mxu0 %v11999
        %12104 = vmatpush2.bf16.msra.mxu0 %v11998
        %12105 = vmatprep.subr.bf16.mxu0 %v11995
        %12106 = vmatpush2.bf16.msra.mxu0 %v11994
        %12107 = vmatprep.subr.bf16.mxu0 %v11991
        %12108 = vmatpush2.bf16.msra.mxu0 %v11990
        %12109 = vmatprep.subr.bf16.mxu0 %v11987
        %12110 = vmatpush2.bf16.msra.mxu0 %v11986
        %12111 = vmatprep.mubr.bf16.mxu0 %v12033
        %12112 = vmatmul.mubr.bf16.gmra.mxu0 %v12032
        %v12113 = vpop.f32.mrf.mxu0
        %v12114 = vadd.f32 %v12073, %v12113
        %v12115 = vpop.f32.mrf.mxu0
        %v12116 = vadd.f32 %v12075, %v12115
        %v12117 = vpop.f32.mrf.mxu0
        %v12118 = vpop.f32.mrf.mxu0
        %12119 = vdwg.mxu0
        %12120 = vmatprep.subr.bf16.mxu0 %v11921
        %12121 = vmatpush1.bf16.msra.mxu0 %v11920
        %12122 = vmatprep.subr.bf16.mxu0 %v11917
        %12123 = vmatpush1.bf16.msra.mxu0 %v11916
        %12124 = vmatprep.subr.bf16.mxu0 %v11913
        %12125 = vmatpush1.bf16.msra.mxu0 %v11912
        %12126 = vmatprep.subr.bf16.mxu0 %v11909
        %12127 = vmatpush1.bf16.msra.mxu0 %v11908
        %12128 = vmatprep.subr.bf16.mxu0 %v11905
        %12129 = vmatpush1.bf16.msra.mxu0 %v11904
        %12130 = vmatprep.subr.bf16.mxu0 %v11901
        %12131 = vmatpush1.bf16.msra.mxu0 %v11900
        %12132 = vmatprep.subr.bf16.mxu0 %v11897
        %12133 = vmatpush1.bf16.msra.mxu0 %v11896
        %12134 = vmatprep.subr.bf16.mxu0 %v11893
        %12135 = vmatpush1.bf16.msra.mxu0 %v11892
        %12136 = vmatprep.subr.bf16.mxu0 %v11953
        %12137 = vmatpush2.bf16.msra.mxu0 %v11952
        %12138 = vmatprep.subr.bf16.mxu0 %v11949
        %12139 = vmatpush2.bf16.msra.mxu0 %v11948
        %12140 = vmatprep.subr.bf16.mxu0 %v11945
        %12141 = vmatpush2.bf16.msra.mxu0 %v11944
        %12142 = vmatprep.subr.bf16.mxu0 %v11941
        %12143 = vmatpush2.bf16.msra.mxu0 %v11940
        %12144 = vmatprep.subr.bf16.mxu0 %v11937
        %12145 = vmatpush2.bf16.msra.mxu0 %v11936
        %12146 = vmatprep.subr.bf16.mxu0 %v11933
        %12147 = vmatpush2.bf16.msra.mxu0 %v11932
        %12148 = vmatprep.subr.bf16.mxu0 %v11929
        %12149 = vmatpush2.bf16.msra.mxu0 %v11928
        %12150 = vmatprep.subr.bf16.mxu0 %v11925
        %12151 = vmatpush2.bf16.msra.mxu0 %v11924
        %12152 = vmatprep.mubr.bf16.mxu0 %v12031
        %12153 = vmatmul.mubr.bf16.gmra.mxu0 %v12030
        %v12154 = vpop.f32.mrf.mxu0
        %v12155 = vadd.f32 0.0, %v12154
        %v12156 = vpop.f32.mrf.mxu0
        %v12157 = vadd.f32 0.0, %v12156
        %v12158 = vpop.f32.mrf.mxu0
        %v12159 = vpop.f32.mrf.mxu0
        %12160 = vdwg.mxu0
        %12161 = vmatprep.subr.bf16.mxu0 %v11985
        %12162 = vmatpush1.bf16.msra.mxu0 %v11984
        %12163 = vmatprep.subr.bf16.mxu0 %v11981
        %12164 = vmatpush1.bf16.msra.mxu0 %v11980
        %12165 = vmatprep.subr.bf16.mxu0 %v11977
        %12166 = vmatpush1.bf16.msra.mxu0 %v11976
        %12167 = vmatprep.subr.bf16.mxu0 %v11973
        %12168 = vmatpush1.bf16.msra.mxu0 %v11972
        %12169 = vmatprep.subr.bf16.mxu0 %v11969
        %12170 = vmatpush1.bf16.msra.mxu0 %v11968
        %12171 = vmatprep.subr.bf16.mxu0 %v11965
        %12172 = vmatpush1.bf16.msra.mxu0 %v11964
        %12173 = vmatprep.subr.bf16.mxu0 %v11961
        %12174 = vmatpush1.bf16.msra.mxu0 %v11960
        %12175 = vmatprep.subr.bf16.mxu0 %v11957
        %12176 = vmatpush1.bf16.msra.mxu0 %v11956
        %12177 = vmatprep.subr.bf16.mxu0 %v12017
        %12178 = vmatpush2.bf16.msra.mxu0 %v12016
        %12179 = vmatprep.subr.bf16.mxu0 %v12013
        %12180 = vmatpush2.bf16.msra.mxu0 %v12012
        %12181 = vmatprep.subr.bf16.mxu0 %v12009
        %12182 = vmatpush2.bf16.msra.mxu0 %v12008
        %12183 = vmatprep.subr.bf16.mxu0 %v12005
        %12184 = vmatpush2.bf16.msra.mxu0 %v12004
        %12185 = vmatprep.subr.bf16.mxu0 %v12001
        %12186 = vmatpush2.bf16.msra.mxu0 %v12000
        %12187 = vmatprep.subr.bf16.mxu0 %v11997
        %12188 = vmatpush2.bf16.msra.mxu0 %v11996
        %12189 = vmatprep.subr.bf16.mxu0 %v11993
        %12190 = vmatpush2.bf16.msra.mxu0 %v11992
        %12191 = vmatprep.subr.bf16.mxu0 %v11989
        %12192 = vmatpush2.bf16.msra.mxu0 %v11988
        %12193 = vmatprep.mubr.bf16.mxu0 %v12033
        %12194 = vmatmul.mubr.bf16.gmra.mxu0 %v12032
        %v12195 = vpop.f32.mrf.mxu0
        %v12196 = vadd.f32 %v12155, %v12195
        %v12197 = vpop.f32.mrf.mxu0
        %v12198 = vadd.f32 %v12157, %v12197
        %v12199 = vpop.f32.mrf.mxu0
        %v12200 = vpop.f32.mrf.mxu0
        %12201 = vdwg.mxu0
        %v12206 = vrot.slane %v12114, 2
        %v12207 = vrot.slane %v12116, 2
        %v12208 = vrot.slane %v12196, 2
        %v12209 = vrot.slane %v12198, 2
        %12214 = vst [vmem:[%s172] sm:$0xc0] %v12206
        %12215 = vst [vmem:[%s172 + $0x8] sm:$0xc0] %v12207
        %12216 = vst [vmem:[%s172 + $0x10] sm:$0xc0] %v12208
        %12217 = vst [vmem:[%s172 + $0x18] sm:$0xc0] %v12209
        %s12218 = sand.u32 %s75, 1
        %s12219 = scalar_lea.sflag [#allocation4], %s12218
        %s12220 = sand.u32 %s75, 1
        %s12221 = smul.addr %s12220, 32
        %s12222 = scalar_lea.vmem [#allocation7], %s12221
        // Predicated region
        $region37: #{tpu_custom_call.1} parent=27 // pred_check
          %p12223 = pneg %p85
        $region38: #{tpu_custom_call.1} parent=27 // pred_check_branch
          %12225 = sbr.rel (%p12223) target = $region40
        $region39: #{tpu_custom_call.1} parent=27 // pred_region
          %s12226 = smul.u32 4, %s20
          %s12228 = ssub.s32 512, 512
          %12229 = vsyncadd %s12219, %s12228
          %s12230 = smul.addr %s12226, 128
          %s12231 = scalar_lea.hbm %s2, %s12230
          %s12233 = sshll.u32 %s12222, 4
          %s12234 = int_to_ptr.vmem [resolvable:$true] %s12233
          %12236 = dma.vmem_to_hbm [thread:$0]  %s12234, 512, %s12231, %s12219
        $region40: #{tpu_custom_call.1} parent=27 // pred_fallthru
          _
      $region28: #{tpu_custom_call.1} parent=5 // pred_fallthru
        _
      %p12237 = scmp.le.s32.totalorder 2, %s15
      // Predicated region
      $region41: #{tpu_custom_call.1} parent=5 // pred_check
        %p12238 = pneg %p12237
      $region42: #{tpu_custom_call.1} parent=5 // pred_check_branch
        %12240 = sbr.rel (%p12238) target = $region44
      $region43: #{tpu_custom_call.1} parent=5 // pred_region
        %s12241 = ssub.s32 %s15, 2
        // Predicated region
        $region45: #{tpu_custom_call.1} parent=43 // pred_check
          %p12242 = pneg %p91
        $region46: #{tpu_custom_call.1} parent=43 // pred_check_branch
          %12244 = sbr.rel (%p12242) target = $region48
        $region47: #{tpu_custom_call.1} parent=43 // pred_region
          %s12245 = sand.u32 %s76, 1
          %s12246 = scalar_lea.sflag [#allocation4], %s12245
          %s12247 = sand.u32 %s76, 1
          %s12248 = smul.addr %s12247, 32
          %s12249 = scalar_lea.vmem [#allocation7], %s12248
          %12250 = dma.done %s12246, 512
        $region48: #{tpu_custom_call.1} parent=43 // pred_fallthru
          _
      $region44: #{tpu_custom_call.1} parent=5 // pred_fallthru
        _
    $region6: #{tpu_custom_call.1} parent=1 // loop_footer
      %s19 = sadd.s32 1, %s15
    $region7: #{tpu_custom_call.1} parent=1 // loop_footer_branch
      %14 = sbr.rel target = $region3
    $region8: #{tpu_custom_call.1} parent=1 // loop_exit
      _
    %12251 = vsyncpa [#allocation3], 1
    %s12252 = scalar_lea.sflag [#allocation3], 1
    %12253 = vsyncpa %s12252, 1
    %12254 = vsyncpa [#allocation6], 1
    %12255 = vsyncpa [#allocation4], 1
    %s12256 = scalar_lea.sflag [#allocation4], 1
    %12257 = vsyncpa %s12256, 1

</llo_original>
